<compile_context>
chip_gen: v7x
topology: tpu7x:2x2x1
jax: 0.10.0
libtpu: 0.0.40
codegen_flags: <defaults>
</compile_context>

<pallas_src>
import functools

import jax
import jax.numpy as jnp
from jax.experimental import pallas as pl
from jax.experimental.pallas import tpu as pltpu

LATENT_DIM = 64
HIDDEN_DIM = 128
N_HIDDEN_LAYERS = 6          # fc2 .. fc7
COORD_PAD = 8                # 3 coords zero-padded to 8 lanes
MIN_TILE_N = 1024            # keeps the lane-dense out block sublane-aligned
MAX_TILE_N = 4096            # rows per grid step


def _decoder_kernel(x_ref, w1c_ref, b1_ref, ws_ref, bs_ref, w8_ref, b8_ref,
                    o_ref):
    t = x_ref.shape[0]                      # tile_n (static)
    nb = t // HIDDEN_DIM                    # number of 128-row chunks in tile

    # ---- layer 1: z already folded into b1_eff; coords via 3 broadcast FMAs ----
    x8 = x_ref[...]                                   # (T, 8) f32, lanes 0..2 live
    w1c = w1c_ref[...]                                # (8, 128) f32, rows 0..2 live
    h = (b1_ref[...]                                  # (1, 128) -> broadcast
         + x8[:, 0:1] * w1c[0:1, :]
         + x8[:, 1:2] * w1c[1:2, :]
         + x8[:, 2:3] * w1c[2:3, :])
    h = jnp.maximum(h, 0.0)                           # (T, 128) f32

    # ---- layers 2..7: bf16 operands on the MXU, f32 accumulate, f32 ReLU ----
    for li in range(N_HIDDEN_LAYERS):
        y = jnp.dot(h.astype(jnp.bfloat16), ws_ref[li],
                    preferred_element_type=jnp.float32)
        h = jnp.maximum(y + bs_ref[li], 0.0)          # (T, 128) f32

    # ---- layer 8: per-row lane reduction against W8's single live column ----
    # (T,128) -> (T//128,128,128) is a layout-free split of the sublane axis;
    # the lane reduce lands on the XLU and the (T//128, 128) result is stored
    # lane-dense (unmasked vst), replacing the old (T, 1) masked stores.
    h3 = h.reshape(nb, HIDDEN_DIM, HIDDEN_DIM)
    w8 = w8_ref[...].reshape(1, 1, HIDDEN_DIM)        # (1,1,128) f32
    s = jnp.sum(h3 * w8, axis=-1)                     # (T//128, 128) f32
    o_ref[...] = jnp.tanh(s + b8_ref[0, 0])           # scalar bias from SMEM


def _pick_tile_n(n):
    """Rows per grid step: multiple of 1024, <= MAX_TILE_N, >= 2 grid steps when possible."""
    n_chunks = int(pl.cdiv(n, MIN_TILE_N))
    tile_chunks = max(1, min(MAX_TILE_N // MIN_TILE_N, int(pl.cdiv(n_chunks, 2))))
    return tile_chunks * MIN_TILE_N


@functools.partial(jax.jit, static_argnames=("tile_n",))
def _decoder_forward_impl(z, x, params, tile_n):
    n = x.shape[0]
    n_pad = int(pl.cdiv(n, tile_n)) * tile_n

    (w1, b1), *hidden, (w8, b8) = params

    # Fold latent z (constant per call) into the first-layer bias, full f32.
    b1_eff = b1 + jnp.dot(z, w1[:LATENT_DIM, :],
                          precision=jax.lax.Precision.HIGHEST)
    b1_eff = b1_eff.reshape(1, HIDDEN_DIM).astype(jnp.float32)

    # First-layer coordinate rows (3, 128) padded to 8 sublanes, f32.
    w1c = jnp.zeros((COORD_PAD, HIDDEN_DIM), jnp.float32)
    w1c = w1c.at[:3, :].set(w1[LATENT_DIM:, :])

    # Hidden layers: weights stacked & cast to bf16, biases stacked in f32.
    ws = jnp.stack([w for (w, _) in hidden]).astype(jnp.bfloat16)    # (6,128,128)
    bs = jnp.stack([b for (_, b) in hidden]).astype(jnp.float32)
    bs = bs.reshape(N_HIDDEN_LAYERS, 1, HIDDEN_DIM)                  # (6,1,128)

    # Final layer: single live column of W8 as a lane row; bias as SMEM scalar.
    w8_row = w8.reshape(1, HIDDEN_DIM).astype(jnp.float32)           # (1,128)
    b8_s = b8.reshape(1, 1).astype(jnp.float32)                      # (1,1) -> SMEM

    # Coords padded to (n_pad, 8) f32 (lanes 0..2 live) -> 32 B/pt HBM read.
    x_pad = jnp.zeros((n_pad, COORD_PAD), jnp.float32).at[:n, :3].set(x)

    grid = (n_pad // tile_n,)
    out_rows = tile_n // HIDDEN_DIM
    const2 = lambda i: (0, 0)
    const3 = lambda i: (0, 0, 0)

    out = pl.pallas_call(
        _decoder_kernel,
        out_shape=jax.ShapeDtypeStruct((n_pad // HIDDEN_DIM, HIDDEN_DIM),
                                       jnp.float32),
        grid_spec=pltpu.PrefetchScalarGridSpec(
            num_scalar_prefetch=0,
            grid=grid,
            in_specs=[
                pl.BlockSpec((tile_n, COORD_PAD), lambda i: (i, 0)),          # x
                pl.BlockSpec((COORD_PAD, HIDDEN_DIM), const2),                # w1c
                pl.BlockSpec((1, HIDDEN_DIM), const2),                        # b1_eff
                pl.BlockSpec((N_HIDDEN_LAYERS, HIDDEN_DIM, HIDDEN_DIM),
                             const3),                                         # ws
                pl.BlockSpec((N_HIDDEN_LAYERS, 1, HIDDEN_DIM), const3),       # bs
                pl.BlockSpec((1, HIDDEN_DIM), const2),                        # w8_row
                pl.BlockSpec(memory_space=pltpu.MemorySpace.SMEM),            # b8
            ],
            out_specs=pl.BlockSpec((out_rows, HIDDEN_DIM), lambda i: (i, 0)),
        ),
        compiler_params=pltpu.CompilerParams(
            dimension_semantics=("parallel",),
            vmem_limit_bytes=32 * 1024 * 1024),
    )(x_pad, w1c, b1_eff, ws, bs, w8_row, b8_s)

    return out.reshape(n_pad, 1)[:n]                                  # (N, 1)


def decoder_forward(z, x, params):
    """z: (64,) f32, x: (N, 3) f32 -> sdf (N, 1) f32."""
    return _decoder_forward_impl(z, x, params, tile_n=_pick_tile_n(x.shape[0]))


def init_params(key):
    """Deterministic init matching PyTorch nn.Linear (stored as (in, out))."""
    dims = [(LATENT_DIM + 3, HIDDEN_DIM)] + [(HIDDEN_DIM, HIDDEN_DIM)] * 6 \
           + [(HIDDEN_DIM, 1)]
    params = []
    keys = jax.random.split(key, len(dims) * 2)
    for li, (fan_in, fan_out) in enumerate(dims):
        bound = 1.0 / jnp.sqrt(fan_in)
        w = jax.random.uniform(keys[2 * li], (fan_in, fan_out),
                               minval=-bound, maxval=bound, dtype=jnp.float32)
        b = jax.random.uniform(keys[2 * li + 1], (fan_out,),
                               minval=-bound, maxval=bound, dtype=jnp.float32)
        params.append((w, b))
    return params


def decoder_reference(z, x, params):
    """Pure-JAX reference following the original module (concat z, 8 Linears).

    Hidden-layer matmuls use bf16 operands + f32 accumulation to mirror the
    kernel's MXU precision.
    """
    n = x.shape[0]
    h = jnp.concatenate([jnp.broadcast_to(z[None, :], (n, LATENT_DIM)), x], -1)
    (w1, b1), *hidden, (w8, b8) = params
    h = jnp.maximum(
        jnp.dot(h, w1, precision=jax.lax.Precision.HIGHEST) + b1, 0.0)
    for (w, b) in hidden:
        y = jnp.dot(h.astype(jnp.bfloat16), w.astype(jnp.bfloat16),
                    preferred_element_type=jnp.float32)
        h = jnp.maximum(y + b, 0.0)
    s = jnp.dot(h, w8, precision=jax.lax.Precision.HIGHEST) + b8
    return jnp.tanh(s)


if __name__ == "__main__":
    key = jax.random.PRNGKey(0)
    k_p, k_z, k_x = jax.random.split(key, 3)

    params = init_params(k_p)
    z = jax.random.normal(k_z, (LATENT_DIM,), dtype=jnp.float32)

    # Small case (single grid step) and a multi-step case (exercises the
    # lane-dense output indexing across grid steps).
    for n_points in (200, 2500):
        k_x, sub = jax.random.split(k_x)
        x = jax.random.normal(sub, (n_points, 3), dtype=jnp.float32)

        sdf = decoder_forward(z, x, params)
        jax.block_until_ready(sdf)

        ref = decoder_reference(z, x, params)
        assert sdf.shape == (n_points, 1)
        max_err = float(jnp.max(jnp.abs(sdf - ref)))
        # bf16 MXU operands -> allow ~1e-2 absolute slack vs the reference.
        assert max_err < 1e-2, (
            f"mismatch vs reference at n={n_points}: max abs err {max_err}")

    print("KERNEL_OK")
</pallas_src>

<mosaic_0001>
module attributes {stable_mosaic.version = 11 : i64} {
  func.func @_decoder_kernel(%arg0: i32, %arg1: memref<1024x8xf32, #tpu.memory_space<vmem>>, %arg2: memref<8x128xf32, #tpu.memory_space<vmem>>, %arg3: memref<1x128xf32, #tpu.memory_space<vmem>>, %arg4: memref<6x128x128xbf16, #tpu.memory_space<vmem>>, %arg5: memref<6x1x128xf32, #tpu.memory_space<vmem>>, %arg6: memref<1x128xf32, #tpu.memory_space<vmem>>, %arg7: memref<1x1xf32, #tpu.memory_space<smem>>, %arg8: memref<8x128xf32, #tpu.memory_space<vmem>>) attributes {dimension_semantics = [#tpu.dimension_semantics<parallel>], iteration_bounds = array<i64: 1>, scalar_prefetch = 0 : i64, scratch_operands = 0 : i64, tpu.core_type = #tpu.core_type<tc>, window_params = [{transform_indices = @transform_0, window_bounds = array<i64: 1024, 8>}, {pipeline_mode = #tpu.pipeline_mode<synchronous>, transform_indices = @transform_1, window_bounds = array<i64: 8, 128>}, {pipeline_mode = #tpu.pipeline_mode<synchronous>, transform_indices = @transform_2, window_bounds = array<i64: 1, 128>}, {pipeline_mode = #tpu.pipeline_mode<synchronous>, transform_indices = @transform_3, window_bounds = array<i64: 6, 128, 128>}, {pipeline_mode = #tpu.pipeline_mode<synchronous>, transform_indices = @transform_4, window_bounds = array<i64: 6, 1, 128>}, {pipeline_mode = #tpu.pipeline_mode<synchronous>, transform_indices = @transform_5, window_bounds = array<i64: 1, 128>}, {transform_indices = @transform_6, window_bounds = array<i64: 1, 1>}, {transform_indices = @transform_7, window_bounds = array<i64: 8, 128>}]} {
    %c0 = arith.constant 0 : index
    %c0_0 = arith.constant 0 : index
    %0 = vector.load %arg1[%c0, %c0_0] : memref<1024x8xf32, #tpu.memory_space<vmem>>, vector<1024x8xf32>
    %c0_1 = arith.constant 0 : index
    %c0_2 = arith.constant 0 : index
    %1 = vector.load %arg2[%c0_1, %c0_2] : memref<8x128xf32, #tpu.memory_space<vmem>>, vector<8x128xf32>
    %c0_3 = arith.constant 0 : index
    %c0_4 = arith.constant 0 : index
    %2 = vector.load %arg3[%c0_3, %c0_4] : memref<1x128xf32, #tpu.memory_space<vmem>>, vector<1x128xf32>
    %3 = vector.extract_strided_slice %0 {offsets = [0, 0], sizes = [1024, 1], strides = [1, 1]} : vector<1024x8xf32> to vector<1024x1xf32>
    %4 = vector.extract_strided_slice %1 {offsets = [0, 0], sizes = [1, 128], strides = [1, 1]} : vector<8x128xf32> to vector<1x128xf32>
    %5 = vector.broadcast %3 : vector<1024x1xf32> to vector<1024x128xf32>
    %6 = vector.broadcast %4 : vector<1x128xf32> to vector<1024x128xf32>
    %7 = arith.mulf %5, %6 : vector<1024x128xf32>
    %8 = vector.broadcast %2 : vector<1x128xf32> to vector<1024x128xf32>
    %9 = arith.addf %8, %7 : vector<1024x128xf32>
    %10 = vector.extract_strided_slice %0 {offsets = [0, 1], sizes = [1024, 1], strides = [1, 1]} : vector<1024x8xf32> to vector<1024x1xf32>
    %11 = vector.extract_strided_slice %1 {offsets = [1, 0], sizes = [1, 128], strides = [1, 1]} : vector<8x128xf32> to vector<1x128xf32>
    %12 = vector.broadcast %10 : vector<1024x1xf32> to vector<1024x128xf32>
    %13 = vector.broadcast %11 : vector<1x128xf32> to vector<1024x128xf32>
    %14 = arith.mulf %12, %13 : vector<1024x128xf32>
    %15 = arith.addf %9, %14 : vector<1024x128xf32>
    %16 = vector.extract_strided_slice %0 {offsets = [0, 2], sizes = [1024, 1], strides = [1, 1]} : vector<1024x8xf32> to vector<1024x1xf32>
    %17 = vector.extract_strided_slice %1 {offsets = [2, 0], sizes = [1, 128], strides = [1, 1]} : vector<8x128xf32> to vector<1x128xf32>
    %18 = vector.broadcast %16 : vector<1024x1xf32> to vector<1024x128xf32>
    %19 = vector.broadcast %17 : vector<1x128xf32> to vector<1024x128xf32>
    %20 = arith.mulf %18, %19 : vector<1024x128xf32>
    %21 = arith.addf %15, %20 : vector<1024x128xf32>
    %cst = arith.constant 0.000000e+00 : f32
    %22 = vector.broadcast %cst : f32 to vector<1024x128xf32>
    %23 = arith.maximumf %21, %22 : vector<1024x128xf32>
    %24 = arith.truncf %23 : vector<1024x128xf32> to vector<1024x128xbf16>
    %c0_5 = arith.constant 0 : index
    %c0_6 = arith.constant 0 : index
    %c0_7 = arith.constant 0 : index
    %25 = vector.load %arg4[%c0_5, %c0_6, %c0_7] : memref<6x128x128xbf16, #tpu.memory_space<vmem>>, vector<1x128x128xbf16>
    %26 = vector.shape_cast %25 : vector<1x128x128xbf16> to vector<128x128xbf16>
    %cst_8 = arith.constant dense<0.000000e+00> : vector<1024x128xf32>
    %27 = tpu.matmul %24, %26, %cst_8 {dimension_numbers = #tpu.dot_dimension_numbers<[1], [0], [0], [1], [0, 0, 1, 1], [], []>} : vector<1024x128xbf16>, vector<128x128xbf16>, vector<1024x128xf32> -> vector<1024x128xf32>
    %c0_9 = arith.constant 0 : index
    %c0_10 = arith.constant 0 : index
    %c0_11 = arith.constant 0 : index
    %28 = vector.load %arg5[%c0_9, %c0_10, %c0_11] : memref<6x1x128xf32, #tpu.memory_space<vmem>>, vector<1x1x128xf32>
    %29 = vector.shape_cast %28 : vector<1x1x128xf32> to vector<1x128xf32>
    %30 = vector.broadcast %29 : vector<1x128xf32> to vector<1024x128xf32>
    %31 = arith.addf %27, %30 : vector<1024x128xf32>
    %cst_12 = arith.constant 0.000000e+00 : f32
    %32 = vector.broadcast %cst_12 : f32 to vector<1024x128xf32>
    %33 = arith.maximumf %31, %32 : vector<1024x128xf32>
    %34 = arith.truncf %33 : vector<1024x128xf32> to vector<1024x128xbf16>
    %c1 = arith.constant 1 : index
    %c0_13 = arith.constant 0 : index
    %c0_14 = arith.constant 0 : index
    %35 = vector.load %arg4[%c1, %c0_13, %c0_14] : memref<6x128x128xbf16, #tpu.memory_space<vmem>>, vector<1x128x128xbf16>
    %36 = vector.shape_cast %35 : vector<1x128x128xbf16> to vector<128x128xbf16>
    %cst_15 = arith.constant dense<0.000000e+00> : vector<1024x128xf32>
    %37 = tpu.matmul %34, %36, %cst_15 {dimension_numbers = #tpu.dot_dimension_numbers<[1], [0], [0], [1], [0, 0, 1, 1], [], []>} : vector<1024x128xbf16>, vector<128x128xbf16>, vector<1024x128xf32> -> vector<1024x128xf32>
    %c1_16 = arith.constant 1 : index
    %c0_17 = arith.constant 0 : index
    %c0_18 = arith.constant 0 : index
    %38 = vector.load %arg5[%c1_16, %c0_17, %c0_18] : memref<6x1x128xf32, #tpu.memory_space<vmem>>, vector<1x1x128xf32>
    %39 = vector.shape_cast %38 : vector<1x1x128xf32> to vector<1x128xf32>
    %40 = vector.broadcast %39 : vector<1x128xf32> to vector<1024x128xf32>
    %41 = arith.addf %37, %40 : vector<1024x128xf32>
    %cst_19 = arith.constant 0.000000e+00 : f32
    %42 = vector.broadcast %cst_19 : f32 to vector<1024x128xf32>
    %43 = arith.maximumf %41, %42 : vector<1024x128xf32>
    %44 = arith.truncf %43 : vector<1024x128xf32> to vector<1024x128xbf16>
    %c2 = arith.constant 2 : index
    %c0_20 = arith.constant 0 : index
    %c0_21 = arith.constant 0 : index
    %45 = vector.load %arg4[%c2, %c0_20, %c0_21] : memref<6x128x128xbf16, #tpu.memory_space<vmem>>, vector<1x128x128xbf16>
    %46 = vector.shape_cast %45 : vector<1x128x128xbf16> to vector<128x128xbf16>
    %cst_22 = arith.constant dense<0.000000e+00> : vector<1024x128xf32>
    %47 = tpu.matmul %44, %46, %cst_22 {dimension_numbers = #tpu.dot_dimension_numbers<[1], [0], [0], [1], [0, 0, 1, 1], [], []>} : vector<1024x128xbf16>, vector<128x128xbf16>, vector<1024x128xf32> -> vector<1024x128xf32>
    %c2_23 = arith.constant 2 : index
    %c0_24 = arith.constant 0 : index
    %c0_25 = arith.constant 0 : index
    %48 = vector.load %arg5[%c2_23, %c0_24, %c0_25] : memref<6x1x128xf32, #tpu.memory_space<vmem>>, vector<1x1x128xf32>
    %49 = vector.shape_cast %48 : vector<1x1x128xf32> to vector<1x128xf32>
    %50 = vector.broadcast %49 : vector<1x128xf32> to vector<1024x128xf32>
    %51 = arith.addf %47, %50 : vector<1024x128xf32>
    %cst_26 = arith.constant 0.000000e+00 : f32
    %52 = vector.broadcast %cst_26 : f32 to vector<1024x128xf32>
    %53 = arith.maximumf %51, %52 : vector<1024x128xf32>
    %54 = arith.truncf %53 : vector<1024x128xf32> to vector<1024x128xbf16>
    %c3 = arith.constant 3 : index
    %c0_27 = arith.constant 0 : index
    %c0_28 = arith.constant 0 : index
    %55 = vector.load %arg4[%c3, %c0_27, %c0_28] : memref<6x128x128xbf16, #tpu.memory_space<vmem>>, vector<1x128x128xbf16>
    %56 = vector.shape_cast %55 : vector<1x128x128xbf16> to vector<128x128xbf16>
    %cst_29 = arith.constant dense<0.000000e+00> : vector<1024x128xf32>
    %57 = tpu.matmul %54, %56, %cst_29 {dimension_numbers = #tpu.dot_dimension_numbers<[1], [0], [0], [1], [0, 0, 1, 1], [], []>} : vector<1024x128xbf16>, vector<128x128xbf16>, vector<1024x128xf32> -> vector<1024x128xf32>
    %c3_30 = arith.constant 3 : index
    %c0_31 = arith.constant 0 : index
    %c0_32 = arith.constant 0 : index
    %58 = vector.load %arg5[%c3_30, %c0_31, %c0_32] : memref<6x1x128xf32, #tpu.memory_space<vmem>>, vector<1x1x128xf32>
    %59 = vector.shape_cast %58 : vector<1x1x128xf32> to vector<1x128xf32>
    %60 = vector.broadcast %59 : vector<1x128xf32> to vector<1024x128xf32>
    %61 = arith.addf %57, %60 : vector<1024x128xf32>
    %cst_33 = arith.constant 0.000000e+00 : f32
    %62 = vector.broadcast %cst_33 : f32 to vector<1024x128xf32>
    %63 = arith.maximumf %61, %62 : vector<1024x128xf32>
    %64 = arith.truncf %63 : vector<1024x128xf32> to vector<1024x128xbf16>
    %c4 = arith.constant 4 : index
    %c0_34 = arith.constant 0 : index
    %c0_35 = arith.constant 0 : index
    %65 = vector.load %arg4[%c4, %c0_34, %c0_35] : memref<6x128x128xbf16, #tpu.memory_space<vmem>>, vector<1x128x128xbf16>
    %66 = vector.shape_cast %65 : vector<1x128x128xbf16> to vector<128x128xbf16>
    %cst_36 = arith.constant dense<0.000000e+00> : vector<1024x128xf32>
    %67 = tpu.matmul %64, %66, %cst_36 {dimension_numbers = #tpu.dot_dimension_numbers<[1], [0], [0], [1], [0, 0, 1, 1], [], []>} : vector<1024x128xbf16>, vector<128x128xbf16>, vector<1024x128xf32> -> vector<1024x128xf32>
    %c4_37 = arith.constant 4 : index
    %c0_38 = arith.constant 0 : index
    %c0_39 = arith.constant 0 : index
    %68 = vector.load %arg5[%c4_37, %c0_38, %c0_39] : memref<6x1x128xf32, #tpu.memory_space<vmem>>, vector<1x1x128xf32>
    %69 = vector.shape_cast %68 : vector<1x1x128xf32> to vector<1x128xf32>
    %70 = vector.broadcast %69 : vector<1x128xf32> to vector<1024x128xf32>
    %71 = arith.addf %67, %70 : vector<1024x128xf32>
    %cst_40 = arith.constant 0.000000e+00 : f32
    %72 = vector.broadcast %cst_40 : f32 to vector<1024x128xf32>
    %73 = arith.maximumf %71, %72 : vector<1024x128xf32>
    %74 = arith.truncf %73 : vector<1024x128xf32> to vector<1024x128xbf16>
    %c5 = arith.constant 5 : index
    %c0_41 = arith.constant 0 : index
    %c0_42 = arith.constant 0 : index
    %75 = vector.load %arg4[%c5, %c0_41, %c0_42] : memref<6x128x128xbf16, #tpu.memory_space<vmem>>, vector<1x128x128xbf16>
    %76 = vector.shape_cast %75 : vector<1x128x128xbf16> to vector<128x128xbf16>
    %cst_43 = arith.constant dense<0.000000e+00> : vector<1024x128xf32>
    %77 = tpu.matmul %74, %76, %cst_43 {dimension_numbers = #tpu.dot_dimension_numbers<[1], [0], [0], [1], [0, 0, 1, 1], [], []>} : vector<1024x128xbf16>, vector<128x128xbf16>, vector<1024x128xf32> -> vector<1024x128xf32>
    %c5_44 = arith.constant 5 : index
    %c0_45 = arith.constant 0 : index
    %c0_46 = arith.constant 0 : index
    %78 = vector.load %arg5[%c5_44, %c0_45, %c0_46] : memref<6x1x128xf32, #tpu.memory_space<vmem>>, vector<1x1x128xf32>
    %79 = vector.shape_cast %78 : vector<1x1x128xf32> to vector<1x128xf32>
    %80 = vector.broadcast %79 : vector<1x128xf32> to vector<1024x128xf32>
    %81 = arith.addf %77, %80 : vector<1024x128xf32>
    %cst_47 = arith.constant 0.000000e+00 : f32
    %82 = vector.broadcast %cst_47 : f32 to vector<1024x128xf32>
    %83 = arith.maximumf %81, %82 : vector<1024x128xf32>
    %84 = vector.shape_cast %83 : vector<1024x128xf32> to vector<8x128x128xf32>
    %c0_48 = arith.constant 0 : index
    %c0_49 = arith.constant 0 : index
    %85 = vector.load %arg6[%c0_48, %c0_49] : memref<1x128xf32, #tpu.memory_space<vmem>>, vector<1x128xf32>
    %86 = vector.shape_cast %85 : vector<1x128xf32> to vector<1x1x128xf32>
    %87 = vector.broadcast %86 : vector<1x1x128xf32> to vector<8x128x128xf32>
    %88 = arith.mulf %84, %87 : vector<8x128x128xf32>
    %cst_50 = arith.constant dense<0.000000e+00> : vector<8x128xf32>
    %89 = vector.multi_reduction <add>, %88, %cst_50 [2] : vector<8x128x128xf32> to vector<8x128xf32>
    %c0_51 = arith.constant 0 : index
    %c0_52 = arith.constant 0 : index
    %90 = memref.load %arg7[%c0_51, %c0_52] : memref<1x1xf32, #tpu.memory_space<smem>>
    %91 = vector.broadcast %90 : f32 to vector<8x128xf32>
    %92 = arith.addf %89, %91 : vector<8x128xf32>
    %93 = math.tanh %92 : vector<8x128xf32>
    %c0_53 = arith.constant 0 : index
    %c0_54 = arith.constant 0 : index
    %94 = vector.load %arg8[%c0_53, %c0_54] : memref<8x128xf32, #tpu.memory_space<vmem>>, vector<8x128xf32>
    tpu.vector_store %arg8[%c0_53, %c0_54], %93 {strides = array<i32>} : memref<8x128xf32, #tpu.memory_space<vmem>>, vector<8x128xf32>,
    return
  }
  func.func @transform_0(%arg0: i32) -> (i32, i32) {
    %c0_i32 = arith.constant 0 : i32
    %c0_i32_0 = arith.constant 0 : i32
    return %arg0, %c0_i32 : i32, i32
  }
  func.func @transform_1(%arg0: i32) -> (i32, i32) {
    %c0_i32 = arith.constant 0 : i32
    %c0_i32_0 = arith.constant 0 : i32
    %c0_i32_1 = arith.constant 0 : i32
    return %c0_i32, %c0_i32_0 : i32, i32
  }
  func.func @transform_2(%arg0: i32) -> (i32, i32) {
    %c0_i32 = arith.constant 0 : i32
    %c0_i32_0 = arith.constant 0 : i32
    %c0_i32_1 = arith.constant 0 : i32
    return %c0_i32, %c0_i32_0 : i32, i32
  }
  func.func @transform_3(%arg0: i32) -> (i32, i32, i32) {
    %c0_i32 = arith.constant 0 : i32
    %c0_i32_0 = arith.constant 0 : i32
    %c0_i32_1 = arith.constant 0 : i32
    %c0_i32_2 = arith.constant 0 : i32
    return %c0_i32, %c0_i32_0, %c0_i32_1 : i32, i32, i32
  }
  func.func @transform_4(%arg0: i32) -> (i32, i32, i32) {
    %c0_i32 = arith.constant 0 : i32
    %c0_i32_0 = arith.constant 0 : i32
    %c0_i32_1 = arith.constant 0 : i32
    %c0_i32_2 = arith.constant 0 : i32
    return %c0_i32, %c0_i32_0, %c0_i32_1 : i32, i32, i32
  }
  func.func @transform_5(%arg0: i32) -> (i32, i32) {
    %c0_i32 = arith.constant 0 : i32
    %c0_i32_0 = arith.constant 0 : i32
    %c0_i32_1 = arith.constant 0 : i32
    return %c0_i32, %c0_i32_0 : i32, i32
  }
  func.func @transform_6(%arg0: i32) -> (i32, i32) {
    %c0_i32 = arith.constant 0 : i32
    %c0_i32_0 = arith.constant 0 : i32
    %c0_i32_1 = arith.constant 0 : i32
    return %c0_i32, %c0_i32_0 : i32, i32
  }
  func.func @transform_7(%arg0: i32) -> (i32, i32) {
    %c0_i32 = arith.constant 0 : i32
    %c0_i32_0 = arith.constant 0 : i32
    return %arg0, %c0_i32 : i32, i32
  }
}

</mosaic_0001>

<llo_original>
// kernel: _decoder_forward_impl.1
$region0: #{_decoder_forward_impl.1}
  #allocation0 [shape = 'u32[]', space=smem, size = 0x4, offset = 0x4, fixed_abs, tag = 'smem constant byte address 0x4 - core index']
  #allocation1 [shape = 'u32[144,128]{1,0:T(1,128)}', space=vmem, size = 0x12000, scoped, tag = 'internal scratch']
  #allocation2 [shape = 'f32[1,1]{1,0:T(1,128)S(6)}', space=smem, size = 0x200, scoped, tag = 'scoped memory for _decoder_forward_impl.1']
  %s0 = inlined_call_operand.vmem [shape: f32[1024,8], index: 0, kind: input, shape index: {}]
  %s1 = inlined_call_operand.vmem [shape: f32[8,128], index: 1, kind: input, shape index: {}]
  %s2 = inlined_call_operand.vmem [shape: f32[1,128], index: 2, kind: input, shape index: {}]
  %s3 = inlined_call_operand.vmem [shape: bf16[6,128,128], index: 3, kind: input, shape index: {}]
  %s4 = inlined_call_operand.vmem [shape: f32[6,1,128], index: 4, kind: input, shape index: {}]
  %s5 = inlined_call_operand.vmem [shape: f32[1,128], index: 5, kind: input, shape index: {}]
  %s6 = inlined_call_operand.<no memory space> [shape: f32[1,1], index: 6, kind: input, shape index: {}]
  %s7 = inlined_call_operand.vmem [shape: f32[8,128], index: 7, kind: output, shape index: {}]
  %s8 = sld [smem:[#allocation0]]
  $region38: #{_decoder_forward_impl.1} parent=0
    _
  %s10 = ssub.s32 1, %s8
  %s11 = scalar_select 0, %s10, %s8
  %12 = sst [smem:[#allocation2]] %s6
  // Predicated region
  $region2: #{_decoder_forward_impl.1} parent=0 // pred_check
    _
  $region3: #{_decoder_forward_impl.1} parent=0 // pred_check_branch
    %14 = sbr.rel (0) target = $region5
  $region4: #{_decoder_forward_impl.1} parent=0 // pred_region
    _
  $region5: #{_decoder_forward_impl.1} parent=0 // pred_fallthru
    _
  // Predicated region
  $region6: #{_decoder_forward_impl.1} parent=0 // pred_check
    _
  $region7: #{_decoder_forward_impl.1} parent=0 // pred_check_branch
    %16 = sbr.rel (0) target = $region9
  $region8: #{_decoder_forward_impl.1} parent=0 // pred_region
    _
  $region9: #{_decoder_forward_impl.1} parent=0 // pred_fallthru
    _
  // Predicated region
  $region10: #{_decoder_forward_impl.1} parent=0 // pred_check
    _
  $region11: #{_decoder_forward_impl.1} parent=0 // pred_check_branch
    %18 = sbr.rel (0) target = $region13
  $region12: #{_decoder_forward_impl.1} parent=0 // pred_region
    _
  $region13: #{_decoder_forward_impl.1} parent=0 // pred_fallthru
    _
  // Predicated region
  $region14: #{_decoder_forward_impl.1} parent=0 // pred_check
    _
  $region15: #{_decoder_forward_impl.1} parent=0 // pred_check_branch
    %20 = sbr.rel (0) target = $region17
  $region16: #{_decoder_forward_impl.1} parent=0 // pred_region
    _
  $region17: #{_decoder_forward_impl.1} parent=0 // pred_fallthru
    _
  // Predicated region
  $region18: #{_decoder_forward_impl.1} parent=0 // pred_check
    _
  $region19: #{_decoder_forward_impl.1} parent=0 // pred_check_branch
    %22 = sbr.rel (0) target = $region21
  $region20: #{_decoder_forward_impl.1} parent=0 // pred_region
    _
  $region21: #{_decoder_forward_impl.1} parent=0 // pred_fallthru
    _
  // Predicated region
  $region22: #{_decoder_forward_impl.1} parent=0 // pred_check
    _
  $region23: #{_decoder_forward_impl.1} parent=0 // pred_check_branch
    %24 = sbr.rel (0) target = $region25
  $region24: #{_decoder_forward_impl.1} parent=0 // pred_region
    _
  $region25: #{_decoder_forward_impl.1} parent=0 // pred_fallthru
    _
  // Predicated region
  $region26: #{_decoder_forward_impl.1} parent=0 // pred_check
    _
  $region27: #{_decoder_forward_impl.1} parent=0 // pred_check_branch
    %26 = sbr.rel (0) target = $region29
  $region28: #{_decoder_forward_impl.1} parent=0 // pred_region
    _
  $region29: #{_decoder_forward_impl.1} parent=0 // pred_fallthru
    _
  %v28 = vld [vmem:[%s0] sm:$0xff]
  %v29 = vld [vmem:[%s0 + $0x8] sm:$0xff]
  %v30 = vld [vmem:[%s0 + $0x10] sm:$0xff]
  %v31 = vld [vmem:[%s0 + $0x18] sm:$0xff]
  %v32 = vld [vmem:[%s0 + $0x20] sm:$0xff]
  %v33 = vld [vmem:[%s0 + $0x28] sm:$0xff]
  %v34 = vld [vmem:[%s0 + $0x30] sm:$0xff]
  %v35 = vld [vmem:[%s0 + $0x38] sm:$0xff]
  %v36 = vld [vmem:[%s0 + $0x40] sm:$0xff]
  %v37 = vld [vmem:[%s0 + $0x48] sm:$0xff]
  %v38 = vld [vmem:[%s0 + $0x50] sm:$0xff]
  %v39 = vld [vmem:[%s0 + $0x58] sm:$0xff]
  %v40 = vld [vmem:[%s0 + $0x60] sm:$0xff]
  %v41 = vld [vmem:[%s0 + $0x68] sm:$0xff]
  %v42 = vld [vmem:[%s0 + $0x70] sm:$0xff]
  %v43 = vld [vmem:[%s0 + $0x78] sm:$0xff]
  %v44 = vld [vmem:[%s0 + $0x80] sm:$0xff]
  %v45 = vld [vmem:[%s0 + $0x88] sm:$0xff]
  %v46 = vld [vmem:[%s0 + $0x90] sm:$0xff]
  %v47 = vld [vmem:[%s0 + $0x98] sm:$0xff]
  %v48 = vld [vmem:[%s0 + $0xa0] sm:$0xff]
  %v49 = vld [vmem:[%s0 + $0xa8] sm:$0xff]
  %v50 = vld [vmem:[%s0 + $0xb0] sm:$0xff]
  %v51 = vld [vmem:[%s0 + $0xb8] sm:$0xff]
  %v52 = vld [vmem:[%s0 + $0xc0] sm:$0xff]
  %v53 = vld [vmem:[%s0 + $0xc8] sm:$0xff]
  %v54 = vld [vmem:[%s0 + $0xd0] sm:$0xff]
  %v55 = vld [vmem:[%s0 + $0xd8] sm:$0xff]
  %v56 = vld [vmem:[%s0 + $0xe0] sm:$0xff]
  %v57 = vld [vmem:[%s0 + $0xe8] sm:$0xff]
  %v58 = vld [vmem:[%s0 + $0xf0] sm:$0xff]
  %v59 = vld [vmem:[%s0 + $0xf8] sm:$0xff]
  %v60 = vld [vmem:[%s0 + $0x100] sm:$0xff]
  %v61 = vld [vmem:[%s0 + $0x108] sm:$0xff]
  %v62 = vld [vmem:[%s0 + $0x110] sm:$0xff]
  %v63 = vld [vmem:[%s0 + $0x118] sm:$0xff]
  %v64 = vld [vmem:[%s0 + $0x120] sm:$0xff]
  %v65 = vld [vmem:[%s0 + $0x128] sm:$0xff]
  %v66 = vld [vmem:[%s0 + $0x130] sm:$0xff]
  %v67 = vld [vmem:[%s0 + $0x138] sm:$0xff]
  %v68 = vld [vmem:[%s0 + $0x140] sm:$0xff]
  %v69 = vld [vmem:[%s0 + $0x148] sm:$0xff]
  %v70 = vld [vmem:[%s0 + $0x150] sm:$0xff]
  %v71 = vld [vmem:[%s0 + $0x158] sm:$0xff]
  %v72 = vld [vmem:[%s0 + $0x160] sm:$0xff]
  %v73 = vld [vmem:[%s0 + $0x168] sm:$0xff]
  %v74 = vld [vmem:[%s0 + $0x170] sm:$0xff]
  %v75 = vld [vmem:[%s0 + $0x178] sm:$0xff]
  %v76 = vld [vmem:[%s0 + $0x180] sm:$0xff]
  %v77 = vld [vmem:[%s0 + $0x188] sm:$0xff]
  %v78 = vld [vmem:[%s0 + $0x190] sm:$0xff]
  %v79 = vld [vmem:[%s0 + $0x198] sm:$0xff]
  %v80 = vld [vmem:[%s0 + $0x1a0] sm:$0xff]
  %v81 = vld [vmem:[%s0 + $0x1a8] sm:$0xff]
  %v82 = vld [vmem:[%s0 + $0x1b0] sm:$0xff]
  %v83 = vld [vmem:[%s0 + $0x1b8] sm:$0xff]
  %v84 = vld [vmem:[%s0 + $0x1c0] sm:$0xff]
  %v85 = vld [vmem:[%s0 + $0x1c8] sm:$0xff]
  %v86 = vld [vmem:[%s0 + $0x1d0] sm:$0xff]
  %v87 = vld [vmem:[%s0 + $0x1d8] sm:$0xff]
  %v88 = vld [vmem:[%s0 + $0x1e0] sm:$0xff]
  %v89 = vld [vmem:[%s0 + $0x1e8] sm:$0xff]
  %v90 = vld [vmem:[%s0 + $0x1f0] sm:$0xff]
  %v91 = vld [vmem:[%s0 + $0x1f8] sm:$0xff]
  %v92 = vld [vmem:[%s0 + $0x200] sm:$0xff]
  %v93 = vld [vmem:[%s0 + $0x208] sm:$0xff]
  %v94 = vld [vmem:[%s0 + $0x210] sm:$0xff]
  %v95 = vld [vmem:[%s0 + $0x218] sm:$0xff]
  %v96 = vld [vmem:[%s0 + $0x220] sm:$0xff]
  %v97 = vld [vmem:[%s0 + $0x228] sm:$0xff]
  %v98 = vld [vmem:[%s0 + $0x230] sm:$0xff]
  %v99 = vld [vmem:[%s0 + $0x238] sm:$0xff]
  %v100 = vld [vmem:[%s0 + $0x240] sm:$0xff]
  %v101 = vld [vmem:[%s0 + $0x248] sm:$0xff]
  %v102 = vld [vmem:[%s0 + $0x250] sm:$0xff]
  %v103 = vld [vmem:[%s0 + $0x258] sm:$0xff]
  %v104 = vld [vmem:[%s0 + $0x260] sm:$0xff]
  %v105 = vld [vmem:[%s0 + $0x268] sm:$0xff]
  %v106 = vld [vmem:[%s0 + $0x270] sm:$0xff]
  %v107 = vld [vmem:[%s0 + $0x278] sm:$0xff]
  %v108 = vld [vmem:[%s0 + $0x280] sm:$0xff]
  %v109 = vld [vmem:[%s0 + $0x288] sm:$0xff]
  %v110 = vld [vmem:[%s0 + $0x290] sm:$0xff]
  %v111 = vld [vmem:[%s0 + $0x298] sm:$0xff]
  %v112 = vld [vmem:[%s0 + $0x2a0] sm:$0xff]
  %v113 = vld [vmem:[%s0 + $0x2a8] sm:$0xff]
  %v114 = vld [vmem:[%s0 + $0x2b0] sm:$0xff]
  %v115 = vld [vmem:[%s0 + $0x2b8] sm:$0xff]
  %v116 = vld [vmem:[%s0 + $0x2c0] sm:$0xff]
  %v117 = vld [vmem:[%s0 + $0x2c8] sm:$0xff]
  %v118 = vld [vmem:[%s0 + $0x2d0] sm:$0xff]
  %v119 = vld [vmem:[%s0 + $0x2d8] sm:$0xff]
  %v120 = vld [vmem:[%s0 + $0x2e0] sm:$0xff]
  %v121 = vld [vmem:[%s0 + $0x2e8] sm:$0xff]
  %v122 = vld [vmem:[%s0 + $0x2f0] sm:$0xff]
  %v123 = vld [vmem:[%s0 + $0x2f8] sm:$0xff]
  %v124 = vld [vmem:[%s0 + $0x300] sm:$0xff]
  %v125 = vld [vmem:[%s0 + $0x308] sm:$0xff]
  %v126 = vld [vmem:[%s0 + $0x310] sm:$0xff]
  %v127 = vld [vmem:[%s0 + $0x318] sm:$0xff]
  %v128 = vld [vmem:[%s0 + $0x320] sm:$0xff]
  %v129 = vld [vmem:[%s0 + $0x328] sm:$0xff]
  %v130 = vld [vmem:[%s0 + $0x330] sm:$0xff]
  %v131 = vld [vmem:[%s0 + $0x338] sm:$0xff]
  %v132 = vld [vmem:[%s0 + $0x340] sm:$0xff]
  %v133 = vld [vmem:[%s0 + $0x348] sm:$0xff]
  %v134 = vld [vmem:[%s0 + $0x350] sm:$0xff]
  %v135 = vld [vmem:[%s0 + $0x358] sm:$0xff]
  %v136 = vld [vmem:[%s0 + $0x360] sm:$0xff]
  %v137 = vld [vmem:[%s0 + $0x368] sm:$0xff]
  %v138 = vld [vmem:[%s0 + $0x370] sm:$0xff]
  %v139 = vld [vmem:[%s0 + $0x378] sm:$0xff]
  %v140 = vld [vmem:[%s0 + $0x380] sm:$0xff]
  %v141 = vld [vmem:[%s0 + $0x388] sm:$0xff]
  %v142 = vld [vmem:[%s0 + $0x390] sm:$0xff]
  %v143 = vld [vmem:[%s0 + $0x398] sm:$0xff]
  %v144 = vld [vmem:[%s0 + $0x3a0] sm:$0xff]
  %v145 = vld [vmem:[%s0 + $0x3a8] sm:$0xff]
  %v146 = vld [vmem:[%s0 + $0x3b0] sm:$0xff]
  %v147 = vld [vmem:[%s0 + $0x3b8] sm:$0xff]
  %v148 = vld [vmem:[%s0 + $0x3c0] sm:$0xff]
  %v149 = vld [vmem:[%s0 + $0x3c8] sm:$0xff]
  %v150 = vld [vmem:[%s0 + $0x3d0] sm:$0xff]
  %v151 = vld [vmem:[%s0 + $0x3d8] sm:$0xff]
  %v152 = vld [vmem:[%s0 + $0x3e0] sm:$0xff]
  %v153 = vld [vmem:[%s0 + $0x3e8] sm:$0xff]
  %v154 = vld [vmem:[%s0 + $0x3f0] sm:$0xff]
  %v155 = vld [vmem:[%s0 + $0x3f8] sm:$0xff]
  %v156 = vld [vmem:[%s1] sm:$0xff]
  %v157 = vld [vmem:[%s2] sm:$0x1]
  %159 = vset.pattern.permute.xlu0 0
  %160 = vperm.xlu0 %159, %v28
  %v161 = vpop.permute.xlu0 %160
  %164 = vset.pattern.permute.xlu0 0
  %165 = vperm.xlu0 %164, %v29
  %v166 = vpop.permute.xlu0 %165
  %169 = vset.pattern.permute.xlu0 0
  %170 = vperm.xlu0 %169, %v30
  %v171 = vpop.permute.xlu0 %170
  %174 = vset.pattern.permute.xlu0 0
  %175 = vperm.xlu0 %174, %v31
  %v176 = vpop.permute.xlu0 %175
  %179 = vset.pattern.permute.xlu0 0
  %180 = vperm.xlu0 %179, %v32
  %v181 = vpop.permute.xlu0 %180
  %184 = vset.pattern.permute.xlu0 0
  %185 = vperm.xlu0 %184, %v33
  %v186 = vpop.permute.xlu0 %185
  %189 = vset.pattern.permute.xlu0 0
  %190 = vperm.xlu0 %189, %v34
  %v191 = vpop.permute.xlu0 %190
  %194 = vset.pattern.permute.xlu0 0
  %195 = vperm.xlu0 %194, %v35
  %v196 = vpop.permute.xlu0 %195
  %199 = vset.pattern.permute.xlu0 0
  %200 = vperm.xlu0 %199, %v36
  %v201 = vpop.permute.xlu0 %200
  %204 = vset.pattern.permute.xlu0 0
  %205 = vperm.xlu0 %204, %v37
  %v206 = vpop.permute.xlu0 %205
  %209 = vset.pattern.permute.xlu0 0
  %210 = vperm.xlu0 %209, %v38
  %v211 = vpop.permute.xlu0 %210
  %214 = vset.pattern.permute.xlu0 0
  %215 = vperm.xlu0 %214, %v39
  %v216 = vpop.permute.xlu0 %215
  %219 = vset.pattern.permute.xlu0 0
  %220 = vperm.xlu0 %219, %v40
  %v221 = vpop.permute.xlu0 %220
  %224 = vset.pattern.permute.xlu0 0
  %225 = vperm.xlu0 %224, %v41
  %v226 = vpop.permute.xlu0 %225
  %229 = vset.pattern.permute.xlu0 0
  %230 = vperm.xlu0 %229, %v42
  %v231 = vpop.permute.xlu0 %230
  %234 = vset.pattern.permute.xlu0 0
  %235 = vperm.xlu0 %234, %v43
  %v236 = vpop.permute.xlu0 %235
  %239 = vset.pattern.permute.xlu0 0
  %240 = vperm.xlu0 %239, %v44
  %v241 = vpop.permute.xlu0 %240
  %244 = vset.pattern.permute.xlu0 0
  %245 = vperm.xlu0 %244, %v45
  %v246 = vpop.permute.xlu0 %245
  %249 = vset.pattern.permute.xlu0 0
  %250 = vperm.xlu0 %249, %v46
  %v251 = vpop.permute.xlu0 %250
  %254 = vset.pattern.permute.xlu0 0
  %255 = vperm.xlu0 %254, %v47
  %v256 = vpop.permute.xlu0 %255
  %259 = vset.pattern.permute.xlu0 0
  %260 = vperm.xlu0 %259, %v48
  %v261 = vpop.permute.xlu0 %260
  %264 = vset.pattern.permute.xlu0 0
  %265 = vperm.xlu0 %264, %v49
  %v266 = vpop.permute.xlu0 %265
  %269 = vset.pattern.permute.xlu0 0
  %270 = vperm.xlu0 %269, %v50
  %v271 = vpop.permute.xlu0 %270
  %274 = vset.pattern.permute.xlu0 0
  %275 = vperm.xlu0 %274, %v51
  %v276 = vpop.permute.xlu0 %275
  %279 = vset.pattern.permute.xlu0 0
  %280 = vperm.xlu0 %279, %v52
  %v281 = vpop.permute.xlu0 %280
  %284 = vset.pattern.permute.xlu0 0
  %285 = vperm.xlu0 %284, %v53
  %v286 = vpop.permute.xlu0 %285
  %289 = vset.pattern.permute.xlu0 0
  %290 = vperm.xlu0 %289, %v54
  %v291 = vpop.permute.xlu0 %290
  %294 = vset.pattern.permute.xlu0 0
  %295 = vperm.xlu0 %294, %v55
  %v296 = vpop.permute.xlu0 %295
  %299 = vset.pattern.permute.xlu0 0
  %300 = vperm.xlu0 %299, %v56
  %v301 = vpop.permute.xlu0 %300
  %304 = vset.pattern.permute.xlu0 0
  %305 = vperm.xlu0 %304, %v57
  %v306 = vpop.permute.xlu0 %305
  %309 = vset.pattern.permute.xlu0 0
  %310 = vperm.xlu0 %309, %v58
  %v311 = vpop.permute.xlu0 %310
  %314 = vset.pattern.permute.xlu0 0
  %315 = vperm.xlu0 %314, %v59
  %v316 = vpop.permute.xlu0 %315
  %319 = vset.pattern.permute.xlu0 0
  %320 = vperm.xlu0 %319, %v60
  %v321 = vpop.permute.xlu0 %320
  %324 = vset.pattern.permute.xlu0 0
  %325 = vperm.xlu0 %324, %v61
  %v326 = vpop.permute.xlu0 %325
  %329 = vset.pattern.permute.xlu0 0
  %330 = vperm.xlu0 %329, %v62
  %v331 = vpop.permute.xlu0 %330
  %334 = vset.pattern.permute.xlu0 0
  %335 = vperm.xlu0 %334, %v63
  %v336 = vpop.permute.xlu0 %335
  %339 = vset.pattern.permute.xlu0 0
  %340 = vperm.xlu0 %339, %v64
  %v341 = vpop.permute.xlu0 %340
  %344 = vset.pattern.permute.xlu0 0
  %345 = vperm.xlu0 %344, %v65
  %v346 = vpop.permute.xlu0 %345
  %349 = vset.pattern.permute.xlu0 0
  %350 = vperm.xlu0 %349, %v66
  %v351 = vpop.permute.xlu0 %350
  %354 = vset.pattern.permute.xlu0 0
  %355 = vperm.xlu0 %354, %v67
  %v356 = vpop.permute.xlu0 %355
  %359 = vset.pattern.permute.xlu0 0
  %360 = vperm.xlu0 %359, %v68
  %v361 = vpop.permute.xlu0 %360
  %364 = vset.pattern.permute.xlu0 0
  %365 = vperm.xlu0 %364, %v69
  %v366 = vpop.permute.xlu0 %365
  %369 = vset.pattern.permute.xlu0 0
  %370 = vperm.xlu0 %369, %v70
  %v371 = vpop.permute.xlu0 %370
  %374 = vset.pattern.permute.xlu0 0
  %375 = vperm.xlu0 %374, %v71
  %v376 = vpop.permute.xlu0 %375
  %379 = vset.pattern.permute.xlu0 0
  %380 = vperm.xlu0 %379, %v72
  %v381 = vpop.permute.xlu0 %380
  %384 = vset.pattern.permute.xlu0 0
  %385 = vperm.xlu0 %384, %v73
  %v386 = vpop.permute.xlu0 %385
  %389 = vset.pattern.permute.xlu0 0
  %390 = vperm.xlu0 %389, %v74
  %v391 = vpop.permute.xlu0 %390
  %394 = vset.pattern.permute.xlu0 0
  %395 = vperm.xlu0 %394, %v75
  %v396 = vpop.permute.xlu0 %395
  %399 = vset.pattern.permute.xlu0 0
  %400 = vperm.xlu0 %399, %v76
  %v401 = vpop.permute.xlu0 %400
  %404 = vset.pattern.permute.xlu0 0
  %405 = vperm.xlu0 %404, %v77
  %v406 = vpop.permute.xlu0 %405
  %409 = vset.pattern.permute.xlu0 0
  %410 = vperm.xlu0 %409, %v78
  %v411 = vpop.permute.xlu0 %410
  %414 = vset.pattern.permute.xlu0 0
  %415 = vperm.xlu0 %414, %v79
  %v416 = vpop.permute.xlu0 %415
  %419 = vset.pattern.permute.xlu0 0
  %420 = vperm.xlu0 %419, %v80
  %v421 = vpop.permute.xlu0 %420
  %424 = vset.pattern.permute.xlu0 0
  %425 = vperm.xlu0 %424, %v81
  %v426 = vpop.permute.xlu0 %425
  %429 = vset.pattern.permute.xlu0 0
  %430 = vperm.xlu0 %429, %v82
  %v431 = vpop.permute.xlu0 %430
  %434 = vset.pattern.permute.xlu0 0
  %435 = vperm.xlu0 %434, %v83
  %v436 = vpop.permute.xlu0 %435
  %439 = vset.pattern.permute.xlu0 0
  %440 = vperm.xlu0 %439, %v84
  %v441 = vpop.permute.xlu0 %440
  %444 = vset.pattern.permute.xlu0 0
  %445 = vperm.xlu0 %444, %v85
  %v446 = vpop.permute.xlu0 %445
  %449 = vset.pattern.permute.xlu0 0
  %450 = vperm.xlu0 %449, %v86
  %v451 = vpop.permute.xlu0 %450
  %454 = vset.pattern.permute.xlu0 0
  %455 = vperm.xlu0 %454, %v87
  %v456 = vpop.permute.xlu0 %455
  %459 = vset.pattern.permute.xlu0 0
  %460 = vperm.xlu0 %459, %v88
  %v461 = vpop.permute.xlu0 %460
  %464 = vset.pattern.permute.xlu0 0
  %465 = vperm.xlu0 %464, %v89
  %v466 = vpop.permute.xlu0 %465
  %469 = vset.pattern.permute.xlu0 0
  %470 = vperm.xlu0 %469, %v90
  %v471 = vpop.permute.xlu0 %470
  %474 = vset.pattern.permute.xlu0 0
  %475 = vperm.xlu0 %474, %v91
  %v476 = vpop.permute.xlu0 %475
  %479 = vset.pattern.permute.xlu0 0
  %480 = vperm.xlu0 %479, %v92
  %v481 = vpop.permute.xlu0 %480
  %484 = vset.pattern.permute.xlu0 0
  %485 = vperm.xlu0 %484, %v93
  %v486 = vpop.permute.xlu0 %485
  %489 = vset.pattern.permute.xlu0 0
  %490 = vperm.xlu0 %489, %v94
  %v491 = vpop.permute.xlu0 %490
  %494 = vset.pattern.permute.xlu0 0
  %495 = vperm.xlu0 %494, %v95
  %v496 = vpop.permute.xlu0 %495
  %499 = vset.pattern.permute.xlu0 0
  %500 = vperm.xlu0 %499, %v96
  %v501 = vpop.permute.xlu0 %500
  %504 = vset.pattern.permute.xlu0 0
  %505 = vperm.xlu0 %504, %v97
  %v506 = vpop.permute.xlu0 %505
  %509 = vset.pattern.permute.xlu0 0
  %510 = vperm.xlu0 %509, %v98
  %v511 = vpop.permute.xlu0 %510
  %514 = vset.pattern.permute.xlu0 0
  %515 = vperm.xlu0 %514, %v99
  %v516 = vpop.permute.xlu0 %515
  %519 = vset.pattern.permute.xlu0 0
  %520 = vperm.xlu0 %519, %v100
  %v521 = vpop.permute.xlu0 %520
  %524 = vset.pattern.permute.xlu0 0
  %525 = vperm.xlu0 %524, %v101
  %v526 = vpop.permute.xlu0 %525
  %529 = vset.pattern.permute.xlu0 0
  %530 = vperm.xlu0 %529, %v102
  %v531 = vpop.permute.xlu0 %530
  %534 = vset.pattern.permute.xlu0 0
  %535 = vperm.xlu0 %534, %v103
  %v536 = vpop.permute.xlu0 %535
  %539 = vset.pattern.permute.xlu0 0
  %540 = vperm.xlu0 %539, %v104
  %v541 = vpop.permute.xlu0 %540
  %544 = vset.pattern.permute.xlu0 0
  %545 = vperm.xlu0 %544, %v105
  %v546 = vpop.permute.xlu0 %545
  %549 = vset.pattern.permute.xlu0 0
  %550 = vperm.xlu0 %549, %v106
  %v551 = vpop.permute.xlu0 %550
  %554 = vset.pattern.permute.xlu0 0
  %555 = vperm.xlu0 %554, %v107
  %v556 = vpop.permute.xlu0 %555
  %559 = vset.pattern.permute.xlu0 0
  %560 = vperm.xlu0 %559, %v108
  %v561 = vpop.permute.xlu0 %560
  %564 = vset.pattern.permute.xlu0 0
  %565 = vperm.xlu0 %564, %v109
  %v566 = vpop.permute.xlu0 %565
  %569 = vset.pattern.permute.xlu0 0
  %570 = vperm.xlu0 %569, %v110
  %v571 = vpop.permute.xlu0 %570
  %574 = vset.pattern.permute.xlu0 0
  %575 = vperm.xlu0 %574, %v111
  %v576 = vpop.permute.xlu0 %575
  %579 = vset.pattern.permute.xlu0 0
  %580 = vperm.xlu0 %579, %v112
  %v581 = vpop.permute.xlu0 %580
  %584 = vset.pattern.permute.xlu0 0
  %585 = vperm.xlu0 %584, %v113
  %v586 = vpop.permute.xlu0 %585
  %589 = vset.pattern.permute.xlu0 0
  %590 = vperm.xlu0 %589, %v114
  %v591 = vpop.permute.xlu0 %590
  %594 = vset.pattern.permute.xlu0 0
  %595 = vperm.xlu0 %594, %v115
  %v596 = vpop.permute.xlu0 %595
  %599 = vset.pattern.permute.xlu0 0
  %600 = vperm.xlu0 %599, %v116
  %v601 = vpop.permute.xlu0 %600
  %604 = vset.pattern.permute.xlu0 0
  %605 = vperm.xlu0 %604, %v117
  %v606 = vpop.permute.xlu0 %605
  %609 = vset.pattern.permute.xlu0 0
  %610 = vperm.xlu0 %609, %v118
  %v611 = vpop.permute.xlu0 %610
  %614 = vset.pattern.permute.xlu0 0
  %615 = vperm.xlu0 %614, %v119
  %v616 = vpop.permute.xlu0 %615
  %619 = vset.pattern.permute.xlu0 0
  %620 = vperm.xlu0 %619, %v120
  %v621 = vpop.permute.xlu0 %620
  %624 = vset.pattern.permute.xlu0 0
  %625 = vperm.xlu0 %624, %v121
  %v626 = vpop.permute.xlu0 %625
  %629 = vset.pattern.permute.xlu0 0
  %630 = vperm.xlu0 %629, %v122
  %v631 = vpop.permute.xlu0 %630
  %634 = vset.pattern.permute.xlu0 0
  %635 = vperm.xlu0 %634, %v123
  %v636 = vpop.permute.xlu0 %635
  %639 = vset.pattern.permute.xlu0 0
  %640 = vperm.xlu0 %639, %v124
  %v641 = vpop.permute.xlu0 %640
  %644 = vset.pattern.permute.xlu0 0
  %645 = vperm.xlu0 %644, %v125
  %v646 = vpop.permute.xlu0 %645
  %649 = vset.pattern.permute.xlu0 0
  %650 = vperm.xlu0 %649, %v126
  %v651 = vpop.permute.xlu0 %650
  %654 = vset.pattern.permute.xlu0 0
  %655 = vperm.xlu0 %654, %v127
  %v656 = vpop.permute.xlu0 %655
  %659 = vset.pattern.permute.xlu0 0
  %660 = vperm.xlu0 %659, %v128
  %v661 = vpop.permute.xlu0 %660
  %664 = vset.pattern.permute.xlu0 0
  %665 = vperm.xlu0 %664, %v129
  %v666 = vpop.permute.xlu0 %665
  %669 = vset.pattern.permute.xlu0 0
  %670 = vperm.xlu0 %669, %v130
  %v671 = vpop.permute.xlu0 %670
  %674 = vset.pattern.permute.xlu0 0
  %675 = vperm.xlu0 %674, %v131
  %v676 = vpop.permute.xlu0 %675
  %679 = vset.pattern.permute.xlu0 0
  %680 = vperm.xlu0 %679, %v132
  %v681 = vpop.permute.xlu0 %680
  %684 = vset.pattern.permute.xlu0 0
  %685 = vperm.xlu0 %684, %v133
  %v686 = vpop.permute.xlu0 %685
  %689 = vset.pattern.permute.xlu0 0
  %690 = vperm.xlu0 %689, %v134
  %v691 = vpop.permute.xlu0 %690
  %694 = vset.pattern.permute.xlu0 0
  %695 = vperm.xlu0 %694, %v135
  %v696 = vpop.permute.xlu0 %695
  %699 = vset.pattern.permute.xlu0 0
  %700 = vperm.xlu0 %699, %v136
  %v701 = vpop.permute.xlu0 %700
  %704 = vset.pattern.permute.xlu0 0
  %705 = vperm.xlu0 %704, %v137
  %v706 = vpop.permute.xlu0 %705
  %709 = vset.pattern.permute.xlu0 0
  %710 = vperm.xlu0 %709, %v138
  %v711 = vpop.permute.xlu0 %710
  %714 = vset.pattern.permute.xlu0 0
  %715 = vperm.xlu0 %714, %v139
  %v716 = vpop.permute.xlu0 %715
  %719 = vset.pattern.permute.xlu0 0
  %720 = vperm.xlu0 %719, %v140
  %v721 = vpop.permute.xlu0 %720
  %724 = vset.pattern.permute.xlu0 0
  %725 = vperm.xlu0 %724, %v141
  %v726 = vpop.permute.xlu0 %725
  %729 = vset.pattern.permute.xlu0 0
  %730 = vperm.xlu0 %729, %v142
  %v731 = vpop.permute.xlu0 %730
  %734 = vset.pattern.permute.xlu0 0
  %735 = vperm.xlu0 %734, %v143
  %v736 = vpop.permute.xlu0 %735
  %739 = vset.pattern.permute.xlu0 0
  %740 = vperm.xlu0 %739, %v144
  %v741 = vpop.permute.xlu0 %740
  %744 = vset.pattern.permute.xlu0 0
  %745 = vperm.xlu0 %744, %v145
  %v746 = vpop.permute.xlu0 %745
  %749 = vset.pattern.permute.xlu0 0
  %750 = vperm.xlu0 %749, %v146
  %v751 = vpop.permute.xlu0 %750
  %754 = vset.pattern.permute.xlu0 0
  %755 = vperm.xlu0 %754, %v147
  %v756 = vpop.permute.xlu0 %755
  %759 = vset.pattern.permute.xlu0 0
  %760 = vperm.xlu0 %759, %v148
  %v761 = vpop.permute.xlu0 %760
  %764 = vset.pattern.permute.xlu0 0
  %765 = vperm.xlu0 %764, %v149
  %v766 = vpop.permute.xlu0 %765
  %769 = vset.pattern.permute.xlu0 0
  %770 = vperm.xlu0 %769, %v150
  %v771 = vpop.permute.xlu0 %770
  %774 = vset.pattern.permute.xlu0 0
  %775 = vperm.xlu0 %774, %v151
  %v776 = vpop.permute.xlu0 %775
  %779 = vset.pattern.permute.xlu0 0
  %780 = vperm.xlu0 %779, %v152
  %v781 = vpop.permute.xlu0 %780
  %784 = vset.pattern.permute.xlu0 0
  %785 = vperm.xlu0 %784, %v153
  %v786 = vpop.permute.xlu0 %785
  %789 = vset.pattern.permute.xlu0 0
  %790 = vperm.xlu0 %789, %v154
  %v791 = vpop.permute.xlu0 %790
  %794 = vset.pattern.permute.xlu0 0
  %795 = vperm.xlu0 %794, %v155
  %v796 = vpop.permute.xlu0 %795
  %v798 = vlaneseq
  %v799 = vshrl.u32 %v798, 7
  %v800 = vsub.s32 0, %v799
  %v801 = vrot.slane %v156, %v800
  %v802 = vmul.f32 %v161, %v801
  %v803 = vmul.f32 %v166, %v801
  %v804 = vmul.f32 %v171, %v801
  %v805 = vmul.f32 %v176, %v801
  %v806 = vmul.f32 %v181, %v801
  %v807 = vmul.f32 %v186, %v801
  %v808 = vmul.f32 %v191, %v801
  %v809 = vmul.f32 %v196, %v801
  %v810 = vmul.f32 %v201, %v801
  %v811 = vmul.f32 %v206, %v801
  %v812 = vmul.f32 %v211, %v801
  %v813 = vmul.f32 %v216, %v801
  %v814 = vmul.f32 %v221, %v801
  %v815 = vmul.f32 %v226, %v801
  %v816 = vmul.f32 %v231, %v801
  %v817 = vmul.f32 %v236, %v801
  %v818 = vmul.f32 %v241, %v801
  %v819 = vmul.f32 %v246, %v801
  %v820 = vmul.f32 %v251, %v801
  %v821 = vmul.f32 %v256, %v801
  %v822 = vmul.f32 %v261, %v801
  %v823 = vmul.f32 %v266, %v801
  %v824 = vmul.f32 %v271, %v801
  %v825 = vmul.f32 %v276, %v801
  %v826 = vmul.f32 %v281, %v801
  %v827 = vmul.f32 %v286, %v801
  %v828 = vmul.f32 %v291, %v801
  %v829 = vmul.f32 %v296, %v801
  %v830 = vmul.f32 %v301, %v801
  %v831 = vmul.f32 %v306, %v801
  %v832 = vmul.f32 %v311, %v801
  %v833 = vmul.f32 %v316, %v801
  %v834 = vmul.f32 %v321, %v801
  %v835 = vmul.f32 %v326, %v801
  %v836 = vmul.f32 %v331, %v801
  %v837 = vmul.f32 %v336, %v801
  %v838 = vmul.f32 %v341, %v801
  %v839 = vmul.f32 %v346, %v801
  %v840 = vmul.f32 %v351, %v801
  %v841 = vmul.f32 %v356, %v801
  %v842 = vmul.f32 %v361, %v801
  %v843 = vmul.f32 %v366, %v801
  %v844 = vmul.f32 %v371, %v801
  %v845 = vmul.f32 %v376, %v801
  %v846 = vmul.f32 %v381, %v801
  %v847 = vmul.f32 %v386, %v801
  %v848 = vmul.f32 %v391, %v801
  %v849 = vmul.f32 %v396, %v801
  %v850 = vmul.f32 %v401, %v801
  %v851 = vmul.f32 %v406, %v801
  %v852 = vmul.f32 %v411, %v801
  %v853 = vmul.f32 %v416, %v801
  %v854 = vmul.f32 %v421, %v801
  %v855 = vmul.f32 %v426, %v801
  %v856 = vmul.f32 %v431, %v801
  %v857 = vmul.f32 %v436, %v801
  %v858 = vmul.f32 %v441, %v801
  %v859 = vmul.f32 %v446, %v801
  %v860 = vmul.f32 %v451, %v801
  %v861 = vmul.f32 %v456, %v801
  %v862 = vmul.f32 %v461, %v801
  %v863 = vmul.f32 %v466, %v801
  %v864 = vmul.f32 %v471, %v801
  %v865 = vmul.f32 %v476, %v801
  %v866 = vmul.f32 %v481, %v801
  %v867 = vmul.f32 %v486, %v801
  %v868 = vmul.f32 %v491, %v801
  %v869 = vmul.f32 %v496, %v801
  %v870 = vmul.f32 %v501, %v801
  %v871 = vmul.f32 %v506, %v801
  %v872 = vmul.f32 %v511, %v801
  %v873 = vmul.f32 %v516, %v801
  %v874 = vmul.f32 %v521, %v801
  %v875 = vmul.f32 %v526, %v801
  %v876 = vmul.f32 %v531, %v801
  %v877 = vmul.f32 %v536, %v801
  %v878 = vmul.f32 %v541, %v801
  %v879 = vmul.f32 %v546, %v801
  %v880 = vmul.f32 %v551, %v801
  %v881 = vmul.f32 %v556, %v801
  %v882 = vmul.f32 %v561, %v801
  %v883 = vmul.f32 %v566, %v801
  %v884 = vmul.f32 %v571, %v801
  %v885 = vmul.f32 %v576, %v801
  %v886 = vmul.f32 %v581, %v801
  %v887 = vmul.f32 %v586, %v801
  %v888 = vmul.f32 %v591, %v801
  %v889 = vmul.f32 %v596, %v801
  %v890 = vmul.f32 %v601, %v801
  %v891 = vmul.f32 %v606, %v801
  %v892 = vmul.f32 %v611, %v801
  %v893 = vmul.f32 %v616, %v801
  %v894 = vmul.f32 %v621, %v801
  %v895 = vmul.f32 %v626, %v801
  %v896 = vmul.f32 %v631, %v801
  %v897 = vmul.f32 %v636, %v801
  %v898 = vmul.f32 %v641, %v801
  %v899 = vmul.f32 %v646, %v801
  %v900 = vmul.f32 %v651, %v801
  %v901 = vmul.f32 %v656, %v801
  %v902 = vmul.f32 %v661, %v801
  %v903 = vmul.f32 %v666, %v801
  %v904 = vmul.f32 %v671, %v801
  %v905 = vmul.f32 %v676, %v801
  %v906 = vmul.f32 %v681, %v801
  %v907 = vmul.f32 %v686, %v801
  %v908 = vmul.f32 %v691, %v801
  %v909 = vmul.f32 %v696, %v801
  %v910 = vmul.f32 %v701, %v801
  %v911 = vmul.f32 %v706, %v801
  %v912 = vmul.f32 %v711, %v801
  %v913 = vmul.f32 %v716, %v801
  %v914 = vmul.f32 %v721, %v801
  %v915 = vmul.f32 %v726, %v801
  %v916 = vmul.f32 %v731, %v801
  %v917 = vmul.f32 %v736, %v801
  %v918 = vmul.f32 %v741, %v801
  %v919 = vmul.f32 %v746, %v801
  %v920 = vmul.f32 %v751, %v801
  %v921 = vmul.f32 %v756, %v801
  %v922 = vmul.f32 %v761, %v801
  %v923 = vmul.f32 %v766, %v801
  %v924 = vmul.f32 %v771, %v801
  %v925 = vmul.f32 %v776, %v801
  %v926 = vmul.f32 %v781, %v801
  %v927 = vmul.f32 %v786, %v801
  %v928 = vmul.f32 %v791, %v801
  %v929 = vmul.f32 %v796, %v801
  %v931 = vlaneseq
  %v932 = vshrl.u32 %v931, 7
  %v933 = vsub.s32 0, %v932
  %v934 = vrot.slane %v157, %v933
  %v936 = vadd.f32 %v934, %v802
  %v937 = vadd.f32 %v934, %v803
  %v938 = vadd.f32 %v934, %v804
  %v939 = vadd.f32 %v934, %v805
  %v940 = vadd.f32 %v934, %v806
  %v941 = vadd.f32 %v934, %v807
  %v942 = vadd.f32 %v934, %v808
  %v943 = vadd.f32 %v934, %v809
  %v944 = vadd.f32 %v934, %v810
  %v945 = vadd.f32 %v934, %v811
  %v946 = vadd.f32 %v934, %v812
  %v947 = vadd.f32 %v934, %v813
  %v948 = vadd.f32 %v934, %v814
  %v949 = vadd.f32 %v934, %v815
  %v950 = vadd.f32 %v934, %v816
  %v951 = vadd.f32 %v934, %v817
  %v952 = vadd.f32 %v934, %v818
  %v953 = vadd.f32 %v934, %v819
  %v954 = vadd.f32 %v934, %v820
  %v955 = vadd.f32 %v934, %v821
  %v956 = vadd.f32 %v934, %v822
  %v957 = vadd.f32 %v934, %v823
  %v958 = vadd.f32 %v934, %v824
  %v959 = vadd.f32 %v934, %v825
  %v960 = vadd.f32 %v934, %v826
  %v961 = vadd.f32 %v934, %v827
  %v962 = vadd.f32 %v934, %v828
  %v963 = vadd.f32 %v934, %v829
  %v964 = vadd.f32 %v934, %v830
  %v965 = vadd.f32 %v934, %v831
  %v966 = vadd.f32 %v934, %v832
  %v967 = vadd.f32 %v934, %v833
  %v968 = vadd.f32 %v934, %v834
  %v969 = vadd.f32 %v934, %v835
  %v970 = vadd.f32 %v934, %v836
  %v971 = vadd.f32 %v934, %v837
  %v972 = vadd.f32 %v934, %v838
  %v973 = vadd.f32 %v934, %v839
  %v974 = vadd.f32 %v934, %v840
  %v975 = vadd.f32 %v934, %v841
  %v976 = vadd.f32 %v934, %v842
  %v977 = vadd.f32 %v934, %v843
  %v978 = vadd.f32 %v934, %v844
  %v979 = vadd.f32 %v934, %v845
  %v980 = vadd.f32 %v934, %v846
  %v981 = vadd.f32 %v934, %v847
  %v982 = vadd.f32 %v934, %v848
  %v983 = vadd.f32 %v934, %v849
  %v984 = vadd.f32 %v934, %v850
  %v985 = vadd.f32 %v934, %v851
  %v986 = vadd.f32 %v934, %v852
  %v987 = vadd.f32 %v934, %v853
  %v988 = vadd.f32 %v934, %v854
  %v989 = vadd.f32 %v934, %v855
  %v990 = vadd.f32 %v934, %v856
  %v991 = vadd.f32 %v934, %v857
  %v992 = vadd.f32 %v934, %v858
  %v993 = vadd.f32 %v934, %v859
  %v994 = vadd.f32 %v934, %v860
  %v995 = vadd.f32 %v934, %v861
  %v996 = vadd.f32 %v934, %v862
  %v997 = vadd.f32 %v934, %v863
  %v998 = vadd.f32 %v934, %v864
  %v999 = vadd.f32 %v934, %v865
  %v1000 = vadd.f32 %v934, %v866
  %v1001 = vadd.f32 %v934, %v867
  %v1002 = vadd.f32 %v934, %v868
  %v1003 = vadd.f32 %v934, %v869
  %v1004 = vadd.f32 %v934, %v870
  %v1005 = vadd.f32 %v934, %v871
  %v1006 = vadd.f32 %v934, %v872
  %v1007 = vadd.f32 %v934, %v873
  %v1008 = vadd.f32 %v934, %v874
  %v1009 = vadd.f32 %v934, %v875
  %v1010 = vadd.f32 %v934, %v876
  %v1011 = vadd.f32 %v934, %v877
  %v1012 = vadd.f32 %v934, %v878
  %v1013 = vadd.f32 %v934, %v879
  %v1014 = vadd.f32 %v934, %v880
  %v1015 = vadd.f32 %v934, %v881
  %v1016 = vadd.f32 %v934, %v882
  %v1017 = vadd.f32 %v934, %v883
  %v1018 = vadd.f32 %v934, %v884
  %v1019 = vadd.f32 %v934, %v885
  %v1020 = vadd.f32 %v934, %v886
  %v1021 = vadd.f32 %v934, %v887
  %v1022 = vadd.f32 %v934, %v888
  %v1023 = vadd.f32 %v934, %v889
  %v1024 = vadd.f32 %v934, %v890
  %v1025 = vadd.f32 %v934, %v891
  %v1026 = vadd.f32 %v934, %v892
  %v1027 = vadd.f32 %v934, %v893
  %v1028 = vadd.f32 %v934, %v894
  %v1029 = vadd.f32 %v934, %v895
  %v1030 = vadd.f32 %v934, %v896
  %v1031 = vadd.f32 %v934, %v897
  %v1032 = vadd.f32 %v934, %v898
  %v1033 = vadd.f32 %v934, %v899
  %v1034 = vadd.f32 %v934, %v900
  %v1035 = vadd.f32 %v934, %v901
  %v1036 = vadd.f32 %v934, %v902
  %v1037 = vadd.f32 %v934, %v903
  %v1038 = vadd.f32 %v934, %v904
  %v1039 = vadd.f32 %v934, %v905
  %v1040 = vadd.f32 %v934, %v906
  %v1041 = vadd.f32 %v934, %v907
  %v1042 = vadd.f32 %v934, %v908
  %v1043 = vadd.f32 %v934, %v909
  %v1044 = vadd.f32 %v934, %v910
  %v1045 = vadd.f32 %v934, %v911
  %v1046 = vadd.f32 %v934, %v912
  %v1047 = vadd.f32 %v934, %v913
  %v1048 = vadd.f32 %v934, %v914
  %v1049 = vadd.f32 %v934, %v915
  %v1050 = vadd.f32 %v934, %v916
  %v1051 = vadd.f32 %v934, %v917
  %v1052 = vadd.f32 %v934, %v918
  %v1053 = vadd.f32 %v934, %v919
  %v1054 = vadd.f32 %v934, %v920
  %v1055 = vadd.f32 %v934, %v921
  %v1056 = vadd.f32 %v934, %v922
  %v1057 = vadd.f32 %v934, %v923
  %v1058 = vadd.f32 %v934, %v924
  %v1059 = vadd.f32 %v934, %v925
  %v1060 = vadd.f32 %v934, %v926
  %v1061 = vadd.f32 %v934, %v927
  %v1062 = vadd.f32 %v934, %v928
  %v1063 = vadd.f32 %v934, %v929
  %1064 = vset.pattern.permute.xlu0 1
  %1065 = vperm.xlu0 %1064, %v28
  %v1066 = vpop.permute.xlu0 %1065
  %1068 = vset.pattern.permute.xlu0 1
  %1069 = vperm.xlu0 %1068, %v29
  %v1070 = vpop.permute.xlu0 %1069
  %1072 = vset.pattern.permute.xlu0 1
  %1073 = vperm.xlu0 %1072, %v30
  %v1074 = vpop.permute.xlu0 %1073
  %1076 = vset.pattern.permute.xlu0 1
  %1077 = vperm.xlu0 %1076, %v31
  %v1078 = vpop.permute.xlu0 %1077
  %1080 = vset.pattern.permute.xlu0 1
  %1081 = vperm.xlu0 %1080, %v32
  %v1082 = vpop.permute.xlu0 %1081
  %1084 = vset.pattern.permute.xlu0 1
  %1085 = vperm.xlu0 %1084, %v33
  %v1086 = vpop.permute.xlu0 %1085
  %1088 = vset.pattern.permute.xlu0 1
  %1089 = vperm.xlu0 %1088, %v34
  %v1090 = vpop.permute.xlu0 %1089
  %1092 = vset.pattern.permute.xlu0 1
  %1093 = vperm.xlu0 %1092, %v35
  %v1094 = vpop.permute.xlu0 %1093
  %1096 = vset.pattern.permute.xlu0 1
  %1097 = vperm.xlu0 %1096, %v36
  %v1098 = vpop.permute.xlu0 %1097
  %1100 = vset.pattern.permute.xlu0 1
  %1101 = vperm.xlu0 %1100, %v37
  %v1102 = vpop.permute.xlu0 %1101
  %1104 = vset.pattern.permute.xlu0 1
  %1105 = vperm.xlu0 %1104, %v38
  %v1106 = vpop.permute.xlu0 %1105
  %1108 = vset.pattern.permute.xlu0 1
  %1109 = vperm.xlu0 %1108, %v39
  %v1110 = vpop.permute.xlu0 %1109
  %1112 = vset.pattern.permute.xlu0 1
  %1113 = vperm.xlu0 %1112, %v40
  %v1114 = vpop.permute.xlu0 %1113
  %1116 = vset.pattern.permute.xlu0 1
  %1117 = vperm.xlu0 %1116, %v41
  %v1118 = vpop.permute.xlu0 %1117
  %1120 = vset.pattern.permute.xlu0 1
  %1121 = vperm.xlu0 %1120, %v42
  %v1122 = vpop.permute.xlu0 %1121
  %1124 = vset.pattern.permute.xlu0 1
  %1125 = vperm.xlu0 %1124, %v43
  %v1126 = vpop.permute.xlu0 %1125
  %1128 = vset.pattern.permute.xlu0 1
  %1129 = vperm.xlu0 %1128, %v44
  %v1130 = vpop.permute.xlu0 %1129
  %1132 = vset.pattern.permute.xlu0 1
  %1133 = vperm.xlu0 %1132, %v45
  %v1134 = vpop.permute.xlu0 %1133
  %1136 = vset.pattern.permute.xlu0 1
  %1137 = vperm.xlu0 %1136, %v46
  %v1138 = vpop.permute.xlu0 %1137
  %1140 = vset.pattern.permute.xlu0 1
  %1141 = vperm.xlu0 %1140, %v47
  %v1142 = vpop.permute.xlu0 %1141
  %1144 = vset.pattern.permute.xlu0 1
  %1145 = vperm.xlu0 %1144, %v48
  %v1146 = vpop.permute.xlu0 %1145
  %1148 = vset.pattern.permute.xlu0 1
  %1149 = vperm.xlu0 %1148, %v49
  %v1150 = vpop.permute.xlu0 %1149
  %1152 = vset.pattern.permute.xlu0 1
  %1153 = vperm.xlu0 %1152, %v50
  %v1154 = vpop.permute.xlu0 %1153
  %1156 = vset.pattern.permute.xlu0 1
  %1157 = vperm.xlu0 %1156, %v51
  %v1158 = vpop.permute.xlu0 %1157
  %1160 = vset.pattern.permute.xlu0 1
  %1161 = vperm.xlu0 %1160, %v52
  %v1162 = vpop.permute.xlu0 %1161
  %1164 = vset.pattern.permute.xlu0 1
  %1165 = vperm.xlu0 %1164, %v53
  %v1166 = vpop.permute.xlu0 %1165
  %1168 = vset.pattern.permute.xlu0 1
  %1169 = vperm.xlu0 %1168, %v54
  %v1170 = vpop.permute.xlu0 %1169
  %1172 = vset.pattern.permute.xlu0 1
  %1173 = vperm.xlu0 %1172, %v55
  %v1174 = vpop.permute.xlu0 %1173
  %1176 = vset.pattern.permute.xlu0 1
  %1177 = vperm.xlu0 %1176, %v56
  %v1178 = vpop.permute.xlu0 %1177
  %1180 = vset.pattern.permute.xlu0 1
  %1181 = vperm.xlu0 %1180, %v57
  %v1182 = vpop.permute.xlu0 %1181
  %1184 = vset.pattern.permute.xlu0 1
  %1185 = vperm.xlu0 %1184, %v58
  %v1186 = vpop.permute.xlu0 %1185
  %1188 = vset.pattern.permute.xlu0 1
  %1189 = vperm.xlu0 %1188, %v59
  %v1190 = vpop.permute.xlu0 %1189
  %1192 = vset.pattern.permute.xlu0 1
  %1193 = vperm.xlu0 %1192, %v60
  %v1194 = vpop.permute.xlu0 %1193
  %1196 = vset.pattern.permute.xlu0 1
  %1197 = vperm.xlu0 %1196, %v61
  %v1198 = vpop.permute.xlu0 %1197
  %1200 = vset.pattern.permute.xlu0 1
  %1201 = vperm.xlu0 %1200, %v62
  %v1202 = vpop.permute.xlu0 %1201
  %1204 = vset.pattern.permute.xlu0 1
  %1205 = vperm.xlu0 %1204, %v63
  %v1206 = vpop.permute.xlu0 %1205
  %1208 = vset.pattern.permute.xlu0 1
  %1209 = vperm.xlu0 %1208, %v64
  %v1210 = vpop.permute.xlu0 %1209
  %1212 = vset.pattern.permute.xlu0 1
  %1213 = vperm.xlu0 %1212, %v65
  %v1214 = vpop.permute.xlu0 %1213
  %1216 = vset.pattern.permute.xlu0 1
  %1217 = vperm.xlu0 %1216, %v66
  %v1218 = vpop.permute.xlu0 %1217
  %1220 = vset.pattern.permute.xlu0 1
  %1221 = vperm.xlu0 %1220, %v67
  %v1222 = vpop.permute.xlu0 %1221
  %1224 = vset.pattern.permute.xlu0 1
  %1225 = vperm.xlu0 %1224, %v68
  %v1226 = vpop.permute.xlu0 %1225
  %1228 = vset.pattern.permute.xlu0 1
  %1229 = vperm.xlu0 %1228, %v69
  %v1230 = vpop.permute.xlu0 %1229
  %1232 = vset.pattern.permute.xlu0 1
  %1233 = vperm.xlu0 %1232, %v70
  %v1234 = vpop.permute.xlu0 %1233
  %1236 = vset.pattern.permute.xlu0 1
  %1237 = vperm.xlu0 %1236, %v71
  %v1238 = vpop.permute.xlu0 %1237
  %1240 = vset.pattern.permute.xlu0 1
  %1241 = vperm.xlu0 %1240, %v72
  %v1242 = vpop.permute.xlu0 %1241
  %1244 = vset.pattern.permute.xlu0 1
  %1245 = vperm.xlu0 %1244, %v73
  %v1246 = vpop.permute.xlu0 %1245
  %1248 = vset.pattern.permute.xlu0 1
  %1249 = vperm.xlu0 %1248, %v74
  %v1250 = vpop.permute.xlu0 %1249
  %1252 = vset.pattern.permute.xlu0 1
  %1253 = vperm.xlu0 %1252, %v75
  %v1254 = vpop.permute.xlu0 %1253
  %1256 = vset.pattern.permute.xlu0 1
  %1257 = vperm.xlu0 %1256, %v76
  %v1258 = vpop.permute.xlu0 %1257
  %1260 = vset.pattern.permute.xlu0 1
  %1261 = vperm.xlu0 %1260, %v77
  %v1262 = vpop.permute.xlu0 %1261
  %1264 = vset.pattern.permute.xlu0 1
  %1265 = vperm.xlu0 %1264, %v78
  %v1266 = vpop.permute.xlu0 %1265
  %1268 = vset.pattern.permute.xlu0 1
  %1269 = vperm.xlu0 %1268, %v79
  %v1270 = vpop.permute.xlu0 %1269
  %1272 = vset.pattern.permute.xlu0 1
  %1273 = vperm.xlu0 %1272, %v80
  %v1274 = vpop.permute.xlu0 %1273
  %1276 = vset.pattern.permute.xlu0 1
  %1277 = vperm.xlu0 %1276, %v81
  %v1278 = vpop.permute.xlu0 %1277
  %1280 = vset.pattern.permute.xlu0 1
  %1281 = vperm.xlu0 %1280, %v82
  %v1282 = vpop.permute.xlu0 %1281
  %1284 = vset.pattern.permute.xlu0 1
  %1285 = vperm.xlu0 %1284, %v83
  %v1286 = vpop.permute.xlu0 %1285
  %1288 = vset.pattern.permute.xlu0 1
  %1289 = vperm.xlu0 %1288, %v84
  %v1290 = vpop.permute.xlu0 %1289
  %1292 = vset.pattern.permute.xlu0 1
  %1293 = vperm.xlu0 %1292, %v85
  %v1294 = vpop.permute.xlu0 %1293
  %1296 = vset.pattern.permute.xlu0 1
  %1297 = vperm.xlu0 %1296, %v86
  %v1298 = vpop.permute.xlu0 %1297
  %1300 = vset.pattern.permute.xlu0 1
  %1301 = vperm.xlu0 %1300, %v87
  %v1302 = vpop.permute.xlu0 %1301
  %1304 = vset.pattern.permute.xlu0 1
  %1305 = vperm.xlu0 %1304, %v88
  %v1306 = vpop.permute.xlu0 %1305
  %1308 = vset.pattern.permute.xlu0 1
  %1309 = vperm.xlu0 %1308, %v89
  %v1310 = vpop.permute.xlu0 %1309
  %1312 = vset.pattern.permute.xlu0 1
  %1313 = vperm.xlu0 %1312, %v90
  %v1314 = vpop.permute.xlu0 %1313
  %1316 = vset.pattern.permute.xlu0 1
  %1317 = vperm.xlu0 %1316, %v91
  %v1318 = vpop.permute.xlu0 %1317
  %1320 = vset.pattern.permute.xlu0 1
  %1321 = vperm.xlu0 %1320, %v92
  %v1322 = vpop.permute.xlu0 %1321
  %1324 = vset.pattern.permute.xlu0 1
  %1325 = vperm.xlu0 %1324, %v93
  %v1326 = vpop.permute.xlu0 %1325
  %1328 = vset.pattern.permute.xlu0 1
  %1329 = vperm.xlu0 %1328, %v94
  %v1330 = vpop.permute.xlu0 %1329
  %1332 = vset.pattern.permute.xlu0 1
  %1333 = vperm.xlu0 %1332, %v95
  %v1334 = vpop.permute.xlu0 %1333
  %1336 = vset.pattern.permute.xlu0 1
  %1337 = vperm.xlu0 %1336, %v96
  %v1338 = vpop.permute.xlu0 %1337
  %1340 = vset.pattern.permute.xlu0 1
  %1341 = vperm.xlu0 %1340, %v97
  %v1342 = vpop.permute.xlu0 %1341
  %1344 = vset.pattern.permute.xlu0 1
  %1345 = vperm.xlu0 %1344, %v98
  %v1346 = vpop.permute.xlu0 %1345
  %1348 = vset.pattern.permute.xlu0 1
  %1349 = vperm.xlu0 %1348, %v99
  %v1350 = vpop.permute.xlu0 %1349
  %1352 = vset.pattern.permute.xlu0 1
  %1353 = vperm.xlu0 %1352, %v100
  %v1354 = vpop.permute.xlu0 %1353
  %1356 = vset.pattern.permute.xlu0 1
  %1357 = vperm.xlu0 %1356, %v101
  %v1358 = vpop.permute.xlu0 %1357
  %1360 = vset.pattern.permute.xlu0 1
  %1361 = vperm.xlu0 %1360, %v102
  %v1362 = vpop.permute.xlu0 %1361
  %1364 = vset.pattern.permute.xlu0 1
  %1365 = vperm.xlu0 %1364, %v103
  %v1366 = vpop.permute.xlu0 %1365
  %1368 = vset.pattern.permute.xlu0 1
  %1369 = vperm.xlu0 %1368, %v104
  %v1370 = vpop.permute.xlu0 %1369
  %1372 = vset.pattern.permute.xlu0 1
  %1373 = vperm.xlu0 %1372, %v105
  %v1374 = vpop.permute.xlu0 %1373
  %1376 = vset.pattern.permute.xlu0 1
  %1377 = vperm.xlu0 %1376, %v106
  %v1378 = vpop.permute.xlu0 %1377
  %1380 = vset.pattern.permute.xlu0 1
  %1381 = vperm.xlu0 %1380, %v107
  %v1382 = vpop.permute.xlu0 %1381
  %1384 = vset.pattern.permute.xlu0 1
  %1385 = vperm.xlu0 %1384, %v108
  %v1386 = vpop.permute.xlu0 %1385
  %1388 = vset.pattern.permute.xlu0 1
  %1389 = vperm.xlu0 %1388, %v109
  %v1390 = vpop.permute.xlu0 %1389
  %1392 = vset.pattern.permute.xlu0 1
  %1393 = vperm.xlu0 %1392, %v110
  %v1394 = vpop.permute.xlu0 %1393
  %1396 = vset.pattern.permute.xlu0 1
  %1397 = vperm.xlu0 %1396, %v111
  %v1398 = vpop.permute.xlu0 %1397
  %1400 = vset.pattern.permute.xlu0 1
  %1401 = vperm.xlu0 %1400, %v112
  %v1402 = vpop.permute.xlu0 %1401
  %1404 = vset.pattern.permute.xlu0 1
  %1405 = vperm.xlu0 %1404, %v113
  %v1406 = vpop.permute.xlu0 %1405
  %1408 = vset.pattern.permute.xlu0 1
  %1409 = vperm.xlu0 %1408, %v114
  %v1410 = vpop.permute.xlu0 %1409
  %1412 = vset.pattern.permute.xlu0 1
  %1413 = vperm.xlu0 %1412, %v115
  %v1414 = vpop.permute.xlu0 %1413
  %1416 = vset.pattern.permute.xlu0 1
  %1417 = vperm.xlu0 %1416, %v116
  %v1418 = vpop.permute.xlu0 %1417
  %1420 = vset.pattern.permute.xlu0 1
  %1421 = vperm.xlu0 %1420, %v117
  %v1422 = vpop.permute.xlu0 %1421
  %1424 = vset.pattern.permute.xlu0 1
  %1425 = vperm.xlu0 %1424, %v118
  %v1426 = vpop.permute.xlu0 %1425
  %1428 = vset.pattern.permute.xlu0 1
  %1429 = vperm.xlu0 %1428, %v119
  %v1430 = vpop.permute.xlu0 %1429
  %1432 = vset.pattern.permute.xlu0 1
  %1433 = vperm.xlu0 %1432, %v120
  %v1434 = vpop.permute.xlu0 %1433
  %1436 = vset.pattern.permute.xlu0 1
  %1437 = vperm.xlu0 %1436, %v121
  %v1438 = vpop.permute.xlu0 %1437
  %1440 = vset.pattern.permute.xlu0 1
  %1441 = vperm.xlu0 %1440, %v122
  %v1442 = vpop.permute.xlu0 %1441
  %1444 = vset.pattern.permute.xlu0 1
  %1445 = vperm.xlu0 %1444, %v123
  %v1446 = vpop.permute.xlu0 %1445
  %1448 = vset.pattern.permute.xlu0 1
  %1449 = vperm.xlu0 %1448, %v124
  %v1450 = vpop.permute.xlu0 %1449
  %1452 = vset.pattern.permute.xlu0 1
  %1453 = vperm.xlu0 %1452, %v125
  %v1454 = vpop.permute.xlu0 %1453
  %1456 = vset.pattern.permute.xlu0 1
  %1457 = vperm.xlu0 %1456, %v126
  %v1458 = vpop.permute.xlu0 %1457
  %1460 = vset.pattern.permute.xlu0 1
  %1461 = vperm.xlu0 %1460, %v127
  %v1462 = vpop.permute.xlu0 %1461
  %1464 = vset.pattern.permute.xlu0 1
  %1465 = vperm.xlu0 %1464, %v128
  %v1466 = vpop.permute.xlu0 %1465
  %1468 = vset.pattern.permute.xlu0 1
  %1469 = vperm.xlu0 %1468, %v129
  %v1470 = vpop.permute.xlu0 %1469
  %1472 = vset.pattern.permute.xlu0 1
  %1473 = vperm.xlu0 %1472, %v130
  %v1474 = vpop.permute.xlu0 %1473
  %1476 = vset.pattern.permute.xlu0 1
  %1477 = vperm.xlu0 %1476, %v131
  %v1478 = vpop.permute.xlu0 %1477
  %1480 = vset.pattern.permute.xlu0 1
  %1481 = vperm.xlu0 %1480, %v132
  %v1482 = vpop.permute.xlu0 %1481
  %1484 = vset.pattern.permute.xlu0 1
  %1485 = vperm.xlu0 %1484, %v133
  %v1486 = vpop.permute.xlu0 %1485
  %1488 = vset.pattern.permute.xlu0 1
  %1489 = vperm.xlu0 %1488, %v134
  %v1490 = vpop.permute.xlu0 %1489
  %1492 = vset.pattern.permute.xlu0 1
  %1493 = vperm.xlu0 %1492, %v135
  %v1494 = vpop.permute.xlu0 %1493
  %1496 = vset.pattern.permute.xlu0 1
  %1497 = vperm.xlu0 %1496, %v136
  %v1498 = vpop.permute.xlu0 %1497
  %1500 = vset.pattern.permute.xlu0 1
  %1501 = vperm.xlu0 %1500, %v137
  %v1502 = vpop.permute.xlu0 %1501
  %1504 = vset.pattern.permute.xlu0 1
  %1505 = vperm.xlu0 %1504, %v138
  %v1506 = vpop.permute.xlu0 %1505
  %1508 = vset.pattern.permute.xlu0 1
  %1509 = vperm.xlu0 %1508, %v139
  %v1510 = vpop.permute.xlu0 %1509
  %1512 = vset.pattern.permute.xlu0 1
  %1513 = vperm.xlu0 %1512, %v140
  %v1514 = vpop.permute.xlu0 %1513
  %1516 = vset.pattern.permute.xlu0 1
  %1517 = vperm.xlu0 %1516, %v141
  %v1518 = vpop.permute.xlu0 %1517
  %1520 = vset.pattern.permute.xlu0 1
  %1521 = vperm.xlu0 %1520, %v142
  %v1522 = vpop.permute.xlu0 %1521
  %1524 = vset.pattern.permute.xlu0 1
  %1525 = vperm.xlu0 %1524, %v143
  %v1526 = vpop.permute.xlu0 %1525
  %1528 = vset.pattern.permute.xlu0 1
  %1529 = vperm.xlu0 %1528, %v144
  %v1530 = vpop.permute.xlu0 %1529
  %1532 = vset.pattern.permute.xlu0 1
  %1533 = vperm.xlu0 %1532, %v145
  %v1534 = vpop.permute.xlu0 %1533
  %1536 = vset.pattern.permute.xlu0 1
  %1537 = vperm.xlu0 %1536, %v146
  %v1538 = vpop.permute.xlu0 %1537
  %1540 = vset.pattern.permute.xlu0 1
  %1541 = vperm.xlu0 %1540, %v147
  %v1542 = vpop.permute.xlu0 %1541
  %1544 = vset.pattern.permute.xlu0 1
  %1545 = vperm.xlu0 %1544, %v148
  %v1546 = vpop.permute.xlu0 %1545
  %1548 = vset.pattern.permute.xlu0 1
  %1549 = vperm.xlu0 %1548, %v149
  %v1550 = vpop.permute.xlu0 %1549
  %1552 = vset.pattern.permute.xlu0 1
  %1553 = vperm.xlu0 %1552, %v150
  %v1554 = vpop.permute.xlu0 %1553
  %1556 = vset.pattern.permute.xlu0 1
  %1557 = vperm.xlu0 %1556, %v151
  %v1558 = vpop.permute.xlu0 %1557
  %1560 = vset.pattern.permute.xlu0 1
  %1561 = vperm.xlu0 %1560, %v152
  %v1562 = vpop.permute.xlu0 %1561
  %1564 = vset.pattern.permute.xlu0 1
  %1565 = vperm.xlu0 %1564, %v153
  %v1566 = vpop.permute.xlu0 %1565
  %1568 = vset.pattern.permute.xlu0 1
  %1569 = vperm.xlu0 %1568, %v154
  %v1570 = vpop.permute.xlu0 %1569
  %1572 = vset.pattern.permute.xlu0 1
  %1573 = vperm.xlu0 %1572, %v155
  %v1574 = vpop.permute.xlu0 %1573
  %v1576 = vlaneseq
  %v1577 = vshrl.u32 %v1576, 7
  %v1578 = vsub.s32 1, %v1577
  %v1579 = vrot.slane %v156, %v1578
  %v1580 = vmul.f32 %v1066, %v1579
  %v1581 = vmul.f32 %v1070, %v1579
  %v1582 = vmul.f32 %v1074, %v1579
  %v1583 = vmul.f32 %v1078, %v1579
  %v1584 = vmul.f32 %v1082, %v1579
  %v1585 = vmul.f32 %v1086, %v1579
  %v1586 = vmul.f32 %v1090, %v1579
  %v1587 = vmul.f32 %v1094, %v1579
  %v1588 = vmul.f32 %v1098, %v1579
  %v1589 = vmul.f32 %v1102, %v1579
  %v1590 = vmul.f32 %v1106, %v1579
  %v1591 = vmul.f32 %v1110, %v1579
  %v1592 = vmul.f32 %v1114, %v1579
  %v1593 = vmul.f32 %v1118, %v1579
  %v1594 = vmul.f32 %v1122, %v1579
  %v1595 = vmul.f32 %v1126, %v1579
  %v1596 = vmul.f32 %v1130, %v1579
  %v1597 = vmul.f32 %v1134, %v1579
  %v1598 = vmul.f32 %v1138, %v1579
  %v1599 = vmul.f32 %v1142, %v1579
  %v1600 = vmul.f32 %v1146, %v1579
  %v1601 = vmul.f32 %v1150, %v1579
  %v1602 = vmul.f32 %v1154, %v1579
  %v1603 = vmul.f32 %v1158, %v1579
  %v1604 = vmul.f32 %v1162, %v1579
  %v1605 = vmul.f32 %v1166, %v1579
  %v1606 = vmul.f32 %v1170, %v1579
  %v1607 = vmul.f32 %v1174, %v1579
  %v1608 = vmul.f32 %v1178, %v1579
  %v1609 = vmul.f32 %v1182, %v1579
  %v1610 = vmul.f32 %v1186, %v1579
  %v1611 = vmul.f32 %v1190, %v1579
  %v1612 = vmul.f32 %v1194, %v1579
  %v1613 = vmul.f32 %v1198, %v1579
  %v1614 = vmul.f32 %v1202, %v1579
  %v1615 = vmul.f32 %v1206, %v1579
  %v1616 = vmul.f32 %v1210, %v1579
  %v1617 = vmul.f32 %v1214, %v1579
  %v1618 = vmul.f32 %v1218, %v1579
  %v1619 = vmul.f32 %v1222, %v1579
  %v1620 = vmul.f32 %v1226, %v1579
  %v1621 = vmul.f32 %v1230, %v1579
  %v1622 = vmul.f32 %v1234, %v1579
  %v1623 = vmul.f32 %v1238, %v1579
  %v1624 = vmul.f32 %v1242, %v1579
  %v1625 = vmul.f32 %v1246, %v1579
  %v1626 = vmul.f32 %v1250, %v1579
  %v1627 = vmul.f32 %v1254, %v1579
  %v1628 = vmul.f32 %v1258, %v1579
  %v1629 = vmul.f32 %v1262, %v1579
  %v1630 = vmul.f32 %v1266, %v1579
  %v1631 = vmul.f32 %v1270, %v1579
  %v1632 = vmul.f32 %v1274, %v1579
  %v1633 = vmul.f32 %v1278, %v1579
  %v1634 = vmul.f32 %v1282, %v1579
  %v1635 = vmul.f32 %v1286, %v1579
  %v1636 = vmul.f32 %v1290, %v1579
  %v1637 = vmul.f32 %v1294, %v1579
  %v1638 = vmul.f32 %v1298, %v1579
  %v1639 = vmul.f32 %v1302, %v1579
  %v1640 = vmul.f32 %v1306, %v1579
  %v1641 = vmul.f32 %v1310, %v1579
  %v1642 = vmul.f32 %v1314, %v1579
  %v1643 = vmul.f32 %v1318, %v1579
  %v1644 = vmul.f32 %v1322, %v1579
  %v1645 = vmul.f32 %v1326, %v1579
  %v1646 = vmul.f32 %v1330, %v1579
  %v1647 = vmul.f32 %v1334, %v1579
  %v1648 = vmul.f32 %v1338, %v1579
  %v1649 = vmul.f32 %v1342, %v1579
  %v1650 = vmul.f32 %v1346, %v1579
  %v1651 = vmul.f32 %v1350, %v1579
  %v1652 = vmul.f32 %v1354, %v1579
  %v1653 = vmul.f32 %v1358, %v1579
  %v1654 = vmul.f32 %v1362, %v1579
  %v1655 = vmul.f32 %v1366, %v1579
  %v1656 = vmul.f32 %v1370, %v1579
  %v1657 = vmul.f32 %v1374, %v1579
  %v1658 = vmul.f32 %v1378, %v1579
  %v1659 = vmul.f32 %v1382, %v1579
  %v1660 = vmul.f32 %v1386, %v1579
  %v1661 = vmul.f32 %v1390, %v1579
  %v1662 = vmul.f32 %v1394, %v1579
  %v1663 = vmul.f32 %v1398, %v1579
  %v1664 = vmul.f32 %v1402, %v1579
  %v1665 = vmul.f32 %v1406, %v1579
  %v1666 = vmul.f32 %v1410, %v1579
  %v1667 = vmul.f32 %v1414, %v1579
  %v1668 = vmul.f32 %v1418, %v1579
  %v1669 = vmul.f32 %v1422, %v1579
  %v1670 = vmul.f32 %v1426, %v1579
  %v1671 = vmul.f32 %v1430, %v1579
  %v1672 = vmul.f32 %v1434, %v1579
  %v1673 = vmul.f32 %v1438, %v1579
  %v1674 = vmul.f32 %v1442, %v1579
  %v1675 = vmul.f32 %v1446, %v1579
  %v1676 = vmul.f32 %v1450, %v1579
  %v1677 = vmul.f32 %v1454, %v1579
  %v1678 = vmul.f32 %v1458, %v1579
  %v1679 = vmul.f32 %v1462, %v1579
  %v1680 = vmul.f32 %v1466, %v1579
  %v1681 = vmul.f32 %v1470, %v1579
  %v1682 = vmul.f32 %v1474, %v1579
  %v1683 = vmul.f32 %v1478, %v1579
  %v1684 = vmul.f32 %v1482, %v1579
  %v1685 = vmul.f32 %v1486, %v1579
  %v1686 = vmul.f32 %v1490, %v1579
  %v1687 = vmul.f32 %v1494, %v1579
  %v1688 = vmul.f32 %v1498, %v1579
  %v1689 = vmul.f32 %v1502, %v1579
  %v1690 = vmul.f32 %v1506, %v1579
  %v1691 = vmul.f32 %v1510, %v1579
  %v1692 = vmul.f32 %v1514, %v1579
  %v1693 = vmul.f32 %v1518, %v1579
  %v1694 = vmul.f32 %v1522, %v1579
  %v1695 = vmul.f32 %v1526, %v1579
  %v1696 = vmul.f32 %v1530, %v1579
  %v1697 = vmul.f32 %v1534, %v1579
  %v1698 = vmul.f32 %v1538, %v1579
  %v1699 = vmul.f32 %v1542, %v1579
  %v1700 = vmul.f32 %v1546, %v1579
  %v1701 = vmul.f32 %v1550, %v1579
  %v1702 = vmul.f32 %v1554, %v1579
  %v1703 = vmul.f32 %v1558, %v1579
  %v1704 = vmul.f32 %v1562, %v1579
  %v1705 = vmul.f32 %v1566, %v1579
  %v1706 = vmul.f32 %v1570, %v1579
  %v1707 = vmul.f32 %v1574, %v1579
  %v1708 = vadd.f32 %v936, %v1580
  %v1709 = vadd.f32 %v937, %v1581
  %v1710 = vadd.f32 %v938, %v1582
  %v1711 = vadd.f32 %v939, %v1583
  %v1712 = vadd.f32 %v940, %v1584
  %v1713 = vadd.f32 %v941, %v1585
  %v1714 = vadd.f32 %v942, %v1586
  %v1715 = vadd.f32 %v943, %v1587
  %v1716 = vadd.f32 %v944, %v1588
  %v1717 = vadd.f32 %v945, %v1589
  %v1718 = vadd.f32 %v946, %v1590
  %v1719 = vadd.f32 %v947, %v1591
  %v1720 = vadd.f32 %v948, %v1592
  %v1721 = vadd.f32 %v949, %v1593
  %v1722 = vadd.f32 %v950, %v1594
  %v1723 = vadd.f32 %v951, %v1595
  %v1724 = vadd.f32 %v952, %v1596
  %v1725 = vadd.f32 %v953, %v1597
  %v1726 = vadd.f32 %v954, %v1598
  %v1727 = vadd.f32 %v955, %v1599
  %v1728 = vadd.f32 %v956, %v1600
  %v1729 = vadd.f32 %v957, %v1601
  %v1730 = vadd.f32 %v958, %v1602
  %v1731 = vadd.f32 %v959, %v1603
  %v1732 = vadd.f32 %v960, %v1604
  %v1733 = vadd.f32 %v961, %v1605
  %v1734 = vadd.f32 %v962, %v1606
  %v1735 = vadd.f32 %v963, %v1607
  %v1736 = vadd.f32 %v964, %v1608
  %v1737 = vadd.f32 %v965, %v1609
  %v1738 = vadd.f32 %v966, %v1610
  %v1739 = vadd.f32 %v967, %v1611
  %v1740 = vadd.f32 %v968, %v1612
  %v1741 = vadd.f32 %v969, %v1613
  %v1742 = vadd.f32 %v970, %v1614
  %v1743 = vadd.f32 %v971, %v1615
  %v1744 = vadd.f32 %v972, %v1616
  %v1745 = vadd.f32 %v973, %v1617
  %v1746 = vadd.f32 %v974, %v1618
  %v1747 = vadd.f32 %v975, %v1619
  %v1748 = vadd.f32 %v976, %v1620
  %v1749 = vadd.f32 %v977, %v1621
  %v1750 = vadd.f32 %v978, %v1622
  %v1751 = vadd.f32 %v979, %v1623
  %v1752 = vadd.f32 %v980, %v1624
  %v1753 = vadd.f32 %v981, %v1625
  %v1754 = vadd.f32 %v982, %v1626
  %v1755 = vadd.f32 %v983, %v1627
  %v1756 = vadd.f32 %v984, %v1628
  %v1757 = vadd.f32 %v985, %v1629
  %v1758 = vadd.f32 %v986, %v1630
  %v1759 = vadd.f32 %v987, %v1631
  %v1760 = vadd.f32 %v988, %v1632
  %v1761 = vadd.f32 %v989, %v1633
  %v1762 = vadd.f32 %v990, %v1634
  %v1763 = vadd.f32 %v991, %v1635
  %v1764 = vadd.f32 %v992, %v1636
  %v1765 = vadd.f32 %v993, %v1637
  %v1766 = vadd.f32 %v994, %v1638
  %v1767 = vadd.f32 %v995, %v1639
  %v1768 = vadd.f32 %v996, %v1640
  %v1769 = vadd.f32 %v997, %v1641
  %v1770 = vadd.f32 %v998, %v1642
  %v1771 = vadd.f32 %v999, %v1643
  %v1772 = vadd.f32 %v1000, %v1644
  %v1773 = vadd.f32 %v1001, %v1645
  %v1774 = vadd.f32 %v1002, %v1646
  %v1775 = vadd.f32 %v1003, %v1647
  %v1776 = vadd.f32 %v1004, %v1648
  %v1777 = vadd.f32 %v1005, %v1649
  %v1778 = vadd.f32 %v1006, %v1650
  %v1779 = vadd.f32 %v1007, %v1651
  %v1780 = vadd.f32 %v1008, %v1652
  %v1781 = vadd.f32 %v1009, %v1653
  %v1782 = vadd.f32 %v1010, %v1654
  %v1783 = vadd.f32 %v1011, %v1655
  %v1784 = vadd.f32 %v1012, %v1656
  %v1785 = vadd.f32 %v1013, %v1657
  %v1786 = vadd.f32 %v1014, %v1658
  %v1787 = vadd.f32 %v1015, %v1659
  %v1788 = vadd.f32 %v1016, %v1660
  %v1789 = vadd.f32 %v1017, %v1661
  %v1790 = vadd.f32 %v1018, %v1662
  %v1791 = vadd.f32 %v1019, %v1663
  %v1792 = vadd.f32 %v1020, %v1664
  %v1793 = vadd.f32 %v1021, %v1665
  %v1794 = vadd.f32 %v1022, %v1666
  %v1795 = vadd.f32 %v1023, %v1667
  %v1796 = vadd.f32 %v1024, %v1668
  %v1797 = vadd.f32 %v1025, %v1669
  %v1798 = vadd.f32 %v1026, %v1670
  %v1799 = vadd.f32 %v1027, %v1671
  %v1800 = vadd.f32 %v1028, %v1672
  %v1801 = vadd.f32 %v1029, %v1673
  %v1802 = vadd.f32 %v1030, %v1674
  %v1803 = vadd.f32 %v1031, %v1675
  %v1804 = vadd.f32 %v1032, %v1676
  %v1805 = vadd.f32 %v1033, %v1677
  %v1806 = vadd.f32 %v1034, %v1678
  %v1807 = vadd.f32 %v1035, %v1679
  %v1808 = vadd.f32 %v1036, %v1680
  %v1809 = vadd.f32 %v1037, %v1681
  %v1810 = vadd.f32 %v1038, %v1682
  %v1811 = vadd.f32 %v1039, %v1683
  %v1812 = vadd.f32 %v1040, %v1684
  %v1813 = vadd.f32 %v1041, %v1685
  %v1814 = vadd.f32 %v1042, %v1686
  %v1815 = vadd.f32 %v1043, %v1687
  %v1816 = vadd.f32 %v1044, %v1688
  %v1817 = vadd.f32 %v1045, %v1689
  %v1818 = vadd.f32 %v1046, %v1690
  %v1819 = vadd.f32 %v1047, %v1691
  %v1820 = vadd.f32 %v1048, %v1692
  %v1821 = vadd.f32 %v1049, %v1693
  %v1822 = vadd.f32 %v1050, %v1694
  %v1823 = vadd.f32 %v1051, %v1695
  %v1824 = vadd.f32 %v1052, %v1696
  %v1825 = vadd.f32 %v1053, %v1697
  %v1826 = vadd.f32 %v1054, %v1698
  %v1827 = vadd.f32 %v1055, %v1699
  %v1828 = vadd.f32 %v1056, %v1700
  %v1829 = vadd.f32 %v1057, %v1701
  %v1830 = vadd.f32 %v1058, %v1702
  %v1831 = vadd.f32 %v1059, %v1703
  %v1832 = vadd.f32 %v1060, %v1704
  %v1833 = vadd.f32 %v1061, %v1705
  %v1834 = vadd.f32 %v1062, %v1706
  %v1835 = vadd.f32 %v1063, %v1707
  %1836 = vset.pattern.permute.xlu0 2
  %1837 = vperm.xlu0 %1836, %v28
  %v1838 = vpop.permute.xlu0 %1837
  %1840 = vset.pattern.permute.xlu0 2
  %1841 = vperm.xlu0 %1840, %v29
  %v1842 = vpop.permute.xlu0 %1841
  %1844 = vset.pattern.permute.xlu0 2
  %1845 = vperm.xlu0 %1844, %v30
  %v1846 = vpop.permute.xlu0 %1845
  %1848 = vset.pattern.permute.xlu0 2
  %1849 = vperm.xlu0 %1848, %v31
  %v1850 = vpop.permute.xlu0 %1849
  %1852 = vset.pattern.permute.xlu0 2
  %1853 = vperm.xlu0 %1852, %v32
  %v1854 = vpop.permute.xlu0 %1853
  %1856 = vset.pattern.permute.xlu0 2
  %1857 = vperm.xlu0 %1856, %v33
  %v1858 = vpop.permute.xlu0 %1857
  %1860 = vset.pattern.permute.xlu0 2
  %1861 = vperm.xlu0 %1860, %v34
  %v1862 = vpop.permute.xlu0 %1861
  %1864 = vset.pattern.permute.xlu0 2
  %1865 = vperm.xlu0 %1864, %v35
  %v1866 = vpop.permute.xlu0 %1865
  %1868 = vset.pattern.permute.xlu0 2
  %1869 = vperm.xlu0 %1868, %v36
  %v1870 = vpop.permute.xlu0 %1869
  %1872 = vset.pattern.permute.xlu0 2
  %1873 = vperm.xlu0 %1872, %v37
  %v1874 = vpop.permute.xlu0 %1873
  %1876 = vset.pattern.permute.xlu0 2
  %1877 = vperm.xlu0 %1876, %v38
  %v1878 = vpop.permute.xlu0 %1877
  %1880 = vset.pattern.permute.xlu0 2
  %1881 = vperm.xlu0 %1880, %v39
  %v1882 = vpop.permute.xlu0 %1881
  %1884 = vset.pattern.permute.xlu0 2
  %1885 = vperm.xlu0 %1884, %v40
  %v1886 = vpop.permute.xlu0 %1885
  %1888 = vset.pattern.permute.xlu0 2
  %1889 = vperm.xlu0 %1888, %v41
  %v1890 = vpop.permute.xlu0 %1889
  %1892 = vset.pattern.permute.xlu0 2
  %1893 = vperm.xlu0 %1892, %v42
  %v1894 = vpop.permute.xlu0 %1893
  %1896 = vset.pattern.permute.xlu0 2
  %1897 = vperm.xlu0 %1896, %v43
  %v1898 = vpop.permute.xlu0 %1897
  %1900 = vset.pattern.permute.xlu0 2
  %1901 = vperm.xlu0 %1900, %v44
  %v1902 = vpop.permute.xlu0 %1901
  %1904 = vset.pattern.permute.xlu0 2
  %1905 = vperm.xlu0 %1904, %v45
  %v1906 = vpop.permute.xlu0 %1905
  %1908 = vset.pattern.permute.xlu0 2
  %1909 = vperm.xlu0 %1908, %v46
  %v1910 = vpop.permute.xlu0 %1909
  %1912 = vset.pattern.permute.xlu0 2
  %1913 = vperm.xlu0 %1912, %v47
  %v1914 = vpop.permute.xlu0 %1913
  %1916 = vset.pattern.permute.xlu0 2
  %1917 = vperm.xlu0 %1916, %v48
  %v1918 = vpop.permute.xlu0 %1917
  %1920 = vset.pattern.permute.xlu0 2
  %1921 = vperm.xlu0 %1920, %v49
  %v1922 = vpop.permute.xlu0 %1921
  %1924 = vset.pattern.permute.xlu0 2
  %1925 = vperm.xlu0 %1924, %v50
  %v1926 = vpop.permute.xlu0 %1925
  %1928 = vset.pattern.permute.xlu0 2
  %1929 = vperm.xlu0 %1928, %v51
  %v1930 = vpop.permute.xlu0 %1929
  %1932 = vset.pattern.permute.xlu0 2
  %1933 = vperm.xlu0 %1932, %v52
  %v1934 = vpop.permute.xlu0 %1933
  %1936 = vset.pattern.permute.xlu0 2
  %1937 = vperm.xlu0 %1936, %v53
  %v1938 = vpop.permute.xlu0 %1937
  %1940 = vset.pattern.permute.xlu0 2
  %1941 = vperm.xlu0 %1940, %v54
  %v1942 = vpop.permute.xlu0 %1941
  %1944 = vset.pattern.permute.xlu0 2
  %1945 = vperm.xlu0 %1944, %v55
  %v1946 = vpop.permute.xlu0 %1945
  %1948 = vset.pattern.permute.xlu0 2
  %1949 = vperm.xlu0 %1948, %v56
  %v1950 = vpop.permute.xlu0 %1949
  %1952 = vset.pattern.permute.xlu0 2
  %1953 = vperm.xlu0 %1952, %v57
  %v1954 = vpop.permute.xlu0 %1953
  %1956 = vset.pattern.permute.xlu0 2
  %1957 = vperm.xlu0 %1956, %v58
  %v1958 = vpop.permute.xlu0 %1957
  %1960 = vset.pattern.permute.xlu0 2
  %1961 = vperm.xlu0 %1960, %v59
  %v1962 = vpop.permute.xlu0 %1961
  %1964 = vset.pattern.permute.xlu0 2
  %1965 = vperm.xlu0 %1964, %v60
  %v1966 = vpop.permute.xlu0 %1965
  %1968 = vset.pattern.permute.xlu0 2
  %1969 = vperm.xlu0 %1968, %v61
  %v1970 = vpop.permute.xlu0 %1969
  %1972 = vset.pattern.permute.xlu0 2
  %1973 = vperm.xlu0 %1972, %v62
  %v1974 = vpop.permute.xlu0 %1973
  %1976 = vset.pattern.permute.xlu0 2
  %1977 = vperm.xlu0 %1976, %v63
  %v1978 = vpop.permute.xlu0 %1977
  %1980 = vset.pattern.permute.xlu0 2
  %1981 = vperm.xlu0 %1980, %v64
  %v1982 = vpop.permute.xlu0 %1981
  %1984 = vset.pattern.permute.xlu0 2
  %1985 = vperm.xlu0 %1984, %v65
  %v1986 = vpop.permute.xlu0 %1985
  %1988 = vset.pattern.permute.xlu0 2
  %1989 = vperm.xlu0 %1988, %v66
  %v1990 = vpop.permute.xlu0 %1989
  %1992 = vset.pattern.permute.xlu0 2
  %1993 = vperm.xlu0 %1992, %v67
  %v1994 = vpop.permute.xlu0 %1993
  %1996 = vset.pattern.permute.xlu0 2
  %1997 = vperm.xlu0 %1996, %v68
  %v1998 = vpop.permute.xlu0 %1997
  %2000 = vset.pattern.permute.xlu0 2
  %2001 = vperm.xlu0 %2000, %v69
  %v2002 = vpop.permute.xlu0 %2001
  %2004 = vset.pattern.permute.xlu0 2
  %2005 = vperm.xlu0 %2004, %v70
  %v2006 = vpop.permute.xlu0 %2005
  %2008 = vset.pattern.permute.xlu0 2
  %2009 = vperm.xlu0 %2008, %v71
  %v2010 = vpop.permute.xlu0 %2009
  %2012 = vset.pattern.permute.xlu0 2
  %2013 = vperm.xlu0 %2012, %v72
  %v2014 = vpop.permute.xlu0 %2013
  %2016 = vset.pattern.permute.xlu0 2
  %2017 = vperm.xlu0 %2016, %v73
  %v2018 = vpop.permute.xlu0 %2017
  %2020 = vset.pattern.permute.xlu0 2
  %2021 = vperm.xlu0 %2020, %v74
  %v2022 = vpop.permute.xlu0 %2021
  %2024 = vset.pattern.permute.xlu0 2
  %2025 = vperm.xlu0 %2024, %v75
  %v2026 = vpop.permute.xlu0 %2025
  %2028 = vset.pattern.permute.xlu0 2
  %2029 = vperm.xlu0 %2028, %v76
  %v2030 = vpop.permute.xlu0 %2029
  %2032 = vset.pattern.permute.xlu0 2
  %2033 = vperm.xlu0 %2032, %v77
  %v2034 = vpop.permute.xlu0 %2033
  %2036 = vset.pattern.permute.xlu0 2
  %2037 = vperm.xlu0 %2036, %v78
  %v2038 = vpop.permute.xlu0 %2037
  %2040 = vset.pattern.permute.xlu0 2
  %2041 = vperm.xlu0 %2040, %v79
  %v2042 = vpop.permute.xlu0 %2041
  %2044 = vset.pattern.permute.xlu0 2
  %2045 = vperm.xlu0 %2044, %v80
  %v2046 = vpop.permute.xlu0 %2045
  %2048 = vset.pattern.permute.xlu0 2
  %2049 = vperm.xlu0 %2048, %v81
  %v2050 = vpop.permute.xlu0 %2049
  %2052 = vset.pattern.permute.xlu0 2
  %2053 = vperm.xlu0 %2052, %v82
  %v2054 = vpop.permute.xlu0 %2053
  %2056 = vset.pattern.permute.xlu0 2
  %2057 = vperm.xlu0 %2056, %v83
  %v2058 = vpop.permute.xlu0 %2057
  %2060 = vset.pattern.permute.xlu0 2
  %2061 = vperm.xlu0 %2060, %v84
  %v2062 = vpop.permute.xlu0 %2061
  %2064 = vset.pattern.permute.xlu0 2
  %2065 = vperm.xlu0 %2064, %v85
  %v2066 = vpop.permute.xlu0 %2065
  %2068 = vset.pattern.permute.xlu0 2
  %2069 = vperm.xlu0 %2068, %v86
  %v2070 = vpop.permute.xlu0 %2069
  %2072 = vset.pattern.permute.xlu0 2
  %2073 = vperm.xlu0 %2072, %v87
  %v2074 = vpop.permute.xlu0 %2073
  %2076 = vset.pattern.permute.xlu0 2
  %2077 = vperm.xlu0 %2076, %v88
  %v2078 = vpop.permute.xlu0 %2077
  %2080 = vset.pattern.permute.xlu0 2
  %2081 = vperm.xlu0 %2080, %v89
  %v2082 = vpop.permute.xlu0 %2081
  %2084 = vset.pattern.permute.xlu0 2
  %2085 = vperm.xlu0 %2084, %v90
  %v2086 = vpop.permute.xlu0 %2085
  %2088 = vset.pattern.permute.xlu0 2
  %2089 = vperm.xlu0 %2088, %v91
  %v2090 = vpop.permute.xlu0 %2089
  %2092 = vset.pattern.permute.xlu0 2
  %2093 = vperm.xlu0 %2092, %v92
  %v2094 = vpop.permute.xlu0 %2093
  %2096 = vset.pattern.permute.xlu0 2
  %2097 = vperm.xlu0 %2096, %v93
  %v2098 = vpop.permute.xlu0 %2097
  %2100 = vset.pattern.permute.xlu0 2
  %2101 = vperm.xlu0 %2100, %v94
  %v2102 = vpop.permute.xlu0 %2101
  %2104 = vset.pattern.permute.xlu0 2
  %2105 = vperm.xlu0 %2104, %v95
  %v2106 = vpop.permute.xlu0 %2105
  %2108 = vset.pattern.permute.xlu0 2
  %2109 = vperm.xlu0 %2108, %v96
  %v2110 = vpop.permute.xlu0 %2109
  %2112 = vset.pattern.permute.xlu0 2
  %2113 = vperm.xlu0 %2112, %v97
  %v2114 = vpop.permute.xlu0 %2113
  %2116 = vset.pattern.permute.xlu0 2
  %2117 = vperm.xlu0 %2116, %v98
  %v2118 = vpop.permute.xlu0 %2117
  %2120 = vset.pattern.permute.xlu0 2
  %2121 = vperm.xlu0 %2120, %v99
  %v2122 = vpop.permute.xlu0 %2121
  %2124 = vset.pattern.permute.xlu0 2
  %2125 = vperm.xlu0 %2124, %v100
  %v2126 = vpop.permute.xlu0 %2125
  %2128 = vset.pattern.permute.xlu0 2
  %2129 = vperm.xlu0 %2128, %v101
  %v2130 = vpop.permute.xlu0 %2129
  %2132 = vset.pattern.permute.xlu0 2
  %2133 = vperm.xlu0 %2132, %v102
  %v2134 = vpop.permute.xlu0 %2133
  %2136 = vset.pattern.permute.xlu0 2
  %2137 = vperm.xlu0 %2136, %v103
  %v2138 = vpop.permute.xlu0 %2137
  %2140 = vset.pattern.permute.xlu0 2
  %2141 = vperm.xlu0 %2140, %v104
  %v2142 = vpop.permute.xlu0 %2141
  %2144 = vset.pattern.permute.xlu0 2
  %2145 = vperm.xlu0 %2144, %v105
  %v2146 = vpop.permute.xlu0 %2145
  %2148 = vset.pattern.permute.xlu0 2
  %2149 = vperm.xlu0 %2148, %v106
  %v2150 = vpop.permute.xlu0 %2149
  %2152 = vset.pattern.permute.xlu0 2
  %2153 = vperm.xlu0 %2152, %v107
  %v2154 = vpop.permute.xlu0 %2153
  %2156 = vset.pattern.permute.xlu0 2
  %2157 = vperm.xlu0 %2156, %v108
  %v2158 = vpop.permute.xlu0 %2157
  %2160 = vset.pattern.permute.xlu0 2
  %2161 = vperm.xlu0 %2160, %v109
  %v2162 = vpop.permute.xlu0 %2161
  %2164 = vset.pattern.permute.xlu0 2
  %2165 = vperm.xlu0 %2164, %v110
  %v2166 = vpop.permute.xlu0 %2165
  %2168 = vset.pattern.permute.xlu0 2
  %2169 = vperm.xlu0 %2168, %v111
  %v2170 = vpop.permute.xlu0 %2169
  %2172 = vset.pattern.permute.xlu0 2
  %2173 = vperm.xlu0 %2172, %v112
  %v2174 = vpop.permute.xlu0 %2173
  %2176 = vset.pattern.permute.xlu0 2
  %2177 = vperm.xlu0 %2176, %v113
  %v2178 = vpop.permute.xlu0 %2177
  %2180 = vset.pattern.permute.xlu0 2
  %2181 = vperm.xlu0 %2180, %v114
  %v2182 = vpop.permute.xlu0 %2181
  %2184 = vset.pattern.permute.xlu0 2
  %2185 = vperm.xlu0 %2184, %v115
  %v2186 = vpop.permute.xlu0 %2185
  %2188 = vset.pattern.permute.xlu0 2
  %2189 = vperm.xlu0 %2188, %v116
  %v2190 = vpop.permute.xlu0 %2189
  %2192 = vset.pattern.permute.xlu0 2
  %2193 = vperm.xlu0 %2192, %v117
  %v2194 = vpop.permute.xlu0 %2193
  %2196 = vset.pattern.permute.xlu0 2
  %2197 = vperm.xlu0 %2196, %v118
  %v2198 = vpop.permute.xlu0 %2197
  %2200 = vset.pattern.permute.xlu0 2
  %2201 = vperm.xlu0 %2200, %v119
  %v2202 = vpop.permute.xlu0 %2201
  %2204 = vset.pattern.permute.xlu0 2
  %2205 = vperm.xlu0 %2204, %v120
  %v2206 = vpop.permute.xlu0 %2205
  %2208 = vset.pattern.permute.xlu0 2
  %2209 = vperm.xlu0 %2208, %v121
  %v2210 = vpop.permute.xlu0 %2209
  %2212 = vset.pattern.permute.xlu0 2
  %2213 = vperm.xlu0 %2212, %v122
  %v2214 = vpop.permute.xlu0 %2213
  %2216 = vset.pattern.permute.xlu0 2
  %2217 = vperm.xlu0 %2216, %v123
  %v2218 = vpop.permute.xlu0 %2217
  %2220 = vset.pattern.permute.xlu0 2
  %2221 = vperm.xlu0 %2220, %v124
  %v2222 = vpop.permute.xlu0 %2221
  %2224 = vset.pattern.permute.xlu0 2
  %2225 = vperm.xlu0 %2224, %v125
  %v2226 = vpop.permute.xlu0 %2225
  %2228 = vset.pattern.permute.xlu0 2
  %2229 = vperm.xlu0 %2228, %v126
  %v2230 = vpop.permute.xlu0 %2229
  %2232 = vset.pattern.permute.xlu0 2
  %2233 = vperm.xlu0 %2232, %v127
  %v2234 = vpop.permute.xlu0 %2233
  %2236 = vset.pattern.permute.xlu0 2
  %2237 = vperm.xlu0 %2236, %v128
  %v2238 = vpop.permute.xlu0 %2237
  %2240 = vset.pattern.permute.xlu0 2
  %2241 = vperm.xlu0 %2240, %v129
  %v2242 = vpop.permute.xlu0 %2241
  %2244 = vset.pattern.permute.xlu0 2
  %2245 = vperm.xlu0 %2244, %v130
  %v2246 = vpop.permute.xlu0 %2245
  %2248 = vset.pattern.permute.xlu0 2
  %2249 = vperm.xlu0 %2248, %v131
  %v2250 = vpop.permute.xlu0 %2249
  %2252 = vset.pattern.permute.xlu0 2
  %2253 = vperm.xlu0 %2252, %v132
  %v2254 = vpop.permute.xlu0 %2253
  %2256 = vset.pattern.permute.xlu0 2
  %2257 = vperm.xlu0 %2256, %v133
  %v2258 = vpop.permute.xlu0 %2257
  %2260 = vset.pattern.permute.xlu0 2
  %2261 = vperm.xlu0 %2260, %v134
  %v2262 = vpop.permute.xlu0 %2261
  %2264 = vset.pattern.permute.xlu0 2
  %2265 = vperm.xlu0 %2264, %v135
  %v2266 = vpop.permute.xlu0 %2265
  %2268 = vset.pattern.permute.xlu0 2
  %2269 = vperm.xlu0 %2268, %v136
  %v2270 = vpop.permute.xlu0 %2269
  %2272 = vset.pattern.permute.xlu0 2
  %2273 = vperm.xlu0 %2272, %v137
  %v2274 = vpop.permute.xlu0 %2273
  %2276 = vset.pattern.permute.xlu0 2
  %2277 = vperm.xlu0 %2276, %v138
  %v2278 = vpop.permute.xlu0 %2277
  %2280 = vset.pattern.permute.xlu0 2
  %2281 = vperm.xlu0 %2280, %v139
  %v2282 = vpop.permute.xlu0 %2281
  %2284 = vset.pattern.permute.xlu0 2
  %2285 = vperm.xlu0 %2284, %v140
  %v2286 = vpop.permute.xlu0 %2285
  %2288 = vset.pattern.permute.xlu0 2
  %2289 = vperm.xlu0 %2288, %v141
  %v2290 = vpop.permute.xlu0 %2289
  %2292 = vset.pattern.permute.xlu0 2
  %2293 = vperm.xlu0 %2292, %v142
  %v2294 = vpop.permute.xlu0 %2293
  %2296 = vset.pattern.permute.xlu0 2
  %2297 = vperm.xlu0 %2296, %v143
  %v2298 = vpop.permute.xlu0 %2297
  %2300 = vset.pattern.permute.xlu0 2
  %2301 = vperm.xlu0 %2300, %v144
  %v2302 = vpop.permute.xlu0 %2301
  %2304 = vset.pattern.permute.xlu0 2
  %2305 = vperm.xlu0 %2304, %v145
  %v2306 = vpop.permute.xlu0 %2305
  %2308 = vset.pattern.permute.xlu0 2
  %2309 = vperm.xlu0 %2308, %v146
  %v2310 = vpop.permute.xlu0 %2309
  %2312 = vset.pattern.permute.xlu0 2
  %2313 = vperm.xlu0 %2312, %v147
  %v2314 = vpop.permute.xlu0 %2313
  %2316 = vset.pattern.permute.xlu0 2
  %2317 = vperm.xlu0 %2316, %v148
  %v2318 = vpop.permute.xlu0 %2317
  %2320 = vset.pattern.permute.xlu0 2
  %2321 = vperm.xlu0 %2320, %v149
  %v2322 = vpop.permute.xlu0 %2321
  %2324 = vset.pattern.permute.xlu0 2
  %2325 = vperm.xlu0 %2324, %v150
  %v2326 = vpop.permute.xlu0 %2325
  %2328 = vset.pattern.permute.xlu0 2
  %2329 = vperm.xlu0 %2328, %v151
  %v2330 = vpop.permute.xlu0 %2329
  %2332 = vset.pattern.permute.xlu0 2
  %2333 = vperm.xlu0 %2332, %v152
  %v2334 = vpop.permute.xlu0 %2333
  %2336 = vset.pattern.permute.xlu0 2
  %2337 = vperm.xlu0 %2336, %v153
  %v2338 = vpop.permute.xlu0 %2337
  %2340 = vset.pattern.permute.xlu0 2
  %2341 = vperm.xlu0 %2340, %v154
  %v2342 = vpop.permute.xlu0 %2341
  %2344 = vset.pattern.permute.xlu0 2
  %2345 = vperm.xlu0 %2344, %v155
  %v2346 = vpop.permute.xlu0 %2345
  %v2348 = vlaneseq
  %v2349 = vshrl.u32 %v2348, 7
  %v2350 = vsub.s32 2, %v2349
  %v2351 = vrot.slane %v156, %v2350
  %v2352 = vmul.f32 %v1838, %v2351
  %v2353 = vmul.f32 %v1842, %v2351
  %v2354 = vmul.f32 %v1846, %v2351
  %v2355 = vmul.f32 %v1850, %v2351
  %v2356 = vmul.f32 %v1854, %v2351
  %v2357 = vmul.f32 %v1858, %v2351
  %v2358 = vmul.f32 %v1862, %v2351
  %v2359 = vmul.f32 %v1866, %v2351
  %v2360 = vmul.f32 %v1870, %v2351
  %v2361 = vmul.f32 %v1874, %v2351
  %v2362 = vmul.f32 %v1878, %v2351
  %v2363 = vmul.f32 %v1882, %v2351
  %v2364 = vmul.f32 %v1886, %v2351
  %v2365 = vmul.f32 %v1890, %v2351
  %v2366 = vmul.f32 %v1894, %v2351
  %v2367 = vmul.f32 %v1898, %v2351
  %v2368 = vmul.f32 %v1902, %v2351
  %v2369 = vmul.f32 %v1906, %v2351
  %v2370 = vmul.f32 %v1910, %v2351
  %v2371 = vmul.f32 %v1914, %v2351
  %v2372 = vmul.f32 %v1918, %v2351
  %v2373 = vmul.f32 %v1922, %v2351
  %v2374 = vmul.f32 %v1926, %v2351
  %v2375 = vmul.f32 %v1930, %v2351
  %v2376 = vmul.f32 %v1934, %v2351
  %v2377 = vmul.f32 %v1938, %v2351
  %v2378 = vmul.f32 %v1942, %v2351
  %v2379 = vmul.f32 %v1946, %v2351
  %v2380 = vmul.f32 %v1950, %v2351
  %v2381 = vmul.f32 %v1954, %v2351
  %v2382 = vmul.f32 %v1958, %v2351
  %v2383 = vmul.f32 %v1962, %v2351
  %v2384 = vmul.f32 %v1966, %v2351
  %v2385 = vmul.f32 %v1970, %v2351
  %v2386 = vmul.f32 %v1974, %v2351
  %v2387 = vmul.f32 %v1978, %v2351
  %v2388 = vmul.f32 %v1982, %v2351
  %v2389 = vmul.f32 %v1986, %v2351
  %v2390 = vmul.f32 %v1990, %v2351
  %v2391 = vmul.f32 %v1994, %v2351
  %v2392 = vmul.f32 %v1998, %v2351
  %v2393 = vmul.f32 %v2002, %v2351
  %v2394 = vmul.f32 %v2006, %v2351
  %v2395 = vmul.f32 %v2010, %v2351
  %v2396 = vmul.f32 %v2014, %v2351
  %v2397 = vmul.f32 %v2018, %v2351
  %v2398 = vmul.f32 %v2022, %v2351
  %v2399 = vmul.f32 %v2026, %v2351
  %v2400 = vmul.f32 %v2030, %v2351
  %v2401 = vmul.f32 %v2034, %v2351
  %v2402 = vmul.f32 %v2038, %v2351
  %v2403 = vmul.f32 %v2042, %v2351
  %v2404 = vmul.f32 %v2046, %v2351
  %v2405 = vmul.f32 %v2050, %v2351
  %v2406 = vmul.f32 %v2054, %v2351
  %v2407 = vmul.f32 %v2058, %v2351
  %v2408 = vmul.f32 %v2062, %v2351
  %v2409 = vmul.f32 %v2066, %v2351
  %v2410 = vmul.f32 %v2070, %v2351
  %v2411 = vmul.f32 %v2074, %v2351
  %v2412 = vmul.f32 %v2078, %v2351
  %v2413 = vmul.f32 %v2082, %v2351
  %v2414 = vmul.f32 %v2086, %v2351
  %v2415 = vmul.f32 %v2090, %v2351
  %v2416 = vmul.f32 %v2094, %v2351
  %v2417 = vmul.f32 %v2098, %v2351
  %v2418 = vmul.f32 %v2102, %v2351
  %v2419 = vmul.f32 %v2106, %v2351
  %v2420 = vmul.f32 %v2110, %v2351
  %v2421 = vmul.f32 %v2114, %v2351
  %v2422 = vmul.f32 %v2118, %v2351
  %v2423 = vmul.f32 %v2122, %v2351
  %v2424 = vmul.f32 %v2126, %v2351
  %v2425 = vmul.f32 %v2130, %v2351
  %v2426 = vmul.f32 %v2134, %v2351
  %v2427 = vmul.f32 %v2138, %v2351
  %v2428 = vmul.f32 %v2142, %v2351
  %v2429 = vmul.f32 %v2146, %v2351
  %v2430 = vmul.f32 %v2150, %v2351
  %v2431 = vmul.f32 %v2154, %v2351
  %v2432 = vmul.f32 %v2158, %v2351
  %v2433 = vmul.f32 %v2162, %v2351
  %v2434 = vmul.f32 %v2166, %v2351
  %v2435 = vmul.f32 %v2170, %v2351
  %v2436 = vmul.f32 %v2174, %v2351
  %v2437 = vmul.f32 %v2178, %v2351
  %v2438 = vmul.f32 %v2182, %v2351
  %v2439 = vmul.f32 %v2186, %v2351
  %v2440 = vmul.f32 %v2190, %v2351
  %v2441 = vmul.f32 %v2194, %v2351
  %v2442 = vmul.f32 %v2198, %v2351
  %v2443 = vmul.f32 %v2202, %v2351
  %v2444 = vmul.f32 %v2206, %v2351
  %v2445 = vmul.f32 %v2210, %v2351
  %v2446 = vmul.f32 %v2214, %v2351
  %v2447 = vmul.f32 %v2218, %v2351
  %v2448 = vmul.f32 %v2222, %v2351
  %v2449 = vmul.f32 %v2226, %v2351
  %v2450 = vmul.f32 %v2230, %v2351
  %v2451 = vmul.f32 %v2234, %v2351
  %v2452 = vmul.f32 %v2238, %v2351
  %v2453 = vmul.f32 %v2242, %v2351
  %v2454 = vmul.f32 %v2246, %v2351
  %v2455 = vmul.f32 %v2250, %v2351
  %v2456 = vmul.f32 %v2254, %v2351
  %v2457 = vmul.f32 %v2258, %v2351
  %v2458 = vmul.f32 %v2262, %v2351
  %v2459 = vmul.f32 %v2266, %v2351
  %v2460 = vmul.f32 %v2270, %v2351
  %v2461 = vmul.f32 %v2274, %v2351
  %v2462 = vmul.f32 %v2278, %v2351
  %v2463 = vmul.f32 %v2282, %v2351
  %v2464 = vmul.f32 %v2286, %v2351
  %v2465 = vmul.f32 %v2290, %v2351
  %v2466 = vmul.f32 %v2294, %v2351
  %v2467 = vmul.f32 %v2298, %v2351
  %v2468 = vmul.f32 %v2302, %v2351
  %v2469 = vmul.f32 %v2306, %v2351
  %v2470 = vmul.f32 %v2310, %v2351
  %v2471 = vmul.f32 %v2314, %v2351
  %v2472 = vmul.f32 %v2318, %v2351
  %v2473 = vmul.f32 %v2322, %v2351
  %v2474 = vmul.f32 %v2326, %v2351
  %v2475 = vmul.f32 %v2330, %v2351
  %v2476 = vmul.f32 %v2334, %v2351
  %v2477 = vmul.f32 %v2338, %v2351
  %v2478 = vmul.f32 %v2342, %v2351
  %v2479 = vmul.f32 %v2346, %v2351
  %v2480 = vadd.f32 %v1708, %v2352
  %v2481 = vadd.f32 %v1709, %v2353
  %v2482 = vadd.f32 %v1710, %v2354
  %v2483 = vadd.f32 %v1711, %v2355
  %v2484 = vadd.f32 %v1712, %v2356
  %v2485 = vadd.f32 %v1713, %v2357
  %v2486 = vadd.f32 %v1714, %v2358
  %v2487 = vadd.f32 %v1715, %v2359
  %v2488 = vadd.f32 %v1716, %v2360
  %v2489 = vadd.f32 %v1717, %v2361
  %v2490 = vadd.f32 %v1718, %v2362
  %v2491 = vadd.f32 %v1719, %v2363
  %v2492 = vadd.f32 %v1720, %v2364
  %v2493 = vadd.f32 %v1721, %v2365
  %v2494 = vadd.f32 %v1722, %v2366
  %v2495 = vadd.f32 %v1723, %v2367
  %v2496 = vadd.f32 %v1724, %v2368
  %v2497 = vadd.f32 %v1725, %v2369
  %v2498 = vadd.f32 %v1726, %v2370
  %v2499 = vadd.f32 %v1727, %v2371
  %v2500 = vadd.f32 %v1728, %v2372
  %v2501 = vadd.f32 %v1729, %v2373
  %v2502 = vadd.f32 %v1730, %v2374
  %v2503 = vadd.f32 %v1731, %v2375
  %v2504 = vadd.f32 %v1732, %v2376
  %v2505 = vadd.f32 %v1733, %v2377
  %v2506 = vadd.f32 %v1734, %v2378
  %v2507 = vadd.f32 %v1735, %v2379
  %v2508 = vadd.f32 %v1736, %v2380
  %v2509 = vadd.f32 %v1737, %v2381
  %v2510 = vadd.f32 %v1738, %v2382
  %v2511 = vadd.f32 %v1739, %v2383
  %v2512 = vadd.f32 %v1740, %v2384
  %v2513 = vadd.f32 %v1741, %v2385
  %v2514 = vadd.f32 %v1742, %v2386
  %v2515 = vadd.f32 %v1743, %v2387
  %v2516 = vadd.f32 %v1744, %v2388
  %v2517 = vadd.f32 %v1745, %v2389
  %v2518 = vadd.f32 %v1746, %v2390
  %v2519 = vadd.f32 %v1747, %v2391
  %v2520 = vadd.f32 %v1748, %v2392
  %v2521 = vadd.f32 %v1749, %v2393
  %v2522 = vadd.f32 %v1750, %v2394
  %v2523 = vadd.f32 %v1751, %v2395
  %v2524 = vadd.f32 %v1752, %v2396
  %v2525 = vadd.f32 %v1753, %v2397
  %v2526 = vadd.f32 %v1754, %v2398
  %v2527 = vadd.f32 %v1755, %v2399
  %v2528 = vadd.f32 %v1756, %v2400
  %v2529 = vadd.f32 %v1757, %v2401
  %v2530 = vadd.f32 %v1758, %v2402
  %v2531 = vadd.f32 %v1759, %v2403
  %v2532 = vadd.f32 %v1760, %v2404
  %v2533 = vadd.f32 %v1761, %v2405
  %v2534 = vadd.f32 %v1762, %v2406
  %v2535 = vadd.f32 %v1763, %v2407
  %v2536 = vadd.f32 %v1764, %v2408
  %v2537 = vadd.f32 %v1765, %v2409
  %v2538 = vadd.f32 %v1766, %v2410
  %v2539 = vadd.f32 %v1767, %v2411
  %v2540 = vadd.f32 %v1768, %v2412
  %v2541 = vadd.f32 %v1769, %v2413
  %v2542 = vadd.f32 %v1770, %v2414
  %v2543 = vadd.f32 %v1771, %v2415
  %v2544 = vadd.f32 %v1772, %v2416
  %v2545 = vadd.f32 %v1773, %v2417
  %v2546 = vadd.f32 %v1774, %v2418
  %v2547 = vadd.f32 %v1775, %v2419
  %v2548 = vadd.f32 %v1776, %v2420
  %v2549 = vadd.f32 %v1777, %v2421
  %v2550 = vadd.f32 %v1778, %v2422
  %v2551 = vadd.f32 %v1779, %v2423
  %v2552 = vadd.f32 %v1780, %v2424
  %v2553 = vadd.f32 %v1781, %v2425
  %v2554 = vadd.f32 %v1782, %v2426
  %v2555 = vadd.f32 %v1783, %v2427
  %v2556 = vadd.f32 %v1784, %v2428
  %v2557 = vadd.f32 %v1785, %v2429
  %v2558 = vadd.f32 %v1786, %v2430
  %v2559 = vadd.f32 %v1787, %v2431
  %v2560 = vadd.f32 %v1788, %v2432
  %v2561 = vadd.f32 %v1789, %v2433
  %v2562 = vadd.f32 %v1790, %v2434
  %v2563 = vadd.f32 %v1791, %v2435
  %v2564 = vadd.f32 %v1792, %v2436
  %v2565 = vadd.f32 %v1793, %v2437
  %v2566 = vadd.f32 %v1794, %v2438
  %v2567 = vadd.f32 %v1795, %v2439
  %v2568 = vadd.f32 %v1796, %v2440
  %v2569 = vadd.f32 %v1797, %v2441
  %v2570 = vadd.f32 %v1798, %v2442
  %v2571 = vadd.f32 %v1799, %v2443
  %v2572 = vadd.f32 %v1800, %v2444
  %v2573 = vadd.f32 %v1801, %v2445
  %v2574 = vadd.f32 %v1802, %v2446
  %v2575 = vadd.f32 %v1803, %v2447
  %v2576 = vadd.f32 %v1804, %v2448
  %v2577 = vadd.f32 %v1805, %v2449
  %v2578 = vadd.f32 %v1806, %v2450
  %v2579 = vadd.f32 %v1807, %v2451
  %v2580 = vadd.f32 %v1808, %v2452
  %v2581 = vadd.f32 %v1809, %v2453
  %v2582 = vadd.f32 %v1810, %v2454
  %v2583 = vadd.f32 %v1811, %v2455
  %v2584 = vadd.f32 %v1812, %v2456
  %v2585 = vadd.f32 %v1813, %v2457
  %v2586 = vadd.f32 %v1814, %v2458
  %v2587 = vadd.f32 %v1815, %v2459
  %v2588 = vadd.f32 %v1816, %v2460
  %v2589 = vadd.f32 %v1817, %v2461
  %v2590 = vadd.f32 %v1818, %v2462
  %v2591 = vadd.f32 %v1819, %v2463
  %v2592 = vadd.f32 %v1820, %v2464
  %v2593 = vadd.f32 %v1821, %v2465
  %v2594 = vadd.f32 %v1822, %v2466
  %v2595 = vadd.f32 %v1823, %v2467
  %v2596 = vadd.f32 %v1824, %v2468
  %v2597 = vadd.f32 %v1825, %v2469
  %v2598 = vadd.f32 %v1826, %v2470
  %v2599 = vadd.f32 %v1827, %v2471
  %v2600 = vadd.f32 %v1828, %v2472
  %v2601 = vadd.f32 %v1829, %v2473
  %v2602 = vadd.f32 %v1830, %v2474
  %v2603 = vadd.f32 %v1831, %v2475
  %v2604 = vadd.f32 %v1832, %v2476
  %v2605 = vadd.f32 %v1833, %v2477
  %v2606 = vadd.f32 %v1834, %v2478
  %v2607 = vadd.f32 %v1835, %v2479
  %v2608 = vmax.f32 %v2480, 0.0
  %v2609 = vmax.f32 %v2481, 0.0
  %v2610 = vmax.f32 %v2482, 0.0
  %v2611 = vmax.f32 %v2483, 0.0
  %v2612 = vmax.f32 %v2484, 0.0
  %v2613 = vmax.f32 %v2485, 0.0
  %v2614 = vmax.f32 %v2486, 0.0
  %v2615 = vmax.f32 %v2487, 0.0
  %v2616 = vmax.f32 %v2488, 0.0
  %v2617 = vmax.f32 %v2489, 0.0
  %v2618 = vmax.f32 %v2490, 0.0
  %v2619 = vmax.f32 %v2491, 0.0
  %v2620 = vmax.f32 %v2492, 0.0
  %v2621 = vmax.f32 %v2493, 0.0
  %v2622 = vmax.f32 %v2494, 0.0
  %v2623 = vmax.f32 %v2495, 0.0
  %v2624 = vmax.f32 %v2496, 0.0
  %v2625 = vmax.f32 %v2497, 0.0
  %v2626 = vmax.f32 %v2498, 0.0
  %v2627 = vmax.f32 %v2499, 0.0
  %v2628 = vmax.f32 %v2500, 0.0
  %v2629 = vmax.f32 %v2501, 0.0
  %v2630 = vmax.f32 %v2502, 0.0
  %v2631 = vmax.f32 %v2503, 0.0
  %v2632 = vmax.f32 %v2504, 0.0
  %v2633 = vmax.f32 %v2505, 0.0
  %v2634 = vmax.f32 %v2506, 0.0
  %v2635 = vmax.f32 %v2507, 0.0
  %v2636 = vmax.f32 %v2508, 0.0
  %v2637 = vmax.f32 %v2509, 0.0
  %v2638 = vmax.f32 %v2510, 0.0
  %v2639 = vmax.f32 %v2511, 0.0
  %v2640 = vmax.f32 %v2512, 0.0
  %v2641 = vmax.f32 %v2513, 0.0
  %v2642 = vmax.f32 %v2514, 0.0
  %v2643 = vmax.f32 %v2515, 0.0
  %v2644 = vmax.f32 %v2516, 0.0
  %v2645 = vmax.f32 %v2517, 0.0
  %v2646 = vmax.f32 %v2518, 0.0
  %v2647 = vmax.f32 %v2519, 0.0
  %v2648 = vmax.f32 %v2520, 0.0
  %v2649 = vmax.f32 %v2521, 0.0
  %v2650 = vmax.f32 %v2522, 0.0
  %v2651 = vmax.f32 %v2523, 0.0
  %v2652 = vmax.f32 %v2524, 0.0
  %v2653 = vmax.f32 %v2525, 0.0
  %v2654 = vmax.f32 %v2526, 0.0
  %v2655 = vmax.f32 %v2527, 0.0
  %v2656 = vmax.f32 %v2528, 0.0
  %v2657 = vmax.f32 %v2529, 0.0
  %v2658 = vmax.f32 %v2530, 0.0
  %v2659 = vmax.f32 %v2531, 0.0
  %v2660 = vmax.f32 %v2532, 0.0
  %v2661 = vmax.f32 %v2533, 0.0
  %v2662 = vmax.f32 %v2534, 0.0
  %v2663 = vmax.f32 %v2535, 0.0
  %v2664 = vmax.f32 %v2536, 0.0
  %v2665 = vmax.f32 %v2537, 0.0
  %v2666 = vmax.f32 %v2538, 0.0
  %v2667 = vmax.f32 %v2539, 0.0
  %v2668 = vmax.f32 %v2540, 0.0
  %v2669 = vmax.f32 %v2541, 0.0
  %v2670 = vmax.f32 %v2542, 0.0
  %v2671 = vmax.f32 %v2543, 0.0
  %v2672 = vmax.f32 %v2544, 0.0
  %v2673 = vmax.f32 %v2545, 0.0
  %v2674 = vmax.f32 %v2546, 0.0
  %v2675 = vmax.f32 %v2547, 0.0
  %v2676 = vmax.f32 %v2548, 0.0
  %v2677 = vmax.f32 %v2549, 0.0
  %v2678 = vmax.f32 %v2550, 0.0
  %v2679 = vmax.f32 %v2551, 0.0
  %v2680 = vmax.f32 %v2552, 0.0
  %v2681 = vmax.f32 %v2553, 0.0
  %v2682 = vmax.f32 %v2554, 0.0
  %v2683 = vmax.f32 %v2555, 0.0
  %v2684 = vmax.f32 %v2556, 0.0
  %v2685 = vmax.f32 %v2557, 0.0
  %v2686 = vmax.f32 %v2558, 0.0
  %v2687 = vmax.f32 %v2559, 0.0
  %v2688 = vmax.f32 %v2560, 0.0
  %v2689 = vmax.f32 %v2561, 0.0
  %v2690 = vmax.f32 %v2562, 0.0
  %v2691 = vmax.f32 %v2563, 0.0
  %v2692 = vmax.f32 %v2564, 0.0
  %v2693 = vmax.f32 %v2565, 0.0
  %v2694 = vmax.f32 %v2566, 0.0
  %v2695 = vmax.f32 %v2567, 0.0
  %v2696 = vmax.f32 %v2568, 0.0
  %v2697 = vmax.f32 %v2569, 0.0
  %v2698 = vmax.f32 %v2570, 0.0
  %v2699 = vmax.f32 %v2571, 0.0
  %v2700 = vmax.f32 %v2572, 0.0
  %v2701 = vmax.f32 %v2573, 0.0
  %v2702 = vmax.f32 %v2574, 0.0
  %v2703 = vmax.f32 %v2575, 0.0
  %v2704 = vmax.f32 %v2576, 0.0
  %v2705 = vmax.f32 %v2577, 0.0
  %v2706 = vmax.f32 %v2578, 0.0
  %v2707 = vmax.f32 %v2579, 0.0
  %v2708 = vmax.f32 %v2580, 0.0
  %v2709 = vmax.f32 %v2581, 0.0
  %v2710 = vmax.f32 %v2582, 0.0
  %v2711 = vmax.f32 %v2583, 0.0
  %v2712 = vmax.f32 %v2584, 0.0
  %v2713 = vmax.f32 %v2585, 0.0
  %v2714 = vmax.f32 %v2586, 0.0
  %v2715 = vmax.f32 %v2587, 0.0
  %v2716 = vmax.f32 %v2588, 0.0
  %v2717 = vmax.f32 %v2589, 0.0
  %v2718 = vmax.f32 %v2590, 0.0
  %v2719 = vmax.f32 %v2591, 0.0
  %v2720 = vmax.f32 %v2592, 0.0
  %v2721 = vmax.f32 %v2593, 0.0
  %v2722 = vmax.f32 %v2594, 0.0
  %v2723 = vmax.f32 %v2595, 0.0
  %v2724 = vmax.f32 %v2596, 0.0
  %v2725 = vmax.f32 %v2597, 0.0
  %v2726 = vmax.f32 %v2598, 0.0
  %v2727 = vmax.f32 %v2599, 0.0
  %v2728 = vmax.f32 %v2600, 0.0
  %v2729 = vmax.f32 %v2601, 0.0
  %v2730 = vmax.f32 %v2602, 0.0
  %v2731 = vmax.f32 %v2603, 0.0
  %v2732 = vmax.f32 %v2604, 0.0
  %v2733 = vmax.f32 %v2605, 0.0
  %v2734 = vmax.f32 %v2606, 0.0
  %v2735 = vmax.f32 %v2607, 0.0
  %v2736 = vpack.c.bf16 %v2609, %v2608
  %v2737 = vpack.c.bf16 %v2611, %v2610
  %v2738 = vpack.c.bf16 %v2613, %v2612
  %v2739 = vpack.c.bf16 %v2615, %v2614
  %v2740 = vpack.c.bf16 %v2617, %v2616
  %v2741 = vpack.c.bf16 %v2619, %v2618
  %v2742 = vpack.c.bf16 %v2621, %v2620
  %v2743 = vpack.c.bf16 %v2623, %v2622
  %v2744 = vpack.c.bf16 %v2625, %v2624
  %v2745 = vpack.c.bf16 %v2627, %v2626
  %v2746 = vpack.c.bf16 %v2629, %v2628
  %v2747 = vpack.c.bf16 %v2631, %v2630
  %v2748 = vpack.c.bf16 %v2633, %v2632
  %v2749 = vpack.c.bf16 %v2635, %v2634
  %v2750 = vpack.c.bf16 %v2637, %v2636
  %v2751 = vpack.c.bf16 %v2639, %v2638
  %v2752 = vpack.c.bf16 %v2641, %v2640
  %v2753 = vpack.c.bf16 %v2643, %v2642
  %v2754 = vpack.c.bf16 %v2645, %v2644
  %v2755 = vpack.c.bf16 %v2647, %v2646
  %v2756 = vpack.c.bf16 %v2649, %v2648
  %v2757 = vpack.c.bf16 %v2651, %v2650
  %v2758 = vpack.c.bf16 %v2653, %v2652
  %v2759 = vpack.c.bf16 %v2655, %v2654
  %v2760 = vpack.c.bf16 %v2657, %v2656
  %v2761 = vpack.c.bf16 %v2659, %v2658
  %v2762 = vpack.c.bf16 %v2661, %v2660
  %v2763 = vpack.c.bf16 %v2663, %v2662
  %v2764 = vpack.c.bf16 %v2665, %v2664
  %v2765 = vpack.c.bf16 %v2667, %v2666
  %v2766 = vpack.c.bf16 %v2669, %v2668
  %v2767 = vpack.c.bf16 %v2671, %v2670
  %v2768 = vpack.c.bf16 %v2673, %v2672
  %v2769 = vpack.c.bf16 %v2675, %v2674
  %v2770 = vpack.c.bf16 %v2677, %v2676
  %v2771 = vpack.c.bf16 %v2679, %v2678
  %v2772 = vpack.c.bf16 %v2681, %v2680
  %v2773 = vpack.c.bf16 %v2683, %v2682
  %v2774 = vpack.c.bf16 %v2685, %v2684
  %v2775 = vpack.c.bf16 %v2687, %v2686
  %v2776 = vpack.c.bf16 %v2689, %v2688
  %v2777 = vpack.c.bf16 %v2691, %v2690
  %v2778 = vpack.c.bf16 %v2693, %v2692
  %v2779 = vpack.c.bf16 %v2695, %v2694
  %v2780 = vpack.c.bf16 %v2697, %v2696
  %v2781 = vpack.c.bf16 %v2699, %v2698
  %v2782 = vpack.c.bf16 %v2701, %v2700
  %v2783 = vpack.c.bf16 %v2703, %v2702
  %v2784 = vpack.c.bf16 %v2705, %v2704
  %v2785 = vpack.c.bf16 %v2707, %v2706
  %v2786 = vpack.c.bf16 %v2709, %v2708
  %v2787 = vpack.c.bf16 %v2711, %v2710
  %v2788 = vpack.c.bf16 %v2713, %v2712
  %v2789 = vpack.c.bf16 %v2715, %v2714
  %v2790 = vpack.c.bf16 %v2717, %v2716
  %v2791 = vpack.c.bf16 %v2719, %v2718
  %v2792 = vpack.c.bf16 %v2721, %v2720
  %v2793 = vpack.c.bf16 %v2723, %v2722
  %v2794 = vpack.c.bf16 %v2725, %v2724
  %v2795 = vpack.c.bf16 %v2727, %v2726
  %v2796 = vpack.c.bf16 %v2729, %v2728
  %v2797 = vpack.c.bf16 %v2731, %v2730
  %v2798 = vpack.c.bf16 %v2733, %v2732
  %v2799 = vpack.c.bf16 %v2735, %v2734
  %v2800 = vld [vmem:[%s3] sm:$0xf]
  %v2801 = vld [vmem:[%s3 + $0x4] sm:$0xf]
  %v2802 = vld [vmem:[%s3 + $0x8] sm:$0xf]
  %v2803 = vld [vmem:[%s3 + $0xc] sm:$0xf]
  %v2804 = vld [vmem:[%s3 + $0x10] sm:$0xf]
  %v2805 = vld [vmem:[%s3 + $0x14] sm:$0xf]
  %v2806 = vld [vmem:[%s3 + $0x18] sm:$0xf]
  %v2807 = vld [vmem:[%s3 + $0x1c] sm:$0xf]
  %v2808 = vld [vmem:[%s3 + $0x20] sm:$0xf]
  %v2809 = vld [vmem:[%s3 + $0x24] sm:$0xf]
  %v2810 = vld [vmem:[%s3 + $0x28] sm:$0xf]
  %v2811 = vld [vmem:[%s3 + $0x2c] sm:$0xf]
  %v2812 = vld [vmem:[%s3 + $0x30] sm:$0xf]
  %v2813 = vld [vmem:[%s3 + $0x34] sm:$0xf]
  %v2814 = vld [vmem:[%s3 + $0x38] sm:$0xf]
  %v2815 = vld [vmem:[%s3 + $0x3c] sm:$0xf]
  %v2816 = vld [vmem:[%s4] sm:$0x1]
  %v2818 = vlaneseq
  %v2819 = vshrl.u32 %v2818, 7
  %v2820 = vsub.s32 0, %v2819
  %v2821 = vrot.slane %v2816, %v2820
  %v2839 = vunpack.c.l.b16 %v2800
  %v2840 = vunpack.c.l.b16 %v2801
  %v2841 = vunpack.c.l.b16 %v2802
  %v2842 = vunpack.c.l.b16 %v2803
  %v2843 = vunpack.c.l.b16 %v2804
  %v2844 = vunpack.c.l.b16 %v2805
  %v2845 = vunpack.c.l.b16 %v2806
  %v2846 = vunpack.c.l.b16 %v2807
  %v2847 = vunpack.c.l.b16 %v2808
  %v2848 = vunpack.c.l.b16 %v2809
  %v2849 = vunpack.c.l.b16 %v2810
  %v2850 = vunpack.c.l.b16 %v2811
  %v2851 = vunpack.c.l.b16 %v2812
  %v2852 = vunpack.c.l.b16 %v2813
  %v2853 = vunpack.c.l.b16 %v2814
  %v2854 = vunpack.c.l.b16 %v2815
  %v2855 = vpack.c.b16 %v2840, %v2839
  %v2856 = vpack.c.b16 %v2842, %v2841
  %v2857 = vpack.c.b16 %v2844, %v2843
  %v2858 = vpack.c.b16 %v2846, %v2845
  %v2859 = vpack.c.b16 %v2848, %v2847
  %v2860 = vpack.c.b16 %v2850, %v2849
  %v2861 = vpack.c.b16 %v2852, %v2851
  %v2862 = vpack.c.b16 %v2854, %v2853
  %2871 = vmatprep.subr.bf16.mxu0 0
  %2872 = vmatpush1.bf16.msra.mxu0 %v2855
  %2873 = vmatprep.subr.bf16.mxu0 0
  %2874 = vmatpush1.bf16.msra.mxu0 %v2856
  %2875 = vmatprep.subr.bf16.mxu0 0
  %2876 = vmatpush1.bf16.msra.mxu0 %v2857
  %2877 = vmatprep.subr.bf16.mxu0 0
  %2878 = vmatpush1.bf16.msra.mxu0 %v2858
  %2879 = vmatprep.subr.bf16.mxu0 0
  %2880 = vmatpush1.bf16.msra.mxu0 %v2859
  %2881 = vmatprep.subr.bf16.mxu0 0
  %2882 = vmatpush1.bf16.msra.mxu0 %v2860
  %2883 = vmatprep.subr.bf16.mxu0 0
  %2884 = vmatpush1.bf16.msra.mxu0 %v2861
  %2885 = vmatprep.subr.bf16.mxu0 0
  %2886 = vmatpush1.bf16.msra.mxu0 %v2862
  %2887 = vmatprep.subr.bf16.mxu0 0
  %2888 = vmatpush1.bf16.msra.mxu0 0
  %2889 = vmatprep.subr.bf16.mxu0 0
  %2890 = vmatpush1.bf16.msra.mxu0 0
  %2891 = vmatprep.subr.bf16.mxu0 0
  %2892 = vmatpush1.bf16.msra.mxu0 0
  %2893 = vmatprep.subr.bf16.mxu0 0
  %2894 = vmatpush1.bf16.msra.mxu0 0
  %2895 = vmatprep.subr.bf16.mxu0 0
  %2896 = vmatpush1.bf16.msra.mxu0 0
  %2897 = vmatprep.subr.bf16.mxu0 0
  %2898 = vmatpush1.bf16.msra.mxu0 0
  %2899 = vmatprep.subr.bf16.mxu0 0
  %2900 = vmatpush1.bf16.msra.mxu0 0
  %2901 = vmatprep.subr.bf16.mxu0 0
  %2902 = vmatpush1.bf16.msra.mxu0 0
  %2903 = vmatprep.mubr.bf16.mxu0 0
  %2904 = vmatmul.mubr.bf16.gmra.mrb[0].mxu0 %v2736
  %v2905 = vpop.f32.mrb[0].mxu0
  %v2906 = vadd.f32 %v2821, %v2905
  %v2907 = vpop.f32.mrb[0].mxu0
  %v2908 = vpop.f32.mrb[0].mxu0
  %v2909 = vadd.f32 %v2821, %v2908
  %v2910 = vpop.f32.mrb[0].mxu0
  %2911 = vmatprep.mubr.bf16.mxu0 0
  %2912 = vmatmul.mubr.bf16.gmra.mrb[0].mxu0 %v2737
  %v2913 = vpop.f32.mrb[0].mxu0
  %v2914 = vadd.f32 %v2821, %v2913
  %v2915 = vpop.f32.mrb[0].mxu0
  %v2916 = vpop.f32.mrb[0].mxu0
  %v2917 = vadd.f32 %v2821, %v2916
  %v2918 = vpop.f32.mrb[0].mxu0
  %2919 = vmatprep.mubr.bf16.mxu0 0
  %2920 = vmatmul.mubr.bf16.gmra.mrb[0].mxu0 %v2738
  %v2921 = vpop.f32.mrb[0].mxu0
  %v2922 = vadd.f32 %v2821, %v2921
  %v2923 = vpop.f32.mrb[0].mxu0
  %v2924 = vpop.f32.mrb[0].mxu0
  %v2925 = vadd.f32 %v2821, %v2924
  %v2926 = vpop.f32.mrb[0].mxu0
  %2927 = vmatprep.mubr.bf16.mxu0 0
  %2928 = vmatmul.mubr.bf16.gmra.mrb[0].mxu0 %v2739
  %v2929 = vpop.f32.mrb[0].mxu0
  %v2930 = vadd.f32 %v2821, %v2929
  %v2931 = vpop.f32.mrb[0].mxu0
  %v2932 = vpop.f32.mrb[0].mxu0
  %v2933 = vadd.f32 %v2821, %v2932
  %v2934 = vpop.f32.mrb[0].mxu0
  %2935 = vmatprep.mubr.bf16.mxu0 0
  %2936 = vmatmul.mubr.bf16.gmra.mrb[0].mxu0 %v2740
  %v2937 = vpop.f32.mrb[0].mxu0
  %v2938 = vadd.f32 %v2821, %v2937
  %v2939 = vpop.f32.mrb[0].mxu0
  %v2940 = vpop.f32.mrb[0].mxu0
  %v2941 = vadd.f32 %v2821, %v2940
  %v2942 = vpop.f32.mrb[0].mxu0
  %2943 = vmatprep.mubr.bf16.mxu0 0
  %2944 = vmatmul.mubr.bf16.gmra.mrb[0].mxu0 %v2741
  %v2945 = vpop.f32.mrb[0].mxu0
  %v2946 = vadd.f32 %v2821, %v2945
  %v2947 = vpop.f32.mrb[0].mxu0
  %v2948 = vpop.f32.mrb[0].mxu0
  %v2949 = vadd.f32 %v2821, %v2948
  %v2950 = vpop.f32.mrb[0].mxu0
  %2951 = vmatprep.mubr.bf16.mxu0 0
  %2952 = vmatmul.mubr.bf16.gmra.mrb[0].mxu0 %v2742
  %v2953 = vpop.f32.mrb[0].mxu0
  %v2954 = vadd.f32 %v2821, %v2953
  %v2955 = vpop.f32.mrb[0].mxu0
  %v2956 = vpop.f32.mrb[0].mxu0
  %v2957 = vadd.f32 %v2821, %v2956
  %v2958 = vpop.f32.mrb[0].mxu0
  %2959 = vmatprep.mubr.bf16.mxu0 0
  %2960 = vmatmul.mubr.bf16.gmra.mrb[0].mxu0 %v2743
  %v2961 = vpop.f32.mrb[0].mxu0
  %v2962 = vadd.f32 %v2821, %v2961
  %v2963 = vpop.f32.mrb[0].mxu0
  %v2964 = vpop.f32.mrb[0].mxu0
  %v2965 = vadd.f32 %v2821, %v2964
  %v2966 = vpop.f32.mrb[0].mxu0
  %2967 = vmatprep.mubr.bf16.mxu0 0
  %2968 = vmatmul.mubr.bf16.gmra.mrb[0].mxu0 %v2744
  %v2969 = vpop.f32.mrb[0].mxu0
  %v2970 = vadd.f32 %v2821, %v2969
  %v2971 = vpop.f32.mrb[0].mxu0
  %v2972 = vpop.f32.mrb[0].mxu0
  %v2973 = vadd.f32 %v2821, %v2972
  %v2974 = vpop.f32.mrb[0].mxu0
  %2975 = vmatprep.mubr.bf16.mxu0 0
  %2976 = vmatmul.mubr.bf16.gmra.mrb[0].mxu0 %v2745
  %v2977 = vpop.f32.mrb[0].mxu0
  %v2978 = vadd.f32 %v2821, %v2977
  %v2979 = vpop.f32.mrb[0].mxu0
  %v2980 = vpop.f32.mrb[0].mxu0
  %v2981 = vadd.f32 %v2821, %v2980
  %v2982 = vpop.f32.mrb[0].mxu0
  %2983 = vmatprep.mubr.bf16.mxu0 0
  %2984 = vmatmul.mubr.bf16.gmra.mrb[0].mxu0 %v2746
  %v2985 = vpop.f32.mrb[0].mxu0
  %v2986 = vadd.f32 %v2821, %v2985
  %v2987 = vpop.f32.mrb[0].mxu0
  %v2988 = vpop.f32.mrb[0].mxu0
  %v2989 = vadd.f32 %v2821, %v2988
  %v2990 = vpop.f32.mrb[0].mxu0
  %2991 = vmatprep.mubr.bf16.mxu0 0
  %2992 = vmatmul.mubr.bf16.gmra.mrb[0].mxu0 %v2747
  %v2993 = vpop.f32.mrb[0].mxu0
  %v2994 = vadd.f32 %v2821, %v2993
  %v2995 = vpop.f32.mrb[0].mxu0
  %v2996 = vpop.f32.mrb[0].mxu0
  %v2997 = vadd.f32 %v2821, %v2996
  %v2998 = vpop.f32.mrb[0].mxu0
  %2999 = vmatprep.mubr.bf16.mxu0 0
  %3000 = vmatmul.mubr.bf16.gmra.mrb[0].mxu0 %v2748
  %v3001 = vpop.f32.mrb[0].mxu0
  %v3002 = vadd.f32 %v2821, %v3001
  %v3003 = vpop.f32.mrb[0].mxu0
  %v3004 = vpop.f32.mrb[0].mxu0
  %v3005 = vadd.f32 %v2821, %v3004
  %v3006 = vpop.f32.mrb[0].mxu0
  %3007 = vmatprep.mubr.bf16.mxu0 0
  %3008 = vmatmul.mubr.bf16.gmra.mrb[0].mxu0 %v2749
  %v3009 = vpop.f32.mrb[0].mxu0
  %v3010 = vadd.f32 %v2821, %v3009
  %v3011 = vpop.f32.mrb[0].mxu0
  %v3012 = vpop.f32.mrb[0].mxu0
  %v3013 = vadd.f32 %v2821, %v3012
  %v3014 = vpop.f32.mrb[0].mxu0
  %3015 = vmatprep.mubr.bf16.mxu0 0
  %3016 = vmatmul.mubr.bf16.gmra.mrb[0].mxu0 %v2750
  %v3017 = vpop.f32.mrb[0].mxu0
  %v3018 = vadd.f32 %v2821, %v3017
  %v3019 = vpop.f32.mrb[0].mxu0
  %v3020 = vpop.f32.mrb[0].mxu0
  %v3021 = vadd.f32 %v2821, %v3020
  %v3022 = vpop.f32.mrb[0].mxu0
  %3023 = vmatprep.mubr.bf16.mxu0 0
  %3024 = vmatmul.mubr.bf16.gmra.mrb[0].mxu0 %v2751
  %v3025 = vpop.f32.mrb[0].mxu0
  %v3026 = vadd.f32 %v2821, %v3025
  %v3027 = vpop.f32.mrb[0].mxu0
  %v3028 = vpop.f32.mrb[0].mxu0
  %v3029 = vadd.f32 %v2821, %v3028
  %v3030 = vpop.f32.mrb[0].mxu0
  %3031 = vmatprep.mubr.bf16.mxu0 0
  %3032 = vmatmul.mubr.bf16.gmra.mrb[0].mxu0 %v2752
  %v3033 = vpop.f32.mrb[0].mxu0
  %v3034 = vadd.f32 %v2821, %v3033
  %v3035 = vpop.f32.mrb[0].mxu0
  %v3036 = vpop.f32.mrb[0].mxu0
  %v3037 = vadd.f32 %v2821, %v3036
  %v3038 = vpop.f32.mrb[0].mxu0
  %3039 = vmatprep.mubr.bf16.mxu0 0
  %3040 = vmatmul.mubr.bf16.gmra.mrb[0].mxu0 %v2753
  %v3041 = vpop.f32.mrb[0].mxu0
  %v3042 = vadd.f32 %v2821, %v3041
  %v3043 = vpop.f32.mrb[0].mxu0
  %v3044 = vpop.f32.mrb[0].mxu0
  %v3045 = vadd.f32 %v2821, %v3044
  %v3046 = vpop.f32.mrb[0].mxu0
  %3047 = vmatprep.mubr.bf16.mxu0 0
  %3048 = vmatmul.mubr.bf16.gmra.mrb[0].mxu0 %v2754
  %v3049 = vpop.f32.mrb[0].mxu0
  %v3050 = vadd.f32 %v2821, %v3049
  %v3051 = vpop.f32.mrb[0].mxu0
  %v3052 = vpop.f32.mrb[0].mxu0
  %v3053 = vadd.f32 %v2821, %v3052
  %v3054 = vpop.f32.mrb[0].mxu0
  %3055 = vmatprep.mubr.bf16.mxu0 0
  %3056 = vmatmul.mubr.bf16.gmra.mrb[0].mxu0 %v2755
  %v3057 = vpop.f32.mrb[0].mxu0
  %v3058 = vadd.f32 %v2821, %v3057
  %v3059 = vpop.f32.mrb[0].mxu0
  %v3060 = vpop.f32.mrb[0].mxu0
  %v3061 = vadd.f32 %v2821, %v3060
  %v3062 = vpop.f32.mrb[0].mxu0
  %3063 = vmatprep.mubr.bf16.mxu0 0
  %3064 = vmatmul.mubr.bf16.gmra.mrb[0].mxu0 %v2756
  %v3065 = vpop.f32.mrb[0].mxu0
  %v3066 = vadd.f32 %v2821, %v3065
  %v3067 = vpop.f32.mrb[0].mxu0
  %v3068 = vpop.f32.mrb[0].mxu0
  %v3069 = vadd.f32 %v2821, %v3068
  %v3070 = vpop.f32.mrb[0].mxu0
  %3071 = vmatprep.mubr.bf16.mxu0 0
  %3072 = vmatmul.mubr.bf16.gmra.mrb[0].mxu0 %v2757
  %v3073 = vpop.f32.mrb[0].mxu0
  %v3074 = vadd.f32 %v2821, %v3073
  %v3075 = vpop.f32.mrb[0].mxu0
  %v3076 = vpop.f32.mrb[0].mxu0
  %v3077 = vadd.f32 %v2821, %v3076
  %v3078 = vpop.f32.mrb[0].mxu0
  %3079 = vmatprep.mubr.bf16.mxu0 0
  %3080 = vmatmul.mubr.bf16.gmra.mrb[0].mxu0 %v2758
  %v3081 = vpop.f32.mrb[0].mxu0
  %v3082 = vadd.f32 %v2821, %v3081
  %v3083 = vpop.f32.mrb[0].mxu0
  %v3084 = vpop.f32.mrb[0].mxu0
  %v3085 = vadd.f32 %v2821, %v3084
  %v3086 = vpop.f32.mrb[0].mxu0
  %3087 = vmatprep.mubr.bf16.mxu0 0
  %3088 = vmatmul.mubr.bf16.gmra.mrb[0].mxu0 %v2759
  %v3089 = vpop.f32.mrb[0].mxu0
  %v3090 = vadd.f32 %v2821, %v3089
  %v3091 = vpop.f32.mrb[0].mxu0
  %v3092 = vpop.f32.mrb[0].mxu0
  %v3093 = vadd.f32 %v2821, %v3092
  %v3094 = vpop.f32.mrb[0].mxu0
  %3095 = vmatprep.mubr.bf16.mxu0 0
  %3096 = vmatmul.mubr.bf16.gmra.mrb[0].mxu0 %v2760
  %v3097 = vpop.f32.mrb[0].mxu0
  %v3098 = vadd.f32 %v2821, %v3097
  %v3099 = vpop.f32.mrb[0].mxu0
  %v3100 = vpop.f32.mrb[0].mxu0
  %v3101 = vadd.f32 %v2821, %v3100
  %v3102 = vpop.f32.mrb[0].mxu0
  %3103 = vmatprep.mubr.bf16.mxu0 0
  %3104 = vmatmul.mubr.bf16.gmra.mrb[0].mxu0 %v2761
  %v3105 = vpop.f32.mrb[0].mxu0
  %v3106 = vadd.f32 %v2821, %v3105
  %v3107 = vpop.f32.mrb[0].mxu0
  %v3108 = vpop.f32.mrb[0].mxu0
  %v3109 = vadd.f32 %v2821, %v3108
  %v3110 = vpop.f32.mrb[0].mxu0
  %3111 = vmatprep.mubr.bf16.mxu0 0
  %3112 = vmatmul.mubr.bf16.gmra.mrb[0].mxu0 %v2762
  %v3113 = vpop.f32.mrb[0].mxu0
  %v3114 = vadd.f32 %v2821, %v3113
  %v3115 = vpop.f32.mrb[0].mxu0
  %v3116 = vpop.f32.mrb[0].mxu0
  %v3117 = vadd.f32 %v2821, %v3116
  %v3118 = vpop.f32.mrb[0].mxu0
  %3119 = vmatprep.mubr.bf16.mxu0 0
  %3120 = vmatmul.mubr.bf16.gmra.mrb[0].mxu0 %v2763
  %v3121 = vpop.f32.mrb[0].mxu0
  %v3122 = vadd.f32 %v2821, %v3121
  %v3123 = vpop.f32.mrb[0].mxu0
  %v3124 = vpop.f32.mrb[0].mxu0
  %v3125 = vadd.f32 %v2821, %v3124
  %v3126 = vpop.f32.mrb[0].mxu0
  %3127 = vmatprep.mubr.bf16.mxu0 0
  %3128 = vmatmul.mubr.bf16.gmra.mrb[0].mxu0 %v2764
  %v3129 = vpop.f32.mrb[0].mxu0
  %v3130 = vadd.f32 %v2821, %v3129
  %v3131 = vpop.f32.mrb[0].mxu0
  %v3132 = vpop.f32.mrb[0].mxu0
  %v3133 = vadd.f32 %v2821, %v3132
  %v3134 = vpop.f32.mrb[0].mxu0
  %3135 = vmatprep.mubr.bf16.mxu0 0
  %3136 = vmatmul.mubr.bf16.gmra.mrb[0].mxu0 %v2765
  %v3137 = vpop.f32.mrb[0].mxu0
  %v3138 = vadd.f32 %v2821, %v3137
  %v3139 = vpop.f32.mrb[0].mxu0
  %v3140 = vpop.f32.mrb[0].mxu0
  %v3141 = vadd.f32 %v2821, %v3140
  %v3142 = vpop.f32.mrb[0].mxu0
  %3143 = vmatprep.mubr.bf16.mxu0 0
  %3144 = vmatmul.mubr.bf16.gmra.mrb[0].mxu0 %v2766
  %v3145 = vpop.f32.mrb[0].mxu0
  %v3146 = vadd.f32 %v2821, %v3145
  %v3147 = vpop.f32.mrb[0].mxu0
  %v3148 = vpop.f32.mrb[0].mxu0
  %v3149 = vadd.f32 %v2821, %v3148
  %v3150 = vpop.f32.mrb[0].mxu0
  %3151 = vmatprep.mubr.bf16.mxu0 0
  %3152 = vmatmul.mubr.bf16.gmra.mrb[0].mxu0 %v2767
  %v3153 = vpop.f32.mrb[0].mxu0
  %v3154 = vadd.f32 %v2821, %v3153
  %v3155 = vpop.f32.mrb[0].mxu0
  %v3156 = vpop.f32.mrb[0].mxu0
  %v3157 = vadd.f32 %v2821, %v3156
  %v3158 = vpop.f32.mrb[0].mxu0
  %3159 = vmatprep.mubr.bf16.mxu0 0
  %3160 = vmatmul.mubr.bf16.gmra.mrb[0].mxu0 %v2768
  %v3161 = vpop.f32.mrb[0].mxu0
  %v3162 = vadd.f32 %v2821, %v3161
  %v3163 = vpop.f32.mrb[0].mxu0
  %v3164 = vpop.f32.mrb[0].mxu0
  %v3165 = vadd.f32 %v2821, %v3164
  %v3166 = vpop.f32.mrb[0].mxu0
  %3167 = vmatprep.mubr.bf16.mxu0 0
  %3168 = vmatmul.mubr.bf16.gmra.mrb[0].mxu0 %v2769
  %v3169 = vpop.f32.mrb[0].mxu0
  %v3170 = vadd.f32 %v2821, %v3169
  %v3171 = vpop.f32.mrb[0].mxu0
  %v3172 = vpop.f32.mrb[0].mxu0
  %v3173 = vadd.f32 %v2821, %v3172
  %v3174 = vpop.f32.mrb[0].mxu0
  %3175 = vmatprep.mubr.bf16.mxu0 0
  %3176 = vmatmul.mubr.bf16.gmra.mrb[0].mxu0 %v2770
  %v3177 = vpop.f32.mrb[0].mxu0
  %v3178 = vadd.f32 %v2821, %v3177
  %v3179 = vpop.f32.mrb[0].mxu0
  %v3180 = vpop.f32.mrb[0].mxu0
  %v3181 = vadd.f32 %v2821, %v3180
  %v3182 = vpop.f32.mrb[0].mxu0
  %3183 = vmatprep.mubr.bf16.mxu0 0
  %3184 = vmatmul.mubr.bf16.gmra.mrb[0].mxu0 %v2771
  %v3185 = vpop.f32.mrb[0].mxu0
  %v3186 = vadd.f32 %v2821, %v3185
  %v3187 = vpop.f32.mrb[0].mxu0
  %v3188 = vpop.f32.mrb[0].mxu0
  %v3189 = vadd.f32 %v2821, %v3188
  %v3190 = vpop.f32.mrb[0].mxu0
  %3191 = vmatprep.mubr.bf16.mxu0 0
  %3192 = vmatmul.mubr.bf16.gmra.mrb[0].mxu0 %v2772
  %v3193 = vpop.f32.mrb[0].mxu0
  %v3194 = vadd.f32 %v2821, %v3193
  %v3195 = vpop.f32.mrb[0].mxu0
  %v3196 = vpop.f32.mrb[0].mxu0
  %v3197 = vadd.f32 %v2821, %v3196
  %v3198 = vpop.f32.mrb[0].mxu0
  %3199 = vmatprep.mubr.bf16.mxu0 0
  %3200 = vmatmul.mubr.bf16.gmra.mrb[0].mxu0 %v2773
  %v3201 = vpop.f32.mrb[0].mxu0
  %v3202 = vadd.f32 %v2821, %v3201
  %v3203 = vpop.f32.mrb[0].mxu0
  %v3204 = vpop.f32.mrb[0].mxu0
  %v3205 = vadd.f32 %v2821, %v3204
  %v3206 = vpop.f32.mrb[0].mxu0
  %3207 = vmatprep.mubr.bf16.mxu0 0
  %3208 = vmatmul.mubr.bf16.gmra.mrb[0].mxu0 %v2774
  %v3209 = vpop.f32.mrb[0].mxu0
  %v3210 = vadd.f32 %v2821, %v3209
  %v3211 = vpop.f32.mrb[0].mxu0
  %v3212 = vpop.f32.mrb[0].mxu0
  %v3213 = vadd.f32 %v2821, %v3212
  %v3214 = vpop.f32.mrb[0].mxu0
  %3215 = vmatprep.mubr.bf16.mxu0 0
  %3216 = vmatmul.mubr.bf16.gmra.mrb[0].mxu0 %v2775
  %v3217 = vpop.f32.mrb[0].mxu0
  %v3218 = vadd.f32 %v2821, %v3217
  %v3219 = vpop.f32.mrb[0].mxu0
  %v3220 = vpop.f32.mrb[0].mxu0
  %v3221 = vadd.f32 %v2821, %v3220
  %v3222 = vpop.f32.mrb[0].mxu0
  %3223 = vmatprep.mubr.bf16.mxu0 0
  %3224 = vmatmul.mubr.bf16.gmra.mrb[0].mxu0 %v2776
  %v3225 = vpop.f32.mrb[0].mxu0
  %v3226 = vadd.f32 %v2821, %v3225
  %v3227 = vpop.f32.mrb[0].mxu0
  %v3228 = vpop.f32.mrb[0].mxu0
  %v3229 = vadd.f32 %v2821, %v3228
  %v3230 = vpop.f32.mrb[0].mxu0
  %3231 = vmatprep.mubr.bf16.mxu0 0
  %3232 = vmatmul.mubr.bf16.gmra.mrb[0].mxu0 %v2777
  %v3233 = vpop.f32.mrb[0].mxu0
  %v3234 = vadd.f32 %v2821, %v3233
  %v3235 = vpop.f32.mrb[0].mxu0
  %v3236 = vpop.f32.mrb[0].mxu0
  %v3237 = vadd.f32 %v2821, %v3236
  %v3238 = vpop.f32.mrb[0].mxu0
  %3239 = vmatprep.mubr.bf16.mxu0 0
  %3240 = vmatmul.mubr.bf16.gmra.mrb[0].mxu0 %v2778
  %v3241 = vpop.f32.mrb[0].mxu0
  %v3242 = vadd.f32 %v2821, %v3241
  %v3243 = vpop.f32.mrb[0].mxu0
  %v3244 = vpop.f32.mrb[0].mxu0
  %v3245 = vadd.f32 %v2821, %v3244
  %v3246 = vpop.f32.mrb[0].mxu0
  %3247 = vmatprep.mubr.bf16.mxu0 0
  %3248 = vmatmul.mubr.bf16.gmra.mrb[0].mxu0 %v2779
  %v3249 = vpop.f32.mrb[0].mxu0
  %v3250 = vadd.f32 %v2821, %v3249
  %v3251 = vpop.f32.mrb[0].mxu0
  %v3252 = vpop.f32.mrb[0].mxu0
  %v3253 = vadd.f32 %v2821, %v3252
  %v3254 = vpop.f32.mrb[0].mxu0
  %3255 = vmatprep.mubr.bf16.mxu0 0
  %3256 = vmatmul.mubr.bf16.gmra.mrb[0].mxu0 %v2780
  %v3257 = vpop.f32.mrb[0].mxu0
  %v3258 = vadd.f32 %v2821, %v3257
  %v3259 = vpop.f32.mrb[0].mxu0
  %v3260 = vpop.f32.mrb[0].mxu0
  %v3261 = vadd.f32 %v2821, %v3260
  %v3262 = vpop.f32.mrb[0].mxu0
  %3263 = vmatprep.mubr.bf16.mxu0 0
  %3264 = vmatmul.mubr.bf16.gmra.mrb[0].mxu0 %v2781
  %v3265 = vpop.f32.mrb[0].mxu0
  %v3266 = vadd.f32 %v2821, %v3265
  %v3267 = vpop.f32.mrb[0].mxu0
  %v3268 = vpop.f32.mrb[0].mxu0
  %v3269 = vadd.f32 %v2821, %v3268
  %v3270 = vpop.f32.mrb[0].mxu0
  %3271 = vmatprep.mubr.bf16.mxu0 0
  %3272 = vmatmul.mubr.bf16.gmra.mrb[0].mxu0 %v2782
  %v3273 = vpop.f32.mrb[0].mxu0
  %v3274 = vadd.f32 %v2821, %v3273
  %v3275 = vpop.f32.mrb[0].mxu0
  %v3276 = vpop.f32.mrb[0].mxu0
  %v3277 = vadd.f32 %v2821, %v3276
  %v3278 = vpop.f32.mrb[0].mxu0
  %3279 = vmatprep.mubr.bf16.mxu0 0
  %3280 = vmatmul.mubr.bf16.gmra.mrb[0].mxu0 %v2783
  %v3281 = vpop.f32.mrb[0].mxu0
  %v3282 = vadd.f32 %v2821, %v3281
  %v3283 = vpop.f32.mrb[0].mxu0
  %v3284 = vpop.f32.mrb[0].mxu0
  %v3285 = vadd.f32 %v2821, %v3284
  %v3286 = vpop.f32.mrb[0].mxu0
  %3287 = vmatprep.mubr.bf16.mxu0 0
  %3288 = vmatmul.mubr.bf16.gmra.mrb[0].mxu0 %v2784
  %v3289 = vpop.f32.mrb[0].mxu0
  %v3290 = vadd.f32 %v2821, %v3289
  %v3291 = vpop.f32.mrb[0].mxu0
  %v3292 = vpop.f32.mrb[0].mxu0
  %v3293 = vadd.f32 %v2821, %v3292
  %v3294 = vpop.f32.mrb[0].mxu0
  %3295 = vmatprep.mubr.bf16.mxu0 0
  %3296 = vmatmul.mubr.bf16.gmra.mrb[0].mxu0 %v2785
  %v3297 = vpop.f32.mrb[0].mxu0
  %v3298 = vadd.f32 %v2821, %v3297
  %v3299 = vpop.f32.mrb[0].mxu0
  %v3300 = vpop.f32.mrb[0].mxu0
  %v3301 = vadd.f32 %v2821, %v3300
  %v3302 = vpop.f32.mrb[0].mxu0
  %3303 = vmatprep.mubr.bf16.mxu0 0
  %3304 = vmatmul.mubr.bf16.gmra.mrb[0].mxu0 %v2786
  %v3305 = vpop.f32.mrb[0].mxu0
  %v3306 = vadd.f32 %v2821, %v3305
  %v3307 = vpop.f32.mrb[0].mxu0
  %v3308 = vpop.f32.mrb[0].mxu0
  %v3309 = vadd.f32 %v2821, %v3308
  %v3310 = vpop.f32.mrb[0].mxu0
  %3311 = vmatprep.mubr.bf16.mxu0 0
  %3312 = vmatmul.mubr.bf16.gmra.mrb[0].mxu0 %v2787
  %v3313 = vpop.f32.mrb[0].mxu0
  %v3314 = vadd.f32 %v2821, %v3313
  %v3315 = vpop.f32.mrb[0].mxu0
  %v3316 = vpop.f32.mrb[0].mxu0
  %v3317 = vadd.f32 %v2821, %v3316
  %v3318 = vpop.f32.mrb[0].mxu0
  %3319 = vmatprep.mubr.bf16.mxu0 0
  %3320 = vmatmul.mubr.bf16.gmra.mrb[0].mxu0 %v2788
  %v3321 = vpop.f32.mrb[0].mxu0
  %v3322 = vadd.f32 %v2821, %v3321
  %v3323 = vpop.f32.mrb[0].mxu0
  %v3324 = vpop.f32.mrb[0].mxu0
  %v3325 = vadd.f32 %v2821, %v3324
  %v3326 = vpop.f32.mrb[0].mxu0
  %3327 = vmatprep.mubr.bf16.mxu0 0
  %3328 = vmatmul.mubr.bf16.gmra.mrb[0].mxu0 %v2789
  %v3329 = vpop.f32.mrb[0].mxu0
  %v3330 = vadd.f32 %v2821, %v3329
  %v3331 = vpop.f32.mrb[0].mxu0
  %v3332 = vpop.f32.mrb[0].mxu0
  %v3333 = vadd.f32 %v2821, %v3332
  %v3334 = vpop.f32.mrb[0].mxu0
  %3335 = vmatprep.mubr.bf16.mxu0 0
  %3336 = vmatmul.mubr.bf16.gmra.mrb[0].mxu0 %v2790
  %v3337 = vpop.f32.mrb[0].mxu0
  %v3338 = vadd.f32 %v2821, %v3337
  %v3339 = vpop.f32.mrb[0].mxu0
  %v3340 = vpop.f32.mrb[0].mxu0
  %v3341 = vadd.f32 %v2821, %v3340
  %v3342 = vpop.f32.mrb[0].mxu0
  %3343 = vmatprep.mubr.bf16.mxu0 0
  %3344 = vmatmul.mubr.bf16.gmra.mrb[0].mxu0 %v2791
  %v3345 = vpop.f32.mrb[0].mxu0
  %v3346 = vadd.f32 %v2821, %v3345
  %v3347 = vpop.f32.mrb[0].mxu0
  %v3348 = vpop.f32.mrb[0].mxu0
  %v3349 = vadd.f32 %v2821, %v3348
  %v3350 = vpop.f32.mrb[0].mxu0
  %3351 = vmatprep.mubr.bf16.mxu0 0
  %3352 = vmatmul.mubr.bf16.gmra.mrb[0].mxu0 %v2792
  %v3353 = vpop.f32.mrb[0].mxu0
  %v3354 = vadd.f32 %v2821, %v3353
  %v3355 = vpop.f32.mrb[0].mxu0
  %v3356 = vpop.f32.mrb[0].mxu0
  %v3357 = vadd.f32 %v2821, %v3356
  %v3358 = vpop.f32.mrb[0].mxu0
  %3359 = vmatprep.mubr.bf16.mxu0 0
  %3360 = vmatmul.mubr.bf16.gmra.mrb[0].mxu0 %v2793
  %v3361 = vpop.f32.mrb[0].mxu0
  %v3362 = vadd.f32 %v2821, %v3361
  %v3363 = vpop.f32.mrb[0].mxu0
  %v3364 = vpop.f32.mrb[0].mxu0
  %v3365 = vadd.f32 %v2821, %v3364
  %v3366 = vpop.f32.mrb[0].mxu0
  %3367 = vmatprep.mubr.bf16.mxu0 0
  %3368 = vmatmul.mubr.bf16.gmra.mrb[0].mxu0 %v2794
  %v3369 = vpop.f32.mrb[0].mxu0
  %v3370 = vadd.f32 %v2821, %v3369
  %v3371 = vpop.f32.mrb[0].mxu0
  %v3372 = vpop.f32.mrb[0].mxu0
  %v3373 = vadd.f32 %v2821, %v3372
  %v3374 = vpop.f32.mrb[0].mxu0
  %3375 = vmatprep.mubr.bf16.mxu0 0
  %3376 = vmatmul.mubr.bf16.gmra.mrb[0].mxu0 %v2795
  %v3377 = vpop.f32.mrb[0].mxu0
  %v3378 = vadd.f32 %v2821, %v3377
  %v3379 = vpop.f32.mrb[0].mxu0
  %v3380 = vpop.f32.mrb[0].mxu0
  %v3381 = vadd.f32 %v2821, %v3380
  %v3382 = vpop.f32.mrb[0].mxu0
  %3383 = vmatprep.mubr.bf16.mxu0 0
  %3384 = vmatmul.mubr.bf16.gmra.mrb[0].mxu0 %v2796
  %v3385 = vpop.f32.mrb[0].mxu0
  %v3386 = vadd.f32 %v2821, %v3385
  %v3387 = vpop.f32.mrb[0].mxu0
  %v3388 = vpop.f32.mrb[0].mxu0
  %v3389 = vadd.f32 %v2821, %v3388
  %v3390 = vpop.f32.mrb[0].mxu0
  %3391 = vmatprep.mubr.bf16.mxu0 0
  %3392 = vmatmul.mubr.bf16.gmra.mrb[0].mxu0 %v2797
  %v3393 = vpop.f32.mrb[0].mxu0
  %v3394 = vadd.f32 %v2821, %v3393
  %v3395 = vpop.f32.mrb[0].mxu0
  %v3396 = vpop.f32.mrb[0].mxu0
  %v3397 = vadd.f32 %v2821, %v3396
  %v3398 = vpop.f32.mrb[0].mxu0
  %3399 = vmatprep.mubr.bf16.mxu0 0
  %3400 = vmatmul.mubr.bf16.gmra.mrb[0].mxu0 %v2798
  %v3401 = vpop.f32.mrb[0].mxu0
  %v3402 = vadd.f32 %v2821, %v3401
  %v3403 = vpop.f32.mrb[0].mxu0
  %v3404 = vpop.f32.mrb[0].mxu0
  %v3405 = vadd.f32 %v2821, %v3404
  %v3406 = vpop.f32.mrb[0].mxu0
  %3407 = vmatprep.mubr.bf16.mxu0 0
  %3408 = vmatmul.mubr.bf16.gmra.mrb[0].mxu0 %v2799
  %v3409 = vpop.f32.mrb[0].mxu0
  %v3410 = vadd.f32 %v2821, %v3409
  %v3411 = vpop.f32.mrb[0].mxu0
  %v3412 = vpop.f32.mrb[0].mxu0
  %v3413 = vadd.f32 %v2821, %v3412
  %v3414 = vpop.f32.mrb[0].mxu0
  %3415 = vdwg.mxu0
  %v3416 = vmax.f32 %v2906, 0.0
  %v3417 = vmax.f32 %v2909, 0.0
  %v3418 = vmax.f32 %v2914, 0.0
  %v3419 = vmax.f32 %v2917, 0.0
  %v3420 = vmax.f32 %v2922, 0.0
  %v3421 = vmax.f32 %v2925, 0.0
  %v3422 = vmax.f32 %v2930, 0.0
  %v3423 = vmax.f32 %v2933, 0.0
  %v3424 = vmax.f32 %v2938, 0.0
  %v3425 = vmax.f32 %v2941, 0.0
  %v3426 = vmax.f32 %v2946, 0.0
  %v3427 = vmax.f32 %v2949, 0.0
  %v3428 = vmax.f32 %v2954, 0.0
  %v3429 = vmax.f32 %v2957, 0.0
  %v3430 = vmax.f32 %v2962, 0.0
  %v3431 = vmax.f32 %v2965, 0.0
  %v3432 = vmax.f32 %v2970, 0.0
  %v3433 = vmax.f32 %v2973, 0.0
  %v3434 = vmax.f32 %v2978, 0.0
  %v3435 = vmax.f32 %v2981, 0.0
  %v3436 = vmax.f32 %v2986, 0.0
  %v3437 = vmax.f32 %v2989, 0.0
  %v3438 = vmax.f32 %v2994, 0.0
  %v3439 = vmax.f32 %v2997, 0.0
  %v3440 = vmax.f32 %v3002, 0.0
  %v3441 = vmax.f32 %v3005, 0.0
  %v3442 = vmax.f32 %v3010, 0.0
  %v3443 = vmax.f32 %v3013, 0.0
  %v3444 = vmax.f32 %v3018, 0.0
  %v3445 = vmax.f32 %v3021, 0.0
  %v3446 = vmax.f32 %v3026, 0.0
  %v3447 = vmax.f32 %v3029, 0.0
  %v3448 = vmax.f32 %v3034, 0.0
  %v3449 = vmax.f32 %v3037, 0.0
  %v3450 = vmax.f32 %v3042, 0.0
  %v3451 = vmax.f32 %v3045, 0.0
  %v3452 = vmax.f32 %v3050, 0.0
  %v3453 = vmax.f32 %v3053, 0.0
  %v3454 = vmax.f32 %v3058, 0.0
  %v3455 = vmax.f32 %v3061, 0.0
  %v3456 = vmax.f32 %v3066, 0.0
  %v3457 = vmax.f32 %v3069, 0.0
  %v3458 = vmax.f32 %v3074, 0.0
  %v3459 = vmax.f32 %v3077, 0.0
  %v3460 = vmax.f32 %v3082, 0.0
  %v3461 = vmax.f32 %v3085, 0.0
  %v3462 = vmax.f32 %v3090, 0.0
  %v3463 = vmax.f32 %v3093, 0.0
  %v3464 = vmax.f32 %v3098, 0.0
  %v3465 = vmax.f32 %v3101, 0.0
  %v3466 = vmax.f32 %v3106, 0.0
  %v3467 = vmax.f32 %v3109, 0.0
  %v3468 = vmax.f32 %v3114, 0.0
  %v3469 = vmax.f32 %v3117, 0.0
  %v3470 = vmax.f32 %v3122, 0.0
  %v3471 = vmax.f32 %v3125, 0.0
  %v3472 = vmax.f32 %v3130, 0.0
  %v3473 = vmax.f32 %v3133, 0.0
  %v3474 = vmax.f32 %v3138, 0.0
  %v3475 = vmax.f32 %v3141, 0.0
  %v3476 = vmax.f32 %v3146, 0.0
  %v3477 = vmax.f32 %v3149, 0.0
  %v3478 = vmax.f32 %v3154, 0.0
  %v3479 = vmax.f32 %v3157, 0.0
  %v3480 = vmax.f32 %v3162, 0.0
  %v3481 = vmax.f32 %v3165, 0.0
  %v3482 = vmax.f32 %v3170, 0.0
  %v3483 = vmax.f32 %v3173, 0.0
  %v3484 = vmax.f32 %v3178, 0.0
  %v3485 = vmax.f32 %v3181, 0.0
  %v3486 = vmax.f32 %v3186, 0.0
  %v3487 = vmax.f32 %v3189, 0.0
  %v3488 = vmax.f32 %v3194, 0.0
  %v3489 = vmax.f32 %v3197, 0.0
  %v3490 = vmax.f32 %v3202, 0.0
  %v3491 = vmax.f32 %v3205, 0.0
  %v3492 = vmax.f32 %v3210, 0.0
  %v3493 = vmax.f32 %v3213, 0.0
  %v3494 = vmax.f32 %v3218, 0.0
  %v3495 = vmax.f32 %v3221, 0.0
  %v3496 = vmax.f32 %v3226, 0.0
  %v3497 = vmax.f32 %v3229, 0.0
  %v3498 = vmax.f32 %v3234, 0.0
  %v3499 = vmax.f32 %v3237, 0.0
  %v3500 = vmax.f32 %v3242, 0.0
  %v3501 = vmax.f32 %v3245, 0.0
  %v3502 = vmax.f32 %v3250, 0.0
  %v3503 = vmax.f32 %v3253, 0.0
  %v3504 = vmax.f32 %v3258, 0.0
  %v3505 = vmax.f32 %v3261, 0.0
  %v3506 = vmax.f32 %v3266, 0.0
  %v3507 = vmax.f32 %v3269, 0.0
  %v3508 = vmax.f32 %v3274, 0.0
  %v3509 = vmax.f32 %v3277, 0.0
  %v3510 = vmax.f32 %v3282, 0.0
  %v3511 = vmax.f32 %v3285, 0.0
  %v3512 = vmax.f32 %v3290, 0.0
  %v3513 = vmax.f32 %v3293, 0.0
  %v3514 = vmax.f32 %v3298, 0.0
  %v3515 = vmax.f32 %v3301, 0.0
  %v3516 = vmax.f32 %v3306, 0.0
  %v3517 = vmax.f32 %v3309, 0.0
  %v3518 = vmax.f32 %v3314, 0.0
  %v3519 = vmax.f32 %v3317, 0.0
  %v3520 = vmax.f32 %v3322, 0.0
  %v3521 = vmax.f32 %v3325, 0.0
  %v3522 = vmax.f32 %v3330, 0.0
  %v3523 = vmax.f32 %v3333, 0.0
  %v3524 = vmax.f32 %v3338, 0.0
  %v3525 = vmax.f32 %v3341, 0.0
  %v3526 = vmax.f32 %v3346, 0.0
  %v3527 = vmax.f32 %v3349, 0.0
  %v3528 = vmax.f32 %v3354, 0.0
  %v3529 = vmax.f32 %v3357, 0.0
  %v3530 = vmax.f32 %v3362, 0.0
  %v3531 = vmax.f32 %v3365, 0.0
  %v3532 = vmax.f32 %v3370, 0.0
  %v3533 = vmax.f32 %v3373, 0.0
  %v3534 = vmax.f32 %v3378, 0.0
  %v3535 = vmax.f32 %v3381, 0.0
  %v3536 = vmax.f32 %v3386, 0.0
  %v3537 = vmax.f32 %v3389, 0.0
  %v3538 = vmax.f32 %v3394, 0.0
  %v3539 = vmax.f32 %v3397, 0.0
  %v3540 = vmax.f32 %v3402, 0.0
  %v3541 = vmax.f32 %v3405, 0.0
  %v3542 = vmax.f32 %v3410, 0.0
  %v3543 = vmax.f32 %v3413, 0.0
  %v3544 = vpack.c.bf16 %v3417, %v3416
  %v3545 = vpack.c.bf16 %v3419, %v3418
  %v3546 = vpack.c.bf16 %v3421, %v3420
  %v3547 = vpack.c.bf16 %v3423, %v3422
  %v3548 = vpack.c.bf16 %v3425, %v3424
  %v3549 = vpack.c.bf16 %v3427, %v3426
  %v3550 = vpack.c.bf16 %v3429, %v3428
  %v3551 = vpack.c.bf16 %v3431, %v3430
  %v3552 = vpack.c.bf16 %v3433, %v3432
  %v3553 = vpack.c.bf16 %v3435, %v3434
  %v3554 = vpack.c.bf16 %v3437, %v3436
  %v3555 = vpack.c.bf16 %v3439, %v3438
  %v3556 = vpack.c.bf16 %v3441, %v3440
  %v3557 = vpack.c.bf16 %v3443, %v3442
  %v3558 = vpack.c.bf16 %v3445, %v3444
  %v3559 = vpack.c.bf16 %v3447, %v3446
  %v3560 = vpack.c.bf16 %v3449, %v3448
  %v3561 = vpack.c.bf16 %v3451, %v3450
  %v3562 = vpack.c.bf16 %v3453, %v3452
  %v3563 = vpack.c.bf16 %v3455, %v3454
  %v3564 = vpack.c.bf16 %v3457, %v3456
  %v3565 = vpack.c.bf16 %v3459, %v3458
  %v3566 = vpack.c.bf16 %v3461, %v3460
  %v3567 = vpack.c.bf16 %v3463, %v3462
  %v3568 = vpack.c.bf16 %v3465, %v3464
  %v3569 = vpack.c.bf16 %v3467, %v3466
  %v3570 = vpack.c.bf16 %v3469, %v3468
  %v3571 = vpack.c.bf16 %v3471, %v3470
  %v3572 = vpack.c.bf16 %v3473, %v3472
  %v3573 = vpack.c.bf16 %v3475, %v3474
  %v3574 = vpack.c.bf16 %v3477, %v3476
  %v3575 = vpack.c.bf16 %v3479, %v3478
  %v3576 = vpack.c.bf16 %v3481, %v3480
  %v3577 = vpack.c.bf16 %v3483, %v3482
  %v3578 = vpack.c.bf16 %v3485, %v3484
  %v3579 = vpack.c.bf16 %v3487, %v3486
  %v3580 = vpack.c.bf16 %v3489, %v3488
  %v3581 = vpack.c.bf16 %v3491, %v3490
  %v3582 = vpack.c.bf16 %v3493, %v3492
  %v3583 = vpack.c.bf16 %v3495, %v3494
  %v3584 = vpack.c.bf16 %v3497, %v3496
  %v3585 = vpack.c.bf16 %v3499, %v3498
  %v3586 = vpack.c.bf16 %v3501, %v3500
  %v3587 = vpack.c.bf16 %v3503, %v3502
  %v3588 = vpack.c.bf16 %v3505, %v3504
  %v3589 = vpack.c.bf16 %v3507, %v3506
  %v3590 = vpack.c.bf16 %v3509, %v3508
  %v3591 = vpack.c.bf16 %v3511, %v3510
  %v3592 = vpack.c.bf16 %v3513, %v3512
  %v3593 = vpack.c.bf16 %v3515, %v3514
  %v3594 = vpack.c.bf16 %v3517, %v3516
  %v3595 = vpack.c.bf16 %v3519, %v3518
  %v3596 = vpack.c.bf16 %v3521, %v3520
  %v3597 = vpack.c.bf16 %v3523, %v3522
  %v3598 = vpack.c.bf16 %v3525, %v3524
  %v3599 = vpack.c.bf16 %v3527, %v3526
  %v3600 = vpack.c.bf16 %v3529, %v3528
  %v3601 = vpack.c.bf16 %v3531, %v3530
  %v3602 = vpack.c.bf16 %v3533, %v3532
  %v3603 = vpack.c.bf16 %v3535, %v3534
  %v3604 = vpack.c.bf16 %v3537, %v3536
  %v3605 = vpack.c.bf16 %v3539, %v3538
  %v3606 = vpack.c.bf16 %v3541, %v3540
  %v3607 = vpack.c.bf16 %v3543, %v3542
  %s3608 = scalar_lea.vmem %s3, 64
  %v3609 = vld [vmem:[%s3608] sm:$0xf]
  %v3610 = vld [vmem:[%s3608 + $0x4] sm:$0xf]
  %v3611 = vld [vmem:[%s3608 + $0x8] sm:$0xf]
  %v3612 = vld [vmem:[%s3608 + $0xc] sm:$0xf]
  %v3613 = vld [vmem:[%s3608 + $0x10] sm:$0xf]
  %v3614 = vld [vmem:[%s3608 + $0x14] sm:$0xf]
  %v3615 = vld [vmem:[%s3608 + $0x18] sm:$0xf]
  %v3616 = vld [vmem:[%s3608 + $0x1c] sm:$0xf]
  %v3617 = vld [vmem:[%s3608 + $0x20] sm:$0xf]
  %v3618 = vld [vmem:[%s3608 + $0x24] sm:$0xf]
  %v3619 = vld [vmem:[%s3608 + $0x28] sm:$0xf]
  %v3620 = vld [vmem:[%s3608 + $0x2c] sm:$0xf]
  %v3621 = vld [vmem:[%s3608 + $0x30] sm:$0xf]
  %v3622 = vld [vmem:[%s3608 + $0x34] sm:$0xf]
  %v3623 = vld [vmem:[%s3608 + $0x38] sm:$0xf]
  %v3624 = vld [vmem:[%s3608 + $0x3c] sm:$0xf]
  %s3625 = scalar_lea.vmem %s4, 1
  %v3626 = vld [vmem:[%s3625] sm:$0x1]
  %v3628 = vlaneseq
  %v3629 = vshrl.u32 %v3628, 7
  %v3630 = vsub.s32 0, %v3629
  %v3631 = vrot.slane %v3626, %v3630
  %v3649 = vunpack.c.l.b16 %v3609
  %v3650 = vunpack.c.l.b16 %v3610
  %v3651 = vunpack.c.l.b16 %v3611
  %v3652 = vunpack.c.l.b16 %v3612
  %v3653 = vunpack.c.l.b16 %v3613
  %v3654 = vunpack.c.l.b16 %v3614
  %v3655 = vunpack.c.l.b16 %v3615
  %v3656 = vunpack.c.l.b16 %v3616
  %v3657 = vunpack.c.l.b16 %v3617
  %v3658 = vunpack.c.l.b16 %v3618
  %v3659 = vunpack.c.l.b16 %v3619
  %v3660 = vunpack.c.l.b16 %v3620
  %v3661 = vunpack.c.l.b16 %v3621
  %v3662 = vunpack.c.l.b16 %v3622
  %v3663 = vunpack.c.l.b16 %v3623
  %v3664 = vunpack.c.l.b16 %v3624
  %v3665 = vpack.c.b16 %v3650, %v3649
  %v3666 = vpack.c.b16 %v3652, %v3651
  %v3667 = vpack.c.b16 %v3654, %v3653
  %v3668 = vpack.c.b16 %v3656, %v3655
  %v3669 = vpack.c.b16 %v3658, %v3657
  %v3670 = vpack.c.b16 %v3660, %v3659
  %v3671 = vpack.c.b16 %v3662, %v3661
  %v3672 = vpack.c.b16 %v3664, %v3663
  %3681 = vmatprep.subr.bf16.mxu0 0
  %3682 = vmatpush1.bf16.msra.mxu0 %v3665
  %3683 = vmatprep.subr.bf16.mxu0 0
  %3684 = vmatpush1.bf16.msra.mxu0 %v3666
  %3685 = vmatprep.subr.bf16.mxu0 0
  %3686 = vmatpush1.bf16.msra.mxu0 %v3667
  %3687 = vmatprep.subr.bf16.mxu0 0
  %3688 = vmatpush1.bf16.msra.mxu0 %v3668
  %3689 = vmatprep.subr.bf16.mxu0 0
  %3690 = vmatpush1.bf16.msra.mxu0 %v3669
  %3691 = vmatprep.subr.bf16.mxu0 0
  %3692 = vmatpush1.bf16.msra.mxu0 %v3670
  %3693 = vmatprep.subr.bf16.mxu0 0
  %3694 = vmatpush1.bf16.msra.mxu0 %v3671
  %3695 = vmatprep.subr.bf16.mxu0 0
  %3696 = vmatpush1.bf16.msra.mxu0 %v3672
  %3697 = vmatprep.subr.bf16.mxu0 0
  %3698 = vmatpush1.bf16.msra.mxu0 0
  %3699 = vmatprep.subr.bf16.mxu0 0
  %3700 = vmatpush1.bf16.msra.mxu0 0
  %3701 = vmatprep.subr.bf16.mxu0 0
  %3702 = vmatpush1.bf16.msra.mxu0 0
  %3703 = vmatprep.subr.bf16.mxu0 0
  %3704 = vmatpush1.bf16.msra.mxu0 0
  %3705 = vmatprep.subr.bf16.mxu0 0
  %3706 = vmatpush1.bf16.msra.mxu0 0
  %3707 = vmatprep.subr.bf16.mxu0 0
  %3708 = vmatpush1.bf16.msra.mxu0 0
  %3709 = vmatprep.subr.bf16.mxu0 0
  %3710 = vmatpush1.bf16.msra.mxu0 0
  %3711 = vmatprep.subr.bf16.mxu0 0
  %3712 = vmatpush1.bf16.msra.mxu0 0
  %3713 = vmatprep.mubr.bf16.mxu0 0
  %3714 = vmatmul.mubr.bf16.gmra.mrb[0].mxu0 %v3544
  %v3715 = vpop.f32.mrb[0].mxu0
  %v3716 = vadd.f32 %v3631, %v3715
  %v3717 = vpop.f32.mrb[0].mxu0
  %v3718 = vpop.f32.mrb[0].mxu0
  %v3719 = vadd.f32 %v3631, %v3718
  %v3720 = vpop.f32.mrb[0].mxu0
  %3721 = vmatprep.mubr.bf16.mxu0 0
  %3722 = vmatmul.mubr.bf16.gmra.mrb[0].mxu0 %v3545
  %v3723 = vpop.f32.mrb[0].mxu0
  %v3724 = vadd.f32 %v3631, %v3723
  %v3725 = vpop.f32.mrb[0].mxu0
  %v3726 = vpop.f32.mrb[0].mxu0
  %v3727 = vadd.f32 %v3631, %v3726
  %v3728 = vpop.f32.mrb[0].mxu0
  %3729 = vmatprep.mubr.bf16.mxu0 0
  %3730 = vmatmul.mubr.bf16.gmra.mrb[0].mxu0 %v3546
  %v3731 = vpop.f32.mrb[0].mxu0
  %v3732 = vadd.f32 %v3631, %v3731
  %v3733 = vpop.f32.mrb[0].mxu0
  %v3734 = vpop.f32.mrb[0].mxu0
  %v3735 = vadd.f32 %v3631, %v3734
  %v3736 = vpop.f32.mrb[0].mxu0
  %3737 = vmatprep.mubr.bf16.mxu0 0
  %3738 = vmatmul.mubr.bf16.gmra.mrb[0].mxu0 %v3547
  %v3739 = vpop.f32.mrb[0].mxu0
  %v3740 = vadd.f32 %v3631, %v3739
  %v3741 = vpop.f32.mrb[0].mxu0
  %v3742 = vpop.f32.mrb[0].mxu0
  %v3743 = vadd.f32 %v3631, %v3742
  %v3744 = vpop.f32.mrb[0].mxu0
  %3745 = vmatprep.mubr.bf16.mxu0 0
  %3746 = vmatmul.mubr.bf16.gmra.mrb[0].mxu0 %v3548
  %v3747 = vpop.f32.mrb[0].mxu0
  %v3748 = vadd.f32 %v3631, %v3747
  %v3749 = vpop.f32.mrb[0].mxu0
  %v3750 = vpop.f32.mrb[0].mxu0
  %v3751 = vadd.f32 %v3631, %v3750
  %v3752 = vpop.f32.mrb[0].mxu0
  %3753 = vmatprep.mubr.bf16.mxu0 0
  %3754 = vmatmul.mubr.bf16.gmra.mrb[0].mxu0 %v3549
  %v3755 = vpop.f32.mrb[0].mxu0
  %v3756 = vadd.f32 %v3631, %v3755
  %v3757 = vpop.f32.mrb[0].mxu0
  %v3758 = vpop.f32.mrb[0].mxu0
  %v3759 = vadd.f32 %v3631, %v3758
  %v3760 = vpop.f32.mrb[0].mxu0
  %3761 = vmatprep.mubr.bf16.mxu0 0
  %3762 = vmatmul.mubr.bf16.gmra.mrb[0].mxu0 %v3550
  %v3763 = vpop.f32.mrb[0].mxu0
  %v3764 = vadd.f32 %v3631, %v3763
  %v3765 = vpop.f32.mrb[0].mxu0
  %v3766 = vpop.f32.mrb[0].mxu0
  %v3767 = vadd.f32 %v3631, %v3766
  %v3768 = vpop.f32.mrb[0].mxu0
  %3769 = vmatprep.mubr.bf16.mxu0 0
  %3770 = vmatmul.mubr.bf16.gmra.mrb[0].mxu0 %v3551
  %v3771 = vpop.f32.mrb[0].mxu0
  %v3772 = vadd.f32 %v3631, %v3771
  %v3773 = vpop.f32.mrb[0].mxu0
  %v3774 = vpop.f32.mrb[0].mxu0
  %v3775 = vadd.f32 %v3631, %v3774
  %v3776 = vpop.f32.mrb[0].mxu0
  %3777 = vmatprep.mubr.bf16.mxu0 0
  %3778 = vmatmul.mubr.bf16.gmra.mrb[0].mxu0 %v3552
  %v3779 = vpop.f32.mrb[0].mxu0
  %v3780 = vadd.f32 %v3631, %v3779
  %v3781 = vpop.f32.mrb[0].mxu0
  %v3782 = vpop.f32.mrb[0].mxu0
  %v3783 = vadd.f32 %v3631, %v3782
  %v3784 = vpop.f32.mrb[0].mxu0
  %3785 = vmatprep.mubr.bf16.mxu0 0
  %3786 = vmatmul.mubr.bf16.gmra.mrb[0].mxu0 %v3553
  %v3787 = vpop.f32.mrb[0].mxu0
  %v3788 = vadd.f32 %v3631, %v3787
  %v3789 = vpop.f32.mrb[0].mxu0
  %v3790 = vpop.f32.mrb[0].mxu0
  %v3791 = vadd.f32 %v3631, %v3790
  %v3792 = vpop.f32.mrb[0].mxu0
  %3793 = vmatprep.mubr.bf16.mxu0 0
  %3794 = vmatmul.mubr.bf16.gmra.mrb[0].mxu0 %v3554
  %v3795 = vpop.f32.mrb[0].mxu0
  %v3796 = vadd.f32 %v3631, %v3795
  %v3797 = vpop.f32.mrb[0].mxu0
  %v3798 = vpop.f32.mrb[0].mxu0
  %v3799 = vadd.f32 %v3631, %v3798
  %v3800 = vpop.f32.mrb[0].mxu0
  %3801 = vmatprep.mubr.bf16.mxu0 0
  %3802 = vmatmul.mubr.bf16.gmra.mrb[0].mxu0 %v3555
  %v3803 = vpop.f32.mrb[0].mxu0
  %v3804 = vadd.f32 %v3631, %v3803
  %v3805 = vpop.f32.mrb[0].mxu0
  %v3806 = vpop.f32.mrb[0].mxu0
  %v3807 = vadd.f32 %v3631, %v3806
  %v3808 = vpop.f32.mrb[0].mxu0
  %3809 = vmatprep.mubr.bf16.mxu0 0
  %3810 = vmatmul.mubr.bf16.gmra.mrb[0].mxu0 %v3556
  %v3811 = vpop.f32.mrb[0].mxu0
  %v3812 = vadd.f32 %v3631, %v3811
  %v3813 = vpop.f32.mrb[0].mxu0
  %v3814 = vpop.f32.mrb[0].mxu0
  %v3815 = vadd.f32 %v3631, %v3814
  %v3816 = vpop.f32.mrb[0].mxu0
  %3817 = vmatprep.mubr.bf16.mxu0 0
  %3818 = vmatmul.mubr.bf16.gmra.mrb[0].mxu0 %v3557
  %v3819 = vpop.f32.mrb[0].mxu0
  %v3820 = vadd.f32 %v3631, %v3819
  %v3821 = vpop.f32.mrb[0].mxu0
  %v3822 = vpop.f32.mrb[0].mxu0
  %v3823 = vadd.f32 %v3631, %v3822
  %v3824 = vpop.f32.mrb[0].mxu0
  %3825 = vmatprep.mubr.bf16.mxu0 0
  %3826 = vmatmul.mubr.bf16.gmra.mrb[0].mxu0 %v3558
  %v3827 = vpop.f32.mrb[0].mxu0
  %v3828 = vadd.f32 %v3631, %v3827
  %v3829 = vpop.f32.mrb[0].mxu0
  %v3830 = vpop.f32.mrb[0].mxu0
  %v3831 = vadd.f32 %v3631, %v3830
  %v3832 = vpop.f32.mrb[0].mxu0
  %3833 = vmatprep.mubr.bf16.mxu0 0
  %3834 = vmatmul.mubr.bf16.gmra.mrb[0].mxu0 %v3559
  %v3835 = vpop.f32.mrb[0].mxu0
  %v3836 = vadd.f32 %v3631, %v3835
  %v3837 = vpop.f32.mrb[0].mxu0
  %v3838 = vpop.f32.mrb[0].mxu0
  %v3839 = vadd.f32 %v3631, %v3838
  %v3840 = vpop.f32.mrb[0].mxu0
  %3841 = vmatprep.mubr.bf16.mxu0 0
  %3842 = vmatmul.mubr.bf16.gmra.mrb[0].mxu0 %v3560
  %v3843 = vpop.f32.mrb[0].mxu0
  %v3844 = vadd.f32 %v3631, %v3843
  %v3845 = vpop.f32.mrb[0].mxu0
  %v3846 = vpop.f32.mrb[0].mxu0
  %v3847 = vadd.f32 %v3631, %v3846
  %v3848 = vpop.f32.mrb[0].mxu0
  %3849 = vmatprep.mubr.bf16.mxu0 0
  %3850 = vmatmul.mubr.bf16.gmra.mrb[0].mxu0 %v3561
  %v3851 = vpop.f32.mrb[0].mxu0
  %v3852 = vadd.f32 %v3631, %v3851
  %v3853 = vpop.f32.mrb[0].mxu0
  %v3854 = vpop.f32.mrb[0].mxu0
  %v3855 = vadd.f32 %v3631, %v3854
  %v3856 = vpop.f32.mrb[0].mxu0
  %3857 = vmatprep.mubr.bf16.mxu0 0
  %3858 = vmatmul.mubr.bf16.gmra.mrb[0].mxu0 %v3562
  %v3859 = vpop.f32.mrb[0].mxu0
  %v3860 = vadd.f32 %v3631, %v3859
  %v3861 = vpop.f32.mrb[0].mxu0
  %v3862 = vpop.f32.mrb[0].mxu0
  %v3863 = vadd.f32 %v3631, %v3862
  %v3864 = vpop.f32.mrb[0].mxu0
  %3865 = vmatprep.mubr.bf16.mxu0 0
  %3866 = vmatmul.mubr.bf16.gmra.mrb[0].mxu0 %v3563
  %v3867 = vpop.f32.mrb[0].mxu0
  %v3868 = vadd.f32 %v3631, %v3867
  %v3869 = vpop.f32.mrb[0].mxu0
  %v3870 = vpop.f32.mrb[0].mxu0
  %v3871 = vadd.f32 %v3631, %v3870
  %v3872 = vpop.f32.mrb[0].mxu0
  %3873 = vmatprep.mubr.bf16.mxu0 0
  %3874 = vmatmul.mubr.bf16.gmra.mrb[0].mxu0 %v3564
  %v3875 = vpop.f32.mrb[0].mxu0
  %v3876 = vadd.f32 %v3631, %v3875
  %v3877 = vpop.f32.mrb[0].mxu0
  %v3878 = vpop.f32.mrb[0].mxu0
  %v3879 = vadd.f32 %v3631, %v3878
  %v3880 = vpop.f32.mrb[0].mxu0
  %3881 = vmatprep.mubr.bf16.mxu0 0
  %3882 = vmatmul.mubr.bf16.gmra.mrb[0].mxu0 %v3565
  %v3883 = vpop.f32.mrb[0].mxu0
  %v3884 = vadd.f32 %v3631, %v3883
  %v3885 = vpop.f32.mrb[0].mxu0
  %v3886 = vpop.f32.mrb[0].mxu0
  %v3887 = vadd.f32 %v3631, %v3886
  %v3888 = vpop.f32.mrb[0].mxu0
  %3889 = vmatprep.mubr.bf16.mxu0 0
  %3890 = vmatmul.mubr.bf16.gmra.mrb[0].mxu0 %v3566
  %v3891 = vpop.f32.mrb[0].mxu0
  %v3892 = vadd.f32 %v3631, %v3891
  %v3893 = vpop.f32.mrb[0].mxu0
  %v3894 = vpop.f32.mrb[0].mxu0
  %v3895 = vadd.f32 %v3631, %v3894
  %v3896 = vpop.f32.mrb[0].mxu0
  %3897 = vmatprep.mubr.bf16.mxu0 0
  %3898 = vmatmul.mubr.bf16.gmra.mrb[0].mxu0 %v3567
  %v3899 = vpop.f32.mrb[0].mxu0
  %v3900 = vadd.f32 %v3631, %v3899
  %v3901 = vpop.f32.mrb[0].mxu0
  %v3902 = vpop.f32.mrb[0].mxu0
  %v3903 = vadd.f32 %v3631, %v3902
  %v3904 = vpop.f32.mrb[0].mxu0
  %3905 = vmatprep.mubr.bf16.mxu0 0
  %3906 = vmatmul.mubr.bf16.gmra.mrb[0].mxu0 %v3568
  %v3907 = vpop.f32.mrb[0].mxu0
  %v3908 = vadd.f32 %v3631, %v3907
  %v3909 = vpop.f32.mrb[0].mxu0
  %v3910 = vpop.f32.mrb[0].mxu0
  %v3911 = vadd.f32 %v3631, %v3910
  %v3912 = vpop.f32.mrb[0].mxu0
  %3913 = vmatprep.mubr.bf16.mxu0 0
  %3914 = vmatmul.mubr.bf16.gmra.mrb[0].mxu0 %v3569
  %v3915 = vpop.f32.mrb[0].mxu0
  %v3916 = vadd.f32 %v3631, %v3915
  %v3917 = vpop.f32.mrb[0].mxu0
  %v3918 = vpop.f32.mrb[0].mxu0
  %v3919 = vadd.f32 %v3631, %v3918
  %v3920 = vpop.f32.mrb[0].mxu0
  %3921 = vmatprep.mubr.bf16.mxu0 0
  %3922 = vmatmul.mubr.bf16.gmra.mrb[0].mxu0 %v3570
  %v3923 = vpop.f32.mrb[0].mxu0
  %v3924 = vadd.f32 %v3631, %v3923
  %v3925 = vpop.f32.mrb[0].mxu0
  %v3926 = vpop.f32.mrb[0].mxu0
  %v3927 = vadd.f32 %v3631, %v3926
  %v3928 = vpop.f32.mrb[0].mxu0
  %3929 = vmatprep.mubr.bf16.mxu0 0
  %3930 = vmatmul.mubr.bf16.gmra.mrb[0].mxu0 %v3571
  %v3931 = vpop.f32.mrb[0].mxu0
  %v3932 = vadd.f32 %v3631, %v3931
  %v3933 = vpop.f32.mrb[0].mxu0
  %v3934 = vpop.f32.mrb[0].mxu0
  %v3935 = vadd.f32 %v3631, %v3934
  %v3936 = vpop.f32.mrb[0].mxu0
  %3937 = vmatprep.mubr.bf16.mxu0 0
  %3938 = vmatmul.mubr.bf16.gmra.mrb[0].mxu0 %v3572
  %v3939 = vpop.f32.mrb[0].mxu0
  %v3940 = vadd.f32 %v3631, %v3939
  %v3941 = vpop.f32.mrb[0].mxu0
  %v3942 = vpop.f32.mrb[0].mxu0
  %v3943 = vadd.f32 %v3631, %v3942
  %v3944 = vpop.f32.mrb[0].mxu0
  %3945 = vmatprep.mubr.bf16.mxu0 0
  %3946 = vmatmul.mubr.bf16.gmra.mrb[0].mxu0 %v3573
  %v3947 = vpop.f32.mrb[0].mxu0
  %v3948 = vadd.f32 %v3631, %v3947
  %v3949 = vpop.f32.mrb[0].mxu0
  %v3950 = vpop.f32.mrb[0].mxu0
  %v3951 = vadd.f32 %v3631, %v3950
  %v3952 = vpop.f32.mrb[0].mxu0
  %3953 = vmatprep.mubr.bf16.mxu0 0
  %3954 = vmatmul.mubr.bf16.gmra.mrb[0].mxu0 %v3574
  %v3955 = vpop.f32.mrb[0].mxu0
  %v3956 = vadd.f32 %v3631, %v3955
  %v3957 = vpop.f32.mrb[0].mxu0
  %v3958 = vpop.f32.mrb[0].mxu0
  %v3959 = vadd.f32 %v3631, %v3958
  %v3960 = vpop.f32.mrb[0].mxu0
  %3961 = vmatprep.mubr.bf16.mxu0 0
  %3962 = vmatmul.mubr.bf16.gmra.mrb[0].mxu0 %v3575
  %v3963 = vpop.f32.mrb[0].mxu0
  %v3964 = vadd.f32 %v3631, %v3963
  %v3965 = vpop.f32.mrb[0].mxu0
  %v3966 = vpop.f32.mrb[0].mxu0
  %v3967 = vadd.f32 %v3631, %v3966
  %v3968 = vpop.f32.mrb[0].mxu0
  %3969 = vmatprep.mubr.bf16.mxu0 0
  %3970 = vmatmul.mubr.bf16.gmra.mrb[0].mxu0 %v3576
  %v3971 = vpop.f32.mrb[0].mxu0
  %v3972 = vadd.f32 %v3631, %v3971
  %v3973 = vpop.f32.mrb[0].mxu0
  %v3974 = vpop.f32.mrb[0].mxu0
  %v3975 = vadd.f32 %v3631, %v3974
  %v3976 = vpop.f32.mrb[0].mxu0
  %3977 = vmatprep.mubr.bf16.mxu0 0
  %3978 = vmatmul.mubr.bf16.gmra.mrb[0].mxu0 %v3577
  %v3979 = vpop.f32.mrb[0].mxu0
  %v3980 = vadd.f32 %v3631, %v3979
  %v3981 = vpop.f32.mrb[0].mxu0
  %v3982 = vpop.f32.mrb[0].mxu0
  %v3983 = vadd.f32 %v3631, %v3982
  %v3984 = vpop.f32.mrb[0].mxu0
  %3985 = vmatprep.mubr.bf16.mxu0 0
  %3986 = vmatmul.mubr.bf16.gmra.mrb[0].mxu0 %v3578
  %v3987 = vpop.f32.mrb[0].mxu0
  %v3988 = vadd.f32 %v3631, %v3987
  %v3989 = vpop.f32.mrb[0].mxu0
  %v3990 = vpop.f32.mrb[0].mxu0
  %v3991 = vadd.f32 %v3631, %v3990
  %v3992 = vpop.f32.mrb[0].mxu0
  %3993 = vmatprep.mubr.bf16.mxu0 0
  %3994 = vmatmul.mubr.bf16.gmra.mrb[0].mxu0 %v3579
  %v3995 = vpop.f32.mrb[0].mxu0
  %v3996 = vadd.f32 %v3631, %v3995
  %v3997 = vpop.f32.mrb[0].mxu0
  %v3998 = vpop.f32.mrb[0].mxu0
  %v3999 = vadd.f32 %v3631, %v3998
  %v4000 = vpop.f32.mrb[0].mxu0
  %4001 = vmatprep.mubr.bf16.mxu0 0
  %4002 = vmatmul.mubr.bf16.gmra.mrb[0].mxu0 %v3580
  %v4003 = vpop.f32.mrb[0].mxu0
  %v4004 = vadd.f32 %v3631, %v4003
  %v4005 = vpop.f32.mrb[0].mxu0
  %v4006 = vpop.f32.mrb[0].mxu0
  %v4007 = vadd.f32 %v3631, %v4006
  %v4008 = vpop.f32.mrb[0].mxu0
  %4009 = vmatprep.mubr.bf16.mxu0 0
  %4010 = vmatmul.mubr.bf16.gmra.mrb[0].mxu0 %v3581
  %v4011 = vpop.f32.mrb[0].mxu0
  %v4012 = vadd.f32 %v3631, %v4011
  %v4013 = vpop.f32.mrb[0].mxu0
  %v4014 = vpop.f32.mrb[0].mxu0
  %v4015 = vadd.f32 %v3631, %v4014
  %v4016 = vpop.f32.mrb[0].mxu0
  %4017 = vmatprep.mubr.bf16.mxu0 0
  %4018 = vmatmul.mubr.bf16.gmra.mrb[0].mxu0 %v3582
  %v4019 = vpop.f32.mrb[0].mxu0
  %v4020 = vadd.f32 %v3631, %v4019
  %v4021 = vpop.f32.mrb[0].mxu0
  %v4022 = vpop.f32.mrb[0].mxu0
  %v4023 = vadd.f32 %v3631, %v4022
  %v4024 = vpop.f32.mrb[0].mxu0
  %4025 = vmatprep.mubr.bf16.mxu0 0
  %4026 = vmatmul.mubr.bf16.gmra.mrb[0].mxu0 %v3583
  %v4027 = vpop.f32.mrb[0].mxu0
  %v4028 = vadd.f32 %v3631, %v4027
  %v4029 = vpop.f32.mrb[0].mxu0
  %v4030 = vpop.f32.mrb[0].mxu0
  %v4031 = vadd.f32 %v3631, %v4030
  %v4032 = vpop.f32.mrb[0].mxu0
  %4033 = vmatprep.mubr.bf16.mxu0 0
  %4034 = vmatmul.mubr.bf16.gmra.mrb[0].mxu0 %v3584
  %v4035 = vpop.f32.mrb[0].mxu0
  %v4036 = vadd.f32 %v3631, %v4035
  %v4037 = vpop.f32.mrb[0].mxu0
  %v4038 = vpop.f32.mrb[0].mxu0
  %v4039 = vadd.f32 %v3631, %v4038
  %v4040 = vpop.f32.mrb[0].mxu0
  %4041 = vmatprep.mubr.bf16.mxu0 0
  %4042 = vmatmul.mubr.bf16.gmra.mrb[0].mxu0 %v3585
  %v4043 = vpop.f32.mrb[0].mxu0
  %v4044 = vadd.f32 %v3631, %v4043
  %v4045 = vpop.f32.mrb[0].mxu0
  %v4046 = vpop.f32.mrb[0].mxu0
  %v4047 = vadd.f32 %v3631, %v4046
  %v4048 = vpop.f32.mrb[0].mxu0
  %4049 = vmatprep.mubr.bf16.mxu0 0
  %4050 = vmatmul.mubr.bf16.gmra.mrb[0].mxu0 %v3586
  %v4051 = vpop.f32.mrb[0].mxu0
  %v4052 = vadd.f32 %v3631, %v4051
  %v4053 = vpop.f32.mrb[0].mxu0
  %v4054 = vpop.f32.mrb[0].mxu0
  %v4055 = vadd.f32 %v3631, %v4054
  %v4056 = vpop.f32.mrb[0].mxu0
  %4057 = vmatprep.mubr.bf16.mxu0 0
  %4058 = vmatmul.mubr.bf16.gmra.mrb[0].mxu0 %v3587
  %v4059 = vpop.f32.mrb[0].mxu0
  %v4060 = vadd.f32 %v3631, %v4059
  %v4061 = vpop.f32.mrb[0].mxu0
  %v4062 = vpop.f32.mrb[0].mxu0
  %v4063 = vadd.f32 %v3631, %v4062
  %v4064 = vpop.f32.mrb[0].mxu0
  %4065 = vmatprep.mubr.bf16.mxu0 0
  %4066 = vmatmul.mubr.bf16.gmra.mrb[0].mxu0 %v3588
  %v4067 = vpop.f32.mrb[0].mxu0
  %v4068 = vadd.f32 %v3631, %v4067
  %v4069 = vpop.f32.mrb[0].mxu0
  %v4070 = vpop.f32.mrb[0].mxu0
  %v4071 = vadd.f32 %v3631, %v4070
  %v4072 = vpop.f32.mrb[0].mxu0
  %4073 = vmatprep.mubr.bf16.mxu0 0
  %4074 = vmatmul.mubr.bf16.gmra.mrb[0].mxu0 %v3589
  %v4075 = vpop.f32.mrb[0].mxu0
  %v4076 = vadd.f32 %v3631, %v4075
  %v4077 = vpop.f32.mrb[0].mxu0
  %v4078 = vpop.f32.mrb[0].mxu0
  %v4079 = vadd.f32 %v3631, %v4078
  %v4080 = vpop.f32.mrb[0].mxu0
  %4081 = vmatprep.mubr.bf16.mxu0 0
  %4082 = vmatmul.mubr.bf16.gmra.mrb[0].mxu0 %v3590
  %v4083 = vpop.f32.mrb[0].mxu0
  %v4084 = vadd.f32 %v3631, %v4083
  %v4085 = vpop.f32.mrb[0].mxu0
  %v4086 = vpop.f32.mrb[0].mxu0
  %v4087 = vadd.f32 %v3631, %v4086
  %v4088 = vpop.f32.mrb[0].mxu0
  %4089 = vmatprep.mubr.bf16.mxu0 0
  %4090 = vmatmul.mubr.bf16.gmra.mrb[0].mxu0 %v3591
  %v4091 = vpop.f32.mrb[0].mxu0
  %v4092 = vadd.f32 %v3631, %v4091
  %v4093 = vpop.f32.mrb[0].mxu0
  %v4094 = vpop.f32.mrb[0].mxu0
  %v4095 = vadd.f32 %v3631, %v4094
  %v4096 = vpop.f32.mrb[0].mxu0
  %4097 = vmatprep.mubr.bf16.mxu0 0
  %4098 = vmatmul.mubr.bf16.gmra.mrb[0].mxu0 %v3592
  %v4099 = vpop.f32.mrb[0].mxu0
  %v4100 = vadd.f32 %v3631, %v4099
  %v4101 = vpop.f32.mrb[0].mxu0
  %v4102 = vpop.f32.mrb[0].mxu0
  %v4103 = vadd.f32 %v3631, %v4102
  %v4104 = vpop.f32.mrb[0].mxu0
  %4105 = vmatprep.mubr.bf16.mxu0 0
  %4106 = vmatmul.mubr.bf16.gmra.mrb[0].mxu0 %v3593
  %v4107 = vpop.f32.mrb[0].mxu0
  %v4108 = vadd.f32 %v3631, %v4107
  %v4109 = vpop.f32.mrb[0].mxu0
  %v4110 = vpop.f32.mrb[0].mxu0
  %v4111 = vadd.f32 %v3631, %v4110
  %v4112 = vpop.f32.mrb[0].mxu0
  %4113 = vmatprep.mubr.bf16.mxu0 0
  %4114 = vmatmul.mubr.bf16.gmra.mrb[0].mxu0 %v3594
  %v4115 = vpop.f32.mrb[0].mxu0
  %v4116 = vadd.f32 %v3631, %v4115
  %v4117 = vpop.f32.mrb[0].mxu0
  %v4118 = vpop.f32.mrb[0].mxu0
  %v4119 = vadd.f32 %v3631, %v4118
  %v4120 = vpop.f32.mrb[0].mxu0
  %4121 = vmatprep.mubr.bf16.mxu0 0
  %4122 = vmatmul.mubr.bf16.gmra.mrb[0].mxu0 %v3595
  %v4123 = vpop.f32.mrb[0].mxu0
  %v4124 = vadd.f32 %v3631, %v4123
  %v4125 = vpop.f32.mrb[0].mxu0
  %v4126 = vpop.f32.mrb[0].mxu0
  %v4127 = vadd.f32 %v3631, %v4126
  %v4128 = vpop.f32.mrb[0].mxu0
  %4129 = vmatprep.mubr.bf16.mxu0 0
  %4130 = vmatmul.mubr.bf16.gmra.mrb[0].mxu0 %v3596
  %v4131 = vpop.f32.mrb[0].mxu0
  %v4132 = vadd.f32 %v3631, %v4131
  %v4133 = vpop.f32.mrb[0].mxu0
  %v4134 = vpop.f32.mrb[0].mxu0
  %v4135 = vadd.f32 %v3631, %v4134
  %v4136 = vpop.f32.mrb[0].mxu0
  %4137 = vmatprep.mubr.bf16.mxu0 0
  %4138 = vmatmul.mubr.bf16.gmra.mrb[0].mxu0 %v3597
  %v4139 = vpop.f32.mrb[0].mxu0
  %v4140 = vadd.f32 %v3631, %v4139
  %v4141 = vpop.f32.mrb[0].mxu0
  %v4142 = vpop.f32.mrb[0].mxu0
  %v4143 = vadd.f32 %v3631, %v4142
  %v4144 = vpop.f32.mrb[0].mxu0
  %4145 = vmatprep.mubr.bf16.mxu0 0
  %4146 = vmatmul.mubr.bf16.gmra.mrb[0].mxu0 %v3598
  %v4147 = vpop.f32.mrb[0].mxu0
  %v4148 = vadd.f32 %v3631, %v4147
  %v4149 = vpop.f32.mrb[0].mxu0
  %v4150 = vpop.f32.mrb[0].mxu0
  %v4151 = vadd.f32 %v3631, %v4150
  %v4152 = vpop.f32.mrb[0].mxu0
  %4153 = vmatprep.mubr.bf16.mxu0 0
  %4154 = vmatmul.mubr.bf16.gmra.mrb[0].mxu0 %v3599
  %v4155 = vpop.f32.mrb[0].mxu0
  %v4156 = vadd.f32 %v3631, %v4155
  %v4157 = vpop.f32.mrb[0].mxu0
  %v4158 = vpop.f32.mrb[0].mxu0
  %v4159 = vadd.f32 %v3631, %v4158
  %v4160 = vpop.f32.mrb[0].mxu0
  %4161 = vmatprep.mubr.bf16.mxu0 0
  %4162 = vmatmul.mubr.bf16.gmra.mrb[0].mxu0 %v3600
  %v4163 = vpop.f32.mrb[0].mxu0
  %v4164 = vadd.f32 %v3631, %v4163
  %v4165 = vpop.f32.mrb[0].mxu0
  %v4166 = vpop.f32.mrb[0].mxu0
  %v4167 = vadd.f32 %v3631, %v4166
  %v4168 = vpop.f32.mrb[0].mxu0
  %4169 = vmatprep.mubr.bf16.mxu0 0
  %4170 = vmatmul.mubr.bf16.gmra.mrb[0].mxu0 %v3601
  %v4171 = vpop.f32.mrb[0].mxu0
  %v4172 = vadd.f32 %v3631, %v4171
  %v4173 = vpop.f32.mrb[0].mxu0
  %v4174 = vpop.f32.mrb[0].mxu0
  %v4175 = vadd.f32 %v3631, %v4174
  %v4176 = vpop.f32.mrb[0].mxu0
  %4177 = vmatprep.mubr.bf16.mxu0 0
  %4178 = vmatmul.mubr.bf16.gmra.mrb[0].mxu0 %v3602
  %v4179 = vpop.f32.mrb[0].mxu0
  %v4180 = vadd.f32 %v3631, %v4179
  %v4181 = vpop.f32.mrb[0].mxu0
  %v4182 = vpop.f32.mrb[0].mxu0
  %v4183 = vadd.f32 %v3631, %v4182
  %v4184 = vpop.f32.mrb[0].mxu0
  %4185 = vmatprep.mubr.bf16.mxu0 0
  %4186 = vmatmul.mubr.bf16.gmra.mrb[0].mxu0 %v3603
  %v4187 = vpop.f32.mrb[0].mxu0
  %v4188 = vadd.f32 %v3631, %v4187
  %v4189 = vpop.f32.mrb[0].mxu0
  %v4190 = vpop.f32.mrb[0].mxu0
  %v4191 = vadd.f32 %v3631, %v4190
  %v4192 = vpop.f32.mrb[0].mxu0
  %4193 = vmatprep.mubr.bf16.mxu0 0
  %4194 = vmatmul.mubr.bf16.gmra.mrb[0].mxu0 %v3604
  %v4195 = vpop.f32.mrb[0].mxu0
  %v4196 = vadd.f32 %v3631, %v4195
  %v4197 = vpop.f32.mrb[0].mxu0
  %v4198 = vpop.f32.mrb[0].mxu0
  %v4199 = vadd.f32 %v3631, %v4198
  %v4200 = vpop.f32.mrb[0].mxu0
  %4201 = vmatprep.mubr.bf16.mxu0 0
  %4202 = vmatmul.mubr.bf16.gmra.mrb[0].mxu0 %v3605
  %v4203 = vpop.f32.mrb[0].mxu0
  %v4204 = vadd.f32 %v3631, %v4203
  %v4205 = vpop.f32.mrb[0].mxu0
  %v4206 = vpop.f32.mrb[0].mxu0
  %v4207 = vadd.f32 %v3631, %v4206
  %v4208 = vpop.f32.mrb[0].mxu0
  %4209 = vmatprep.mubr.bf16.mxu0 0
  %4210 = vmatmul.mubr.bf16.gmra.mrb[0].mxu0 %v3606
  %v4211 = vpop.f32.mrb[0].mxu0
  %v4212 = vadd.f32 %v3631, %v4211
  %v4213 = vpop.f32.mrb[0].mxu0
  %v4214 = vpop.f32.mrb[0].mxu0
  %v4215 = vadd.f32 %v3631, %v4214
  %v4216 = vpop.f32.mrb[0].mxu0
  %4217 = vmatprep.mubr.bf16.mxu0 0
  %4218 = vmatmul.mubr.bf16.gmra.mrb[0].mxu0 %v3607
  %v4219 = vpop.f32.mrb[0].mxu0
  %v4220 = vadd.f32 %v3631, %v4219
  %v4221 = vpop.f32.mrb[0].mxu0
  %v4222 = vpop.f32.mrb[0].mxu0
  %v4223 = vadd.f32 %v3631, %v4222
  %v4224 = vpop.f32.mrb[0].mxu0
  %4225 = vdwg.mxu0
  %v4226 = vmax.f32 %v3716, 0.0
  %v4227 = vmax.f32 %v3719, 0.0
  %v4228 = vmax.f32 %v3724, 0.0
  %v4229 = vmax.f32 %v3727, 0.0
  %v4230 = vmax.f32 %v3732, 0.0
  %v4231 = vmax.f32 %v3735, 0.0
  %v4232 = vmax.f32 %v3740, 0.0
  %v4233 = vmax.f32 %v3743, 0.0
  %v4234 = vmax.f32 %v3748, 0.0
  %v4235 = vmax.f32 %v3751, 0.0
  %v4236 = vmax.f32 %v3756, 0.0
  %v4237 = vmax.f32 %v3759, 0.0
  %v4238 = vmax.f32 %v3764, 0.0
  %v4239 = vmax.f32 %v3767, 0.0
  %v4240 = vmax.f32 %v3772, 0.0
  %v4241 = vmax.f32 %v3775, 0.0
  %v4242 = vmax.f32 %v3780, 0.0
  %v4243 = vmax.f32 %v3783, 0.0
  %v4244 = vmax.f32 %v3788, 0.0
  %v4245 = vmax.f32 %v3791, 0.0
  %v4246 = vmax.f32 %v3796, 0.0
  %v4247 = vmax.f32 %v3799, 0.0
  %v4248 = vmax.f32 %v3804, 0.0
  %v4249 = vmax.f32 %v3807, 0.0
  %v4250 = vmax.f32 %v3812, 0.0
  %v4251 = vmax.f32 %v3815, 0.0
  %v4252 = vmax.f32 %v3820, 0.0
  %v4253 = vmax.f32 %v3823, 0.0
  %v4254 = vmax.f32 %v3828, 0.0
  %v4255 = vmax.f32 %v3831, 0.0
  %v4256 = vmax.f32 %v3836, 0.0
  %v4257 = vmax.f32 %v3839, 0.0
  %v4258 = vmax.f32 %v3844, 0.0
  %v4259 = vmax.f32 %v3847, 0.0
  %v4260 = vmax.f32 %v3852, 0.0
  %v4261 = vmax.f32 %v3855, 0.0
  %v4262 = vmax.f32 %v3860, 0.0
  %v4263 = vmax.f32 %v3863, 0.0
  %v4264 = vmax.f32 %v3868, 0.0
  %v4265 = vmax.f32 %v3871, 0.0
  %v4266 = vmax.f32 %v3876, 0.0
  %v4267 = vmax.f32 %v3879, 0.0
  %v4268 = vmax.f32 %v3884, 0.0
  %v4269 = vmax.f32 %v3887, 0.0
  %v4270 = vmax.f32 %v3892, 0.0
  %v4271 = vmax.f32 %v3895, 0.0
  %v4272 = vmax.f32 %v3900, 0.0
  %v4273 = vmax.f32 %v3903, 0.0
  %v4274 = vmax.f32 %v3908, 0.0
  %v4275 = vmax.f32 %v3911, 0.0
  %v4276 = vmax.f32 %v3916, 0.0
  %v4277 = vmax.f32 %v3919, 0.0
  %v4278 = vmax.f32 %v3924, 0.0
  %v4279 = vmax.f32 %v3927, 0.0
  %v4280 = vmax.f32 %v3932, 0.0
  %v4281 = vmax.f32 %v3935, 0.0
  %v4282 = vmax.f32 %v3940, 0.0
  %v4283 = vmax.f32 %v3943, 0.0
  %v4284 = vmax.f32 %v3948, 0.0
  %v4285 = vmax.f32 %v3951, 0.0
  %v4286 = vmax.f32 %v3956, 0.0
  %v4287 = vmax.f32 %v3959, 0.0
  %v4288 = vmax.f32 %v3964, 0.0
  %v4289 = vmax.f32 %v3967, 0.0
  %v4290 = vmax.f32 %v3972, 0.0
  %v4291 = vmax.f32 %v3975, 0.0
  %v4292 = vmax.f32 %v3980, 0.0
  %v4293 = vmax.f32 %v3983, 0.0
  %v4294 = vmax.f32 %v3988, 0.0
  %v4295 = vmax.f32 %v3991, 0.0
  %v4296 = vmax.f32 %v3996, 0.0
  %v4297 = vmax.f32 %v3999, 0.0
  %v4298 = vmax.f32 %v4004, 0.0
  %v4299 = vmax.f32 %v4007, 0.0
  %v4300 = vmax.f32 %v4012, 0.0
  %v4301 = vmax.f32 %v4015, 0.0
  %v4302 = vmax.f32 %v4020, 0.0
  %v4303 = vmax.f32 %v4023, 0.0
  %v4304 = vmax.f32 %v4028, 0.0
  %v4305 = vmax.f32 %v4031, 0.0
  %v4306 = vmax.f32 %v4036, 0.0
  %v4307 = vmax.f32 %v4039, 0.0
  %v4308 = vmax.f32 %v4044, 0.0
  %v4309 = vmax.f32 %v4047, 0.0
  %v4310 = vmax.f32 %v4052, 0.0
  %v4311 = vmax.f32 %v4055, 0.0
  %v4312 = vmax.f32 %v4060, 0.0
  %v4313 = vmax.f32 %v4063, 0.0
  %v4314 = vmax.f32 %v4068, 0.0
  %v4315 = vmax.f32 %v4071, 0.0
  %v4316 = vmax.f32 %v4076, 0.0
  %v4317 = vmax.f32 %v4079, 0.0
  %v4318 = vmax.f32 %v4084, 0.0
  %v4319 = vmax.f32 %v4087, 0.0
  %v4320 = vmax.f32 %v4092, 0.0
  %v4321 = vmax.f32 %v4095, 0.0
  %v4322 = vmax.f32 %v4100, 0.0
  %v4323 = vmax.f32 %v4103, 0.0
  %v4324 = vmax.f32 %v4108, 0.0
  %v4325 = vmax.f32 %v4111, 0.0
  %v4326 = vmax.f32 %v4116, 0.0
  %v4327 = vmax.f32 %v4119, 0.0
  %v4328 = vmax.f32 %v4124, 0.0
  %v4329 = vmax.f32 %v4127, 0.0
  %v4330 = vmax.f32 %v4132, 0.0
  %v4331 = vmax.f32 %v4135, 0.0
  %v4332 = vmax.f32 %v4140, 0.0
  %v4333 = vmax.f32 %v4143, 0.0
  %v4334 = vmax.f32 %v4148, 0.0
  %v4335 = vmax.f32 %v4151, 0.0
  %v4336 = vmax.f32 %v4156, 0.0
  %v4337 = vmax.f32 %v4159, 0.0
  %v4338 = vmax.f32 %v4164, 0.0
  %v4339 = vmax.f32 %v4167, 0.0
  %v4340 = vmax.f32 %v4172, 0.0
  %v4341 = vmax.f32 %v4175, 0.0
  %v4342 = vmax.f32 %v4180, 0.0
  %v4343 = vmax.f32 %v4183, 0.0
  %v4344 = vmax.f32 %v4188, 0.0
  %v4345 = vmax.f32 %v4191, 0.0
  %v4346 = vmax.f32 %v4196, 0.0
  %v4347 = vmax.f32 %v4199, 0.0
  %v4348 = vmax.f32 %v4204, 0.0
  %v4349 = vmax.f32 %v4207, 0.0
  %v4350 = vmax.f32 %v4212, 0.0
  %v4351 = vmax.f32 %v4215, 0.0
  %v4352 = vmax.f32 %v4220, 0.0
  %v4353 = vmax.f32 %v4223, 0.0
  %v4354 = vpack.c.bf16 %v4227, %v4226
  %v4355 = vpack.c.bf16 %v4229, %v4228
  %v4356 = vpack.c.bf16 %v4231, %v4230
  %v4357 = vpack.c.bf16 %v4233, %v4232
  %v4358 = vpack.c.bf16 %v4235, %v4234
  %v4359 = vpack.c.bf16 %v4237, %v4236
  %v4360 = vpack.c.bf16 %v4239, %v4238
  %v4361 = vpack.c.bf16 %v4241, %v4240
  %v4362 = vpack.c.bf16 %v4243, %v4242
  %v4363 = vpack.c.bf16 %v4245, %v4244
  %v4364 = vpack.c.bf16 %v4247, %v4246
  %v4365 = vpack.c.bf16 %v4249, %v4248
  %v4366 = vpack.c.bf16 %v4251, %v4250
  %v4367 = vpack.c.bf16 %v4253, %v4252
  %v4368 = vpack.c.bf16 %v4255, %v4254
  %v4369 = vpack.c.bf16 %v4257, %v4256
  %v4370 = vpack.c.bf16 %v4259, %v4258
  %v4371 = vpack.c.bf16 %v4261, %v4260
  %v4372 = vpack.c.bf16 %v4263, %v4262
  %v4373 = vpack.c.bf16 %v4265, %v4264
  %v4374 = vpack.c.bf16 %v4267, %v4266
  %v4375 = vpack.c.bf16 %v4269, %v4268
  %v4376 = vpack.c.bf16 %v4271, %v4270
  %v4377 = vpack.c.bf16 %v4273, %v4272
  %v4378 = vpack.c.bf16 %v4275, %v4274
  %v4379 = vpack.c.bf16 %v4277, %v4276
  %v4380 = vpack.c.bf16 %v4279, %v4278
  %v4381 = vpack.c.bf16 %v4281, %v4280
  %v4382 = vpack.c.bf16 %v4283, %v4282
  %v4383 = vpack.c.bf16 %v4285, %v4284
  %v4384 = vpack.c.bf16 %v4287, %v4286
  %v4385 = vpack.c.bf16 %v4289, %v4288
  %v4386 = vpack.c.bf16 %v4291, %v4290
  %v4387 = vpack.c.bf16 %v4293, %v4292
  %v4388 = vpack.c.bf16 %v4295, %v4294
  %v4389 = vpack.c.bf16 %v4297, %v4296
  %v4390 = vpack.c.bf16 %v4299, %v4298
  %v4391 = vpack.c.bf16 %v4301, %v4300
  %v4392 = vpack.c.bf16 %v4303, %v4302
  %v4393 = vpack.c.bf16 %v4305, %v4304
  %v4394 = vpack.c.bf16 %v4307, %v4306
  %v4395 = vpack.c.bf16 %v4309, %v4308
  %v4396 = vpack.c.bf16 %v4311, %v4310
  %v4397 = vpack.c.bf16 %v4313, %v4312
  %v4398 = vpack.c.bf16 %v4315, %v4314
  %v4399 = vpack.c.bf16 %v4317, %v4316
  %v4400 = vpack.c.bf16 %v4319, %v4318
  %v4401 = vpack.c.bf16 %v4321, %v4320
  %v4402 = vpack.c.bf16 %v4323, %v4322
  %v4403 = vpack.c.bf16 %v4325, %v4324
  %v4404 = vpack.c.bf16 %v4327, %v4326
  %v4405 = vpack.c.bf16 %v4329, %v4328
  %v4406 = vpack.c.bf16 %v4331, %v4330
  %v4407 = vpack.c.bf16 %v4333, %v4332
  %v4408 = vpack.c.bf16 %v4335, %v4334
  %v4409 = vpack.c.bf16 %v4337, %v4336
  %v4410 = vpack.c.bf16 %v4339, %v4338
  %v4411 = vpack.c.bf16 %v4341, %v4340
  %v4412 = vpack.c.bf16 %v4343, %v4342
  %v4413 = vpack.c.bf16 %v4345, %v4344
  %v4414 = vpack.c.bf16 %v4347, %v4346
  %v4415 = vpack.c.bf16 %v4349, %v4348
  %v4416 = vpack.c.bf16 %v4351, %v4350
  %v4417 = vpack.c.bf16 %v4353, %v4352
  %s4418 = scalar_lea.vmem %s3, 128
  %v4419 = vld [vmem:[%s4418] sm:$0xf]
  %v4420 = vld [vmem:[%s4418 + $0x4] sm:$0xf]
  %v4421 = vld [vmem:[%s4418 + $0x8] sm:$0xf]
  %v4422 = vld [vmem:[%s4418 + $0xc] sm:$0xf]
  %v4423 = vld [vmem:[%s4418 + $0x10] sm:$0xf]
  %v4424 = vld [vmem:[%s4418 + $0x14] sm:$0xf]
  %v4425 = vld [vmem:[%s4418 + $0x18] sm:$0xf]
  %v4426 = vld [vmem:[%s4418 + $0x1c] sm:$0xf]
  %v4427 = vld [vmem:[%s4418 + $0x20] sm:$0xf]
  %v4428 = vld [vmem:[%s4418 + $0x24] sm:$0xf]
  %v4429 = vld [vmem:[%s4418 + $0x28] sm:$0xf]
  %v4430 = vld [vmem:[%s4418 + $0x2c] sm:$0xf]
  %v4431 = vld [vmem:[%s4418 + $0x30] sm:$0xf]
  %v4432 = vld [vmem:[%s4418 + $0x34] sm:$0xf]
  %v4433 = vld [vmem:[%s4418 + $0x38] sm:$0xf]
  %v4434 = vld [vmem:[%s4418 + $0x3c] sm:$0xf]
  %s4435 = scalar_lea.vmem %s4, 2
  %v4436 = vld [vmem:[%s4435] sm:$0x1]
  %v4438 = vlaneseq
  %v4439 = vshrl.u32 %v4438, 7
  %v4440 = vsub.s32 0, %v4439
  %v4441 = vrot.slane %v4436, %v4440
  %v4459 = vunpack.c.l.b16 %v4419
  %v4460 = vunpack.c.l.b16 %v4420
  %v4461 = vunpack.c.l.b16 %v4421
  %v4462 = vunpack.c.l.b16 %v4422
  %v4463 = vunpack.c.l.b16 %v4423
  %v4464 = vunpack.c.l.b16 %v4424
  %v4465 = vunpack.c.l.b16 %v4425
  %v4466 = vunpack.c.l.b16 %v4426
  %v4467 = vunpack.c.l.b16 %v4427
  %v4468 = vunpack.c.l.b16 %v4428
  %v4469 = vunpack.c.l.b16 %v4429
  %v4470 = vunpack.c.l.b16 %v4430
  %v4471 = vunpack.c.l.b16 %v4431
  %v4472 = vunpack.c.l.b16 %v4432
  %v4473 = vunpack.c.l.b16 %v4433
  %v4474 = vunpack.c.l.b16 %v4434
  %v4475 = vpack.c.b16 %v4460, %v4459
  %v4476 = vpack.c.b16 %v4462, %v4461
  %v4477 = vpack.c.b16 %v4464, %v4463
  %v4478 = vpack.c.b16 %v4466, %v4465
  %v4479 = vpack.c.b16 %v4468, %v4467
  %v4480 = vpack.c.b16 %v4470, %v4469
  %v4481 = vpack.c.b16 %v4472, %v4471
  %v4482 = vpack.c.b16 %v4474, %v4473
  %4491 = vmatprep.subr.bf16.mxu0 0
  %4492 = vmatpush1.bf16.msra.mxu0 %v4475
  %4493 = vmatprep.subr.bf16.mxu0 0
  %4494 = vmatpush1.bf16.msra.mxu0 %v4476
  %4495 = vmatprep.subr.bf16.mxu0 0
  %4496 = vmatpush1.bf16.msra.mxu0 %v4477
  %4497 = vmatprep.subr.bf16.mxu0 0
  %4498 = vmatpush1.bf16.msra.mxu0 %v4478
  %4499 = vmatprep.subr.bf16.mxu0 0
  %4500 = vmatpush1.bf16.msra.mxu0 %v4479
  %4501 = vmatprep.subr.bf16.mxu0 0
  %4502 = vmatpush1.bf16.msra.mxu0 %v4480
  %4503 = vmatprep.subr.bf16.mxu0 0
  %4504 = vmatpush1.bf16.msra.mxu0 %v4481
  %4505 = vmatprep.subr.bf16.mxu0 0
  %4506 = vmatpush1.bf16.msra.mxu0 %v4482
  %4507 = vmatprep.subr.bf16.mxu0 0
  %4508 = vmatpush1.bf16.msra.mxu0 0
  %4509 = vmatprep.subr.bf16.mxu0 0
  %4510 = vmatpush1.bf16.msra.mxu0 0
  %4511 = vmatprep.subr.bf16.mxu0 0
  %4512 = vmatpush1.bf16.msra.mxu0 0
  %4513 = vmatprep.subr.bf16.mxu0 0
  %4514 = vmatpush1.bf16.msra.mxu0 0
  %4515 = vmatprep.subr.bf16.mxu0 0
  %4516 = vmatpush1.bf16.msra.mxu0 0
  %4517 = vmatprep.subr.bf16.mxu0 0
  %4518 = vmatpush1.bf16.msra.mxu0 0
  %4519 = vmatprep.subr.bf16.mxu0 0
  %4520 = vmatpush1.bf16.msra.mxu0 0
  %4521 = vmatprep.subr.bf16.mxu0 0
  %4522 = vmatpush1.bf16.msra.mxu0 0
  %4523 = vmatprep.mubr.bf16.mxu0 0
  %4524 = vmatmul.mubr.bf16.gmra.mrb[0].mxu0 %v4354
  %v4525 = vpop.f32.mrb[0].mxu0
  %v4526 = vadd.f32 %v4441, %v4525
  %v4527 = vpop.f32.mrb[0].mxu0
  %v4528 = vpop.f32.mrb[0].mxu0
  %v4529 = vadd.f32 %v4441, %v4528
  %v4530 = vpop.f32.mrb[0].mxu0
  %4531 = vmatprep.mubr.bf16.mxu0 0
  %4532 = vmatmul.mubr.bf16.gmra.mrb[0].mxu0 %v4355
  %v4533 = vpop.f32.mrb[0].mxu0
  %v4534 = vadd.f32 %v4441, %v4533
  %v4535 = vpop.f32.mrb[0].mxu0
  %v4536 = vpop.f32.mrb[0].mxu0
  %v4537 = vadd.f32 %v4441, %v4536
  %v4538 = vpop.f32.mrb[0].mxu0
  %4539 = vmatprep.mubr.bf16.mxu0 0
  %4540 = vmatmul.mubr.bf16.gmra.mrb[0].mxu0 %v4356
  %v4541 = vpop.f32.mrb[0].mxu0
  %v4542 = vadd.f32 %v4441, %v4541
  %v4543 = vpop.f32.mrb[0].mxu0
  %v4544 = vpop.f32.mrb[0].mxu0
  %v4545 = vadd.f32 %v4441, %v4544
  %v4546 = vpop.f32.mrb[0].mxu0
  %4547 = vmatprep.mubr.bf16.mxu0 0
  %4548 = vmatmul.mubr.bf16.gmra.mrb[0].mxu0 %v4357
  %v4549 = vpop.f32.mrb[0].mxu0
  %v4550 = vadd.f32 %v4441, %v4549
  %v4551 = vpop.f32.mrb[0].mxu0
  %v4552 = vpop.f32.mrb[0].mxu0
  %v4553 = vadd.f32 %v4441, %v4552
  %v4554 = vpop.f32.mrb[0].mxu0
  %4555 = vmatprep.mubr.bf16.mxu0 0
  %4556 = vmatmul.mubr.bf16.gmra.mrb[0].mxu0 %v4358
  %v4557 = vpop.f32.mrb[0].mxu0
  %v4558 = vadd.f32 %v4441, %v4557
  %v4559 = vpop.f32.mrb[0].mxu0
  %v4560 = vpop.f32.mrb[0].mxu0
  %v4561 = vadd.f32 %v4441, %v4560
  %v4562 = vpop.f32.mrb[0].mxu0
  %4563 = vmatprep.mubr.bf16.mxu0 0
  %4564 = vmatmul.mubr.bf16.gmra.mrb[0].mxu0 %v4359
  %v4565 = vpop.f32.mrb[0].mxu0
  %v4566 = vadd.f32 %v4441, %v4565
  %v4567 = vpop.f32.mrb[0].mxu0
  %v4568 = vpop.f32.mrb[0].mxu0
  %v4569 = vadd.f32 %v4441, %v4568
  %v4570 = vpop.f32.mrb[0].mxu0
  %4571 = vmatprep.mubr.bf16.mxu0 0
  %4572 = vmatmul.mubr.bf16.gmra.mrb[0].mxu0 %v4360
  %v4573 = vpop.f32.mrb[0].mxu0
  %v4574 = vadd.f32 %v4441, %v4573
  %v4575 = vpop.f32.mrb[0].mxu0
  %v4576 = vpop.f32.mrb[0].mxu0
  %v4577 = vadd.f32 %v4441, %v4576
  %v4578 = vpop.f32.mrb[0].mxu0
  %4579 = vmatprep.mubr.bf16.mxu0 0
  %4580 = vmatmul.mubr.bf16.gmra.mrb[0].mxu0 %v4361
  %v4581 = vpop.f32.mrb[0].mxu0
  %v4582 = vadd.f32 %v4441, %v4581
  %v4583 = vpop.f32.mrb[0].mxu0
  %v4584 = vpop.f32.mrb[0].mxu0
  %v4585 = vadd.f32 %v4441, %v4584
  %v4586 = vpop.f32.mrb[0].mxu0
  %4587 = vmatprep.mubr.bf16.mxu0 0
  %4588 = vmatmul.mubr.bf16.gmra.mrb[0].mxu0 %v4362
  %v4589 = vpop.f32.mrb[0].mxu0
  %v4590 = vadd.f32 %v4441, %v4589
  %v4591 = vpop.f32.mrb[0].mxu0
  %v4592 = vpop.f32.mrb[0].mxu0
  %v4593 = vadd.f32 %v4441, %v4592
  %v4594 = vpop.f32.mrb[0].mxu0
  %4595 = vmatprep.mubr.bf16.mxu0 0
  %4596 = vmatmul.mubr.bf16.gmra.mrb[0].mxu0 %v4363
  %v4597 = vpop.f32.mrb[0].mxu0
  %v4598 = vadd.f32 %v4441, %v4597
  %v4599 = vpop.f32.mrb[0].mxu0
  %v4600 = vpop.f32.mrb[0].mxu0
  %v4601 = vadd.f32 %v4441, %v4600
  %v4602 = vpop.f32.mrb[0].mxu0
  %4603 = vmatprep.mubr.bf16.mxu0 0
  %4604 = vmatmul.mubr.bf16.gmra.mrb[0].mxu0 %v4364
  %v4605 = vpop.f32.mrb[0].mxu0
  %v4606 = vadd.f32 %v4441, %v4605
  %v4607 = vpop.f32.mrb[0].mxu0
  %v4608 = vpop.f32.mrb[0].mxu0
  %v4609 = vadd.f32 %v4441, %v4608
  %v4610 = vpop.f32.mrb[0].mxu0
  %4611 = vmatprep.mubr.bf16.mxu0 0
  %4612 = vmatmul.mubr.bf16.gmra.mrb[0].mxu0 %v4365
  %v4613 = vpop.f32.mrb[0].mxu0
  %v4614 = vadd.f32 %v4441, %v4613
  %v4615 = vpop.f32.mrb[0].mxu0
  %v4616 = vpop.f32.mrb[0].mxu0
  %v4617 = vadd.f32 %v4441, %v4616
  %v4618 = vpop.f32.mrb[0].mxu0
  %4619 = vmatprep.mubr.bf16.mxu0 0
  %4620 = vmatmul.mubr.bf16.gmra.mrb[0].mxu0 %v4366
  %v4621 = vpop.f32.mrb[0].mxu0
  %v4622 = vadd.f32 %v4441, %v4621
  %v4623 = vpop.f32.mrb[0].mxu0
  %v4624 = vpop.f32.mrb[0].mxu0
  %v4625 = vadd.f32 %v4441, %v4624
  %v4626 = vpop.f32.mrb[0].mxu0
  %4627 = vmatprep.mubr.bf16.mxu0 0
  %4628 = vmatmul.mubr.bf16.gmra.mrb[0].mxu0 %v4367
  %v4629 = vpop.f32.mrb[0].mxu0
  %v4630 = vadd.f32 %v4441, %v4629
  %v4631 = vpop.f32.mrb[0].mxu0
  %v4632 = vpop.f32.mrb[0].mxu0
  %v4633 = vadd.f32 %v4441, %v4632
  %v4634 = vpop.f32.mrb[0].mxu0
  %4635 = vmatprep.mubr.bf16.mxu0 0
  %4636 = vmatmul.mubr.bf16.gmra.mrb[0].mxu0 %v4368
  %v4637 = vpop.f32.mrb[0].mxu0
  %v4638 = vadd.f32 %v4441, %v4637
  %v4639 = vpop.f32.mrb[0].mxu0
  %v4640 = vpop.f32.mrb[0].mxu0
  %v4641 = vadd.f32 %v4441, %v4640
  %v4642 = vpop.f32.mrb[0].mxu0
  %4643 = vmatprep.mubr.bf16.mxu0 0
  %4644 = vmatmul.mubr.bf16.gmra.mrb[0].mxu0 %v4369
  %v4645 = vpop.f32.mrb[0].mxu0
  %v4646 = vadd.f32 %v4441, %v4645
  %v4647 = vpop.f32.mrb[0].mxu0
  %v4648 = vpop.f32.mrb[0].mxu0
  %v4649 = vadd.f32 %v4441, %v4648
  %v4650 = vpop.f32.mrb[0].mxu0
  %4651 = vmatprep.mubr.bf16.mxu0 0
  %4652 = vmatmul.mubr.bf16.gmra.mrb[0].mxu0 %v4370
  %v4653 = vpop.f32.mrb[0].mxu0
  %v4654 = vadd.f32 %v4441, %v4653
  %v4655 = vpop.f32.mrb[0].mxu0
  %v4656 = vpop.f32.mrb[0].mxu0
  %v4657 = vadd.f32 %v4441, %v4656
  %v4658 = vpop.f32.mrb[0].mxu0
  %4659 = vmatprep.mubr.bf16.mxu0 0
  %4660 = vmatmul.mubr.bf16.gmra.mrb[0].mxu0 %v4371
  %v4661 = vpop.f32.mrb[0].mxu0
  %v4662 = vadd.f32 %v4441, %v4661
  %v4663 = vpop.f32.mrb[0].mxu0
  %v4664 = vpop.f32.mrb[0].mxu0
  %v4665 = vadd.f32 %v4441, %v4664
  %v4666 = vpop.f32.mrb[0].mxu0
  %4667 = vmatprep.mubr.bf16.mxu0 0
  %4668 = vmatmul.mubr.bf16.gmra.mrb[0].mxu0 %v4372
  %v4669 = vpop.f32.mrb[0].mxu0
  %v4670 = vadd.f32 %v4441, %v4669
  %v4671 = vpop.f32.mrb[0].mxu0
  %v4672 = vpop.f32.mrb[0].mxu0
  %v4673 = vadd.f32 %v4441, %v4672
  %v4674 = vpop.f32.mrb[0].mxu0
  %4675 = vmatprep.mubr.bf16.mxu0 0
  %4676 = vmatmul.mubr.bf16.gmra.mrb[0].mxu0 %v4373
  %v4677 = vpop.f32.mrb[0].mxu0
  %v4678 = vadd.f32 %v4441, %v4677
  %v4679 = vpop.f32.mrb[0].mxu0
  %v4680 = vpop.f32.mrb[0].mxu0
  %v4681 = vadd.f32 %v4441, %v4680
  %v4682 = vpop.f32.mrb[0].mxu0
  %4683 = vmatprep.mubr.bf16.mxu0 0
  %4684 = vmatmul.mubr.bf16.gmra.mrb[0].mxu0 %v4374
  %v4685 = vpop.f32.mrb[0].mxu0
  %v4686 = vadd.f32 %v4441, %v4685
  %v4687 = vpop.f32.mrb[0].mxu0
  %v4688 = vpop.f32.mrb[0].mxu0
  %v4689 = vadd.f32 %v4441, %v4688
  %v4690 = vpop.f32.mrb[0].mxu0
  %4691 = vmatprep.mubr.bf16.mxu0 0
  %4692 = vmatmul.mubr.bf16.gmra.mrb[0].mxu0 %v4375
  %v4693 = vpop.f32.mrb[0].mxu0
  %v4694 = vadd.f32 %v4441, %v4693
  %v4695 = vpop.f32.mrb[0].mxu0
  %v4696 = vpop.f32.mrb[0].mxu0
  %v4697 = vadd.f32 %v4441, %v4696
  %v4698 = vpop.f32.mrb[0].mxu0
  %4699 = vmatprep.mubr.bf16.mxu0 0
  %4700 = vmatmul.mubr.bf16.gmra.mrb[0].mxu0 %v4376
  %v4701 = vpop.f32.mrb[0].mxu0
  %v4702 = vadd.f32 %v4441, %v4701
  %v4703 = vpop.f32.mrb[0].mxu0
  %v4704 = vpop.f32.mrb[0].mxu0
  %v4705 = vadd.f32 %v4441, %v4704
  %v4706 = vpop.f32.mrb[0].mxu0
  %4707 = vmatprep.mubr.bf16.mxu0 0
  %4708 = vmatmul.mubr.bf16.gmra.mrb[0].mxu0 %v4377
  %v4709 = vpop.f32.mrb[0].mxu0
  %v4710 = vadd.f32 %v4441, %v4709
  %v4711 = vpop.f32.mrb[0].mxu0
  %v4712 = vpop.f32.mrb[0].mxu0
  %v4713 = vadd.f32 %v4441, %v4712
  %v4714 = vpop.f32.mrb[0].mxu0
  %4715 = vmatprep.mubr.bf16.mxu0 0
  %4716 = vmatmul.mubr.bf16.gmra.mrb[0].mxu0 %v4378
  %v4717 = vpop.f32.mrb[0].mxu0
  %v4718 = vadd.f32 %v4441, %v4717
  %v4719 = vpop.f32.mrb[0].mxu0
  %v4720 = vpop.f32.mrb[0].mxu0
  %v4721 = vadd.f32 %v4441, %v4720
  %v4722 = vpop.f32.mrb[0].mxu0
  %4723 = vmatprep.mubr.bf16.mxu0 0
  %4724 = vmatmul.mubr.bf16.gmra.mrb[0].mxu0 %v4379
  %v4725 = vpop.f32.mrb[0].mxu0
  %v4726 = vadd.f32 %v4441, %v4725
  %v4727 = vpop.f32.mrb[0].mxu0
  %v4728 = vpop.f32.mrb[0].mxu0
  %v4729 = vadd.f32 %v4441, %v4728
  %v4730 = vpop.f32.mrb[0].mxu0
  %4731 = vmatprep.mubr.bf16.mxu0 0
  %4732 = vmatmul.mubr.bf16.gmra.mrb[0].mxu0 %v4380
  %v4733 = vpop.f32.mrb[0].mxu0
  %v4734 = vadd.f32 %v4441, %v4733
  %v4735 = vpop.f32.mrb[0].mxu0
  %v4736 = vpop.f32.mrb[0].mxu0
  %v4737 = vadd.f32 %v4441, %v4736
  %v4738 = vpop.f32.mrb[0].mxu0
  %4739 = vmatprep.mubr.bf16.mxu0 0
  %4740 = vmatmul.mubr.bf16.gmra.mrb[0].mxu0 %v4381
  %v4741 = vpop.f32.mrb[0].mxu0
  %v4742 = vadd.f32 %v4441, %v4741
  %v4743 = vpop.f32.mrb[0].mxu0
  %v4744 = vpop.f32.mrb[0].mxu0
  %v4745 = vadd.f32 %v4441, %v4744
  %v4746 = vpop.f32.mrb[0].mxu0
  %4747 = vmatprep.mubr.bf16.mxu0 0
  %4748 = vmatmul.mubr.bf16.gmra.mrb[0].mxu0 %v4382
  %v4749 = vpop.f32.mrb[0].mxu0
  %v4750 = vadd.f32 %v4441, %v4749
  %v4751 = vpop.f32.mrb[0].mxu0
  %v4752 = vpop.f32.mrb[0].mxu0
  %v4753 = vadd.f32 %v4441, %v4752
  %v4754 = vpop.f32.mrb[0].mxu0
  %4755 = vmatprep.mubr.bf16.mxu0 0
  %4756 = vmatmul.mubr.bf16.gmra.mrb[0].mxu0 %v4383
  %v4757 = vpop.f32.mrb[0].mxu0
  %v4758 = vadd.f32 %v4441, %v4757
  %v4759 = vpop.f32.mrb[0].mxu0
  %v4760 = vpop.f32.mrb[0].mxu0
  %v4761 = vadd.f32 %v4441, %v4760
  %v4762 = vpop.f32.mrb[0].mxu0
  %4763 = vmatprep.mubr.bf16.mxu0 0
  %4764 = vmatmul.mubr.bf16.gmra.mrb[0].mxu0 %v4384
  %v4765 = vpop.f32.mrb[0].mxu0
  %v4766 = vadd.f32 %v4441, %v4765
  %v4767 = vpop.f32.mrb[0].mxu0
  %v4768 = vpop.f32.mrb[0].mxu0
  %v4769 = vadd.f32 %v4441, %v4768
  %v4770 = vpop.f32.mrb[0].mxu0
  %4771 = vmatprep.mubr.bf16.mxu0 0
  %4772 = vmatmul.mubr.bf16.gmra.mrb[0].mxu0 %v4385
  %v4773 = vpop.f32.mrb[0].mxu0
  %v4774 = vadd.f32 %v4441, %v4773
  %v4775 = vpop.f32.mrb[0].mxu0
  %v4776 = vpop.f32.mrb[0].mxu0
  %v4777 = vadd.f32 %v4441, %v4776
  %v4778 = vpop.f32.mrb[0].mxu0
  %4779 = vmatprep.mubr.bf16.mxu0 0
  %4780 = vmatmul.mubr.bf16.gmra.mrb[0].mxu0 %v4386
  %v4781 = vpop.f32.mrb[0].mxu0
  %v4782 = vadd.f32 %v4441, %v4781
  %v4783 = vpop.f32.mrb[0].mxu0
  %v4784 = vpop.f32.mrb[0].mxu0
  %v4785 = vadd.f32 %v4441, %v4784
  %v4786 = vpop.f32.mrb[0].mxu0
  %4787 = vmatprep.mubr.bf16.mxu0 0
  %4788 = vmatmul.mubr.bf16.gmra.mrb[0].mxu0 %v4387
  %v4789 = vpop.f32.mrb[0].mxu0
  %v4790 = vadd.f32 %v4441, %v4789
  %v4791 = vpop.f32.mrb[0].mxu0
  %v4792 = vpop.f32.mrb[0].mxu0
  %v4793 = vadd.f32 %v4441, %v4792
  %v4794 = vpop.f32.mrb[0].mxu0
  %4795 = vmatprep.mubr.bf16.mxu0 0
  %4796 = vmatmul.mubr.bf16.gmra.mrb[0].mxu0 %v4388
  %v4797 = vpop.f32.mrb[0].mxu0
  %v4798 = vadd.f32 %v4441, %v4797
  %v4799 = vpop.f32.mrb[0].mxu0
  %v4800 = vpop.f32.mrb[0].mxu0
  %v4801 = vadd.f32 %v4441, %v4800
  %v4802 = vpop.f32.mrb[0].mxu0
  %4803 = vmatprep.mubr.bf16.mxu0 0
  %4804 = vmatmul.mubr.bf16.gmra.mrb[0].mxu0 %v4389
  %v4805 = vpop.f32.mrb[0].mxu0
  %v4806 = vadd.f32 %v4441, %v4805
  %v4807 = vpop.f32.mrb[0].mxu0
  %v4808 = vpop.f32.mrb[0].mxu0
  %v4809 = vadd.f32 %v4441, %v4808
  %v4810 = vpop.f32.mrb[0].mxu0
  %4811 = vmatprep.mubr.bf16.mxu0 0
  %4812 = vmatmul.mubr.bf16.gmra.mrb[0].mxu0 %v4390
  %v4813 = vpop.f32.mrb[0].mxu0
  %v4814 = vadd.f32 %v4441, %v4813
  %v4815 = vpop.f32.mrb[0].mxu0
  %v4816 = vpop.f32.mrb[0].mxu0
  %v4817 = vadd.f32 %v4441, %v4816
  %v4818 = vpop.f32.mrb[0].mxu0
  %4819 = vmatprep.mubr.bf16.mxu0 0
  %4820 = vmatmul.mubr.bf16.gmra.mrb[0].mxu0 %v4391
  %v4821 = vpop.f32.mrb[0].mxu0
  %v4822 = vadd.f32 %v4441, %v4821
  %v4823 = vpop.f32.mrb[0].mxu0
  %v4824 = vpop.f32.mrb[0].mxu0
  %v4825 = vadd.f32 %v4441, %v4824
  %v4826 = vpop.f32.mrb[0].mxu0
  %4827 = vmatprep.mubr.bf16.mxu0 0
  %4828 = vmatmul.mubr.bf16.gmra.mrb[0].mxu0 %v4392
  %v4829 = vpop.f32.mrb[0].mxu0
  %v4830 = vadd.f32 %v4441, %v4829
  %v4831 = vpop.f32.mrb[0].mxu0
  %v4832 = vpop.f32.mrb[0].mxu0
  %v4833 = vadd.f32 %v4441, %v4832
  %v4834 = vpop.f32.mrb[0].mxu0
  %4835 = vmatprep.mubr.bf16.mxu0 0
  %4836 = vmatmul.mubr.bf16.gmra.mrb[0].mxu0 %v4393
  %v4837 = vpop.f32.mrb[0].mxu0
  %v4838 = vadd.f32 %v4441, %v4837
  %v4839 = vpop.f32.mrb[0].mxu0
  %v4840 = vpop.f32.mrb[0].mxu0
  %v4841 = vadd.f32 %v4441, %v4840
  %v4842 = vpop.f32.mrb[0].mxu0
  %4843 = vmatprep.mubr.bf16.mxu0 0
  %4844 = vmatmul.mubr.bf16.gmra.mrb[0].mxu0 %v4394
  %v4845 = vpop.f32.mrb[0].mxu0
  %v4846 = vadd.f32 %v4441, %v4845
  %v4847 = vpop.f32.mrb[0].mxu0
  %v4848 = vpop.f32.mrb[0].mxu0
  %v4849 = vadd.f32 %v4441, %v4848
  %v4850 = vpop.f32.mrb[0].mxu0
  %4851 = vmatprep.mubr.bf16.mxu0 0
  %4852 = vmatmul.mubr.bf16.gmra.mrb[0].mxu0 %v4395
  %v4853 = vpop.f32.mrb[0].mxu0
  %v4854 = vadd.f32 %v4441, %v4853
  %v4855 = vpop.f32.mrb[0].mxu0
  %v4856 = vpop.f32.mrb[0].mxu0
  %v4857 = vadd.f32 %v4441, %v4856
  %v4858 = vpop.f32.mrb[0].mxu0
  %4859 = vmatprep.mubr.bf16.mxu0 0
  %4860 = vmatmul.mubr.bf16.gmra.mrb[0].mxu0 %v4396
  %v4861 = vpop.f32.mrb[0].mxu0
  %v4862 = vadd.f32 %v4441, %v4861
  %v4863 = vpop.f32.mrb[0].mxu0
  %v4864 = vpop.f32.mrb[0].mxu0
  %v4865 = vadd.f32 %v4441, %v4864
  %v4866 = vpop.f32.mrb[0].mxu0
  %4867 = vmatprep.mubr.bf16.mxu0 0
  %4868 = vmatmul.mubr.bf16.gmra.mrb[0].mxu0 %v4397
  %v4869 = vpop.f32.mrb[0].mxu0
  %v4870 = vadd.f32 %v4441, %v4869
  %v4871 = vpop.f32.mrb[0].mxu0
  %v4872 = vpop.f32.mrb[0].mxu0
  %v4873 = vadd.f32 %v4441, %v4872
  %v4874 = vpop.f32.mrb[0].mxu0
  %4875 = vmatprep.mubr.bf16.mxu0 0
  %4876 = vmatmul.mubr.bf16.gmra.mrb[0].mxu0 %v4398
  %v4877 = vpop.f32.mrb[0].mxu0
  %v4878 = vadd.f32 %v4441, %v4877
  %v4879 = vpop.f32.mrb[0].mxu0
  %v4880 = vpop.f32.mrb[0].mxu0
  %v4881 = vadd.f32 %v4441, %v4880
  %v4882 = vpop.f32.mrb[0].mxu0
  %4883 = vmatprep.mubr.bf16.mxu0 0
  %4884 = vmatmul.mubr.bf16.gmra.mrb[0].mxu0 %v4399
  %v4885 = vpop.f32.mrb[0].mxu0
  %v4886 = vadd.f32 %v4441, %v4885
  %v4887 = vpop.f32.mrb[0].mxu0
  %v4888 = vpop.f32.mrb[0].mxu0
  %v4889 = vadd.f32 %v4441, %v4888
  %v4890 = vpop.f32.mrb[0].mxu0
  %4891 = vmatprep.mubr.bf16.mxu0 0
  %4892 = vmatmul.mubr.bf16.gmra.mrb[0].mxu0 %v4400
  %v4893 = vpop.f32.mrb[0].mxu0
  %v4894 = vadd.f32 %v4441, %v4893
  %v4895 = vpop.f32.mrb[0].mxu0
  %v4896 = vpop.f32.mrb[0].mxu0
  %v4897 = vadd.f32 %v4441, %v4896
  %v4898 = vpop.f32.mrb[0].mxu0
  %4899 = vmatprep.mubr.bf16.mxu0 0
  %4900 = vmatmul.mubr.bf16.gmra.mrb[0].mxu0 %v4401
  %v4901 = vpop.f32.mrb[0].mxu0
  %v4902 = vadd.f32 %v4441, %v4901
  %v4903 = vpop.f32.mrb[0].mxu0
  %v4904 = vpop.f32.mrb[0].mxu0
  %v4905 = vadd.f32 %v4441, %v4904
  %v4906 = vpop.f32.mrb[0].mxu0
  %4907 = vmatprep.mubr.bf16.mxu0 0
  %4908 = vmatmul.mubr.bf16.gmra.mrb[0].mxu0 %v4402
  %v4909 = vpop.f32.mrb[0].mxu0
  %v4910 = vadd.f32 %v4441, %v4909
  %v4911 = vpop.f32.mrb[0].mxu0
  %v4912 = vpop.f32.mrb[0].mxu0
  %v4913 = vadd.f32 %v4441, %v4912
  %v4914 = vpop.f32.mrb[0].mxu0
  %4915 = vmatprep.mubr.bf16.mxu0 0
  %4916 = vmatmul.mubr.bf16.gmra.mrb[0].mxu0 %v4403
  %v4917 = vpop.f32.mrb[0].mxu0
  %v4918 = vadd.f32 %v4441, %v4917
  %v4919 = vpop.f32.mrb[0].mxu0
  %v4920 = vpop.f32.mrb[0].mxu0
  %v4921 = vadd.f32 %v4441, %v4920
  %v4922 = vpop.f32.mrb[0].mxu0
  %4923 = vmatprep.mubr.bf16.mxu0 0
  %4924 = vmatmul.mubr.bf16.gmra.mrb[0].mxu0 %v4404
  %v4925 = vpop.f32.mrb[0].mxu0
  %v4926 = vadd.f32 %v4441, %v4925
  %v4927 = vpop.f32.mrb[0].mxu0
  %v4928 = vpop.f32.mrb[0].mxu0
  %v4929 = vadd.f32 %v4441, %v4928
  %v4930 = vpop.f32.mrb[0].mxu0
  %4931 = vmatprep.mubr.bf16.mxu0 0
  %4932 = vmatmul.mubr.bf16.gmra.mrb[0].mxu0 %v4405
  %v4933 = vpop.f32.mrb[0].mxu0
  %v4934 = vadd.f32 %v4441, %v4933
  %v4935 = vpop.f32.mrb[0].mxu0
  %v4936 = vpop.f32.mrb[0].mxu0
  %v4937 = vadd.f32 %v4441, %v4936
  %v4938 = vpop.f32.mrb[0].mxu0
  %4939 = vmatprep.mubr.bf16.mxu0 0
  %4940 = vmatmul.mubr.bf16.gmra.mrb[0].mxu0 %v4406
  %v4941 = vpop.f32.mrb[0].mxu0
  %v4942 = vadd.f32 %v4441, %v4941
  %v4943 = vpop.f32.mrb[0].mxu0
  %v4944 = vpop.f32.mrb[0].mxu0
  %v4945 = vadd.f32 %v4441, %v4944
  %v4946 = vpop.f32.mrb[0].mxu0
  %4947 = vmatprep.mubr.bf16.mxu0 0
  %4948 = vmatmul.mubr.bf16.gmra.mrb[0].mxu0 %v4407
  %v4949 = vpop.f32.mrb[0].mxu0
  %v4950 = vadd.f32 %v4441, %v4949
  %v4951 = vpop.f32.mrb[0].mxu0
  %v4952 = vpop.f32.mrb[0].mxu0
  %v4953 = vadd.f32 %v4441, %v4952
  %v4954 = vpop.f32.mrb[0].mxu0
  %4955 = vmatprep.mubr.bf16.mxu0 0
  %4956 = vmatmul.mubr.bf16.gmra.mrb[0].mxu0 %v4408
  %v4957 = vpop.f32.mrb[0].mxu0
  %v4958 = vadd.f32 %v4441, %v4957
  %v4959 = vpop.f32.mrb[0].mxu0
  %v4960 = vpop.f32.mrb[0].mxu0
  %v4961 = vadd.f32 %v4441, %v4960
  %v4962 = vpop.f32.mrb[0].mxu0
  %4963 = vmatprep.mubr.bf16.mxu0 0
  %4964 = vmatmul.mubr.bf16.gmra.mrb[0].mxu0 %v4409
  %v4965 = vpop.f32.mrb[0].mxu0
  %v4966 = vadd.f32 %v4441, %v4965
  %v4967 = vpop.f32.mrb[0].mxu0
  %v4968 = vpop.f32.mrb[0].mxu0
  %v4969 = vadd.f32 %v4441, %v4968
  %v4970 = vpop.f32.mrb[0].mxu0
  %4971 = vmatprep.mubr.bf16.mxu0 0
  %4972 = vmatmul.mubr.bf16.gmra.mrb[0].mxu0 %v4410
  %v4973 = vpop.f32.mrb[0].mxu0
  %v4974 = vadd.f32 %v4441, %v4973
  %v4975 = vpop.f32.mrb[0].mxu0
  %v4976 = vpop.f32.mrb[0].mxu0
  %v4977 = vadd.f32 %v4441, %v4976
  %v4978 = vpop.f32.mrb[0].mxu0
  %4979 = vmatprep.mubr.bf16.mxu0 0
  %4980 = vmatmul.mubr.bf16.gmra.mrb[0].mxu0 %v4411
  %v4981 = vpop.f32.mrb[0].mxu0
  %v4982 = vadd.f32 %v4441, %v4981
  %v4983 = vpop.f32.mrb[0].mxu0
  %v4984 = vpop.f32.mrb[0].mxu0
  %v4985 = vadd.f32 %v4441, %v4984
  %v4986 = vpop.f32.mrb[0].mxu0
  %4987 = vmatprep.mubr.bf16.mxu0 0
  %4988 = vmatmul.mubr.bf16.gmra.mrb[0].mxu0 %v4412
  %v4989 = vpop.f32.mrb[0].mxu0
  %v4990 = vadd.f32 %v4441, %v4989
  %v4991 = vpop.f32.mrb[0].mxu0
  %v4992 = vpop.f32.mrb[0].mxu0
  %v4993 = vadd.f32 %v4441, %v4992
  %v4994 = vpop.f32.mrb[0].mxu0
  %4995 = vmatprep.mubr.bf16.mxu0 0
  %4996 = vmatmul.mubr.bf16.gmra.mrb[0].mxu0 %v4413
  %v4997 = vpop.f32.mrb[0].mxu0
  %v4998 = vadd.f32 %v4441, %v4997
  %v4999 = vpop.f32.mrb[0].mxu0
  %v5000 = vpop.f32.mrb[0].mxu0
  %v5001 = vadd.f32 %v4441, %v5000
  %v5002 = vpop.f32.mrb[0].mxu0
  %5003 = vmatprep.mubr.bf16.mxu0 0
  %5004 = vmatmul.mubr.bf16.gmra.mrb[0].mxu0 %v4414
  %v5005 = vpop.f32.mrb[0].mxu0
  %v5006 = vadd.f32 %v4441, %v5005
  %v5007 = vpop.f32.mrb[0].mxu0
  %v5008 = vpop.f32.mrb[0].mxu0
  %v5009 = vadd.f32 %v4441, %v5008
  %v5010 = vpop.f32.mrb[0].mxu0
  %5011 = vmatprep.mubr.bf16.mxu0 0
  %5012 = vmatmul.mubr.bf16.gmra.mrb[0].mxu0 %v4415
  %v5013 = vpop.f32.mrb[0].mxu0
  %v5014 = vadd.f32 %v4441, %v5013
  %v5015 = vpop.f32.mrb[0].mxu0
  %v5016 = vpop.f32.mrb[0].mxu0
  %v5017 = vadd.f32 %v4441, %v5016
  %v5018 = vpop.f32.mrb[0].mxu0
  %5019 = vmatprep.mubr.bf16.mxu0 0
  %5020 = vmatmul.mubr.bf16.gmra.mrb[0].mxu0 %v4416
  %v5021 = vpop.f32.mrb[0].mxu0
  %v5022 = vadd.f32 %v4441, %v5021
  %v5023 = vpop.f32.mrb[0].mxu0
  %v5024 = vpop.f32.mrb[0].mxu0
  %v5025 = vadd.f32 %v4441, %v5024
  %v5026 = vpop.f32.mrb[0].mxu0
  %5027 = vmatprep.mubr.bf16.mxu0 0
  %5028 = vmatmul.mubr.bf16.gmra.mrb[0].mxu0 %v4417
  %v5029 = vpop.f32.mrb[0].mxu0
  %v5030 = vadd.f32 %v4441, %v5029
  %v5031 = vpop.f32.mrb[0].mxu0
  %v5032 = vpop.f32.mrb[0].mxu0
  %v5033 = vadd.f32 %v4441, %v5032
  %v5034 = vpop.f32.mrb[0].mxu0
  %5035 = vdwg.mxu0
  %v5036 = vmax.f32 %v4526, 0.0
  %v5037 = vmax.f32 %v4529, 0.0
  %v5038 = vmax.f32 %v4534, 0.0
  %v5039 = vmax.f32 %v4537, 0.0
  %v5040 = vmax.f32 %v4542, 0.0
  %v5041 = vmax.f32 %v4545, 0.0
  %v5042 = vmax.f32 %v4550, 0.0
  %v5043 = vmax.f32 %v4553, 0.0
  %v5044 = vmax.f32 %v4558, 0.0
  %v5045 = vmax.f32 %v4561, 0.0
  %v5046 = vmax.f32 %v4566, 0.0
  %v5047 = vmax.f32 %v4569, 0.0
  %v5048 = vmax.f32 %v4574, 0.0
  %v5049 = vmax.f32 %v4577, 0.0
  %v5050 = vmax.f32 %v4582, 0.0
  %v5051 = vmax.f32 %v4585, 0.0
  %v5052 = vmax.f32 %v4590, 0.0
  %v5053 = vmax.f32 %v4593, 0.0
  %v5054 = vmax.f32 %v4598, 0.0
  %v5055 = vmax.f32 %v4601, 0.0
  %v5056 = vmax.f32 %v4606, 0.0
  %v5057 = vmax.f32 %v4609, 0.0
  %v5058 = vmax.f32 %v4614, 0.0
  %v5059 = vmax.f32 %v4617, 0.0
  %v5060 = vmax.f32 %v4622, 0.0
  %v5061 = vmax.f32 %v4625, 0.0
  %v5062 = vmax.f32 %v4630, 0.0
  %v5063 = vmax.f32 %v4633, 0.0
  %v5064 = vmax.f32 %v4638, 0.0
  %v5065 = vmax.f32 %v4641, 0.0
  %v5066 = vmax.f32 %v4646, 0.0
  %v5067 = vmax.f32 %v4649, 0.0
  %v5068 = vmax.f32 %v4654, 0.0
  %v5069 = vmax.f32 %v4657, 0.0
  %v5070 = vmax.f32 %v4662, 0.0
  %v5071 = vmax.f32 %v4665, 0.0
  %v5072 = vmax.f32 %v4670, 0.0
  %v5073 = vmax.f32 %v4673, 0.0
  %v5074 = vmax.f32 %v4678, 0.0
  %v5075 = vmax.f32 %v4681, 0.0
  %v5076 = vmax.f32 %v4686, 0.0
  %v5077 = vmax.f32 %v4689, 0.0
  %v5078 = vmax.f32 %v4694, 0.0
  %v5079 = vmax.f32 %v4697, 0.0
  %v5080 = vmax.f32 %v4702, 0.0
  %v5081 = vmax.f32 %v4705, 0.0
  %v5082 = vmax.f32 %v4710, 0.0
  %v5083 = vmax.f32 %v4713, 0.0
  %v5084 = vmax.f32 %v4718, 0.0
  %v5085 = vmax.f32 %v4721, 0.0
  %v5086 = vmax.f32 %v4726, 0.0
  %v5087 = vmax.f32 %v4729, 0.0
  %v5088 = vmax.f32 %v4734, 0.0
  %v5089 = vmax.f32 %v4737, 0.0
  %v5090 = vmax.f32 %v4742, 0.0
  %v5091 = vmax.f32 %v4745, 0.0
  %v5092 = vmax.f32 %v4750, 0.0
  %v5093 = vmax.f32 %v4753, 0.0
  %v5094 = vmax.f32 %v4758, 0.0
  %v5095 = vmax.f32 %v4761, 0.0
  %v5096 = vmax.f32 %v4766, 0.0
  %v5097 = vmax.f32 %v4769, 0.0
  %v5098 = vmax.f32 %v4774, 0.0
  %v5099 = vmax.f32 %v4777, 0.0
  %v5100 = vmax.f32 %v4782, 0.0
  %v5101 = vmax.f32 %v4785, 0.0
  %v5102 = vmax.f32 %v4790, 0.0
  %v5103 = vmax.f32 %v4793, 0.0
  %v5104 = vmax.f32 %v4798, 0.0
  %v5105 = vmax.f32 %v4801, 0.0
  %v5106 = vmax.f32 %v4806, 0.0
  %v5107 = vmax.f32 %v4809, 0.0
  %v5108 = vmax.f32 %v4814, 0.0
  %v5109 = vmax.f32 %v4817, 0.0
  %v5110 = vmax.f32 %v4822, 0.0
  %v5111 = vmax.f32 %v4825, 0.0
  %v5112 = vmax.f32 %v4830, 0.0
  %v5113 = vmax.f32 %v4833, 0.0
  %v5114 = vmax.f32 %v4838, 0.0
  %v5115 = vmax.f32 %v4841, 0.0
  %v5116 = vmax.f32 %v4846, 0.0
  %v5117 = vmax.f32 %v4849, 0.0
  %v5118 = vmax.f32 %v4854, 0.0
  %v5119 = vmax.f32 %v4857, 0.0
  %v5120 = vmax.f32 %v4862, 0.0
  %v5121 = vmax.f32 %v4865, 0.0
  %v5122 = vmax.f32 %v4870, 0.0
  %v5123 = vmax.f32 %v4873, 0.0
  %v5124 = vmax.f32 %v4878, 0.0
  %v5125 = vmax.f32 %v4881, 0.0
  %v5126 = vmax.f32 %v4886, 0.0
  %v5127 = vmax.f32 %v4889, 0.0
  %v5128 = vmax.f32 %v4894, 0.0
  %v5129 = vmax.f32 %v4897, 0.0
  %v5130 = vmax.f32 %v4902, 0.0
  %v5131 = vmax.f32 %v4905, 0.0
  %v5132 = vmax.f32 %v4910, 0.0
  %v5133 = vmax.f32 %v4913, 0.0
  %v5134 = vmax.f32 %v4918, 0.0
  %v5135 = vmax.f32 %v4921, 0.0
  %v5136 = vmax.f32 %v4926, 0.0
  %v5137 = vmax.f32 %v4929, 0.0
  %v5138 = vmax.f32 %v4934, 0.0
  %v5139 = vmax.f32 %v4937, 0.0
  %v5140 = vmax.f32 %v4942, 0.0
  %v5141 = vmax.f32 %v4945, 0.0
  %v5142 = vmax.f32 %v4950, 0.0
  %v5143 = vmax.f32 %v4953, 0.0
  %v5144 = vmax.f32 %v4958, 0.0
  %v5145 = vmax.f32 %v4961, 0.0
  %v5146 = vmax.f32 %v4966, 0.0
  %v5147 = vmax.f32 %v4969, 0.0
  %v5148 = vmax.f32 %v4974, 0.0
  %v5149 = vmax.f32 %v4977, 0.0
  %v5150 = vmax.f32 %v4982, 0.0
  %v5151 = vmax.f32 %v4985, 0.0
  %v5152 = vmax.f32 %v4990, 0.0
  %v5153 = vmax.f32 %v4993, 0.0
  %v5154 = vmax.f32 %v4998, 0.0
  %v5155 = vmax.f32 %v5001, 0.0
  %v5156 = vmax.f32 %v5006, 0.0
  %v5157 = vmax.f32 %v5009, 0.0
  %v5158 = vmax.f32 %v5014, 0.0
  %v5159 = vmax.f32 %v5017, 0.0
  %v5160 = vmax.f32 %v5022, 0.0
  %v5161 = vmax.f32 %v5025, 0.0
  %v5162 = vmax.f32 %v5030, 0.0
  %v5163 = vmax.f32 %v5033, 0.0
  %v5164 = vpack.c.bf16 %v5037, %v5036
  %v5165 = vpack.c.bf16 %v5039, %v5038
  %v5166 = vpack.c.bf16 %v5041, %v5040
  %v5167 = vpack.c.bf16 %v5043, %v5042
  %v5168 = vpack.c.bf16 %v5045, %v5044
  %v5169 = vpack.c.bf16 %v5047, %v5046
  %v5170 = vpack.c.bf16 %v5049, %v5048
  %v5171 = vpack.c.bf16 %v5051, %v5050
  %v5172 = vpack.c.bf16 %v5053, %v5052
  %v5173 = vpack.c.bf16 %v5055, %v5054
  %v5174 = vpack.c.bf16 %v5057, %v5056
  %v5175 = vpack.c.bf16 %v5059, %v5058
  %v5176 = vpack.c.bf16 %v5061, %v5060
  %v5177 = vpack.c.bf16 %v5063, %v5062
  %v5178 = vpack.c.bf16 %v5065, %v5064
  %v5179 = vpack.c.bf16 %v5067, %v5066
  %v5180 = vpack.c.bf16 %v5069, %v5068
  %v5181 = vpack.c.bf16 %v5071, %v5070
  %v5182 = vpack.c.bf16 %v5073, %v5072
  %v5183 = vpack.c.bf16 %v5075, %v5074
  %v5184 = vpack.c.bf16 %v5077, %v5076
  %v5185 = vpack.c.bf16 %v5079, %v5078
  %v5186 = vpack.c.bf16 %v5081, %v5080
  %v5187 = vpack.c.bf16 %v5083, %v5082
  %v5188 = vpack.c.bf16 %v5085, %v5084
  %v5189 = vpack.c.bf16 %v5087, %v5086
  %v5190 = vpack.c.bf16 %v5089, %v5088
  %v5191 = vpack.c.bf16 %v5091, %v5090
  %v5192 = vpack.c.bf16 %v5093, %v5092
  %v5193 = vpack.c.bf16 %v5095, %v5094
  %v5194 = vpack.c.bf16 %v5097, %v5096
  %v5195 = vpack.c.bf16 %v5099, %v5098
  %v5196 = vpack.c.bf16 %v5101, %v5100
  %v5197 = vpack.c.bf16 %v5103, %v5102
  %v5198 = vpack.c.bf16 %v5105, %v5104
  %v5199 = vpack.c.bf16 %v5107, %v5106
  %v5200 = vpack.c.bf16 %v5109, %v5108
  %v5201 = vpack.c.bf16 %v5111, %v5110
  %v5202 = vpack.c.bf16 %v5113, %v5112
  %v5203 = vpack.c.bf16 %v5115, %v5114
  %v5204 = vpack.c.bf16 %v5117, %v5116
  %v5205 = vpack.c.bf16 %v5119, %v5118
  %v5206 = vpack.c.bf16 %v5121, %v5120
  %v5207 = vpack.c.bf16 %v5123, %v5122
  %v5208 = vpack.c.bf16 %v5125, %v5124
  %v5209 = vpack.c.bf16 %v5127, %v5126
  %v5210 = vpack.c.bf16 %v5129, %v5128
  %v5211 = vpack.c.bf16 %v5131, %v5130
  %v5212 = vpack.c.bf16 %v5133, %v5132
  %v5213 = vpack.c.bf16 %v5135, %v5134
  %v5214 = vpack.c.bf16 %v5137, %v5136
  %v5215 = vpack.c.bf16 %v5139, %v5138
  %v5216 = vpack.c.bf16 %v5141, %v5140
  %v5217 = vpack.c.bf16 %v5143, %v5142
  %v5218 = vpack.c.bf16 %v5145, %v5144
  %v5219 = vpack.c.bf16 %v5147, %v5146
  %v5220 = vpack.c.bf16 %v5149, %v5148
  %v5221 = vpack.c.bf16 %v5151, %v5150
  %v5222 = vpack.c.bf16 %v5153, %v5152
  %v5223 = vpack.c.bf16 %v5155, %v5154
  %v5224 = vpack.c.bf16 %v5157, %v5156
  %v5225 = vpack.c.bf16 %v5159, %v5158
  %v5226 = vpack.c.bf16 %v5161, %v5160
  %v5227 = vpack.c.bf16 %v5163, %v5162
  %s5228 = scalar_lea.vmem %s3, 192
  %v5229 = vld [vmem:[%s5228] sm:$0xf]
  %v5230 = vld [vmem:[%s5228 + $0x4] sm:$0xf]
  %v5231 = vld [vmem:[%s5228 + $0x8] sm:$0xf]
  %v5232 = vld [vmem:[%s5228 + $0xc] sm:$0xf]
  %v5233 = vld [vmem:[%s5228 + $0x10] sm:$0xf]
  %v5234 = vld [vmem:[%s5228 + $0x14] sm:$0xf]
  %v5235 = vld [vmem:[%s5228 + $0x18] sm:$0xf]
  %v5236 = vld [vmem:[%s5228 + $0x1c] sm:$0xf]
  %v5237 = vld [vmem:[%s5228 + $0x20] sm:$0xf]
  %v5238 = vld [vmem:[%s5228 + $0x24] sm:$0xf]
  %v5239 = vld [vmem:[%s5228 + $0x28] sm:$0xf]
  %v5240 = vld [vmem:[%s5228 + $0x2c] sm:$0xf]
  %v5241 = vld [vmem:[%s5228 + $0x30] sm:$0xf]
  %v5242 = vld [vmem:[%s5228 + $0x34] sm:$0xf]
  %v5243 = vld [vmem:[%s5228 + $0x38] sm:$0xf]
  %v5244 = vld [vmem:[%s5228 + $0x3c] sm:$0xf]
  %s5245 = scalar_lea.vmem %s4, 3
  %v5246 = vld [vmem:[%s5245] sm:$0x1]
  %v5248 = vlaneseq
  %v5249 = vshrl.u32 %v5248, 7
  %v5250 = vsub.s32 0, %v5249
  %v5251 = vrot.slane %v5246, %v5250
  %v5269 = vunpack.c.l.b16 %v5229
  %v5270 = vunpack.c.l.b16 %v5230
  %v5271 = vunpack.c.l.b16 %v5231
  %v5272 = vunpack.c.l.b16 %v5232
  %v5273 = vunpack.c.l.b16 %v5233
  %v5274 = vunpack.c.l.b16 %v5234
  %v5275 = vunpack.c.l.b16 %v5235
  %v5276 = vunpack.c.l.b16 %v5236
  %v5277 = vunpack.c.l.b16 %v5237
  %v5278 = vunpack.c.l.b16 %v5238
  %v5279 = vunpack.c.l.b16 %v5239
  %v5280 = vunpack.c.l.b16 %v5240
  %v5281 = vunpack.c.l.b16 %v5241
  %v5282 = vunpack.c.l.b16 %v5242
  %v5283 = vunpack.c.l.b16 %v5243
  %v5284 = vunpack.c.l.b16 %v5244
  %v5285 = vpack.c.b16 %v5270, %v5269
  %v5286 = vpack.c.b16 %v5272, %v5271
  %v5287 = vpack.c.b16 %v5274, %v5273
  %v5288 = vpack.c.b16 %v5276, %v5275
  %v5289 = vpack.c.b16 %v5278, %v5277
  %v5290 = vpack.c.b16 %v5280, %v5279
  %v5291 = vpack.c.b16 %v5282, %v5281
  %v5292 = vpack.c.b16 %v5284, %v5283
  %5301 = vmatprep.subr.bf16.mxu0 0
  %5302 = vmatpush1.bf16.msra.mxu0 %v5285
  %5303 = vmatprep.subr.bf16.mxu0 0
  %5304 = vmatpush1.bf16.msra.mxu0 %v5286
  %5305 = vmatprep.subr.bf16.mxu0 0
  %5306 = vmatpush1.bf16.msra.mxu0 %v5287
  %5307 = vmatprep.subr.bf16.mxu0 0
  %5308 = vmatpush1.bf16.msra.mxu0 %v5288
  %5309 = vmatprep.subr.bf16.mxu0 0
  %5310 = vmatpush1.bf16.msra.mxu0 %v5289
  %5311 = vmatprep.subr.bf16.mxu0 0
  %5312 = vmatpush1.bf16.msra.mxu0 %v5290
  %5313 = vmatprep.subr.bf16.mxu0 0
  %5314 = vmatpush1.bf16.msra.mxu0 %v5291
  %5315 = vmatprep.subr.bf16.mxu0 0
  %5316 = vmatpush1.bf16.msra.mxu0 %v5292
  %5317 = vmatprep.subr.bf16.mxu0 0
  %5318 = vmatpush1.bf16.msra.mxu0 0
  %5319 = vmatprep.subr.bf16.mxu0 0
  %5320 = vmatpush1.bf16.msra.mxu0 0
  %5321 = vmatprep.subr.bf16.mxu0 0
  %5322 = vmatpush1.bf16.msra.mxu0 0
  %5323 = vmatprep.subr.bf16.mxu0 0
  %5324 = vmatpush1.bf16.msra.mxu0 0
  %5325 = vmatprep.subr.bf16.mxu0 0
  %5326 = vmatpush1.bf16.msra.mxu0 0
  %5327 = vmatprep.subr.bf16.mxu0 0
  %5328 = vmatpush1.bf16.msra.mxu0 0
  %5329 = vmatprep.subr.bf16.mxu0 0
  %5330 = vmatpush1.bf16.msra.mxu0 0
  %5331 = vmatprep.subr.bf16.mxu0 0
  %5332 = vmatpush1.bf16.msra.mxu0 0
  %5333 = vmatprep.mubr.bf16.mxu0 0
  %5334 = vmatmul.mubr.bf16.gmra.mrb[0].mxu0 %v5164
  %v5335 = vpop.f32.mrb[0].mxu0
  %v5336 = vadd.f32 %v5251, %v5335
  %v5337 = vpop.f32.mrb[0].mxu0
  %v5338 = vpop.f32.mrb[0].mxu0
  %v5339 = vadd.f32 %v5251, %v5338
  %v5340 = vpop.f32.mrb[0].mxu0
  %5341 = vmatprep.mubr.bf16.mxu0 0
  %5342 = vmatmul.mubr.bf16.gmra.mrb[0].mxu0 %v5165
  %v5343 = vpop.f32.mrb[0].mxu0
  %v5344 = vadd.f32 %v5251, %v5343
  %v5345 = vpop.f32.mrb[0].mxu0
  %v5346 = vpop.f32.mrb[0].mxu0
  %v5347 = vadd.f32 %v5251, %v5346
  %v5348 = vpop.f32.mrb[0].mxu0
  %5349 = vmatprep.mubr.bf16.mxu0 0
  %5350 = vmatmul.mubr.bf16.gmra.mrb[0].mxu0 %v5166
  %v5351 = vpop.f32.mrb[0].mxu0
  %v5352 = vadd.f32 %v5251, %v5351
  %v5353 = vpop.f32.mrb[0].mxu0
  %v5354 = vpop.f32.mrb[0].mxu0
  %v5355 = vadd.f32 %v5251, %v5354
  %v5356 = vpop.f32.mrb[0].mxu0
  %5357 = vmatprep.mubr.bf16.mxu0 0
  %5358 = vmatmul.mubr.bf16.gmra.mrb[0].mxu0 %v5167
  %v5359 = vpop.f32.mrb[0].mxu0
  %v5360 = vadd.f32 %v5251, %v5359
  %v5361 = vpop.f32.mrb[0].mxu0
  %v5362 = vpop.f32.mrb[0].mxu0
  %v5363 = vadd.f32 %v5251, %v5362
  %v5364 = vpop.f32.mrb[0].mxu0
  %5365 = vmatprep.mubr.bf16.mxu0 0
  %5366 = vmatmul.mubr.bf16.gmra.mrb[0].mxu0 %v5168
  %v5367 = vpop.f32.mrb[0].mxu0
  %v5368 = vadd.f32 %v5251, %v5367
  %v5369 = vpop.f32.mrb[0].mxu0
  %v5370 = vpop.f32.mrb[0].mxu0
  %v5371 = vadd.f32 %v5251, %v5370
  %v5372 = vpop.f32.mrb[0].mxu0
  %5373 = vmatprep.mubr.bf16.mxu0 0
  %5374 = vmatmul.mubr.bf16.gmra.mrb[0].mxu0 %v5169
  %v5375 = vpop.f32.mrb[0].mxu0
  %v5376 = vadd.f32 %v5251, %v5375
  %v5377 = vpop.f32.mrb[0].mxu0
  %v5378 = vpop.f32.mrb[0].mxu0
  %v5379 = vadd.f32 %v5251, %v5378
  %v5380 = vpop.f32.mrb[0].mxu0
  %5381 = vmatprep.mubr.bf16.mxu0 0
  %5382 = vmatmul.mubr.bf16.gmra.mrb[0].mxu0 %v5170
  %v5383 = vpop.f32.mrb[0].mxu0
  %v5384 = vadd.f32 %v5251, %v5383
  %v5385 = vpop.f32.mrb[0].mxu0
  %v5386 = vpop.f32.mrb[0].mxu0
  %v5387 = vadd.f32 %v5251, %v5386
  %v5388 = vpop.f32.mrb[0].mxu0
  %5389 = vmatprep.mubr.bf16.mxu0 0
  %5390 = vmatmul.mubr.bf16.gmra.mrb[0].mxu0 %v5171
  %v5391 = vpop.f32.mrb[0].mxu0
  %v5392 = vadd.f32 %v5251, %v5391
  %v5393 = vpop.f32.mrb[0].mxu0
  %v5394 = vpop.f32.mrb[0].mxu0
  %v5395 = vadd.f32 %v5251, %v5394
  %v5396 = vpop.f32.mrb[0].mxu0
  %5397 = vmatprep.mubr.bf16.mxu0 0
  %5398 = vmatmul.mubr.bf16.gmra.mrb[0].mxu0 %v5172
  %v5399 = vpop.f32.mrb[0].mxu0
  %v5400 = vadd.f32 %v5251, %v5399
  %v5401 = vpop.f32.mrb[0].mxu0
  %v5402 = vpop.f32.mrb[0].mxu0
  %v5403 = vadd.f32 %v5251, %v5402
  %v5404 = vpop.f32.mrb[0].mxu0
  %5405 = vmatprep.mubr.bf16.mxu0 0
  %5406 = vmatmul.mubr.bf16.gmra.mrb[0].mxu0 %v5173
  %v5407 = vpop.f32.mrb[0].mxu0
  %v5408 = vadd.f32 %v5251, %v5407
  %v5409 = vpop.f32.mrb[0].mxu0
  %v5410 = vpop.f32.mrb[0].mxu0
  %v5411 = vadd.f32 %v5251, %v5410
  %v5412 = vpop.f32.mrb[0].mxu0
  %5413 = vmatprep.mubr.bf16.mxu0 0
  %5414 = vmatmul.mubr.bf16.gmra.mrb[0].mxu0 %v5174
  %v5415 = vpop.f32.mrb[0].mxu0
  %v5416 = vadd.f32 %v5251, %v5415
  %v5417 = vpop.f32.mrb[0].mxu0
  %v5418 = vpop.f32.mrb[0].mxu0
  %v5419 = vadd.f32 %v5251, %v5418
  %v5420 = vpop.f32.mrb[0].mxu0
  %5421 = vmatprep.mubr.bf16.mxu0 0
  %5422 = vmatmul.mubr.bf16.gmra.mrb[0].mxu0 %v5175
  %v5423 = vpop.f32.mrb[0].mxu0
  %v5424 = vadd.f32 %v5251, %v5423
  %v5425 = vpop.f32.mrb[0].mxu0
  %v5426 = vpop.f32.mrb[0].mxu0
  %v5427 = vadd.f32 %v5251, %v5426
  %v5428 = vpop.f32.mrb[0].mxu0
  %5429 = vmatprep.mubr.bf16.mxu0 0
  %5430 = vmatmul.mubr.bf16.gmra.mrb[0].mxu0 %v5176
  %v5431 = vpop.f32.mrb[0].mxu0
  %v5432 = vadd.f32 %v5251, %v5431
  %v5433 = vpop.f32.mrb[0].mxu0
  %v5434 = vpop.f32.mrb[0].mxu0
  %v5435 = vadd.f32 %v5251, %v5434
  %v5436 = vpop.f32.mrb[0].mxu0
  %5437 = vmatprep.mubr.bf16.mxu0 0
  %5438 = vmatmul.mubr.bf16.gmra.mrb[0].mxu0 %v5177
  %v5439 = vpop.f32.mrb[0].mxu0
  %v5440 = vadd.f32 %v5251, %v5439
  %v5441 = vpop.f32.mrb[0].mxu0
  %v5442 = vpop.f32.mrb[0].mxu0
  %v5443 = vadd.f32 %v5251, %v5442
  %v5444 = vpop.f32.mrb[0].mxu0
  %5445 = vmatprep.mubr.bf16.mxu0 0
  %5446 = vmatmul.mubr.bf16.gmra.mrb[0].mxu0 %v5178
  %v5447 = vpop.f32.mrb[0].mxu0
  %v5448 = vadd.f32 %v5251, %v5447
  %v5449 = vpop.f32.mrb[0].mxu0
  %v5450 = vpop.f32.mrb[0].mxu0
  %v5451 = vadd.f32 %v5251, %v5450
  %v5452 = vpop.f32.mrb[0].mxu0
  %5453 = vmatprep.mubr.bf16.mxu0 0
  %5454 = vmatmul.mubr.bf16.gmra.mrb[0].mxu0 %v5179
  %v5455 = vpop.f32.mrb[0].mxu0
  %v5456 = vadd.f32 %v5251, %v5455
  %v5457 = vpop.f32.mrb[0].mxu0
  %v5458 = vpop.f32.mrb[0].mxu0
  %v5459 = vadd.f32 %v5251, %v5458
  %v5460 = vpop.f32.mrb[0].mxu0
  %5461 = vmatprep.mubr.bf16.mxu0 0
  %5462 = vmatmul.mubr.bf16.gmra.mrb[0].mxu0 %v5180
  %v5463 = vpop.f32.mrb[0].mxu0
  %v5464 = vadd.f32 %v5251, %v5463
  %v5465 = vpop.f32.mrb[0].mxu0
  %v5466 = vpop.f32.mrb[0].mxu0
  %v5467 = vadd.f32 %v5251, %v5466
  %v5468 = vpop.f32.mrb[0].mxu0
  %5469 = vmatprep.mubr.bf16.mxu0 0
  %5470 = vmatmul.mubr.bf16.gmra.mrb[0].mxu0 %v5181
  %v5471 = vpop.f32.mrb[0].mxu0
  %v5472 = vadd.f32 %v5251, %v5471
  %v5473 = vpop.f32.mrb[0].mxu0
  %v5474 = vpop.f32.mrb[0].mxu0
  %v5475 = vadd.f32 %v5251, %v5474
  %v5476 = vpop.f32.mrb[0].mxu0
  %5477 = vmatprep.mubr.bf16.mxu0 0
  %5478 = vmatmul.mubr.bf16.gmra.mrb[0].mxu0 %v5182
  %v5479 = vpop.f32.mrb[0].mxu0
  %v5480 = vadd.f32 %v5251, %v5479
  %v5481 = vpop.f32.mrb[0].mxu0
  %v5482 = vpop.f32.mrb[0].mxu0
  %v5483 = vadd.f32 %v5251, %v5482
  %v5484 = vpop.f32.mrb[0].mxu0
  %5485 = vmatprep.mubr.bf16.mxu0 0
  %5486 = vmatmul.mubr.bf16.gmra.mrb[0].mxu0 %v5183
  %v5487 = vpop.f32.mrb[0].mxu0
  %v5488 = vadd.f32 %v5251, %v5487
  %v5489 = vpop.f32.mrb[0].mxu0
  %v5490 = vpop.f32.mrb[0].mxu0
  %v5491 = vadd.f32 %v5251, %v5490
  %v5492 = vpop.f32.mrb[0].mxu0
  %5493 = vmatprep.mubr.bf16.mxu0 0
  %5494 = vmatmul.mubr.bf16.gmra.mrb[0].mxu0 %v5184
  %v5495 = vpop.f32.mrb[0].mxu0
  %v5496 = vadd.f32 %v5251, %v5495
  %v5497 = vpop.f32.mrb[0].mxu0
  %v5498 = vpop.f32.mrb[0].mxu0
  %v5499 = vadd.f32 %v5251, %v5498
  %v5500 = vpop.f32.mrb[0].mxu0
  %5501 = vmatprep.mubr.bf16.mxu0 0
  %5502 = vmatmul.mubr.bf16.gmra.mrb[0].mxu0 %v5185
  %v5503 = vpop.f32.mrb[0].mxu0
  %v5504 = vadd.f32 %v5251, %v5503
  %v5505 = vpop.f32.mrb[0].mxu0
  %v5506 = vpop.f32.mrb[0].mxu0
  %v5507 = vadd.f32 %v5251, %v5506
  %v5508 = vpop.f32.mrb[0].mxu0
  %5509 = vmatprep.mubr.bf16.mxu0 0
  %5510 = vmatmul.mubr.bf16.gmra.mrb[0].mxu0 %v5186
  %v5511 = vpop.f32.mrb[0].mxu0
  %v5512 = vadd.f32 %v5251, %v5511
  %v5513 = vpop.f32.mrb[0].mxu0
  %v5514 = vpop.f32.mrb[0].mxu0
  %v5515 = vadd.f32 %v5251, %v5514
  %v5516 = vpop.f32.mrb[0].mxu0
  %5517 = vmatprep.mubr.bf16.mxu0 0
  %5518 = vmatmul.mubr.bf16.gmra.mrb[0].mxu0 %v5187
  %v5519 = vpop.f32.mrb[0].mxu0
  %v5520 = vadd.f32 %v5251, %v5519
  %v5521 = vpop.f32.mrb[0].mxu0
  %v5522 = vpop.f32.mrb[0].mxu0
  %v5523 = vadd.f32 %v5251, %v5522
  %v5524 = vpop.f32.mrb[0].mxu0
  %5525 = vmatprep.mubr.bf16.mxu0 0
  %5526 = vmatmul.mubr.bf16.gmra.mrb[0].mxu0 %v5188
  %v5527 = vpop.f32.mrb[0].mxu0
  %v5528 = vadd.f32 %v5251, %v5527
  %v5529 = vpop.f32.mrb[0].mxu0
  %v5530 = vpop.f32.mrb[0].mxu0
  %v5531 = vadd.f32 %v5251, %v5530
  %v5532 = vpop.f32.mrb[0].mxu0
  %5533 = vmatprep.mubr.bf16.mxu0 0
  %5534 = vmatmul.mubr.bf16.gmra.mrb[0].mxu0 %v5189
  %v5535 = vpop.f32.mrb[0].mxu0
  %v5536 = vadd.f32 %v5251, %v5535
  %v5537 = vpop.f32.mrb[0].mxu0
  %v5538 = vpop.f32.mrb[0].mxu0
  %v5539 = vadd.f32 %v5251, %v5538
  %v5540 = vpop.f32.mrb[0].mxu0
  %5541 = vmatprep.mubr.bf16.mxu0 0
  %5542 = vmatmul.mubr.bf16.gmra.mrb[0].mxu0 %v5190
  %v5543 = vpop.f32.mrb[0].mxu0
  %v5544 = vadd.f32 %v5251, %v5543
  %v5545 = vpop.f32.mrb[0].mxu0
  %v5546 = vpop.f32.mrb[0].mxu0
  %v5547 = vadd.f32 %v5251, %v5546
  %v5548 = vpop.f32.mrb[0].mxu0
  %5549 = vmatprep.mubr.bf16.mxu0 0
  %5550 = vmatmul.mubr.bf16.gmra.mrb[0].mxu0 %v5191
  %v5551 = vpop.f32.mrb[0].mxu0
  %v5552 = vadd.f32 %v5251, %v5551
  %v5553 = vpop.f32.mrb[0].mxu0
  %v5554 = vpop.f32.mrb[0].mxu0
  %v5555 = vadd.f32 %v5251, %v5554
  %v5556 = vpop.f32.mrb[0].mxu0
  %5557 = vmatprep.mubr.bf16.mxu0 0
  %5558 = vmatmul.mubr.bf16.gmra.mrb[0].mxu0 %v5192
  %v5559 = vpop.f32.mrb[0].mxu0
  %v5560 = vadd.f32 %v5251, %v5559
  %v5561 = vpop.f32.mrb[0].mxu0
  %v5562 = vpop.f32.mrb[0].mxu0
  %v5563 = vadd.f32 %v5251, %v5562
  %v5564 = vpop.f32.mrb[0].mxu0
  %5565 = vmatprep.mubr.bf16.mxu0 0
  %5566 = vmatmul.mubr.bf16.gmra.mrb[0].mxu0 %v5193
  %v5567 = vpop.f32.mrb[0].mxu0
  %v5568 = vadd.f32 %v5251, %v5567
  %v5569 = vpop.f32.mrb[0].mxu0
  %v5570 = vpop.f32.mrb[0].mxu0
  %v5571 = vadd.f32 %v5251, %v5570
  %v5572 = vpop.f32.mrb[0].mxu0
  %5573 = vmatprep.mubr.bf16.mxu0 0
  %5574 = vmatmul.mubr.bf16.gmra.mrb[0].mxu0 %v5194
  %v5575 = vpop.f32.mrb[0].mxu0
  %v5576 = vadd.f32 %v5251, %v5575
  %v5577 = vpop.f32.mrb[0].mxu0
  %v5578 = vpop.f32.mrb[0].mxu0
  %v5579 = vadd.f32 %v5251, %v5578
  %v5580 = vpop.f32.mrb[0].mxu0
  %5581 = vmatprep.mubr.bf16.mxu0 0
  %5582 = vmatmul.mubr.bf16.gmra.mrb[0].mxu0 %v5195
  %v5583 = vpop.f32.mrb[0].mxu0
  %v5584 = vadd.f32 %v5251, %v5583
  %v5585 = vpop.f32.mrb[0].mxu0
  %v5586 = vpop.f32.mrb[0].mxu0
  %v5587 = vadd.f32 %v5251, %v5586
  %v5588 = vpop.f32.mrb[0].mxu0
  %5589 = vmatprep.mubr.bf16.mxu0 0
  %5590 = vmatmul.mubr.bf16.gmra.mrb[0].mxu0 %v5196
  %v5591 = vpop.f32.mrb[0].mxu0
  %v5592 = vadd.f32 %v5251, %v5591
  %v5593 = vpop.f32.mrb[0].mxu0
  %v5594 = vpop.f32.mrb[0].mxu0
  %v5595 = vadd.f32 %v5251, %v5594
  %v5596 = vpop.f32.mrb[0].mxu0
  %5597 = vmatprep.mubr.bf16.mxu0 0
  %5598 = vmatmul.mubr.bf16.gmra.mrb[0].mxu0 %v5197
  %v5599 = vpop.f32.mrb[0].mxu0
  %v5600 = vadd.f32 %v5251, %v5599
  %v5601 = vpop.f32.mrb[0].mxu0
  %v5602 = vpop.f32.mrb[0].mxu0
  %v5603 = vadd.f32 %v5251, %v5602
  %v5604 = vpop.f32.mrb[0].mxu0
  %5605 = vmatprep.mubr.bf16.mxu0 0
  %5606 = vmatmul.mubr.bf16.gmra.mrb[0].mxu0 %v5198
  %v5607 = vpop.f32.mrb[0].mxu0
  %v5608 = vadd.f32 %v5251, %v5607
  %v5609 = vpop.f32.mrb[0].mxu0
  %v5610 = vpop.f32.mrb[0].mxu0
  %v5611 = vadd.f32 %v5251, %v5610
  %v5612 = vpop.f32.mrb[0].mxu0
  %5613 = vmatprep.mubr.bf16.mxu0 0
  %5614 = vmatmul.mubr.bf16.gmra.mrb[0].mxu0 %v5199
  %v5615 = vpop.f32.mrb[0].mxu0
  %v5616 = vadd.f32 %v5251, %v5615
  %v5617 = vpop.f32.mrb[0].mxu0
  %v5618 = vpop.f32.mrb[0].mxu0
  %v5619 = vadd.f32 %v5251, %v5618
  %v5620 = vpop.f32.mrb[0].mxu0
  %5621 = vmatprep.mubr.bf16.mxu0 0
  %5622 = vmatmul.mubr.bf16.gmra.mrb[0].mxu0 %v5200
  %v5623 = vpop.f32.mrb[0].mxu0
  %v5624 = vadd.f32 %v5251, %v5623
  %v5625 = vpop.f32.mrb[0].mxu0
  %v5626 = vpop.f32.mrb[0].mxu0
  %v5627 = vadd.f32 %v5251, %v5626
  %v5628 = vpop.f32.mrb[0].mxu0
  %5629 = vmatprep.mubr.bf16.mxu0 0
  %5630 = vmatmul.mubr.bf16.gmra.mrb[0].mxu0 %v5201
  %v5631 = vpop.f32.mrb[0].mxu0
  %v5632 = vadd.f32 %v5251, %v5631
  %v5633 = vpop.f32.mrb[0].mxu0
  %v5634 = vpop.f32.mrb[0].mxu0
  %v5635 = vadd.f32 %v5251, %v5634
  %v5636 = vpop.f32.mrb[0].mxu0
  %5637 = vmatprep.mubr.bf16.mxu0 0
  %5638 = vmatmul.mubr.bf16.gmra.mrb[0].mxu0 %v5202
  %v5639 = vpop.f32.mrb[0].mxu0
  %v5640 = vadd.f32 %v5251, %v5639
  %v5641 = vpop.f32.mrb[0].mxu0
  %v5642 = vpop.f32.mrb[0].mxu0
  %v5643 = vadd.f32 %v5251, %v5642
  %v5644 = vpop.f32.mrb[0].mxu0
  %5645 = vmatprep.mubr.bf16.mxu0 0
  %5646 = vmatmul.mubr.bf16.gmra.mrb[0].mxu0 %v5203
  %v5647 = vpop.f32.mrb[0].mxu0
  %v5648 = vadd.f32 %v5251, %v5647
  %v5649 = vpop.f32.mrb[0].mxu0
  %v5650 = vpop.f32.mrb[0].mxu0
  %v5651 = vadd.f32 %v5251, %v5650
  %v5652 = vpop.f32.mrb[0].mxu0
  %5653 = vmatprep.mubr.bf16.mxu0 0
  %5654 = vmatmul.mubr.bf16.gmra.mrb[0].mxu0 %v5204
  %v5655 = vpop.f32.mrb[0].mxu0
  %v5656 = vadd.f32 %v5251, %v5655
  %v5657 = vpop.f32.mrb[0].mxu0
  %v5658 = vpop.f32.mrb[0].mxu0
  %v5659 = vadd.f32 %v5251, %v5658
  %v5660 = vpop.f32.mrb[0].mxu0
  %5661 = vmatprep.mubr.bf16.mxu0 0
  %5662 = vmatmul.mubr.bf16.gmra.mrb[0].mxu0 %v5205
  %v5663 = vpop.f32.mrb[0].mxu0
  %v5664 = vadd.f32 %v5251, %v5663
  %v5665 = vpop.f32.mrb[0].mxu0
  %v5666 = vpop.f32.mrb[0].mxu0
  %v5667 = vadd.f32 %v5251, %v5666
  %v5668 = vpop.f32.mrb[0].mxu0
  %5669 = vmatprep.mubr.bf16.mxu0 0
  %5670 = vmatmul.mubr.bf16.gmra.mrb[0].mxu0 %v5206
  %v5671 = vpop.f32.mrb[0].mxu0
  %v5672 = vadd.f32 %v5251, %v5671
  %v5673 = vpop.f32.mrb[0].mxu0
  %v5674 = vpop.f32.mrb[0].mxu0
  %v5675 = vadd.f32 %v5251, %v5674
  %v5676 = vpop.f32.mrb[0].mxu0
  %5677 = vmatprep.mubr.bf16.mxu0 0
  %5678 = vmatmul.mubr.bf16.gmra.mrb[0].mxu0 %v5207
  %v5679 = vpop.f32.mrb[0].mxu0
  %v5680 = vadd.f32 %v5251, %v5679
  %v5681 = vpop.f32.mrb[0].mxu0
  %v5682 = vpop.f32.mrb[0].mxu0
  %v5683 = vadd.f32 %v5251, %v5682
  %v5684 = vpop.f32.mrb[0].mxu0
  %5685 = vmatprep.mubr.bf16.mxu0 0
  %5686 = vmatmul.mubr.bf16.gmra.mrb[0].mxu0 %v5208
  %v5687 = vpop.f32.mrb[0].mxu0
  %v5688 = vadd.f32 %v5251, %v5687
  %v5689 = vpop.f32.mrb[0].mxu0
  %v5690 = vpop.f32.mrb[0].mxu0
  %v5691 = vadd.f32 %v5251, %v5690
  %v5692 = vpop.f32.mrb[0].mxu0
  %5693 = vmatprep.mubr.bf16.mxu0 0
  %5694 = vmatmul.mubr.bf16.gmra.mrb[0].mxu0 %v5209
  %v5695 = vpop.f32.mrb[0].mxu0
  %v5696 = vadd.f32 %v5251, %v5695
  %v5697 = vpop.f32.mrb[0].mxu0
  %v5698 = vpop.f32.mrb[0].mxu0
  %v5699 = vadd.f32 %v5251, %v5698
  %v5700 = vpop.f32.mrb[0].mxu0
  %5701 = vmatprep.mubr.bf16.mxu0 0
  %5702 = vmatmul.mubr.bf16.gmra.mrb[0].mxu0 %v5210
  %v5703 = vpop.f32.mrb[0].mxu0
  %v5704 = vadd.f32 %v5251, %v5703
  %v5705 = vpop.f32.mrb[0].mxu0
  %v5706 = vpop.f32.mrb[0].mxu0
  %v5707 = vadd.f32 %v5251, %v5706
  %v5708 = vpop.f32.mrb[0].mxu0
  %5709 = vmatprep.mubr.bf16.mxu0 0
  %5710 = vmatmul.mubr.bf16.gmra.mrb[0].mxu0 %v5211
  %v5711 = vpop.f32.mrb[0].mxu0
  %v5712 = vadd.f32 %v5251, %v5711
  %v5713 = vpop.f32.mrb[0].mxu0
  %v5714 = vpop.f32.mrb[0].mxu0
  %v5715 = vadd.f32 %v5251, %v5714
  %v5716 = vpop.f32.mrb[0].mxu0
  %5717 = vmatprep.mubr.bf16.mxu0 0
  %5718 = vmatmul.mubr.bf16.gmra.mrb[0].mxu0 %v5212
  %v5719 = vpop.f32.mrb[0].mxu0
  %v5720 = vadd.f32 %v5251, %v5719
  %v5721 = vpop.f32.mrb[0].mxu0
  %v5722 = vpop.f32.mrb[0].mxu0
  %v5723 = vadd.f32 %v5251, %v5722
  %v5724 = vpop.f32.mrb[0].mxu0
  %5725 = vmatprep.mubr.bf16.mxu0 0
  %5726 = vmatmul.mubr.bf16.gmra.mrb[0].mxu0 %v5213
  %v5727 = vpop.f32.mrb[0].mxu0
  %v5728 = vadd.f32 %v5251, %v5727
  %v5729 = vpop.f32.mrb[0].mxu0
  %v5730 = vpop.f32.mrb[0].mxu0
  %v5731 = vadd.f32 %v5251, %v5730
  %v5732 = vpop.f32.mrb[0].mxu0
  %5733 = vmatprep.mubr.bf16.mxu0 0
  %5734 = vmatmul.mubr.bf16.gmra.mrb[0].mxu0 %v5214
  %v5735 = vpop.f32.mrb[0].mxu0
  %v5736 = vadd.f32 %v5251, %v5735
  %v5737 = vpop.f32.mrb[0].mxu0
  %v5738 = vpop.f32.mrb[0].mxu0
  %v5739 = vadd.f32 %v5251, %v5738
  %v5740 = vpop.f32.mrb[0].mxu0
  %5741 = vmatprep.mubr.bf16.mxu0 0
  %5742 = vmatmul.mubr.bf16.gmra.mrb[0].mxu0 %v5215
  %v5743 = vpop.f32.mrb[0].mxu0
  %v5744 = vadd.f32 %v5251, %v5743
  %v5745 = vpop.f32.mrb[0].mxu0
  %v5746 = vpop.f32.mrb[0].mxu0
  %v5747 = vadd.f32 %v5251, %v5746
  %v5748 = vpop.f32.mrb[0].mxu0
  %5749 = vmatprep.mubr.bf16.mxu0 0
  %5750 = vmatmul.mubr.bf16.gmra.mrb[0].mxu0 %v5216
  %v5751 = vpop.f32.mrb[0].mxu0
  %v5752 = vadd.f32 %v5251, %v5751
  %v5753 = vpop.f32.mrb[0].mxu0
  %v5754 = vpop.f32.mrb[0].mxu0
  %v5755 = vadd.f32 %v5251, %v5754
  %v5756 = vpop.f32.mrb[0].mxu0
  %5757 = vmatprep.mubr.bf16.mxu0 0
  %5758 = vmatmul.mubr.bf16.gmra.mrb[0].mxu0 %v5217
  %v5759 = vpop.f32.mrb[0].mxu0
  %v5760 = vadd.f32 %v5251, %v5759
  %v5761 = vpop.f32.mrb[0].mxu0
  %v5762 = vpop.f32.mrb[0].mxu0
  %v5763 = vadd.f32 %v5251, %v5762
  %v5764 = vpop.f32.mrb[0].mxu0
  %5765 = vmatprep.mubr.bf16.mxu0 0
  %5766 = vmatmul.mubr.bf16.gmra.mrb[0].mxu0 %v5218
  %v5767 = vpop.f32.mrb[0].mxu0
  %v5768 = vadd.f32 %v5251, %v5767
  %v5769 = vpop.f32.mrb[0].mxu0
  %v5770 = vpop.f32.mrb[0].mxu0
  %v5771 = vadd.f32 %v5251, %v5770
  %v5772 = vpop.f32.mrb[0].mxu0
  %5773 = vmatprep.mubr.bf16.mxu0 0
  %5774 = vmatmul.mubr.bf16.gmra.mrb[0].mxu0 %v5219
  %v5775 = vpop.f32.mrb[0].mxu0
  %v5776 = vadd.f32 %v5251, %v5775
  %v5777 = vpop.f32.mrb[0].mxu0
  %v5778 = vpop.f32.mrb[0].mxu0
  %v5779 = vadd.f32 %v5251, %v5778
  %v5780 = vpop.f32.mrb[0].mxu0
  %5781 = vmatprep.mubr.bf16.mxu0 0
  %5782 = vmatmul.mubr.bf16.gmra.mrb[0].mxu0 %v5220
  %v5783 = vpop.f32.mrb[0].mxu0
  %v5784 = vadd.f32 %v5251, %v5783
  %v5785 = vpop.f32.mrb[0].mxu0
  %v5786 = vpop.f32.mrb[0].mxu0
  %v5787 = vadd.f32 %v5251, %v5786
  %v5788 = vpop.f32.mrb[0].mxu0
  %5789 = vmatprep.mubr.bf16.mxu0 0
  %5790 = vmatmul.mubr.bf16.gmra.mrb[0].mxu0 %v5221
  %v5791 = vpop.f32.mrb[0].mxu0
  %v5792 = vadd.f32 %v5251, %v5791
  %v5793 = vpop.f32.mrb[0].mxu0
  %v5794 = vpop.f32.mrb[0].mxu0
  %v5795 = vadd.f32 %v5251, %v5794
  %v5796 = vpop.f32.mrb[0].mxu0
  %5797 = vmatprep.mubr.bf16.mxu0 0
  %5798 = vmatmul.mubr.bf16.gmra.mrb[0].mxu0 %v5222
  %v5799 = vpop.f32.mrb[0].mxu0
  %v5800 = vadd.f32 %v5251, %v5799
  %v5801 = vpop.f32.mrb[0].mxu0
  %v5802 = vpop.f32.mrb[0].mxu0
  %v5803 = vadd.f32 %v5251, %v5802
  %v5804 = vpop.f32.mrb[0].mxu0
  %5805 = vmatprep.mubr.bf16.mxu0 0
  %5806 = vmatmul.mubr.bf16.gmra.mrb[0].mxu0 %v5223
  %v5807 = vpop.f32.mrb[0].mxu0
  %v5808 = vadd.f32 %v5251, %v5807
  %v5809 = vpop.f32.mrb[0].mxu0
  %v5810 = vpop.f32.mrb[0].mxu0
  %v5811 = vadd.f32 %v5251, %v5810
  %v5812 = vpop.f32.mrb[0].mxu0
  %5813 = vmatprep.mubr.bf16.mxu0 0
  %5814 = vmatmul.mubr.bf16.gmra.mrb[0].mxu0 %v5224
  %v5815 = vpop.f32.mrb[0].mxu0
  %v5816 = vadd.f32 %v5251, %v5815
  %v5817 = vpop.f32.mrb[0].mxu0
  %v5818 = vpop.f32.mrb[0].mxu0
  %v5819 = vadd.f32 %v5251, %v5818
  %v5820 = vpop.f32.mrb[0].mxu0
  %5821 = vmatprep.mubr.bf16.mxu0 0
  %5822 = vmatmul.mubr.bf16.gmra.mrb[0].mxu0 %v5225
  %v5823 = vpop.f32.mrb[0].mxu0
  %v5824 = vadd.f32 %v5251, %v5823
  %v5825 = vpop.f32.mrb[0].mxu0
  %v5826 = vpop.f32.mrb[0].mxu0
  %v5827 = vadd.f32 %v5251, %v5826
  %v5828 = vpop.f32.mrb[0].mxu0
  %5829 = vmatprep.mubr.bf16.mxu0 0
  %5830 = vmatmul.mubr.bf16.gmra.mrb[0].mxu0 %v5226
  %v5831 = vpop.f32.mrb[0].mxu0
  %v5832 = vadd.f32 %v5251, %v5831
  %v5833 = vpop.f32.mrb[0].mxu0
  %v5834 = vpop.f32.mrb[0].mxu0
  %v5835 = vadd.f32 %v5251, %v5834
  %v5836 = vpop.f32.mrb[0].mxu0
  %5837 = vmatprep.mubr.bf16.mxu0 0
  %5838 = vmatmul.mubr.bf16.gmra.mrb[0].mxu0 %v5227
  %v5839 = vpop.f32.mrb[0].mxu0
  %v5840 = vadd.f32 %v5251, %v5839
  %v5841 = vpop.f32.mrb[0].mxu0
  %v5842 = vpop.f32.mrb[0].mxu0
  %v5843 = vadd.f32 %v5251, %v5842
  %v5844 = vpop.f32.mrb[0].mxu0
  %5845 = vdwg.mxu0
  %v5846 = vmax.f32 %v5336, 0.0
  %v5847 = vmax.f32 %v5339, 0.0
  %v5848 = vmax.f32 %v5344, 0.0
  %v5849 = vmax.f32 %v5347, 0.0
  %v5850 = vmax.f32 %v5352, 0.0
  %v5851 = vmax.f32 %v5355, 0.0
  %v5852 = vmax.f32 %v5360, 0.0
  %v5853 = vmax.f32 %v5363, 0.0
  %v5854 = vmax.f32 %v5368, 0.0
  %v5855 = vmax.f32 %v5371, 0.0
  %v5856 = vmax.f32 %v5376, 0.0
  %v5857 = vmax.f32 %v5379, 0.0
  %v5858 = vmax.f32 %v5384, 0.0
  %v5859 = vmax.f32 %v5387, 0.0
  %v5860 = vmax.f32 %v5392, 0.0
  %v5861 = vmax.f32 %v5395, 0.0
  %v5862 = vmax.f32 %v5400, 0.0
  %v5863 = vmax.f32 %v5403, 0.0
  %v5864 = vmax.f32 %v5408, 0.0
  %v5865 = vmax.f32 %v5411, 0.0
  %v5866 = vmax.f32 %v5416, 0.0
  %v5867 = vmax.f32 %v5419, 0.0
  %v5868 = vmax.f32 %v5424, 0.0
  %v5869 = vmax.f32 %v5427, 0.0
  %v5870 = vmax.f32 %v5432, 0.0
  %v5871 = vmax.f32 %v5435, 0.0
  %v5872 = vmax.f32 %v5440, 0.0
  %v5873 = vmax.f32 %v5443, 0.0
  %v5874 = vmax.f32 %v5448, 0.0
  %v5875 = vmax.f32 %v5451, 0.0
  %v5876 = vmax.f32 %v5456, 0.0
  %v5877 = vmax.f32 %v5459, 0.0
  %v5878 = vmax.f32 %v5464, 0.0
  %v5879 = vmax.f32 %v5467, 0.0
  %v5880 = vmax.f32 %v5472, 0.0
  %v5881 = vmax.f32 %v5475, 0.0
  %v5882 = vmax.f32 %v5480, 0.0
  %v5883 = vmax.f32 %v5483, 0.0
  %v5884 = vmax.f32 %v5488, 0.0
  %v5885 = vmax.f32 %v5491, 0.0
  %v5886 = vmax.f32 %v5496, 0.0
  %v5887 = vmax.f32 %v5499, 0.0
  %v5888 = vmax.f32 %v5504, 0.0
  %v5889 = vmax.f32 %v5507, 0.0
  %v5890 = vmax.f32 %v5512, 0.0
  %v5891 = vmax.f32 %v5515, 0.0
  %v5892 = vmax.f32 %v5520, 0.0
  %v5893 = vmax.f32 %v5523, 0.0
  %v5894 = vmax.f32 %v5528, 0.0
  %v5895 = vmax.f32 %v5531, 0.0
  %v5896 = vmax.f32 %v5536, 0.0
  %v5897 = vmax.f32 %v5539, 0.0
  %v5898 = vmax.f32 %v5544, 0.0
  %v5899 = vmax.f32 %v5547, 0.0
  %v5900 = vmax.f32 %v5552, 0.0
  %v5901 = vmax.f32 %v5555, 0.0
  %v5902 = vmax.f32 %v5560, 0.0
  %v5903 = vmax.f32 %v5563, 0.0
  %v5904 = vmax.f32 %v5568, 0.0
  %v5905 = vmax.f32 %v5571, 0.0
  %v5906 = vmax.f32 %v5576, 0.0
  %v5907 = vmax.f32 %v5579, 0.0
  %v5908 = vmax.f32 %v5584, 0.0
  %v5909 = vmax.f32 %v5587, 0.0
  %v5910 = vmax.f32 %v5592, 0.0
  %v5911 = vmax.f32 %v5595, 0.0
  %v5912 = vmax.f32 %v5600, 0.0
  %v5913 = vmax.f32 %v5603, 0.0
  %v5914 = vmax.f32 %v5608, 0.0
  %v5915 = vmax.f32 %v5611, 0.0
  %v5916 = vmax.f32 %v5616, 0.0
  %v5917 = vmax.f32 %v5619, 0.0
  %v5918 = vmax.f32 %v5624, 0.0
  %v5919 = vmax.f32 %v5627, 0.0
  %v5920 = vmax.f32 %v5632, 0.0
  %v5921 = vmax.f32 %v5635, 0.0
  %v5922 = vmax.f32 %v5640, 0.0
  %v5923 = vmax.f32 %v5643, 0.0
  %v5924 = vmax.f32 %v5648, 0.0
  %v5925 = vmax.f32 %v5651, 0.0
  %v5926 = vmax.f32 %v5656, 0.0
  %v5927 = vmax.f32 %v5659, 0.0
  %v5928 = vmax.f32 %v5664, 0.0
  %v5929 = vmax.f32 %v5667, 0.0
  %v5930 = vmax.f32 %v5672, 0.0
  %v5931 = vmax.f32 %v5675, 0.0
  %v5932 = vmax.f32 %v5680, 0.0
  %v5933 = vmax.f32 %v5683, 0.0
  %v5934 = vmax.f32 %v5688, 0.0
  %v5935 = vmax.f32 %v5691, 0.0
  %v5936 = vmax.f32 %v5696, 0.0
  %v5937 = vmax.f32 %v5699, 0.0
  %v5938 = vmax.f32 %v5704, 0.0
  %v5939 = vmax.f32 %v5707, 0.0
  %v5940 = vmax.f32 %v5712, 0.0
  %v5941 = vmax.f32 %v5715, 0.0
  %v5942 = vmax.f32 %v5720, 0.0
  %v5943 = vmax.f32 %v5723, 0.0
  %v5944 = vmax.f32 %v5728, 0.0
  %v5945 = vmax.f32 %v5731, 0.0
  %v5946 = vmax.f32 %v5736, 0.0
  %v5947 = vmax.f32 %v5739, 0.0
  %v5948 = vmax.f32 %v5744, 0.0
  %v5949 = vmax.f32 %v5747, 0.0
  %v5950 = vmax.f32 %v5752, 0.0
  %v5951 = vmax.f32 %v5755, 0.0
  %v5952 = vmax.f32 %v5760, 0.0
  %v5953 = vmax.f32 %v5763, 0.0
  %v5954 = vmax.f32 %v5768, 0.0
  %v5955 = vmax.f32 %v5771, 0.0
  %v5956 = vmax.f32 %v5776, 0.0
  %v5957 = vmax.f32 %v5779, 0.0
  %v5958 = vmax.f32 %v5784, 0.0
  %v5959 = vmax.f32 %v5787, 0.0
  %v5960 = vmax.f32 %v5792, 0.0
  %v5961 = vmax.f32 %v5795, 0.0
  %v5962 = vmax.f32 %v5800, 0.0
  %v5963 = vmax.f32 %v5803, 0.0
  %v5964 = vmax.f32 %v5808, 0.0
  %v5965 = vmax.f32 %v5811, 0.0
  %v5966 = vmax.f32 %v5816, 0.0
  %v5967 = vmax.f32 %v5819, 0.0
  %v5968 = vmax.f32 %v5824, 0.0
  %v5969 = vmax.f32 %v5827, 0.0
  %v5970 = vmax.f32 %v5832, 0.0
  %v5971 = vmax.f32 %v5835, 0.0
  %v5972 = vmax.f32 %v5840, 0.0
  %v5973 = vmax.f32 %v5843, 0.0
  %v5974 = vpack.c.bf16 %v5847, %v5846
  %v5975 = vpack.c.bf16 %v5849, %v5848
  %v5976 = vpack.c.bf16 %v5851, %v5850
  %v5977 = vpack.c.bf16 %v5853, %v5852
  %v5978 = vpack.c.bf16 %v5855, %v5854
  %v5979 = vpack.c.bf16 %v5857, %v5856
  %v5980 = vpack.c.bf16 %v5859, %v5858
  %v5981 = vpack.c.bf16 %v5861, %v5860
  %v5982 = vpack.c.bf16 %v5863, %v5862
  %v5983 = vpack.c.bf16 %v5865, %v5864
  %v5984 = vpack.c.bf16 %v5867, %v5866
  %v5985 = vpack.c.bf16 %v5869, %v5868
  %v5986 = vpack.c.bf16 %v5871, %v5870
  %v5987 = vpack.c.bf16 %v5873, %v5872
  %v5988 = vpack.c.bf16 %v5875, %v5874
  %v5989 = vpack.c.bf16 %v5877, %v5876
  %v5990 = vpack.c.bf16 %v5879, %v5878
  %v5991 = vpack.c.bf16 %v5881, %v5880
  %v5992 = vpack.c.bf16 %v5883, %v5882
  %v5993 = vpack.c.bf16 %v5885, %v5884
  %v5994 = vpack.c.bf16 %v5887, %v5886
  %v5995 = vpack.c.bf16 %v5889, %v5888
  %v5996 = vpack.c.bf16 %v5891, %v5890
  %v5997 = vpack.c.bf16 %v5893, %v5892
  %v5998 = vpack.c.bf16 %v5895, %v5894
  %v5999 = vpack.c.bf16 %v5897, %v5896
  %v6000 = vpack.c.bf16 %v5899, %v5898
  %v6001 = vpack.c.bf16 %v5901, %v5900
  %v6002 = vpack.c.bf16 %v5903, %v5902
  %v6003 = vpack.c.bf16 %v5905, %v5904
  %v6004 = vpack.c.bf16 %v5907, %v5906
  %v6005 = vpack.c.bf16 %v5909, %v5908
  %v6006 = vpack.c.bf16 %v5911, %v5910
  %v6007 = vpack.c.bf16 %v5913, %v5912
  %v6008 = vpack.c.bf16 %v5915, %v5914
  %v6009 = vpack.c.bf16 %v5917, %v5916
  %v6010 = vpack.c.bf16 %v5919, %v5918
  %v6011 = vpack.c.bf16 %v5921, %v5920
  %v6012 = vpack.c.bf16 %v5923, %v5922
  %v6013 = vpack.c.bf16 %v5925, %v5924
  %v6014 = vpack.c.bf16 %v5927, %v5926
  %v6015 = vpack.c.bf16 %v5929, %v5928
  %v6016 = vpack.c.bf16 %v5931, %v5930
  %v6017 = vpack.c.bf16 %v5933, %v5932
  %v6018 = vpack.c.bf16 %v5935, %v5934
  %v6019 = vpack.c.bf16 %v5937, %v5936
  %v6020 = vpack.c.bf16 %v5939, %v5938
  %v6021 = vpack.c.bf16 %v5941, %v5940
  %v6022 = vpack.c.bf16 %v5943, %v5942
  %v6023 = vpack.c.bf16 %v5945, %v5944
  %v6024 = vpack.c.bf16 %v5947, %v5946
  %v6025 = vpack.c.bf16 %v5949, %v5948
  %v6026 = vpack.c.bf16 %v5951, %v5950
  %v6027 = vpack.c.bf16 %v5953, %v5952
  %v6028 = vpack.c.bf16 %v5955, %v5954
  %v6029 = vpack.c.bf16 %v5957, %v5956
  %v6030 = vpack.c.bf16 %v5959, %v5958
  %v6031 = vpack.c.bf16 %v5961, %v5960
  %v6032 = vpack.c.bf16 %v5963, %v5962
  %v6033 = vpack.c.bf16 %v5965, %v5964
  %v6034 = vpack.c.bf16 %v5967, %v5966
  %v6035 = vpack.c.bf16 %v5969, %v5968
  %v6036 = vpack.c.bf16 %v5971, %v5970
  %v6037 = vpack.c.bf16 %v5973, %v5972
  %s6038 = scalar_lea.vmem %s3, 256
  %v6039 = vld [vmem:[%s6038] sm:$0xf]
  %v6040 = vld [vmem:[%s6038 + $0x4] sm:$0xf]
  %v6041 = vld [vmem:[%s6038 + $0x8] sm:$0xf]
  %v6042 = vld [vmem:[%s6038 + $0xc] sm:$0xf]
  %v6043 = vld [vmem:[%s6038 + $0x10] sm:$0xf]
  %v6044 = vld [vmem:[%s6038 + $0x14] sm:$0xf]
  %v6045 = vld [vmem:[%s6038 + $0x18] sm:$0xf]
  %v6046 = vld [vmem:[%s6038 + $0x1c] sm:$0xf]
  %v6047 = vld [vmem:[%s6038 + $0x20] sm:$0xf]
  %v6048 = vld [vmem:[%s6038 + $0x24] sm:$0xf]
  %v6049 = vld [vmem:[%s6038 + $0x28] sm:$0xf]
  %v6050 = vld [vmem:[%s6038 + $0x2c] sm:$0xf]
  %v6051 = vld [vmem:[%s6038 + $0x30] sm:$0xf]
  %v6052 = vld [vmem:[%s6038 + $0x34] sm:$0xf]
  %v6053 = vld [vmem:[%s6038 + $0x38] sm:$0xf]
  %v6054 = vld [vmem:[%s6038 + $0x3c] sm:$0xf]
  %s6055 = scalar_lea.vmem %s4, 4
  %v6056 = vld [vmem:[%s6055] sm:$0x1]
  %v6058 = vlaneseq
  %v6059 = vshrl.u32 %v6058, 7
  %v6060 = vsub.s32 0, %v6059
  %v6061 = vrot.slane %v6056, %v6060
  %v6079 = vunpack.c.l.b16 %v6039
  %v6080 = vunpack.c.l.b16 %v6040
  %v6081 = vunpack.c.l.b16 %v6041
  %v6082 = vunpack.c.l.b16 %v6042
  %v6083 = vunpack.c.l.b16 %v6043
  %v6084 = vunpack.c.l.b16 %v6044
  %v6085 = vunpack.c.l.b16 %v6045
  %v6086 = vunpack.c.l.b16 %v6046
  %v6087 = vunpack.c.l.b16 %v6047
  %v6088 = vunpack.c.l.b16 %v6048
  %v6089 = vunpack.c.l.b16 %v6049
  %v6090 = vunpack.c.l.b16 %v6050
  %v6091 = vunpack.c.l.b16 %v6051
  %v6092 = vunpack.c.l.b16 %v6052
  %v6093 = vunpack.c.l.b16 %v6053
  %v6094 = vunpack.c.l.b16 %v6054
  %v6095 = vpack.c.b16 %v6080, %v6079
  %v6096 = vpack.c.b16 %v6082, %v6081
  %v6097 = vpack.c.b16 %v6084, %v6083
  %v6098 = vpack.c.b16 %v6086, %v6085
  %v6099 = vpack.c.b16 %v6088, %v6087
  %v6100 = vpack.c.b16 %v6090, %v6089
  %v6101 = vpack.c.b16 %v6092, %v6091
  %v6102 = vpack.c.b16 %v6094, %v6093
  %6111 = vmatprep.subr.bf16.mxu0 0
  %6112 = vmatpush1.bf16.msra.mxu0 %v6095
  %6113 = vmatprep.subr.bf16.mxu0 0
  %6114 = vmatpush1.bf16.msra.mxu0 %v6096
  %6115 = vmatprep.subr.bf16.mxu0 0
  %6116 = vmatpush1.bf16.msra.mxu0 %v6097
  %6117 = vmatprep.subr.bf16.mxu0 0
  %6118 = vmatpush1.bf16.msra.mxu0 %v6098
  %6119 = vmatprep.subr.bf16.mxu0 0
  %6120 = vmatpush1.bf16.msra.mxu0 %v6099
  %6121 = vmatprep.subr.bf16.mxu0 0
  %6122 = vmatpush1.bf16.msra.mxu0 %v6100
  %6123 = vmatprep.subr.bf16.mxu0 0
  %6124 = vmatpush1.bf16.msra.mxu0 %v6101
  %6125 = vmatprep.subr.bf16.mxu0 0
  %6126 = vmatpush1.bf16.msra.mxu0 %v6102
  %6127 = vmatprep.subr.bf16.mxu0 0
  %6128 = vmatpush1.bf16.msra.mxu0 0
  %6129 = vmatprep.subr.bf16.mxu0 0
  %6130 = vmatpush1.bf16.msra.mxu0 0
  %6131 = vmatprep.subr.bf16.mxu0 0
  %6132 = vmatpush1.bf16.msra.mxu0 0
  %6133 = vmatprep.subr.bf16.mxu0 0
  %6134 = vmatpush1.bf16.msra.mxu0 0
  %6135 = vmatprep.subr.bf16.mxu0 0
  %6136 = vmatpush1.bf16.msra.mxu0 0
  %6137 = vmatprep.subr.bf16.mxu0 0
  %6138 = vmatpush1.bf16.msra.mxu0 0
  %6139 = vmatprep.subr.bf16.mxu0 0
  %6140 = vmatpush1.bf16.msra.mxu0 0
  %6141 = vmatprep.subr.bf16.mxu0 0
  %6142 = vmatpush1.bf16.msra.mxu0 0
  %6143 = vmatprep.mubr.bf16.mxu0 0
  %6144 = vmatmul.mubr.bf16.gmra.mrb[0].mxu0 %v5974
  %v6145 = vpop.f32.mrb[0].mxu0
  %v6146 = vadd.f32 %v6061, %v6145
  %v6147 = vpop.f32.mrb[0].mxu0
  %v6148 = vpop.f32.mrb[0].mxu0
  %v6149 = vadd.f32 %v6061, %v6148
  %v6150 = vpop.f32.mrb[0].mxu0
  %6151 = vmatprep.mubr.bf16.mxu0 0
  %6152 = vmatmul.mubr.bf16.gmra.mrb[0].mxu0 %v5975
  %v6153 = vpop.f32.mrb[0].mxu0
  %v6154 = vadd.f32 %v6061, %v6153
  %v6155 = vpop.f32.mrb[0].mxu0
  %v6156 = vpop.f32.mrb[0].mxu0
  %v6157 = vadd.f32 %v6061, %v6156
  %v6158 = vpop.f32.mrb[0].mxu0
  %6159 = vmatprep.mubr.bf16.mxu0 0
  %6160 = vmatmul.mubr.bf16.gmra.mrb[0].mxu0 %v5976
  %v6161 = vpop.f32.mrb[0].mxu0
  %v6162 = vadd.f32 %v6061, %v6161
  %v6163 = vpop.f32.mrb[0].mxu0
  %v6164 = vpop.f32.mrb[0].mxu0
  %v6165 = vadd.f32 %v6061, %v6164
  %v6166 = vpop.f32.mrb[0].mxu0
  %6167 = vmatprep.mubr.bf16.mxu0 0
  %6168 = vmatmul.mubr.bf16.gmra.mrb[0].mxu0 %v5977
  %v6169 = vpop.f32.mrb[0].mxu0
  %v6170 = vadd.f32 %v6061, %v6169
  %v6171 = vpop.f32.mrb[0].mxu0
  %v6172 = vpop.f32.mrb[0].mxu0
  %v6173 = vadd.f32 %v6061, %v6172
  %v6174 = vpop.f32.mrb[0].mxu0
  %6175 = vmatprep.mubr.bf16.mxu0 0
  %6176 = vmatmul.mubr.bf16.gmra.mrb[0].mxu0 %v5978
  %v6177 = vpop.f32.mrb[0].mxu0
  %v6178 = vadd.f32 %v6061, %v6177
  %v6179 = vpop.f32.mrb[0].mxu0
  %v6180 = vpop.f32.mrb[0].mxu0
  %v6181 = vadd.f32 %v6061, %v6180
  %v6182 = vpop.f32.mrb[0].mxu0
  %6183 = vmatprep.mubr.bf16.mxu0 0
  %6184 = vmatmul.mubr.bf16.gmra.mrb[0].mxu0 %v5979
  %v6185 = vpop.f32.mrb[0].mxu0
  %v6186 = vadd.f32 %v6061, %v6185
  %v6187 = vpop.f32.mrb[0].mxu0
  %v6188 = vpop.f32.mrb[0].mxu0
  %v6189 = vadd.f32 %v6061, %v6188
  %v6190 = vpop.f32.mrb[0].mxu0
  %6191 = vmatprep.mubr.bf16.mxu0 0
  %6192 = vmatmul.mubr.bf16.gmra.mrb[0].mxu0 %v5980
  %v6193 = vpop.f32.mrb[0].mxu0
  %v6194 = vadd.f32 %v6061, %v6193
  %v6195 = vpop.f32.mrb[0].mxu0
  %v6196 = vpop.f32.mrb[0].mxu0
  %v6197 = vadd.f32 %v6061, %v6196
  %v6198 = vpop.f32.mrb[0].mxu0
  %6199 = vmatprep.mubr.bf16.mxu0 0
  %6200 = vmatmul.mubr.bf16.gmra.mrb[0].mxu0 %v5981
  %v6201 = vpop.f32.mrb[0].mxu0
  %v6202 = vadd.f32 %v6061, %v6201
  %v6203 = vpop.f32.mrb[0].mxu0
  %v6204 = vpop.f32.mrb[0].mxu0
  %v6205 = vadd.f32 %v6061, %v6204
  %v6206 = vpop.f32.mrb[0].mxu0
  %6207 = vmatprep.mubr.bf16.mxu0 0
  %6208 = vmatmul.mubr.bf16.gmra.mrb[0].mxu0 %v5982
  %v6209 = vpop.f32.mrb[0].mxu0
  %v6210 = vadd.f32 %v6061, %v6209
  %v6211 = vpop.f32.mrb[0].mxu0
  %v6212 = vpop.f32.mrb[0].mxu0
  %v6213 = vadd.f32 %v6061, %v6212
  %v6214 = vpop.f32.mrb[0].mxu0
  %6215 = vmatprep.mubr.bf16.mxu0 0
  %6216 = vmatmul.mubr.bf16.gmra.mrb[0].mxu0 %v5983
  %v6217 = vpop.f32.mrb[0].mxu0
  %v6218 = vadd.f32 %v6061, %v6217
  %v6219 = vpop.f32.mrb[0].mxu0
  %v6220 = vpop.f32.mrb[0].mxu0
  %v6221 = vadd.f32 %v6061, %v6220
  %v6222 = vpop.f32.mrb[0].mxu0
  %6223 = vmatprep.mubr.bf16.mxu0 0
  %6224 = vmatmul.mubr.bf16.gmra.mrb[0].mxu0 %v5984
  %v6225 = vpop.f32.mrb[0].mxu0
  %v6226 = vadd.f32 %v6061, %v6225
  %v6227 = vpop.f32.mrb[0].mxu0
  %v6228 = vpop.f32.mrb[0].mxu0
  %v6229 = vadd.f32 %v6061, %v6228
  %v6230 = vpop.f32.mrb[0].mxu0
  %6231 = vmatprep.mubr.bf16.mxu0 0
  %6232 = vmatmul.mubr.bf16.gmra.mrb[0].mxu0 %v5985
  %v6233 = vpop.f32.mrb[0].mxu0
  %v6234 = vadd.f32 %v6061, %v6233
  %v6235 = vpop.f32.mrb[0].mxu0
  %v6236 = vpop.f32.mrb[0].mxu0
  %v6237 = vadd.f32 %v6061, %v6236
  %v6238 = vpop.f32.mrb[0].mxu0
  %6239 = vmatprep.mubr.bf16.mxu0 0
  %6240 = vmatmul.mubr.bf16.gmra.mrb[0].mxu0 %v5986
  %v6241 = vpop.f32.mrb[0].mxu0
  %v6242 = vadd.f32 %v6061, %v6241
  %v6243 = vpop.f32.mrb[0].mxu0
  %v6244 = vpop.f32.mrb[0].mxu0
  %v6245 = vadd.f32 %v6061, %v6244
  %v6246 = vpop.f32.mrb[0].mxu0
  %6247 = vmatprep.mubr.bf16.mxu0 0
  %6248 = vmatmul.mubr.bf16.gmra.mrb[0].mxu0 %v5987
  %v6249 = vpop.f32.mrb[0].mxu0
  %v6250 = vadd.f32 %v6061, %v6249
  %v6251 = vpop.f32.mrb[0].mxu0
  %v6252 = vpop.f32.mrb[0].mxu0
  %v6253 = vadd.f32 %v6061, %v6252
  %v6254 = vpop.f32.mrb[0].mxu0
  %6255 = vmatprep.mubr.bf16.mxu0 0
  %6256 = vmatmul.mubr.bf16.gmra.mrb[0].mxu0 %v5988
  %v6257 = vpop.f32.mrb[0].mxu0
  %v6258 = vadd.f32 %v6061, %v6257
  %v6259 = vpop.f32.mrb[0].mxu0
  %v6260 = vpop.f32.mrb[0].mxu0
  %v6261 = vadd.f32 %v6061, %v6260
  %v6262 = vpop.f32.mrb[0].mxu0
  %6263 = vmatprep.mubr.bf16.mxu0 0
  %6264 = vmatmul.mubr.bf16.gmra.mrb[0].mxu0 %v5989
  %v6265 = vpop.f32.mrb[0].mxu0
  %v6266 = vadd.f32 %v6061, %v6265
  %v6267 = vpop.f32.mrb[0].mxu0
  %v6268 = vpop.f32.mrb[0].mxu0
  %v6269 = vadd.f32 %v6061, %v6268
  %v6270 = vpop.f32.mrb[0].mxu0
  %6271 = vmatprep.mubr.bf16.mxu0 0
  %6272 = vmatmul.mubr.bf16.gmra.mrb[0].mxu0 %v5990
  %v6273 = vpop.f32.mrb[0].mxu0
  %v6274 = vadd.f32 %v6061, %v6273
  %v6275 = vpop.f32.mrb[0].mxu0
  %v6276 = vpop.f32.mrb[0].mxu0
  %v6277 = vadd.f32 %v6061, %v6276
  %v6278 = vpop.f32.mrb[0].mxu0
  %6279 = vmatprep.mubr.bf16.mxu0 0
  %6280 = vmatmul.mubr.bf16.gmra.mrb[0].mxu0 %v5991
  %v6281 = vpop.f32.mrb[0].mxu0
  %v6282 = vadd.f32 %v6061, %v6281
  %v6283 = vpop.f32.mrb[0].mxu0
  %v6284 = vpop.f32.mrb[0].mxu0
  %v6285 = vadd.f32 %v6061, %v6284
  %v6286 = vpop.f32.mrb[0].mxu0
  %6287 = vmatprep.mubr.bf16.mxu0 0
  %6288 = vmatmul.mubr.bf16.gmra.mrb[0].mxu0 %v5992
  %v6289 = vpop.f32.mrb[0].mxu0
  %v6290 = vadd.f32 %v6061, %v6289
  %v6291 = vpop.f32.mrb[0].mxu0
  %v6292 = vpop.f32.mrb[0].mxu0
  %v6293 = vadd.f32 %v6061, %v6292
  %v6294 = vpop.f32.mrb[0].mxu0
  %6295 = vmatprep.mubr.bf16.mxu0 0
  %6296 = vmatmul.mubr.bf16.gmra.mrb[0].mxu0 %v5993
  %v6297 = vpop.f32.mrb[0].mxu0
  %v6298 = vadd.f32 %v6061, %v6297
  %v6299 = vpop.f32.mrb[0].mxu0
  %v6300 = vpop.f32.mrb[0].mxu0
  %v6301 = vadd.f32 %v6061, %v6300
  %v6302 = vpop.f32.mrb[0].mxu0
  %6303 = vmatprep.mubr.bf16.mxu0 0
  %6304 = vmatmul.mubr.bf16.gmra.mrb[0].mxu0 %v5994
  %v6305 = vpop.f32.mrb[0].mxu0
  %v6306 = vadd.f32 %v6061, %v6305
  %v6307 = vpop.f32.mrb[0].mxu0
  %v6308 = vpop.f32.mrb[0].mxu0
  %v6309 = vadd.f32 %v6061, %v6308
  %v6310 = vpop.f32.mrb[0].mxu0
  %6311 = vmatprep.mubr.bf16.mxu0 0
  %6312 = vmatmul.mubr.bf16.gmra.mrb[0].mxu0 %v5995
  %v6313 = vpop.f32.mrb[0].mxu0
  %v6314 = vadd.f32 %v6061, %v6313
  %v6315 = vpop.f32.mrb[0].mxu0
  %v6316 = vpop.f32.mrb[0].mxu0
  %v6317 = vadd.f32 %v6061, %v6316
  %v6318 = vpop.f32.mrb[0].mxu0
  %6319 = vmatprep.mubr.bf16.mxu0 0
  %6320 = vmatmul.mubr.bf16.gmra.mrb[0].mxu0 %v5996
  %v6321 = vpop.f32.mrb[0].mxu0
  %v6322 = vadd.f32 %v6061, %v6321
  %v6323 = vpop.f32.mrb[0].mxu0
  %v6324 = vpop.f32.mrb[0].mxu0
  %v6325 = vadd.f32 %v6061, %v6324
  %v6326 = vpop.f32.mrb[0].mxu0
  %6327 = vmatprep.mubr.bf16.mxu0 0
  %6328 = vmatmul.mubr.bf16.gmra.mrb[0].mxu0 %v5997
  %v6329 = vpop.f32.mrb[0].mxu0
  %v6330 = vadd.f32 %v6061, %v6329
  %v6331 = vpop.f32.mrb[0].mxu0
  %v6332 = vpop.f32.mrb[0].mxu0
  %v6333 = vadd.f32 %v6061, %v6332
  %v6334 = vpop.f32.mrb[0].mxu0
  %6335 = vmatprep.mubr.bf16.mxu0 0
  %6336 = vmatmul.mubr.bf16.gmra.mrb[0].mxu0 %v5998
  %v6337 = vpop.f32.mrb[0].mxu0
  %v6338 = vadd.f32 %v6061, %v6337
  %v6339 = vpop.f32.mrb[0].mxu0
  %v6340 = vpop.f32.mrb[0].mxu0
  %v6341 = vadd.f32 %v6061, %v6340
  %v6342 = vpop.f32.mrb[0].mxu0
  %6343 = vmatprep.mubr.bf16.mxu0 0
  %6344 = vmatmul.mubr.bf16.gmra.mrb[0].mxu0 %v5999
  %v6345 = vpop.f32.mrb[0].mxu0
  %v6346 = vadd.f32 %v6061, %v6345
  %v6347 = vpop.f32.mrb[0].mxu0
  %v6348 = vpop.f32.mrb[0].mxu0
  %v6349 = vadd.f32 %v6061, %v6348
  %v6350 = vpop.f32.mrb[0].mxu0
  %6351 = vmatprep.mubr.bf16.mxu0 0
  %6352 = vmatmul.mubr.bf16.gmra.mrb[0].mxu0 %v6000
  %v6353 = vpop.f32.mrb[0].mxu0
  %v6354 = vadd.f32 %v6061, %v6353
  %v6355 = vpop.f32.mrb[0].mxu0
  %v6356 = vpop.f32.mrb[0].mxu0
  %v6357 = vadd.f32 %v6061, %v6356
  %v6358 = vpop.f32.mrb[0].mxu0
  %6359 = vmatprep.mubr.bf16.mxu0 0
  %6360 = vmatmul.mubr.bf16.gmra.mrb[0].mxu0 %v6001
  %v6361 = vpop.f32.mrb[0].mxu0
  %v6362 = vadd.f32 %v6061, %v6361
  %v6363 = vpop.f32.mrb[0].mxu0
  %v6364 = vpop.f32.mrb[0].mxu0
  %v6365 = vadd.f32 %v6061, %v6364
  %v6366 = vpop.f32.mrb[0].mxu0
  %6367 = vmatprep.mubr.bf16.mxu0 0
  %6368 = vmatmul.mubr.bf16.gmra.mrb[0].mxu0 %v6002
  %v6369 = vpop.f32.mrb[0].mxu0
  %v6370 = vadd.f32 %v6061, %v6369
  %v6371 = vpop.f32.mrb[0].mxu0
  %v6372 = vpop.f32.mrb[0].mxu0
  %v6373 = vadd.f32 %v6061, %v6372
  %v6374 = vpop.f32.mrb[0].mxu0
  %6375 = vmatprep.mubr.bf16.mxu0 0
  %6376 = vmatmul.mubr.bf16.gmra.mrb[0].mxu0 %v6003
  %v6377 = vpop.f32.mrb[0].mxu0
  %v6378 = vadd.f32 %v6061, %v6377
  %v6379 = vpop.f32.mrb[0].mxu0
  %v6380 = vpop.f32.mrb[0].mxu0
  %v6381 = vadd.f32 %v6061, %v6380
  %v6382 = vpop.f32.mrb[0].mxu0
  %6383 = vmatprep.mubr.bf16.mxu0 0
  %6384 = vmatmul.mubr.bf16.gmra.mrb[0].mxu0 %v6004
  %v6385 = vpop.f32.mrb[0].mxu0
  %v6386 = vadd.f32 %v6061, %v6385
  %v6387 = vpop.f32.mrb[0].mxu0
  %v6388 = vpop.f32.mrb[0].mxu0
  %v6389 = vadd.f32 %v6061, %v6388
  %v6390 = vpop.f32.mrb[0].mxu0
  %6391 = vmatprep.mubr.bf16.mxu0 0
  %6392 = vmatmul.mubr.bf16.gmra.mrb[0].mxu0 %v6005
  %v6393 = vpop.f32.mrb[0].mxu0
  %v6394 = vadd.f32 %v6061, %v6393
  %v6395 = vpop.f32.mrb[0].mxu0
  %v6396 = vpop.f32.mrb[0].mxu0
  %v6397 = vadd.f32 %v6061, %v6396
  %v6398 = vpop.f32.mrb[0].mxu0
  %6399 = vmatprep.mubr.bf16.mxu0 0
  %6400 = vmatmul.mubr.bf16.gmra.mrb[0].mxu0 %v6006
  %v6401 = vpop.f32.mrb[0].mxu0
  %v6402 = vadd.f32 %v6061, %v6401
  %v6403 = vpop.f32.mrb[0].mxu0
  %v6404 = vpop.f32.mrb[0].mxu0
  %v6405 = vadd.f32 %v6061, %v6404
  %v6406 = vpop.f32.mrb[0].mxu0
  %6407 = vmatprep.mubr.bf16.mxu0 0
  %6408 = vmatmul.mubr.bf16.gmra.mrb[0].mxu0 %v6007
  %v6409 = vpop.f32.mrb[0].mxu0
  %v6410 = vadd.f32 %v6061, %v6409
  %v6411 = vpop.f32.mrb[0].mxu0
  %v6412 = vpop.f32.mrb[0].mxu0
  %v6413 = vadd.f32 %v6061, %v6412
  %v6414 = vpop.f32.mrb[0].mxu0
  %6415 = vmatprep.mubr.bf16.mxu0 0
  %6416 = vmatmul.mubr.bf16.gmra.mrb[0].mxu0 %v6008
  %v6417 = vpop.f32.mrb[0].mxu0
  %v6418 = vadd.f32 %v6061, %v6417
  %v6419 = vpop.f32.mrb[0].mxu0
  %v6420 = vpop.f32.mrb[0].mxu0
  %v6421 = vadd.f32 %v6061, %v6420
  %v6422 = vpop.f32.mrb[0].mxu0
  %6423 = vmatprep.mubr.bf16.mxu0 0
  %6424 = vmatmul.mubr.bf16.gmra.mrb[0].mxu0 %v6009
  %v6425 = vpop.f32.mrb[0].mxu0
  %v6426 = vadd.f32 %v6061, %v6425
  %v6427 = vpop.f32.mrb[0].mxu0
  %v6428 = vpop.f32.mrb[0].mxu0
  %v6429 = vadd.f32 %v6061, %v6428
  %v6430 = vpop.f32.mrb[0].mxu0
  %6431 = vmatprep.mubr.bf16.mxu0 0
  %6432 = vmatmul.mubr.bf16.gmra.mrb[0].mxu0 %v6010
  %v6433 = vpop.f32.mrb[0].mxu0
  %v6434 = vadd.f32 %v6061, %v6433
  %v6435 = vpop.f32.mrb[0].mxu0
  %v6436 = vpop.f32.mrb[0].mxu0
  %v6437 = vadd.f32 %v6061, %v6436
  %v6438 = vpop.f32.mrb[0].mxu0
  %6439 = vmatprep.mubr.bf16.mxu0 0
  %6440 = vmatmul.mubr.bf16.gmra.mrb[0].mxu0 %v6011
  %v6441 = vpop.f32.mrb[0].mxu0
  %v6442 = vadd.f32 %v6061, %v6441
  %v6443 = vpop.f32.mrb[0].mxu0
  %v6444 = vpop.f32.mrb[0].mxu0
  %v6445 = vadd.f32 %v6061, %v6444
  %v6446 = vpop.f32.mrb[0].mxu0
  %6447 = vmatprep.mubr.bf16.mxu0 0
  %6448 = vmatmul.mubr.bf16.gmra.mrb[0].mxu0 %v6012
  %v6449 = vpop.f32.mrb[0].mxu0
  %v6450 = vadd.f32 %v6061, %v6449
  %v6451 = vpop.f32.mrb[0].mxu0
  %v6452 = vpop.f32.mrb[0].mxu0
  %v6453 = vadd.f32 %v6061, %v6452
  %v6454 = vpop.f32.mrb[0].mxu0
  %6455 = vmatprep.mubr.bf16.mxu0 0
  %6456 = vmatmul.mubr.bf16.gmra.mrb[0].mxu0 %v6013
  %v6457 = vpop.f32.mrb[0].mxu0
  %v6458 = vadd.f32 %v6061, %v6457
  %v6459 = vpop.f32.mrb[0].mxu0
  %v6460 = vpop.f32.mrb[0].mxu0
  %v6461 = vadd.f32 %v6061, %v6460
  %v6462 = vpop.f32.mrb[0].mxu0
  %6463 = vmatprep.mubr.bf16.mxu0 0
  %6464 = vmatmul.mubr.bf16.gmra.mrb[0].mxu0 %v6014
  %v6465 = vpop.f32.mrb[0].mxu0
  %v6466 = vadd.f32 %v6061, %v6465
  %v6467 = vpop.f32.mrb[0].mxu0
  %v6468 = vpop.f32.mrb[0].mxu0
  %v6469 = vadd.f32 %v6061, %v6468
  %v6470 = vpop.f32.mrb[0].mxu0
  %6471 = vmatprep.mubr.bf16.mxu0 0
  %6472 = vmatmul.mubr.bf16.gmra.mrb[0].mxu0 %v6015
  %v6473 = vpop.f32.mrb[0].mxu0
  %v6474 = vadd.f32 %v6061, %v6473
  %v6475 = vpop.f32.mrb[0].mxu0
  %v6476 = vpop.f32.mrb[0].mxu0
  %v6477 = vadd.f32 %v6061, %v6476
  %v6478 = vpop.f32.mrb[0].mxu0
  %6479 = vmatprep.mubr.bf16.mxu0 0
  %6480 = vmatmul.mubr.bf16.gmra.mrb[0].mxu0 %v6016
  %v6481 = vpop.f32.mrb[0].mxu0
  %v6482 = vadd.f32 %v6061, %v6481
  %v6483 = vpop.f32.mrb[0].mxu0
  %v6484 = vpop.f32.mrb[0].mxu0
  %v6485 = vadd.f32 %v6061, %v6484
  %v6486 = vpop.f32.mrb[0].mxu0
  %6487 = vmatprep.mubr.bf16.mxu0 0
  %6488 = vmatmul.mubr.bf16.gmra.mrb[0].mxu0 %v6017
  %v6489 = vpop.f32.mrb[0].mxu0
  %v6490 = vadd.f32 %v6061, %v6489
  %v6491 = vpop.f32.mrb[0].mxu0
  %v6492 = vpop.f32.mrb[0].mxu0
  %v6493 = vadd.f32 %v6061, %v6492
  %v6494 = vpop.f32.mrb[0].mxu0
  %6495 = vmatprep.mubr.bf16.mxu0 0
  %6496 = vmatmul.mubr.bf16.gmra.mrb[0].mxu0 %v6018
  %v6497 = vpop.f32.mrb[0].mxu0
  %v6498 = vadd.f32 %v6061, %v6497
  %v6499 = vpop.f32.mrb[0].mxu0
  %v6500 = vpop.f32.mrb[0].mxu0
  %v6501 = vadd.f32 %v6061, %v6500
  %v6502 = vpop.f32.mrb[0].mxu0
  %6503 = vmatprep.mubr.bf16.mxu0 0
  %6504 = vmatmul.mubr.bf16.gmra.mrb[0].mxu0 %v6019
  %v6505 = vpop.f32.mrb[0].mxu0
  %v6506 = vadd.f32 %v6061, %v6505
  %v6507 = vpop.f32.mrb[0].mxu0
  %v6508 = vpop.f32.mrb[0].mxu0
  %v6509 = vadd.f32 %v6061, %v6508
  %v6510 = vpop.f32.mrb[0].mxu0
  %6511 = vmatprep.mubr.bf16.mxu0 0
  %6512 = vmatmul.mubr.bf16.gmra.mrb[0].mxu0 %v6020
  %v6513 = vpop.f32.mrb[0].mxu0
  %v6514 = vadd.f32 %v6061, %v6513
  %v6515 = vpop.f32.mrb[0].mxu0
  %v6516 = vpop.f32.mrb[0].mxu0
  %v6517 = vadd.f32 %v6061, %v6516
  %v6518 = vpop.f32.mrb[0].mxu0
  %6519 = vmatprep.mubr.bf16.mxu0 0
  %6520 = vmatmul.mubr.bf16.gmra.mrb[0].mxu0 %v6021
  %v6521 = vpop.f32.mrb[0].mxu0
  %v6522 = vadd.f32 %v6061, %v6521
  %v6523 = vpop.f32.mrb[0].mxu0
  %v6524 = vpop.f32.mrb[0].mxu0
  %v6525 = vadd.f32 %v6061, %v6524
  %v6526 = vpop.f32.mrb[0].mxu0
  %6527 = vmatprep.mubr.bf16.mxu0 0
  %6528 = vmatmul.mubr.bf16.gmra.mrb[0].mxu0 %v6022
  %v6529 = vpop.f32.mrb[0].mxu0
  %v6530 = vadd.f32 %v6061, %v6529
  %v6531 = vpop.f32.mrb[0].mxu0
  %v6532 = vpop.f32.mrb[0].mxu0
  %v6533 = vadd.f32 %v6061, %v6532
  %v6534 = vpop.f32.mrb[0].mxu0
  %6535 = vmatprep.mubr.bf16.mxu0 0
  %6536 = vmatmul.mubr.bf16.gmra.mrb[0].mxu0 %v6023
  %v6537 = vpop.f32.mrb[0].mxu0
  %v6538 = vadd.f32 %v6061, %v6537
  %v6539 = vpop.f32.mrb[0].mxu0
  %v6540 = vpop.f32.mrb[0].mxu0
  %v6541 = vadd.f32 %v6061, %v6540
  %v6542 = vpop.f32.mrb[0].mxu0
  %6543 = vmatprep.mubr.bf16.mxu0 0
  %6544 = vmatmul.mubr.bf16.gmra.mrb[0].mxu0 %v6024
  %v6545 = vpop.f32.mrb[0].mxu0
  %v6546 = vadd.f32 %v6061, %v6545
  %v6547 = vpop.f32.mrb[0].mxu0
  %v6548 = vpop.f32.mrb[0].mxu0
  %v6549 = vadd.f32 %v6061, %v6548
  %v6550 = vpop.f32.mrb[0].mxu0
  %6551 = vmatprep.mubr.bf16.mxu0 0
  %6552 = vmatmul.mubr.bf16.gmra.mrb[0].mxu0 %v6025
  %v6553 = vpop.f32.mrb[0].mxu0
  %v6554 = vadd.f32 %v6061, %v6553
  %v6555 = vpop.f32.mrb[0].mxu0
  %v6556 = vpop.f32.mrb[0].mxu0
  %v6557 = vadd.f32 %v6061, %v6556
  %v6558 = vpop.f32.mrb[0].mxu0
  %6559 = vmatprep.mubr.bf16.mxu0 0
  %6560 = vmatmul.mubr.bf16.gmra.mrb[0].mxu0 %v6026
  %v6561 = vpop.f32.mrb[0].mxu0
  %v6562 = vadd.f32 %v6061, %v6561
  %v6563 = vpop.f32.mrb[0].mxu0
  %v6564 = vpop.f32.mrb[0].mxu0
  %v6565 = vadd.f32 %v6061, %v6564
  %v6566 = vpop.f32.mrb[0].mxu0
  %6567 = vmatprep.mubr.bf16.mxu0 0
  %6568 = vmatmul.mubr.bf16.gmra.mrb[0].mxu0 %v6027
  %v6569 = vpop.f32.mrb[0].mxu0
  %v6570 = vadd.f32 %v6061, %v6569
  %v6571 = vpop.f32.mrb[0].mxu0
  %v6572 = vpop.f32.mrb[0].mxu0
  %v6573 = vadd.f32 %v6061, %v6572
  %v6574 = vpop.f32.mrb[0].mxu0
  %6575 = vmatprep.mubr.bf16.mxu0 0
  %6576 = vmatmul.mubr.bf16.gmra.mrb[0].mxu0 %v6028
  %v6577 = vpop.f32.mrb[0].mxu0
  %v6578 = vadd.f32 %v6061, %v6577
  %v6579 = vpop.f32.mrb[0].mxu0
  %v6580 = vpop.f32.mrb[0].mxu0
  %v6581 = vadd.f32 %v6061, %v6580
  %v6582 = vpop.f32.mrb[0].mxu0
  %6583 = vmatprep.mubr.bf16.mxu0 0
  %6584 = vmatmul.mubr.bf16.gmra.mrb[0].mxu0 %v6029
  %v6585 = vpop.f32.mrb[0].mxu0
  %v6586 = vadd.f32 %v6061, %v6585
  %v6587 = vpop.f32.mrb[0].mxu0
  %v6588 = vpop.f32.mrb[0].mxu0
  %v6589 = vadd.f32 %v6061, %v6588
  %v6590 = vpop.f32.mrb[0].mxu0
  %6591 = vmatprep.mubr.bf16.mxu0 0
  %6592 = vmatmul.mubr.bf16.gmra.mrb[0].mxu0 %v6030
  %v6593 = vpop.f32.mrb[0].mxu0
  %v6594 = vadd.f32 %v6061, %v6593
  %v6595 = vpop.f32.mrb[0].mxu0
  %v6596 = vpop.f32.mrb[0].mxu0
  %v6597 = vadd.f32 %v6061, %v6596
  %v6598 = vpop.f32.mrb[0].mxu0
  %6599 = vmatprep.mubr.bf16.mxu0 0
  %6600 = vmatmul.mubr.bf16.gmra.mrb[0].mxu0 %v6031
  %v6601 = vpop.f32.mrb[0].mxu0
  %v6602 = vadd.f32 %v6061, %v6601
  %v6603 = vpop.f32.mrb[0].mxu0
  %v6604 = vpop.f32.mrb[0].mxu0
  %v6605 = vadd.f32 %v6061, %v6604
  %v6606 = vpop.f32.mrb[0].mxu0
  %6607 = vmatprep.mubr.bf16.mxu0 0
  %6608 = vmatmul.mubr.bf16.gmra.mrb[0].mxu0 %v6032
  %v6609 = vpop.f32.mrb[0].mxu0
  %v6610 = vadd.f32 %v6061, %v6609
  %v6611 = vpop.f32.mrb[0].mxu0
  %v6612 = vpop.f32.mrb[0].mxu0
  %v6613 = vadd.f32 %v6061, %v6612
  %v6614 = vpop.f32.mrb[0].mxu0
  %6615 = vmatprep.mubr.bf16.mxu0 0
  %6616 = vmatmul.mubr.bf16.gmra.mrb[0].mxu0 %v6033
  %v6617 = vpop.f32.mrb[0].mxu0
  %v6618 = vadd.f32 %v6061, %v6617
  %v6619 = vpop.f32.mrb[0].mxu0
  %v6620 = vpop.f32.mrb[0].mxu0
  %v6621 = vadd.f32 %v6061, %v6620
  %v6622 = vpop.f32.mrb[0].mxu0
  %6623 = vmatprep.mubr.bf16.mxu0 0
  %6624 = vmatmul.mubr.bf16.gmra.mrb[0].mxu0 %v6034
  %v6625 = vpop.f32.mrb[0].mxu0
  %v6626 = vadd.f32 %v6061, %v6625
  %v6627 = vpop.f32.mrb[0].mxu0
  %v6628 = vpop.f32.mrb[0].mxu0
  %v6629 = vadd.f32 %v6061, %v6628
  %v6630 = vpop.f32.mrb[0].mxu0
  %6631 = vmatprep.mubr.bf16.mxu0 0
  %6632 = vmatmul.mubr.bf16.gmra.mrb[0].mxu0 %v6035
  %v6633 = vpop.f32.mrb[0].mxu0
  %v6634 = vadd.f32 %v6061, %v6633
  %v6635 = vpop.f32.mrb[0].mxu0
  %v6636 = vpop.f32.mrb[0].mxu0
  %v6637 = vadd.f32 %v6061, %v6636
  %v6638 = vpop.f32.mrb[0].mxu0
  %6639 = vmatprep.mubr.bf16.mxu0 0
  %6640 = vmatmul.mubr.bf16.gmra.mrb[0].mxu0 %v6036
  %v6641 = vpop.f32.mrb[0].mxu0
  %v6642 = vadd.f32 %v6061, %v6641
  %v6643 = vpop.f32.mrb[0].mxu0
  %v6644 = vpop.f32.mrb[0].mxu0
  %v6645 = vadd.f32 %v6061, %v6644
  %v6646 = vpop.f32.mrb[0].mxu0
  %6647 = vmatprep.mubr.bf16.mxu0 0
  %6648 = vmatmul.mubr.bf16.gmra.mrb[0].mxu0 %v6037
  %v6649 = vpop.f32.mrb[0].mxu0
  %v6650 = vadd.f32 %v6061, %v6649
  %v6651 = vpop.f32.mrb[0].mxu0
  %v6652 = vpop.f32.mrb[0].mxu0
  %v6653 = vadd.f32 %v6061, %v6652
  %v6654 = vpop.f32.mrb[0].mxu0
  %6655 = vdwg.mxu0
  %v6656 = vmax.f32 %v6146, 0.0
  %v6657 = vmax.f32 %v6149, 0.0
  %v6658 = vmax.f32 %v6154, 0.0
  %v6659 = vmax.f32 %v6157, 0.0
  %v6660 = vmax.f32 %v6162, 0.0
  %v6661 = vmax.f32 %v6165, 0.0
  %v6662 = vmax.f32 %v6170, 0.0
  %v6663 = vmax.f32 %v6173, 0.0
  %v6664 = vmax.f32 %v6178, 0.0
  %v6665 = vmax.f32 %v6181, 0.0
  %v6666 = vmax.f32 %v6186, 0.0
  %v6667 = vmax.f32 %v6189, 0.0
  %v6668 = vmax.f32 %v6194, 0.0
  %v6669 = vmax.f32 %v6197, 0.0
  %v6670 = vmax.f32 %v6202, 0.0
  %v6671 = vmax.f32 %v6205, 0.0
  %v6672 = vmax.f32 %v6210, 0.0
  %v6673 = vmax.f32 %v6213, 0.0
  %v6674 = vmax.f32 %v6218, 0.0
  %v6675 = vmax.f32 %v6221, 0.0
  %v6676 = vmax.f32 %v6226, 0.0
  %v6677 = vmax.f32 %v6229, 0.0
  %v6678 = vmax.f32 %v6234, 0.0
  %v6679 = vmax.f32 %v6237, 0.0
  %v6680 = vmax.f32 %v6242, 0.0
  %v6681 = vmax.f32 %v6245, 0.0
  %v6682 = vmax.f32 %v6250, 0.0
  %v6683 = vmax.f32 %v6253, 0.0
  %v6684 = vmax.f32 %v6258, 0.0
  %v6685 = vmax.f32 %v6261, 0.0
  %v6686 = vmax.f32 %v6266, 0.0
  %v6687 = vmax.f32 %v6269, 0.0
  %v6688 = vmax.f32 %v6274, 0.0
  %v6689 = vmax.f32 %v6277, 0.0
  %v6690 = vmax.f32 %v6282, 0.0
  %v6691 = vmax.f32 %v6285, 0.0
  %v6692 = vmax.f32 %v6290, 0.0
  %v6693 = vmax.f32 %v6293, 0.0
  %v6694 = vmax.f32 %v6298, 0.0
  %v6695 = vmax.f32 %v6301, 0.0
  %v6696 = vmax.f32 %v6306, 0.0
  %v6697 = vmax.f32 %v6309, 0.0
  %v6698 = vmax.f32 %v6314, 0.0
  %v6699 = vmax.f32 %v6317, 0.0
  %v6700 = vmax.f32 %v6322, 0.0
  %v6701 = vmax.f32 %v6325, 0.0
  %v6702 = vmax.f32 %v6330, 0.0
  %v6703 = vmax.f32 %v6333, 0.0
  %v6704 = vmax.f32 %v6338, 0.0
  %v6705 = vmax.f32 %v6341, 0.0
  %v6706 = vmax.f32 %v6346, 0.0
  %v6707 = vmax.f32 %v6349, 0.0
  %v6708 = vmax.f32 %v6354, 0.0
  %v6709 = vmax.f32 %v6357, 0.0
  %v6710 = vmax.f32 %v6362, 0.0
  %v6711 = vmax.f32 %v6365, 0.0
  %v6712 = vmax.f32 %v6370, 0.0
  %v6713 = vmax.f32 %v6373, 0.0
  %v6714 = vmax.f32 %v6378, 0.0
  %v6715 = vmax.f32 %v6381, 0.0
  %v6716 = vmax.f32 %v6386, 0.0
  %v6717 = vmax.f32 %v6389, 0.0
  %v6718 = vmax.f32 %v6394, 0.0
  %v6719 = vmax.f32 %v6397, 0.0
  %v6720 = vmax.f32 %v6402, 0.0
  %v6721 = vmax.f32 %v6405, 0.0
  %v6722 = vmax.f32 %v6410, 0.0
  %v6723 = vmax.f32 %v6413, 0.0
  %v6724 = vmax.f32 %v6418, 0.0
  %v6725 = vmax.f32 %v6421, 0.0
  %v6726 = vmax.f32 %v6426, 0.0
  %v6727 = vmax.f32 %v6429, 0.0
  %v6728 = vmax.f32 %v6434, 0.0
  %v6729 = vmax.f32 %v6437, 0.0
  %v6730 = vmax.f32 %v6442, 0.0
  %v6731 = vmax.f32 %v6445, 0.0
  %v6732 = vmax.f32 %v6450, 0.0
  %v6733 = vmax.f32 %v6453, 0.0
  %v6734 = vmax.f32 %v6458, 0.0
  %v6735 = vmax.f32 %v6461, 0.0
  %v6736 = vmax.f32 %v6466, 0.0
  %v6737 = vmax.f32 %v6469, 0.0
  %v6738 = vmax.f32 %v6474, 0.0
  %v6739 = vmax.f32 %v6477, 0.0
  %v6740 = vmax.f32 %v6482, 0.0
  %v6741 = vmax.f32 %v6485, 0.0
  %v6742 = vmax.f32 %v6490, 0.0
  %v6743 = vmax.f32 %v6493, 0.0
  %v6744 = vmax.f32 %v6498, 0.0
  %v6745 = vmax.f32 %v6501, 0.0
  %v6746 = vmax.f32 %v6506, 0.0
  %v6747 = vmax.f32 %v6509, 0.0
  %v6748 = vmax.f32 %v6514, 0.0
  %v6749 = vmax.f32 %v6517, 0.0
  %v6750 = vmax.f32 %v6522, 0.0
  %v6751 = vmax.f32 %v6525, 0.0
  %v6752 = vmax.f32 %v6530, 0.0
  %v6753 = vmax.f32 %v6533, 0.0
  %v6754 = vmax.f32 %v6538, 0.0
  %v6755 = vmax.f32 %v6541, 0.0
  %v6756 = vmax.f32 %v6546, 0.0
  %v6757 = vmax.f32 %v6549, 0.0
  %v6758 = vmax.f32 %v6554, 0.0
  %v6759 = vmax.f32 %v6557, 0.0
  %v6760 = vmax.f32 %v6562, 0.0
  %v6761 = vmax.f32 %v6565, 0.0
  %v6762 = vmax.f32 %v6570, 0.0
  %v6763 = vmax.f32 %v6573, 0.0
  %v6764 = vmax.f32 %v6578, 0.0
  %v6765 = vmax.f32 %v6581, 0.0
  %v6766 = vmax.f32 %v6586, 0.0
  %v6767 = vmax.f32 %v6589, 0.0
  %v6768 = vmax.f32 %v6594, 0.0
  %v6769 = vmax.f32 %v6597, 0.0
  %v6770 = vmax.f32 %v6602, 0.0
  %v6771 = vmax.f32 %v6605, 0.0
  %v6772 = vmax.f32 %v6610, 0.0
  %v6773 = vmax.f32 %v6613, 0.0
  %v6774 = vmax.f32 %v6618, 0.0
  %v6775 = vmax.f32 %v6621, 0.0
  %v6776 = vmax.f32 %v6626, 0.0
  %v6777 = vmax.f32 %v6629, 0.0
  %v6778 = vmax.f32 %v6634, 0.0
  %v6779 = vmax.f32 %v6637, 0.0
  %v6780 = vmax.f32 %v6642, 0.0
  %v6781 = vmax.f32 %v6645, 0.0
  %v6782 = vmax.f32 %v6650, 0.0
  %v6783 = vmax.f32 %v6653, 0.0
  %v6784 = vpack.c.bf16 %v6657, %v6656
  %v6785 = vpack.c.bf16 %v6659, %v6658
  %v6786 = vpack.c.bf16 %v6661, %v6660
  %v6787 = vpack.c.bf16 %v6663, %v6662
  %v6788 = vpack.c.bf16 %v6665, %v6664
  %v6789 = vpack.c.bf16 %v6667, %v6666
  %v6790 = vpack.c.bf16 %v6669, %v6668
  %v6791 = vpack.c.bf16 %v6671, %v6670
  %v6792 = vpack.c.bf16 %v6673, %v6672
  %v6793 = vpack.c.bf16 %v6675, %v6674
  %v6794 = vpack.c.bf16 %v6677, %v6676
  %v6795 = vpack.c.bf16 %v6679, %v6678
  %v6796 = vpack.c.bf16 %v6681, %v6680
  %v6797 = vpack.c.bf16 %v6683, %v6682
  %v6798 = vpack.c.bf16 %v6685, %v6684
  %v6799 = vpack.c.bf16 %v6687, %v6686
  %v6800 = vpack.c.bf16 %v6689, %v6688
  %v6801 = vpack.c.bf16 %v6691, %v6690
  %v6802 = vpack.c.bf16 %v6693, %v6692
  %v6803 = vpack.c.bf16 %v6695, %v6694
  %v6804 = vpack.c.bf16 %v6697, %v6696
  %v6805 = vpack.c.bf16 %v6699, %v6698
  %v6806 = vpack.c.bf16 %v6701, %v6700
  %v6807 = vpack.c.bf16 %v6703, %v6702
  %v6808 = vpack.c.bf16 %v6705, %v6704
  %v6809 = vpack.c.bf16 %v6707, %v6706
  %v6810 = vpack.c.bf16 %v6709, %v6708
  %v6811 = vpack.c.bf16 %v6711, %v6710
  %v6812 = vpack.c.bf16 %v6713, %v6712
  %v6813 = vpack.c.bf16 %v6715, %v6714
  %v6814 = vpack.c.bf16 %v6717, %v6716
  %v6815 = vpack.c.bf16 %v6719, %v6718
  %v6816 = vpack.c.bf16 %v6721, %v6720
  %v6817 = vpack.c.bf16 %v6723, %v6722
  %v6818 = vpack.c.bf16 %v6725, %v6724
  %v6819 = vpack.c.bf16 %v6727, %v6726
  %v6820 = vpack.c.bf16 %v6729, %v6728
  %v6821 = vpack.c.bf16 %v6731, %v6730
  %v6822 = vpack.c.bf16 %v6733, %v6732
  %v6823 = vpack.c.bf16 %v6735, %v6734
  %v6824 = vpack.c.bf16 %v6737, %v6736
  %v6825 = vpack.c.bf16 %v6739, %v6738
  %v6826 = vpack.c.bf16 %v6741, %v6740
  %v6827 = vpack.c.bf16 %v6743, %v6742
  %v6828 = vpack.c.bf16 %v6745, %v6744
  %v6829 = vpack.c.bf16 %v6747, %v6746
  %v6830 = vpack.c.bf16 %v6749, %v6748
  %v6831 = vpack.c.bf16 %v6751, %v6750
  %v6832 = vpack.c.bf16 %v6753, %v6752
  %v6833 = vpack.c.bf16 %v6755, %v6754
  %v6834 = vpack.c.bf16 %v6757, %v6756
  %v6835 = vpack.c.bf16 %v6759, %v6758
  %v6836 = vpack.c.bf16 %v6761, %v6760
  %v6837 = vpack.c.bf16 %v6763, %v6762
  %v6838 = vpack.c.bf16 %v6765, %v6764
  %v6839 = vpack.c.bf16 %v6767, %v6766
  %v6840 = vpack.c.bf16 %v6769, %v6768
  %v6841 = vpack.c.bf16 %v6771, %v6770
  %v6842 = vpack.c.bf16 %v6773, %v6772
  %v6843 = vpack.c.bf16 %v6775, %v6774
  %v6844 = vpack.c.bf16 %v6777, %v6776
  %v6845 = vpack.c.bf16 %v6779, %v6778
  %v6846 = vpack.c.bf16 %v6781, %v6780
  %v6847 = vpack.c.bf16 %v6783, %v6782
  %s6848 = scalar_lea.vmem %s3, 320
  %v6849 = vld [vmem:[%s6848] sm:$0xf]
  %v6850 = vld [vmem:[%s6848 + $0x4] sm:$0xf]
  %v6851 = vld [vmem:[%s6848 + $0x8] sm:$0xf]
  %v6852 = vld [vmem:[%s6848 + $0xc] sm:$0xf]
  %v6853 = vld [vmem:[%s6848 + $0x10] sm:$0xf]
  %v6854 = vld [vmem:[%s6848 + $0x14] sm:$0xf]
  %v6855 = vld [vmem:[%s6848 + $0x18] sm:$0xf]
  %v6856 = vld [vmem:[%s6848 + $0x1c] sm:$0xf]
  %v6857 = vld [vmem:[%s6848 + $0x20] sm:$0xf]
  %v6858 = vld [vmem:[%s6848 + $0x24] sm:$0xf]
  %v6859 = vld [vmem:[%s6848 + $0x28] sm:$0xf]
  %v6860 = vld [vmem:[%s6848 + $0x2c] sm:$0xf]
  %v6861 = vld [vmem:[%s6848 + $0x30] sm:$0xf]
  %v6862 = vld [vmem:[%s6848 + $0x34] sm:$0xf]
  %v6863 = vld [vmem:[%s6848 + $0x38] sm:$0xf]
  %v6864 = vld [vmem:[%s6848 + $0x3c] sm:$0xf]
  %s6865 = scalar_lea.vmem %s4, 5
  %v6866 = vld [vmem:[%s6865] sm:$0x1]
  %v6868 = vlaneseq
  %v6869 = vshrl.u32 %v6868, 7
  %v6870 = vsub.s32 0, %v6869
  %v6871 = vrot.slane %v6866, %v6870
  %v6889 = vunpack.c.l.b16 %v6849
  %v6890 = vunpack.c.l.b16 %v6850
  %v6891 = vunpack.c.l.b16 %v6851
  %v6892 = vunpack.c.l.b16 %v6852
  %v6893 = vunpack.c.l.b16 %v6853
  %v6894 = vunpack.c.l.b16 %v6854
  %v6895 = vunpack.c.l.b16 %v6855
  %v6896 = vunpack.c.l.b16 %v6856
  %v6897 = vunpack.c.l.b16 %v6857
  %v6898 = vunpack.c.l.b16 %v6858
  %v6899 = vunpack.c.l.b16 %v6859
  %v6900 = vunpack.c.l.b16 %v6860
  %v6901 = vunpack.c.l.b16 %v6861
  %v6902 = vunpack.c.l.b16 %v6862
  %v6903 = vunpack.c.l.b16 %v6863
  %v6904 = vunpack.c.l.b16 %v6864
  %v6905 = vpack.c.b16 %v6890, %v6889
  %v6906 = vpack.c.b16 %v6892, %v6891
  %v6907 = vpack.c.b16 %v6894, %v6893
  %v6908 = vpack.c.b16 %v6896, %v6895
  %v6909 = vpack.c.b16 %v6898, %v6897
  %v6910 = vpack.c.b16 %v6900, %v6899
  %v6911 = vpack.c.b16 %v6902, %v6901
  %v6912 = vpack.c.b16 %v6904, %v6903
  %6921 = vmatprep.subr.bf16.mxu0 0
  %6922 = vmatpush1.bf16.msra.mxu0 %v6905
  %6923 = vmatprep.subr.bf16.mxu0 0
  %6924 = vmatpush1.bf16.msra.mxu0 %v6906
  %6925 = vmatprep.subr.bf16.mxu0 0
  %6926 = vmatpush1.bf16.msra.mxu0 %v6907
  %6927 = vmatprep.subr.bf16.mxu0 0
  %6928 = vmatpush1.bf16.msra.mxu0 %v6908
  %6929 = vmatprep.subr.bf16.mxu0 0
  %6930 = vmatpush1.bf16.msra.mxu0 %v6909
  %6931 = vmatprep.subr.bf16.mxu0 0
  %6932 = vmatpush1.bf16.msra.mxu0 %v6910
  %6933 = vmatprep.subr.bf16.mxu0 0
  %6934 = vmatpush1.bf16.msra.mxu0 %v6911
  %6935 = vmatprep.subr.bf16.mxu0 0
  %6936 = vmatpush1.bf16.msra.mxu0 %v6912
  %6937 = vmatprep.subr.bf16.mxu0 0
  %6938 = vmatpush1.bf16.msra.mxu0 0
  %6939 = vmatprep.subr.bf16.mxu0 0
  %6940 = vmatpush1.bf16.msra.mxu0 0
  %6941 = vmatprep.subr.bf16.mxu0 0
  %6942 = vmatpush1.bf16.msra.mxu0 0
  %6943 = vmatprep.subr.bf16.mxu0 0
  %6944 = vmatpush1.bf16.msra.mxu0 0
  %6945 = vmatprep.subr.bf16.mxu0 0
  %6946 = vmatpush1.bf16.msra.mxu0 0
  %6947 = vmatprep.subr.bf16.mxu0 0
  %6948 = vmatpush1.bf16.msra.mxu0 0
  %6949 = vmatprep.subr.bf16.mxu0 0
  %6950 = vmatpush1.bf16.msra.mxu0 0
  %6951 = vmatprep.subr.bf16.mxu0 0
  %6952 = vmatpush1.bf16.msra.mxu0 0
  %6953 = vmatprep.mubr.bf16.mxu0 0
  %6954 = vmatmul.mubr.bf16.gmra.mrb[0].mxu0 %v6784
  %v6955 = vpop.f32.mrb[0].mxu0
  %v6956 = vadd.f32 %v6871, %v6955
  %v6957 = vpop.f32.mrb[0].mxu0
  %v6958 = vpop.f32.mrb[0].mxu0
  %v6959 = vadd.f32 %v6871, %v6958
  %v6960 = vpop.f32.mrb[0].mxu0
  %6961 = vmatprep.mubr.bf16.mxu0 0
  %6962 = vmatmul.mubr.bf16.gmra.mrb[0].mxu0 %v6785
  %v6963 = vpop.f32.mrb[0].mxu0
  %v6964 = vadd.f32 %v6871, %v6963
  %v6965 = vpop.f32.mrb[0].mxu0
  %v6966 = vpop.f32.mrb[0].mxu0
  %v6967 = vadd.f32 %v6871, %v6966
  %v6968 = vpop.f32.mrb[0].mxu0
  %6969 = vmatprep.mubr.bf16.mxu0 0
  %6970 = vmatmul.mubr.bf16.gmra.mrb[0].mxu0 %v6786
  %v6971 = vpop.f32.mrb[0].mxu0
  %v6972 = vadd.f32 %v6871, %v6971
  %v6973 = vpop.f32.mrb[0].mxu0
  %v6974 = vpop.f32.mrb[0].mxu0
  %v6975 = vadd.f32 %v6871, %v6974
  %v6976 = vpop.f32.mrb[0].mxu0
  %6977 = vmatprep.mubr.bf16.mxu0 0
  %6978 = vmatmul.mubr.bf16.gmra.mrb[0].mxu0 %v6787
  %v6979 = vpop.f32.mrb[0].mxu0
  %v6980 = vadd.f32 %v6871, %v6979
  %v6981 = vpop.f32.mrb[0].mxu0
  %v6982 = vpop.f32.mrb[0].mxu0
  %v6983 = vadd.f32 %v6871, %v6982
  %v6984 = vpop.f32.mrb[0].mxu0
  %6985 = vmatprep.mubr.bf16.mxu0 0
  %6986 = vmatmul.mubr.bf16.gmra.mrb[0].mxu0 %v6788
  %v6987 = vpop.f32.mrb[0].mxu0
  %v6988 = vadd.f32 %v6871, %v6987
  %v6989 = vpop.f32.mrb[0].mxu0
  %v6990 = vpop.f32.mrb[0].mxu0
  %v6991 = vadd.f32 %v6871, %v6990
  %v6992 = vpop.f32.mrb[0].mxu0
  %6993 = vmatprep.mubr.bf16.mxu0 0
  %6994 = vmatmul.mubr.bf16.gmra.mrb[0].mxu0 %v6789
  %v6995 = vpop.f32.mrb[0].mxu0
  %v6996 = vadd.f32 %v6871, %v6995
  %v6997 = vpop.f32.mrb[0].mxu0
  %v6998 = vpop.f32.mrb[0].mxu0
  %v6999 = vadd.f32 %v6871, %v6998
  %v7000 = vpop.f32.mrb[0].mxu0
  %7001 = vmatprep.mubr.bf16.mxu0 0
  %7002 = vmatmul.mubr.bf16.gmra.mrb[0].mxu0 %v6790
  %v7003 = vpop.f32.mrb[0].mxu0
  %v7004 = vadd.f32 %v6871, %v7003
  %v7005 = vpop.f32.mrb[0].mxu0
  %v7006 = vpop.f32.mrb[0].mxu0
  %v7007 = vadd.f32 %v6871, %v7006
  %v7008 = vpop.f32.mrb[0].mxu0
  %7009 = vmatprep.mubr.bf16.mxu0 0
  %7010 = vmatmul.mubr.bf16.gmra.mrb[0].mxu0 %v6791
  %v7011 = vpop.f32.mrb[0].mxu0
  %v7012 = vadd.f32 %v6871, %v7011
  %v7013 = vpop.f32.mrb[0].mxu0
  %v7014 = vpop.f32.mrb[0].mxu0
  %v7015 = vadd.f32 %v6871, %v7014
  %v7016 = vpop.f32.mrb[0].mxu0
  %7017 = vmatprep.mubr.bf16.mxu0 0
  %7018 = vmatmul.mubr.bf16.gmra.mrb[0].mxu0 %v6792
  %v7019 = vpop.f32.mrb[0].mxu0
  %v7020 = vadd.f32 %v6871, %v7019
  %v7021 = vpop.f32.mrb[0].mxu0
  %v7022 = vpop.f32.mrb[0].mxu0
  %v7023 = vadd.f32 %v6871, %v7022
  %v7024 = vpop.f32.mrb[0].mxu0
  %7025 = vmatprep.mubr.bf16.mxu0 0
  %7026 = vmatmul.mubr.bf16.gmra.mrb[0].mxu0 %v6793
  %v7027 = vpop.f32.mrb[0].mxu0
  %v7028 = vadd.f32 %v6871, %v7027
  %v7029 = vpop.f32.mrb[0].mxu0
  %v7030 = vpop.f32.mrb[0].mxu0
  %v7031 = vadd.f32 %v6871, %v7030
  %v7032 = vpop.f32.mrb[0].mxu0
  %7033 = vmatprep.mubr.bf16.mxu0 0
  %7034 = vmatmul.mubr.bf16.gmra.mrb[0].mxu0 %v6794
  %v7035 = vpop.f32.mrb[0].mxu0
  %v7036 = vadd.f32 %v6871, %v7035
  %v7037 = vpop.f32.mrb[0].mxu0
  %v7038 = vpop.f32.mrb[0].mxu0
  %v7039 = vadd.f32 %v6871, %v7038
  %v7040 = vpop.f32.mrb[0].mxu0
  %7041 = vmatprep.mubr.bf16.mxu0 0
  %7042 = vmatmul.mubr.bf16.gmra.mrb[0].mxu0 %v6795
  %v7043 = vpop.f32.mrb[0].mxu0
  %v7044 = vadd.f32 %v6871, %v7043
  %v7045 = vpop.f32.mrb[0].mxu0
  %v7046 = vpop.f32.mrb[0].mxu0
  %v7047 = vadd.f32 %v6871, %v7046
  %v7048 = vpop.f32.mrb[0].mxu0
  %7049 = vmatprep.mubr.bf16.mxu0 0
  %7050 = vmatmul.mubr.bf16.gmra.mrb[0].mxu0 %v6796
  %v7051 = vpop.f32.mrb[0].mxu0
  %v7052 = vadd.f32 %v6871, %v7051
  %v7053 = vpop.f32.mrb[0].mxu0
  %v7054 = vpop.f32.mrb[0].mxu0
  %v7055 = vadd.f32 %v6871, %v7054
  %v7056 = vpop.f32.mrb[0].mxu0
  %7057 = vmatprep.mubr.bf16.mxu0 0
  %7058 = vmatmul.mubr.bf16.gmra.mrb[0].mxu0 %v6797
  %v7059 = vpop.f32.mrb[0].mxu0
  %v7060 = vadd.f32 %v6871, %v7059
  %v7061 = vpop.f32.mrb[0].mxu0
  %v7062 = vpop.f32.mrb[0].mxu0
  %v7063 = vadd.f32 %v6871, %v7062
  %v7064 = vpop.f32.mrb[0].mxu0
  %7065 = vmatprep.mubr.bf16.mxu0 0
  %7066 = vmatmul.mubr.bf16.gmra.mrb[0].mxu0 %v6798
  %v7067 = vpop.f32.mrb[0].mxu0
  %v7068 = vadd.f32 %v6871, %v7067
  %v7069 = vpop.f32.mrb[0].mxu0
  %v7070 = vpop.f32.mrb[0].mxu0
  %v7071 = vadd.f32 %v6871, %v7070
  %v7072 = vpop.f32.mrb[0].mxu0
  %7073 = vmatprep.mubr.bf16.mxu0 0
  %7074 = vmatmul.mubr.bf16.gmra.mrb[0].mxu0 %v6799
  %v7075 = vpop.f32.mrb[0].mxu0
  %v7076 = vadd.f32 %v6871, %v7075
  %v7077 = vpop.f32.mrb[0].mxu0
  %v7078 = vpop.f32.mrb[0].mxu0
  %v7079 = vadd.f32 %v6871, %v7078
  %v7080 = vpop.f32.mrb[0].mxu0
  %7081 = vmatprep.mubr.bf16.mxu0 0
  %7082 = vmatmul.mubr.bf16.gmra.mrb[0].mxu0 %v6800
  %v7083 = vpop.f32.mrb[0].mxu0
  %v7084 = vadd.f32 %v6871, %v7083
  %v7085 = vpop.f32.mrb[0].mxu0
  %v7086 = vpop.f32.mrb[0].mxu0
  %v7087 = vadd.f32 %v6871, %v7086
  %v7088 = vpop.f32.mrb[0].mxu0
  %7089 = vmatprep.mubr.bf16.mxu0 0
  %7090 = vmatmul.mubr.bf16.gmra.mrb[0].mxu0 %v6801
  %v7091 = vpop.f32.mrb[0].mxu0
  %v7092 = vadd.f32 %v6871, %v7091
  %v7093 = vpop.f32.mrb[0].mxu0
  %v7094 = vpop.f32.mrb[0].mxu0
  %v7095 = vadd.f32 %v6871, %v7094
  %v7096 = vpop.f32.mrb[0].mxu0
  %7097 = vmatprep.mubr.bf16.mxu0 0
  %7098 = vmatmul.mubr.bf16.gmra.mrb[0].mxu0 %v6802
  %v7099 = vpop.f32.mrb[0].mxu0
  %v7100 = vadd.f32 %v6871, %v7099
  %v7101 = vpop.f32.mrb[0].mxu0
  %v7102 = vpop.f32.mrb[0].mxu0
  %v7103 = vadd.f32 %v6871, %v7102
  %v7104 = vpop.f32.mrb[0].mxu0
  %7105 = vmatprep.mubr.bf16.mxu0 0
  %7106 = vmatmul.mubr.bf16.gmra.mrb[0].mxu0 %v6803
  %v7107 = vpop.f32.mrb[0].mxu0
  %v7108 = vadd.f32 %v6871, %v7107
  %v7109 = vpop.f32.mrb[0].mxu0
  %v7110 = vpop.f32.mrb[0].mxu0
  %v7111 = vadd.f32 %v6871, %v7110
  %v7112 = vpop.f32.mrb[0].mxu0
  %7113 = vmatprep.mubr.bf16.mxu0 0
  %7114 = vmatmul.mubr.bf16.gmra.mrb[0].mxu0 %v6804
  %v7115 = vpop.f32.mrb[0].mxu0
  %v7116 = vadd.f32 %v6871, %v7115
  %v7117 = vpop.f32.mrb[0].mxu0
  %v7118 = vpop.f32.mrb[0].mxu0
  %v7119 = vadd.f32 %v6871, %v7118
  %v7120 = vpop.f32.mrb[0].mxu0
  %7121 = vmatprep.mubr.bf16.mxu0 0
  %7122 = vmatmul.mubr.bf16.gmra.mrb[0].mxu0 %v6805
  %v7123 = vpop.f32.mrb[0].mxu0
  %v7124 = vadd.f32 %v6871, %v7123
  %v7125 = vpop.f32.mrb[0].mxu0
  %v7126 = vpop.f32.mrb[0].mxu0
  %v7127 = vadd.f32 %v6871, %v7126
  %v7128 = vpop.f32.mrb[0].mxu0
  %7129 = vmatprep.mubr.bf16.mxu0 0
  %7130 = vmatmul.mubr.bf16.gmra.mrb[0].mxu0 %v6806
  %v7131 = vpop.f32.mrb[0].mxu0
  %v7132 = vadd.f32 %v6871, %v7131
  %v7133 = vpop.f32.mrb[0].mxu0
  %v7134 = vpop.f32.mrb[0].mxu0
  %v7135 = vadd.f32 %v6871, %v7134
  %v7136 = vpop.f32.mrb[0].mxu0
  %7137 = vmatprep.mubr.bf16.mxu0 0
  %7138 = vmatmul.mubr.bf16.gmra.mrb[0].mxu0 %v6807
  %v7139 = vpop.f32.mrb[0].mxu0
  %v7140 = vadd.f32 %v6871, %v7139
  %v7141 = vpop.f32.mrb[0].mxu0
  %v7142 = vpop.f32.mrb[0].mxu0
  %v7143 = vadd.f32 %v6871, %v7142
  %v7144 = vpop.f32.mrb[0].mxu0
  %7145 = vmatprep.mubr.bf16.mxu0 0
  %7146 = vmatmul.mubr.bf16.gmra.mrb[0].mxu0 %v6808
  %v7147 = vpop.f32.mrb[0].mxu0
  %v7148 = vadd.f32 %v6871, %v7147
  %v7149 = vpop.f32.mrb[0].mxu0
  %v7150 = vpop.f32.mrb[0].mxu0
  %v7151 = vadd.f32 %v6871, %v7150
  %v7152 = vpop.f32.mrb[0].mxu0
  %7153 = vmatprep.mubr.bf16.mxu0 0
  %7154 = vmatmul.mubr.bf16.gmra.mrb[0].mxu0 %v6809
  %v7155 = vpop.f32.mrb[0].mxu0
  %v7156 = vadd.f32 %v6871, %v7155
  %v7157 = vpop.f32.mrb[0].mxu0
  %v7158 = vpop.f32.mrb[0].mxu0
  %v7159 = vadd.f32 %v6871, %v7158
  %v7160 = vpop.f32.mrb[0].mxu0
  %7161 = vmatprep.mubr.bf16.mxu0 0
  %7162 = vmatmul.mubr.bf16.gmra.mrb[0].mxu0 %v6810
  %v7163 = vpop.f32.mrb[0].mxu0
  %v7164 = vadd.f32 %v6871, %v7163
  %v7165 = vpop.f32.mrb[0].mxu0
  %v7166 = vpop.f32.mrb[0].mxu0
  %v7167 = vadd.f32 %v6871, %v7166
  %v7168 = vpop.f32.mrb[0].mxu0
  %7169 = vmatprep.mubr.bf16.mxu0 0
  %7170 = vmatmul.mubr.bf16.gmra.mrb[0].mxu0 %v6811
  %v7171 = vpop.f32.mrb[0].mxu0
  %v7172 = vadd.f32 %v6871, %v7171
  %v7173 = vpop.f32.mrb[0].mxu0
  %v7174 = vpop.f32.mrb[0].mxu0
  %v7175 = vadd.f32 %v6871, %v7174
  %v7176 = vpop.f32.mrb[0].mxu0
  %7177 = vmatprep.mubr.bf16.mxu0 0
  %7178 = vmatmul.mubr.bf16.gmra.mrb[0].mxu0 %v6812
  %v7179 = vpop.f32.mrb[0].mxu0
  %v7180 = vadd.f32 %v6871, %v7179
  %v7181 = vpop.f32.mrb[0].mxu0
  %v7182 = vpop.f32.mrb[0].mxu0
  %v7183 = vadd.f32 %v6871, %v7182
  %v7184 = vpop.f32.mrb[0].mxu0
  %7185 = vmatprep.mubr.bf16.mxu0 0
  %7186 = vmatmul.mubr.bf16.gmra.mrb[0].mxu0 %v6813
  %v7187 = vpop.f32.mrb[0].mxu0
  %v7188 = vadd.f32 %v6871, %v7187
  %v7189 = vpop.f32.mrb[0].mxu0
  %v7190 = vpop.f32.mrb[0].mxu0
  %v7191 = vadd.f32 %v6871, %v7190
  %v7192 = vpop.f32.mrb[0].mxu0
  %7193 = vmatprep.mubr.bf16.mxu0 0
  %7194 = vmatmul.mubr.bf16.gmra.mrb[0].mxu0 %v6814
  %v7195 = vpop.f32.mrb[0].mxu0
  %v7196 = vadd.f32 %v6871, %v7195
  %v7197 = vpop.f32.mrb[0].mxu0
  %v7198 = vpop.f32.mrb[0].mxu0
  %v7199 = vadd.f32 %v6871, %v7198
  %v7200 = vpop.f32.mrb[0].mxu0
  %7201 = vmatprep.mubr.bf16.mxu0 0
  %7202 = vmatmul.mubr.bf16.gmra.mrb[0].mxu0 %v6815
  %v7203 = vpop.f32.mrb[0].mxu0
  %v7204 = vadd.f32 %v6871, %v7203
  %v7205 = vpop.f32.mrb[0].mxu0
  %v7206 = vpop.f32.mrb[0].mxu0
  %v7207 = vadd.f32 %v6871, %v7206
  %v7208 = vpop.f32.mrb[0].mxu0
  %7209 = vmatprep.mubr.bf16.mxu0 0
  %7210 = vmatmul.mubr.bf16.gmra.mrb[0].mxu0 %v6816
  %v7211 = vpop.f32.mrb[0].mxu0
  %v7212 = vadd.f32 %v6871, %v7211
  %v7213 = vpop.f32.mrb[0].mxu0
  %v7214 = vpop.f32.mrb[0].mxu0
  %v7215 = vadd.f32 %v6871, %v7214
  %v7216 = vpop.f32.mrb[0].mxu0
  %7217 = vmatprep.mubr.bf16.mxu0 0
  %7218 = vmatmul.mubr.bf16.gmra.mrb[0].mxu0 %v6817
  %v7219 = vpop.f32.mrb[0].mxu0
  %v7220 = vadd.f32 %v6871, %v7219
  %v7221 = vpop.f32.mrb[0].mxu0
  %v7222 = vpop.f32.mrb[0].mxu0
  %v7223 = vadd.f32 %v6871, %v7222
  %v7224 = vpop.f32.mrb[0].mxu0
  %7225 = vmatprep.mubr.bf16.mxu0 0
  %7226 = vmatmul.mubr.bf16.gmra.mrb[0].mxu0 %v6818
  %v7227 = vpop.f32.mrb[0].mxu0
  %v7228 = vadd.f32 %v6871, %v7227
  %v7229 = vpop.f32.mrb[0].mxu0
  %v7230 = vpop.f32.mrb[0].mxu0
  %v7231 = vadd.f32 %v6871, %v7230
  %v7232 = vpop.f32.mrb[0].mxu0
  %7233 = vmatprep.mubr.bf16.mxu0 0
  %7234 = vmatmul.mubr.bf16.gmra.mrb[0].mxu0 %v6819
  %v7235 = vpop.f32.mrb[0].mxu0
  %v7236 = vadd.f32 %v6871, %v7235
  %v7237 = vpop.f32.mrb[0].mxu0
  %v7238 = vpop.f32.mrb[0].mxu0
  %v7239 = vadd.f32 %v6871, %v7238
  %v7240 = vpop.f32.mrb[0].mxu0
  %7241 = vmatprep.mubr.bf16.mxu0 0
  %7242 = vmatmul.mubr.bf16.gmra.mrb[0].mxu0 %v6820
  %v7243 = vpop.f32.mrb[0].mxu0
  %v7244 = vadd.f32 %v6871, %v7243
  %v7245 = vpop.f32.mrb[0].mxu0
  %v7246 = vpop.f32.mrb[0].mxu0
  %v7247 = vadd.f32 %v6871, %v7246
  %v7248 = vpop.f32.mrb[0].mxu0
  %7249 = vmatprep.mubr.bf16.mxu0 0
  %7250 = vmatmul.mubr.bf16.gmra.mrb[0].mxu0 %v6821
  %v7251 = vpop.f32.mrb[0].mxu0
  %v7252 = vadd.f32 %v6871, %v7251
  %v7253 = vpop.f32.mrb[0].mxu0
  %v7254 = vpop.f32.mrb[0].mxu0
  %v7255 = vadd.f32 %v6871, %v7254
  %v7256 = vpop.f32.mrb[0].mxu0
  %7257 = vmatprep.mubr.bf16.mxu0 0
  %7258 = vmatmul.mubr.bf16.gmra.mrb[0].mxu0 %v6822
  %v7259 = vpop.f32.mrb[0].mxu0
  %v7260 = vadd.f32 %v6871, %v7259
  %v7261 = vpop.f32.mrb[0].mxu0
  %v7262 = vpop.f32.mrb[0].mxu0
  %v7263 = vadd.f32 %v6871, %v7262
  %v7264 = vpop.f32.mrb[0].mxu0
  %7265 = vmatprep.mubr.bf16.mxu0 0
  %7266 = vmatmul.mubr.bf16.gmra.mrb[0].mxu0 %v6823
  %v7267 = vpop.f32.mrb[0].mxu0
  %v7268 = vadd.f32 %v6871, %v7267
  %v7269 = vpop.f32.mrb[0].mxu0
  %v7270 = vpop.f32.mrb[0].mxu0
  %v7271 = vadd.f32 %v6871, %v7270
  %v7272 = vpop.f32.mrb[0].mxu0
  %7273 = vmatprep.mubr.bf16.mxu0 0
  %7274 = vmatmul.mubr.bf16.gmra.mrb[0].mxu0 %v6824
  %v7275 = vpop.f32.mrb[0].mxu0
  %v7276 = vadd.f32 %v6871, %v7275
  %v7277 = vpop.f32.mrb[0].mxu0
  %v7278 = vpop.f32.mrb[0].mxu0
  %v7279 = vadd.f32 %v6871, %v7278
  %v7280 = vpop.f32.mrb[0].mxu0
  %7281 = vmatprep.mubr.bf16.mxu0 0
  %7282 = vmatmul.mubr.bf16.gmra.mrb[0].mxu0 %v6825
  %v7283 = vpop.f32.mrb[0].mxu0
  %v7284 = vadd.f32 %v6871, %v7283
  %v7285 = vpop.f32.mrb[0].mxu0
  %v7286 = vpop.f32.mrb[0].mxu0
  %v7287 = vadd.f32 %v6871, %v7286
  %v7288 = vpop.f32.mrb[0].mxu0
  %7289 = vmatprep.mubr.bf16.mxu0 0
  %7290 = vmatmul.mubr.bf16.gmra.mrb[0].mxu0 %v6826
  %v7291 = vpop.f32.mrb[0].mxu0
  %v7292 = vadd.f32 %v6871, %v7291
  %v7293 = vpop.f32.mrb[0].mxu0
  %v7294 = vpop.f32.mrb[0].mxu0
  %v7295 = vadd.f32 %v6871, %v7294
  %v7296 = vpop.f32.mrb[0].mxu0
  %7297 = vmatprep.mubr.bf16.mxu0 0
  %7298 = vmatmul.mubr.bf16.gmra.mrb[0].mxu0 %v6827
  %v7299 = vpop.f32.mrb[0].mxu0
  %v7300 = vadd.f32 %v6871, %v7299
  %v7301 = vpop.f32.mrb[0].mxu0
  %v7302 = vpop.f32.mrb[0].mxu0
  %v7303 = vadd.f32 %v6871, %v7302
  %v7304 = vpop.f32.mrb[0].mxu0
  %7305 = vmatprep.mubr.bf16.mxu0 0
  %7306 = vmatmul.mubr.bf16.gmra.mrb[0].mxu0 %v6828
  %v7307 = vpop.f32.mrb[0].mxu0
  %v7308 = vadd.f32 %v6871, %v7307
  %v7309 = vpop.f32.mrb[0].mxu0
  %v7310 = vpop.f32.mrb[0].mxu0
  %v7311 = vadd.f32 %v6871, %v7310
  %v7312 = vpop.f32.mrb[0].mxu0
  %7313 = vmatprep.mubr.bf16.mxu0 0
  %7314 = vmatmul.mubr.bf16.gmra.mrb[0].mxu0 %v6829
  %v7315 = vpop.f32.mrb[0].mxu0
  %v7316 = vadd.f32 %v6871, %v7315
  %v7317 = vpop.f32.mrb[0].mxu0
  %v7318 = vpop.f32.mrb[0].mxu0
  %v7319 = vadd.f32 %v6871, %v7318
  %v7320 = vpop.f32.mrb[0].mxu0
  %7321 = vmatprep.mubr.bf16.mxu0 0
  %7322 = vmatmul.mubr.bf16.gmra.mrb[0].mxu0 %v6830
  %v7323 = vpop.f32.mrb[0].mxu0
  %v7324 = vadd.f32 %v6871, %v7323
  %v7325 = vpop.f32.mrb[0].mxu0
  %v7326 = vpop.f32.mrb[0].mxu0
  %v7327 = vadd.f32 %v6871, %v7326
  %v7328 = vpop.f32.mrb[0].mxu0
  %7329 = vmatprep.mubr.bf16.mxu0 0
  %7330 = vmatmul.mubr.bf16.gmra.mrb[0].mxu0 %v6831
  %v7331 = vpop.f32.mrb[0].mxu0
  %v7332 = vadd.f32 %v6871, %v7331
  %v7333 = vpop.f32.mrb[0].mxu0
  %v7334 = vpop.f32.mrb[0].mxu0
  %v7335 = vadd.f32 %v6871, %v7334
  %v7336 = vpop.f32.mrb[0].mxu0
  %7337 = vmatprep.mubr.bf16.mxu0 0
  %7338 = vmatmul.mubr.bf16.gmra.mrb[0].mxu0 %v6832
  %v7339 = vpop.f32.mrb[0].mxu0
  %v7340 = vadd.f32 %v6871, %v7339
  %v7341 = vpop.f32.mrb[0].mxu0
  %v7342 = vpop.f32.mrb[0].mxu0
  %v7343 = vadd.f32 %v6871, %v7342
  %v7344 = vpop.f32.mrb[0].mxu0
  %7345 = vmatprep.mubr.bf16.mxu0 0
  %7346 = vmatmul.mubr.bf16.gmra.mrb[0].mxu0 %v6833
  %v7347 = vpop.f32.mrb[0].mxu0
  %v7348 = vadd.f32 %v6871, %v7347
  %v7349 = vpop.f32.mrb[0].mxu0
  %v7350 = vpop.f32.mrb[0].mxu0
  %v7351 = vadd.f32 %v6871, %v7350
  %v7352 = vpop.f32.mrb[0].mxu0
  %7353 = vmatprep.mubr.bf16.mxu0 0
  %7354 = vmatmul.mubr.bf16.gmra.mrb[0].mxu0 %v6834
  %v7355 = vpop.f32.mrb[0].mxu0
  %v7356 = vadd.f32 %v6871, %v7355
  %v7357 = vpop.f32.mrb[0].mxu0
  %v7358 = vpop.f32.mrb[0].mxu0
  %v7359 = vadd.f32 %v6871, %v7358
  %v7360 = vpop.f32.mrb[0].mxu0
  %7361 = vmatprep.mubr.bf16.mxu0 0
  %7362 = vmatmul.mubr.bf16.gmra.mrb[0].mxu0 %v6835
  %v7363 = vpop.f32.mrb[0].mxu0
  %v7364 = vadd.f32 %v6871, %v7363
  %v7365 = vpop.f32.mrb[0].mxu0
  %v7366 = vpop.f32.mrb[0].mxu0
  %v7367 = vadd.f32 %v6871, %v7366
  %v7368 = vpop.f32.mrb[0].mxu0
  %7369 = vmatprep.mubr.bf16.mxu0 0
  %7370 = vmatmul.mubr.bf16.gmra.mrb[0].mxu0 %v6836
  %v7371 = vpop.f32.mrb[0].mxu0
  %v7372 = vadd.f32 %v6871, %v7371
  %v7373 = vpop.f32.mrb[0].mxu0
  %v7374 = vpop.f32.mrb[0].mxu0
  %v7375 = vadd.f32 %v6871, %v7374
  %v7376 = vpop.f32.mrb[0].mxu0
  %7377 = vmatprep.mubr.bf16.mxu0 0
  %7378 = vmatmul.mubr.bf16.gmra.mrb[0].mxu0 %v6837
  %v7379 = vpop.f32.mrb[0].mxu0
  %v7380 = vadd.f32 %v6871, %v7379
  %v7381 = vpop.f32.mrb[0].mxu0
  %v7382 = vpop.f32.mrb[0].mxu0
  %v7383 = vadd.f32 %v6871, %v7382
  %v7384 = vpop.f32.mrb[0].mxu0
  %7385 = vmatprep.mubr.bf16.mxu0 0
  %7386 = vmatmul.mubr.bf16.gmra.mrb[0].mxu0 %v6838
  %v7387 = vpop.f32.mrb[0].mxu0
  %v7388 = vadd.f32 %v6871, %v7387
  %v7389 = vpop.f32.mrb[0].mxu0
  %v7390 = vpop.f32.mrb[0].mxu0
  %v7391 = vadd.f32 %v6871, %v7390
  %v7392 = vpop.f32.mrb[0].mxu0
  %7393 = vmatprep.mubr.bf16.mxu0 0
  %7394 = vmatmul.mubr.bf16.gmra.mrb[0].mxu0 %v6839
  %v7395 = vpop.f32.mrb[0].mxu0
  %v7396 = vadd.f32 %v6871, %v7395
  %v7397 = vpop.f32.mrb[0].mxu0
  %v7398 = vpop.f32.mrb[0].mxu0
  %v7399 = vadd.f32 %v6871, %v7398
  %v7400 = vpop.f32.mrb[0].mxu0
  %7401 = vmatprep.mubr.bf16.mxu0 0
  %7402 = vmatmul.mubr.bf16.gmra.mrb[0].mxu0 %v6840
  %v7403 = vpop.f32.mrb[0].mxu0
  %v7404 = vadd.f32 %v6871, %v7403
  %v7405 = vpop.f32.mrb[0].mxu0
  %v7406 = vpop.f32.mrb[0].mxu0
  %v7407 = vadd.f32 %v6871, %v7406
  %v7408 = vpop.f32.mrb[0].mxu0
  %7409 = vmatprep.mubr.bf16.mxu0 0
  %7410 = vmatmul.mubr.bf16.gmra.mrb[0].mxu0 %v6841
  %v7411 = vpop.f32.mrb[0].mxu0
  %v7412 = vadd.f32 %v6871, %v7411
  %v7413 = vpop.f32.mrb[0].mxu0
  %v7414 = vpop.f32.mrb[0].mxu0
  %v7415 = vadd.f32 %v6871, %v7414
  %v7416 = vpop.f32.mrb[0].mxu0
  %7417 = vmatprep.mubr.bf16.mxu0 0
  %7418 = vmatmul.mubr.bf16.gmra.mrb[0].mxu0 %v6842
  %v7419 = vpop.f32.mrb[0].mxu0
  %v7420 = vadd.f32 %v6871, %v7419
  %v7421 = vpop.f32.mrb[0].mxu0
  %v7422 = vpop.f32.mrb[0].mxu0
  %v7423 = vadd.f32 %v6871, %v7422
  %v7424 = vpop.f32.mrb[0].mxu0
  %7425 = vmatprep.mubr.bf16.mxu0 0
  %7426 = vmatmul.mubr.bf16.gmra.mrb[0].mxu0 %v6843
  %v7427 = vpop.f32.mrb[0].mxu0
  %v7428 = vadd.f32 %v6871, %v7427
  %v7429 = vpop.f32.mrb[0].mxu0
  %v7430 = vpop.f32.mrb[0].mxu0
  %v7431 = vadd.f32 %v6871, %v7430
  %v7432 = vpop.f32.mrb[0].mxu0
  %7433 = vmatprep.mubr.bf16.mxu0 0
  %7434 = vmatmul.mubr.bf16.gmra.mrb[0].mxu0 %v6844
  %v7435 = vpop.f32.mrb[0].mxu0
  %v7436 = vadd.f32 %v6871, %v7435
  %v7437 = vpop.f32.mrb[0].mxu0
  %v7438 = vpop.f32.mrb[0].mxu0
  %v7439 = vadd.f32 %v6871, %v7438
  %v7440 = vpop.f32.mrb[0].mxu0
  %7441 = vmatprep.mubr.bf16.mxu0 0
  %7442 = vmatmul.mubr.bf16.gmra.mrb[0].mxu0 %v6845
  %v7443 = vpop.f32.mrb[0].mxu0
  %v7444 = vadd.f32 %v6871, %v7443
  %v7445 = vpop.f32.mrb[0].mxu0
  %v7446 = vpop.f32.mrb[0].mxu0
  %v7447 = vadd.f32 %v6871, %v7446
  %v7448 = vpop.f32.mrb[0].mxu0
  %7449 = vmatprep.mubr.bf16.mxu0 0
  %7450 = vmatmul.mubr.bf16.gmra.mrb[0].mxu0 %v6846
  %v7451 = vpop.f32.mrb[0].mxu0
  %v7452 = vadd.f32 %v6871, %v7451
  %v7453 = vpop.f32.mrb[0].mxu0
  %v7454 = vpop.f32.mrb[0].mxu0
  %v7455 = vadd.f32 %v6871, %v7454
  %v7456 = vpop.f32.mrb[0].mxu0
  %7457 = vmatprep.mubr.bf16.mxu0 0
  %7458 = vmatmul.mubr.bf16.gmra.mrb[0].mxu0 %v6847
  %v7459 = vpop.f32.mrb[0].mxu0
  %v7460 = vadd.f32 %v6871, %v7459
  %v7461 = vpop.f32.mrb[0].mxu0
  %v7462 = vpop.f32.mrb[0].mxu0
  %v7463 = vadd.f32 %v6871, %v7462
  %v7464 = vpop.f32.mrb[0].mxu0
  %7465 = vdwg.mxu0
  %v7466 = vmax.f32 %v6956, 0.0
  %v7467 = vmax.f32 %v6959, 0.0
  %v7468 = vmax.f32 %v6964, 0.0
  %v7469 = vmax.f32 %v6967, 0.0
  %v7470 = vmax.f32 %v6972, 0.0
  %v7471 = vmax.f32 %v6975, 0.0
  %v7472 = vmax.f32 %v6980, 0.0
  %v7473 = vmax.f32 %v6983, 0.0
  %v7474 = vmax.f32 %v6988, 0.0
  %v7475 = vmax.f32 %v6991, 0.0
  %v7476 = vmax.f32 %v6996, 0.0
  %v7477 = vmax.f32 %v6999, 0.0
  %v7478 = vmax.f32 %v7004, 0.0
  %v7479 = vmax.f32 %v7007, 0.0
  %v7480 = vmax.f32 %v7012, 0.0
  %v7481 = vmax.f32 %v7015, 0.0
  %v7482 = vmax.f32 %v7020, 0.0
  %v7483 = vmax.f32 %v7023, 0.0
  %v7484 = vmax.f32 %v7028, 0.0
  %v7485 = vmax.f32 %v7031, 0.0
  %v7486 = vmax.f32 %v7036, 0.0
  %v7487 = vmax.f32 %v7039, 0.0
  %v7488 = vmax.f32 %v7044, 0.0
  %v7489 = vmax.f32 %v7047, 0.0
  %v7490 = vmax.f32 %v7052, 0.0
  %v7491 = vmax.f32 %v7055, 0.0
  %v7492 = vmax.f32 %v7060, 0.0
  %v7493 = vmax.f32 %v7063, 0.0
  %v7494 = vmax.f32 %v7068, 0.0
  %v7495 = vmax.f32 %v7071, 0.0
  %v7496 = vmax.f32 %v7076, 0.0
  %v7497 = vmax.f32 %v7079, 0.0
  %v7498 = vmax.f32 %v7084, 0.0
  %v7499 = vmax.f32 %v7087, 0.0
  %v7500 = vmax.f32 %v7092, 0.0
  %v7501 = vmax.f32 %v7095, 0.0
  %v7502 = vmax.f32 %v7100, 0.0
  %v7503 = vmax.f32 %v7103, 0.0
  %v7504 = vmax.f32 %v7108, 0.0
  %v7505 = vmax.f32 %v7111, 0.0
  %v7506 = vmax.f32 %v7116, 0.0
  %v7507 = vmax.f32 %v7119, 0.0
  %v7508 = vmax.f32 %v7124, 0.0
  %v7509 = vmax.f32 %v7127, 0.0
  %v7510 = vmax.f32 %v7132, 0.0
  %v7511 = vmax.f32 %v7135, 0.0
  %v7512 = vmax.f32 %v7140, 0.0
  %v7513 = vmax.f32 %v7143, 0.0
  %v7514 = vmax.f32 %v7148, 0.0
  %v7515 = vmax.f32 %v7151, 0.0
  %v7516 = vmax.f32 %v7156, 0.0
  %v7517 = vmax.f32 %v7159, 0.0
  %v7518 = vmax.f32 %v7164, 0.0
  %v7519 = vmax.f32 %v7167, 0.0
  %v7520 = vmax.f32 %v7172, 0.0
  %v7521 = vmax.f32 %v7175, 0.0
  %v7522 = vmax.f32 %v7180, 0.0
  %v7523 = vmax.f32 %v7183, 0.0
  %v7524 = vmax.f32 %v7188, 0.0
  %v7525 = vmax.f32 %v7191, 0.0
  %v7526 = vmax.f32 %v7196, 0.0
  %v7527 = vmax.f32 %v7199, 0.0
  %v7528 = vmax.f32 %v7204, 0.0
  %v7529 = vmax.f32 %v7207, 0.0
  %v7530 = vmax.f32 %v7212, 0.0
  %v7531 = vmax.f32 %v7215, 0.0
  %v7532 = vmax.f32 %v7220, 0.0
  %v7533 = vmax.f32 %v7223, 0.0
  %v7534 = vmax.f32 %v7228, 0.0
  %v7535 = vmax.f32 %v7231, 0.0
  %v7536 = vmax.f32 %v7236, 0.0
  %v7537 = vmax.f32 %v7239, 0.0
  %v7538 = vmax.f32 %v7244, 0.0
  %v7539 = vmax.f32 %v7247, 0.0
  %v7540 = vmax.f32 %v7252, 0.0
  %v7541 = vmax.f32 %v7255, 0.0
  %v7542 = vmax.f32 %v7260, 0.0
  %v7543 = vmax.f32 %v7263, 0.0
  %v7544 = vmax.f32 %v7268, 0.0
  %v7545 = vmax.f32 %v7271, 0.0
  %v7546 = vmax.f32 %v7276, 0.0
  %v7547 = vmax.f32 %v7279, 0.0
  %v7548 = vmax.f32 %v7284, 0.0
  %v7549 = vmax.f32 %v7287, 0.0
  %v7550 = vmax.f32 %v7292, 0.0
  %v7551 = vmax.f32 %v7295, 0.0
  %v7552 = vmax.f32 %v7300, 0.0
  %v7553 = vmax.f32 %v7303, 0.0
  %v7554 = vmax.f32 %v7308, 0.0
  %v7555 = vmax.f32 %v7311, 0.0
  %v7556 = vmax.f32 %v7316, 0.0
  %v7557 = vmax.f32 %v7319, 0.0
  %v7558 = vmax.f32 %v7324, 0.0
  %v7559 = vmax.f32 %v7327, 0.0
  %v7560 = vmax.f32 %v7332, 0.0
  %v7561 = vmax.f32 %v7335, 0.0
  %v7562 = vmax.f32 %v7340, 0.0
  %v7563 = vmax.f32 %v7343, 0.0
  %v7564 = vmax.f32 %v7348, 0.0
  %v7565 = vmax.f32 %v7351, 0.0
  %v7566 = vmax.f32 %v7356, 0.0
  %v7567 = vmax.f32 %v7359, 0.0
  %v7568 = vmax.f32 %v7364, 0.0
  %v7569 = vmax.f32 %v7367, 0.0
  %v7570 = vmax.f32 %v7372, 0.0
  %v7571 = vmax.f32 %v7375, 0.0
  %v7572 = vmax.f32 %v7380, 0.0
  %v7573 = vmax.f32 %v7383, 0.0
  %v7574 = vmax.f32 %v7388, 0.0
  %v7575 = vmax.f32 %v7391, 0.0
  %v7576 = vmax.f32 %v7396, 0.0
  %v7577 = vmax.f32 %v7399, 0.0
  %v7578 = vmax.f32 %v7404, 0.0
  %v7579 = vmax.f32 %v7407, 0.0
  %v7580 = vmax.f32 %v7412, 0.0
  %v7581 = vmax.f32 %v7415, 0.0
  %v7582 = vmax.f32 %v7420, 0.0
  %v7583 = vmax.f32 %v7423, 0.0
  %v7584 = vmax.f32 %v7428, 0.0
  %v7585 = vmax.f32 %v7431, 0.0
  %v7586 = vmax.f32 %v7436, 0.0
  %v7587 = vmax.f32 %v7439, 0.0
  %v7588 = vmax.f32 %v7444, 0.0
  %v7589 = vmax.f32 %v7447, 0.0
  %v7590 = vmax.f32 %v7452, 0.0
  %v7591 = vmax.f32 %v7455, 0.0
  %v7592 = vmax.f32 %v7460, 0.0
  %v7593 = vmax.f32 %v7463, 0.0
  %v7594 = vld [vmem:[%s5] sm:$0x1]
  %v7596 = vlaneseq
  %v7597 = vshrl.u32 %v7596, 7
  %v7598 = vsub.s32 0, %v7597
  %v7599 = vrot.slane %v7594, %v7598
  %v7601 = vmul.f32 %v7466, %v7599
  %v7602 = vmul.f32 %v7467, %v7599
  %v7603 = vmul.f32 %v7468, %v7599
  %v7604 = vmul.f32 %v7469, %v7599
  %v7605 = vmul.f32 %v7470, %v7599
  %v7606 = vmul.f32 %v7471, %v7599
  %v7607 = vmul.f32 %v7472, %v7599
  %v7608 = vmul.f32 %v7473, %v7599
  %v7609 = vmul.f32 %v7474, %v7599
  %v7610 = vmul.f32 %v7475, %v7599
  %v7611 = vmul.f32 %v7476, %v7599
  %v7612 = vmul.f32 %v7477, %v7599
  %v7613 = vmul.f32 %v7478, %v7599
  %v7614 = vmul.f32 %v7479, %v7599
  %v7615 = vmul.f32 %v7480, %v7599
  %v7616 = vmul.f32 %v7481, %v7599
  %v7617 = vmul.f32 %v7482, %v7599
  %v7618 = vmul.f32 %v7483, %v7599
  %v7619 = vmul.f32 %v7484, %v7599
  %v7620 = vmul.f32 %v7485, %v7599
  %v7621 = vmul.f32 %v7486, %v7599
  %v7622 = vmul.f32 %v7487, %v7599
  %v7623 = vmul.f32 %v7488, %v7599
  %v7624 = vmul.f32 %v7489, %v7599
  %v7625 = vmul.f32 %v7490, %v7599
  %v7626 = vmul.f32 %v7491, %v7599
  %v7627 = vmul.f32 %v7492, %v7599
  %v7628 = vmul.f32 %v7493, %v7599
  %v7629 = vmul.f32 %v7494, %v7599
  %v7630 = vmul.f32 %v7495, %v7599
  %v7631 = vmul.f32 %v7496, %v7599
  %v7632 = vmul.f32 %v7497, %v7599
  %v7633 = vmul.f32 %v7498, %v7599
  %v7634 = vmul.f32 %v7499, %v7599
  %v7635 = vmul.f32 %v7500, %v7599
  %v7636 = vmul.f32 %v7501, %v7599
  %v7637 = vmul.f32 %v7502, %v7599
  %v7638 = vmul.f32 %v7503, %v7599
  %v7639 = vmul.f32 %v7504, %v7599
  %v7640 = vmul.f32 %v7505, %v7599
  %v7641 = vmul.f32 %v7506, %v7599
  %v7642 = vmul.f32 %v7507, %v7599
  %v7643 = vmul.f32 %v7508, %v7599
  %v7644 = vmul.f32 %v7509, %v7599
  %v7645 = vmul.f32 %v7510, %v7599
  %v7646 = vmul.f32 %v7511, %v7599
  %v7647 = vmul.f32 %v7512, %v7599
  %v7648 = vmul.f32 %v7513, %v7599
  %v7649 = vmul.f32 %v7514, %v7599
  %v7650 = vmul.f32 %v7515, %v7599
  %v7651 = vmul.f32 %v7516, %v7599
  %v7652 = vmul.f32 %v7517, %v7599
  %v7653 = vmul.f32 %v7518, %v7599
  %v7654 = vmul.f32 %v7519, %v7599
  %v7655 = vmul.f32 %v7520, %v7599
  %v7656 = vmul.f32 %v7521, %v7599
  %v7657 = vmul.f32 %v7522, %v7599
  %v7658 = vmul.f32 %v7523, %v7599
  %v7659 = vmul.f32 %v7524, %v7599
  %v7660 = vmul.f32 %v7525, %v7599
  %v7661 = vmul.f32 %v7526, %v7599
  %v7662 = vmul.f32 %v7527, %v7599
  %v7663 = vmul.f32 %v7528, %v7599
  %v7664 = vmul.f32 %v7529, %v7599
  %v7665 = vmul.f32 %v7530, %v7599
  %v7666 = vmul.f32 %v7531, %v7599
  %v7667 = vmul.f32 %v7532, %v7599
  %v7668 = vmul.f32 %v7533, %v7599
  %v7669 = vmul.f32 %v7534, %v7599
  %v7670 = vmul.f32 %v7535, %v7599
  %v7671 = vmul.f32 %v7536, %v7599
  %v7672 = vmul.f32 %v7537, %v7599
  %v7673 = vmul.f32 %v7538, %v7599
  %v7674 = vmul.f32 %v7539, %v7599
  %v7675 = vmul.f32 %v7540, %v7599
  %v7676 = vmul.f32 %v7541, %v7599
  %v7677 = vmul.f32 %v7542, %v7599
  %v7678 = vmul.f32 %v7543, %v7599
  %v7679 = vmul.f32 %v7544, %v7599
  %v7680 = vmul.f32 %v7545, %v7599
  %v7681 = vmul.f32 %v7546, %v7599
  %v7682 = vmul.f32 %v7547, %v7599
  %v7683 = vmul.f32 %v7548, %v7599
  %v7684 = vmul.f32 %v7549, %v7599
  %v7685 = vmul.f32 %v7550, %v7599
  %v7686 = vmul.f32 %v7551, %v7599
  %v7687 = vmul.f32 %v7552, %v7599
  %v7688 = vmul.f32 %v7553, %v7599
  %v7689 = vmul.f32 %v7554, %v7599
  %v7690 = vmul.f32 %v7555, %v7599
  %v7691 = vmul.f32 %v7556, %v7599
  %v7692 = vmul.f32 %v7557, %v7599
  %v7693 = vmul.f32 %v7558, %v7599
  %v7694 = vmul.f32 %v7559, %v7599
  %v7695 = vmul.f32 %v7560, %v7599
  %v7696 = vmul.f32 %v7561, %v7599
  %v7697 = vmul.f32 %v7562, %v7599
  %v7698 = vmul.f32 %v7563, %v7599
  %v7699 = vmul.f32 %v7564, %v7599
  %v7700 = vmul.f32 %v7565, %v7599
  %v7701 = vmul.f32 %v7566, %v7599
  %v7702 = vmul.f32 %v7567, %v7599
  %v7703 = vmul.f32 %v7568, %v7599
  %v7704 = vmul.f32 %v7569, %v7599
  %v7705 = vmul.f32 %v7570, %v7599
  %v7706 = vmul.f32 %v7571, %v7599
  %v7707 = vmul.f32 %v7572, %v7599
  %v7708 = vmul.f32 %v7573, %v7599
  %v7709 = vmul.f32 %v7574, %v7599
  %v7710 = vmul.f32 %v7575, %v7599
  %v7711 = vmul.f32 %v7576, %v7599
  %v7712 = vmul.f32 %v7577, %v7599
  %v7713 = vmul.f32 %v7578, %v7599
  %v7714 = vmul.f32 %v7579, %v7599
  %v7715 = vmul.f32 %v7580, %v7599
  %v7716 = vmul.f32 %v7581, %v7599
  %v7717 = vmul.f32 %v7582, %v7599
  %v7718 = vmul.f32 %v7583, %v7599
  %v7719 = vmul.f32 %v7584, %v7599
  %v7720 = vmul.f32 %v7585, %v7599
  %v7721 = vmul.f32 %v7586, %v7599
  %v7722 = vmul.f32 %v7587, %v7599
  %v7723 = vmul.f32 %v7588, %v7599
  %v7724 = vmul.f32 %v7589, %v7599
  %v7725 = vmul.f32 %v7590, %v7599
  %v7726 = vmul.f32 %v7591, %v7599
  %v7727 = vmul.f32 %v7592, %v7599
  %v7728 = vmul.f32 %v7593, %v7599
  %7729 = vadd.xlane.f32.xlu0 %v7601
  %v7730 = vpop.xlane.xlu0 %7729
  %7731 = vadd.xlane.f32.xlu0 %v7602
  %v7732 = vpop.xlane.xlu0 %7731
  %7733 = vadd.xlane.f32.xlu0 %v7603
  %v7734 = vpop.xlane.xlu0 %7733
  %7735 = vadd.xlane.f32.xlu0 %v7604
  %v7736 = vpop.xlane.xlu0 %7735
  %7737 = vadd.xlane.f32.xlu0 %v7605
  %v7738 = vpop.xlane.xlu0 %7737
  %7739 = vadd.xlane.f32.xlu0 %v7606
  %v7740 = vpop.xlane.xlu0 %7739
  %7741 = vadd.xlane.f32.xlu0 %v7607
  %v7742 = vpop.xlane.xlu0 %7741
  %7743 = vadd.xlane.f32.xlu0 %v7608
  %v7744 = vpop.xlane.xlu0 %7743
  %7745 = vadd.xlane.f32.xlu0 %v7609
  %v7746 = vpop.xlane.xlu0 %7745
  %7747 = vadd.xlane.f32.xlu0 %v7610
  %v7748 = vpop.xlane.xlu0 %7747
  %7749 = vadd.xlane.f32.xlu0 %v7611
  %v7750 = vpop.xlane.xlu0 %7749
  %7751 = vadd.xlane.f32.xlu0 %v7612
  %v7752 = vpop.xlane.xlu0 %7751
  %7753 = vadd.xlane.f32.xlu0 %v7613
  %v7754 = vpop.xlane.xlu0 %7753
  %7755 = vadd.xlane.f32.xlu0 %v7614
  %v7756 = vpop.xlane.xlu0 %7755
  %7757 = vadd.xlane.f32.xlu0 %v7615
  %v7758 = vpop.xlane.xlu0 %7757
  %7759 = vadd.xlane.f32.xlu0 %v7616
  %v7760 = vpop.xlane.xlu0 %7759
  %7761 = vadd.xlane.f32.xlu0 %v7617
  %v7762 = vpop.xlane.xlu0 %7761
  %7763 = vadd.xlane.f32.xlu0 %v7618
  %v7764 = vpop.xlane.xlu0 %7763
  %7765 = vadd.xlane.f32.xlu0 %v7619
  %v7766 = vpop.xlane.xlu0 %7765
  %7767 = vadd.xlane.f32.xlu0 %v7620
  %v7768 = vpop.xlane.xlu0 %7767
  %7769 = vadd.xlane.f32.xlu0 %v7621
  %v7770 = vpop.xlane.xlu0 %7769
  %7771 = vadd.xlane.f32.xlu0 %v7622
  %v7772 = vpop.xlane.xlu0 %7771
  %7773 = vadd.xlane.f32.xlu0 %v7623
  %v7774 = vpop.xlane.xlu0 %7773
  %7775 = vadd.xlane.f32.xlu0 %v7624
  %v7776 = vpop.xlane.xlu0 %7775
  %7777 = vadd.xlane.f32.xlu0 %v7625
  %v7778 = vpop.xlane.xlu0 %7777
  %7779 = vadd.xlane.f32.xlu0 %v7626
  %v7780 = vpop.xlane.xlu0 %7779
  %7781 = vadd.xlane.f32.xlu0 %v7627
  %v7782 = vpop.xlane.xlu0 %7781
  %7783 = vadd.xlane.f32.xlu0 %v7628
  %v7784 = vpop.xlane.xlu0 %7783
  %7785 = vadd.xlane.f32.xlu0 %v7629
  %v7786 = vpop.xlane.xlu0 %7785
  %7787 = vadd.xlane.f32.xlu0 %v7630
  %v7788 = vpop.xlane.xlu0 %7787
  %7789 = vadd.xlane.f32.xlu0 %v7631
  %v7790 = vpop.xlane.xlu0 %7789
  %7791 = vadd.xlane.f32.xlu0 %v7632
  %v7792 = vpop.xlane.xlu0 %7791
  %7793 = vadd.xlane.f32.xlu0 %v7633
  %v7794 = vpop.xlane.xlu0 %7793
  %7795 = vadd.xlane.f32.xlu0 %v7634
  %v7796 = vpop.xlane.xlu0 %7795
  %7797 = vadd.xlane.f32.xlu0 %v7635
  %v7798 = vpop.xlane.xlu0 %7797
  %7799 = vadd.xlane.f32.xlu0 %v7636
  %v7800 = vpop.xlane.xlu0 %7799
  %7801 = vadd.xlane.f32.xlu0 %v7637
  %v7802 = vpop.xlane.xlu0 %7801
  %7803 = vadd.xlane.f32.xlu0 %v7638
  %v7804 = vpop.xlane.xlu0 %7803
  %7805 = vadd.xlane.f32.xlu0 %v7639
  %v7806 = vpop.xlane.xlu0 %7805
  %7807 = vadd.xlane.f32.xlu0 %v7640
  %v7808 = vpop.xlane.xlu0 %7807
  %7809 = vadd.xlane.f32.xlu0 %v7641
  %v7810 = vpop.xlane.xlu0 %7809
  %7811 = vadd.xlane.f32.xlu0 %v7642
  %v7812 = vpop.xlane.xlu0 %7811
  %7813 = vadd.xlane.f32.xlu0 %v7643
  %v7814 = vpop.xlane.xlu0 %7813
  %7815 = vadd.xlane.f32.xlu0 %v7644
  %v7816 = vpop.xlane.xlu0 %7815
  %7817 = vadd.xlane.f32.xlu0 %v7645
  %v7818 = vpop.xlane.xlu0 %7817
  %7819 = vadd.xlane.f32.xlu0 %v7646
  %v7820 = vpop.xlane.xlu0 %7819
  %7821 = vadd.xlane.f32.xlu0 %v7647
  %v7822 = vpop.xlane.xlu0 %7821
  %7823 = vadd.xlane.f32.xlu0 %v7648
  %v7824 = vpop.xlane.xlu0 %7823
  %7825 = vadd.xlane.f32.xlu0 %v7649
  %v7826 = vpop.xlane.xlu0 %7825
  %7827 = vadd.xlane.f32.xlu0 %v7650
  %v7828 = vpop.xlane.xlu0 %7827
  %7829 = vadd.xlane.f32.xlu0 %v7651
  %v7830 = vpop.xlane.xlu0 %7829
  %7831 = vadd.xlane.f32.xlu0 %v7652
  %v7832 = vpop.xlane.xlu0 %7831
  %7833 = vadd.xlane.f32.xlu0 %v7653
  %v7834 = vpop.xlane.xlu0 %7833
  %7835 = vadd.xlane.f32.xlu0 %v7654
  %v7836 = vpop.xlane.xlu0 %7835
  %7837 = vadd.xlane.f32.xlu0 %v7655
  %v7838 = vpop.xlane.xlu0 %7837
  %7839 = vadd.xlane.f32.xlu0 %v7656
  %v7840 = vpop.xlane.xlu0 %7839
  %7841 = vadd.xlane.f32.xlu0 %v7657
  %v7842 = vpop.xlane.xlu0 %7841
  %7843 = vadd.xlane.f32.xlu0 %v7658
  %v7844 = vpop.xlane.xlu0 %7843
  %7845 = vadd.xlane.f32.xlu0 %v7659
  %v7846 = vpop.xlane.xlu0 %7845
  %7847 = vadd.xlane.f32.xlu0 %v7660
  %v7848 = vpop.xlane.xlu0 %7847
  %7849 = vadd.xlane.f32.xlu0 %v7661
  %v7850 = vpop.xlane.xlu0 %7849
  %7851 = vadd.xlane.f32.xlu0 %v7662
  %v7852 = vpop.xlane.xlu0 %7851
  %7853 = vadd.xlane.f32.xlu0 %v7663
  %v7854 = vpop.xlane.xlu0 %7853
  %7855 = vadd.xlane.f32.xlu0 %v7664
  %v7856 = vpop.xlane.xlu0 %7855
  %7857 = vadd.xlane.f32.xlu0 %v7665
  %v7858 = vpop.xlane.xlu0 %7857
  %7859 = vadd.xlane.f32.xlu0 %v7666
  %v7860 = vpop.xlane.xlu0 %7859
  %7861 = vadd.xlane.f32.xlu0 %v7667
  %v7862 = vpop.xlane.xlu0 %7861
  %7863 = vadd.xlane.f32.xlu0 %v7668
  %v7864 = vpop.xlane.xlu0 %7863
  %7865 = vadd.xlane.f32.xlu0 %v7669
  %v7866 = vpop.xlane.xlu0 %7865
  %7867 = vadd.xlane.f32.xlu0 %v7670
  %v7868 = vpop.xlane.xlu0 %7867
  %7869 = vadd.xlane.f32.xlu0 %v7671
  %v7870 = vpop.xlane.xlu0 %7869
  %7871 = vadd.xlane.f32.xlu0 %v7672
  %v7872 = vpop.xlane.xlu0 %7871
  %7873 = vadd.xlane.f32.xlu0 %v7673
  %v7874 = vpop.xlane.xlu0 %7873
  %7875 = vadd.xlane.f32.xlu0 %v7674
  %v7876 = vpop.xlane.xlu0 %7875
  %7877 = vadd.xlane.f32.xlu0 %v7675
  %v7878 = vpop.xlane.xlu0 %7877
  %7879 = vadd.xlane.f32.xlu0 %v7676
  %v7880 = vpop.xlane.xlu0 %7879
  %7881 = vadd.xlane.f32.xlu0 %v7677
  %v7882 = vpop.xlane.xlu0 %7881
  %7883 = vadd.xlane.f32.xlu0 %v7678
  %v7884 = vpop.xlane.xlu0 %7883
  %7885 = vadd.xlane.f32.xlu0 %v7679
  %v7886 = vpop.xlane.xlu0 %7885
  %7887 = vadd.xlane.f32.xlu0 %v7680
  %v7888 = vpop.xlane.xlu0 %7887
  %7889 = vadd.xlane.f32.xlu0 %v7681
  %v7890 = vpop.xlane.xlu0 %7889
  %7891 = vadd.xlane.f32.xlu0 %v7682
  %v7892 = vpop.xlane.xlu0 %7891
  %7893 = vadd.xlane.f32.xlu0 %v7683
  %v7894 = vpop.xlane.xlu0 %7893
  %7895 = vadd.xlane.f32.xlu0 %v7684
  %v7896 = vpop.xlane.xlu0 %7895
  %7897 = vadd.xlane.f32.xlu0 %v7685
  %v7898 = vpop.xlane.xlu0 %7897
  %7899 = vadd.xlane.f32.xlu0 %v7686
  %v7900 = vpop.xlane.xlu0 %7899
  %7901 = vadd.xlane.f32.xlu0 %v7687
  %v7902 = vpop.xlane.xlu0 %7901
  %7903 = vadd.xlane.f32.xlu0 %v7688
  %v7904 = vpop.xlane.xlu0 %7903
  %7905 = vadd.xlane.f32.xlu0 %v7689
  %v7906 = vpop.xlane.xlu0 %7905
  %7907 = vadd.xlane.f32.xlu0 %v7690
  %v7908 = vpop.xlane.xlu0 %7907
  %7909 = vadd.xlane.f32.xlu0 %v7691
  %v7910 = vpop.xlane.xlu0 %7909
  %7911 = vadd.xlane.f32.xlu0 %v7692
  %v7912 = vpop.xlane.xlu0 %7911
  %7913 = vadd.xlane.f32.xlu0 %v7693
  %v7914 = vpop.xlane.xlu0 %7913
  %7915 = vadd.xlane.f32.xlu0 %v7694
  %v7916 = vpop.xlane.xlu0 %7915
  %7917 = vadd.xlane.f32.xlu0 %v7695
  %v7918 = vpop.xlane.xlu0 %7917
  %7919 = vadd.xlane.f32.xlu0 %v7696
  %v7920 = vpop.xlane.xlu0 %7919
  %7921 = vadd.xlane.f32.xlu0 %v7697
  %v7922 = vpop.xlane.xlu0 %7921
  %7923 = vadd.xlane.f32.xlu0 %v7698
  %v7924 = vpop.xlane.xlu0 %7923
  %7925 = vadd.xlane.f32.xlu0 %v7699
  %v7926 = vpop.xlane.xlu0 %7925
  %7927 = vadd.xlane.f32.xlu0 %v7700
  %v7928 = vpop.xlane.xlu0 %7927
  %7929 = vadd.xlane.f32.xlu0 %v7701
  %v7930 = vpop.xlane.xlu0 %7929
  %7931 = vadd.xlane.f32.xlu0 %v7702
  %v7932 = vpop.xlane.xlu0 %7931
  %7933 = vadd.xlane.f32.xlu0 %v7703
  %v7934 = vpop.xlane.xlu0 %7933
  %7935 = vadd.xlane.f32.xlu0 %v7704
  %v7936 = vpop.xlane.xlu0 %7935
  %7937 = vadd.xlane.f32.xlu0 %v7705
  %v7938 = vpop.xlane.xlu0 %7937
  %7939 = vadd.xlane.f32.xlu0 %v7706
  %v7940 = vpop.xlane.xlu0 %7939
  %7941 = vadd.xlane.f32.xlu0 %v7707
  %v7942 = vpop.xlane.xlu0 %7941
  %7943 = vadd.xlane.f32.xlu0 %v7708
  %v7944 = vpop.xlane.xlu0 %7943
  %7945 = vadd.xlane.f32.xlu0 %v7709
  %v7946 = vpop.xlane.xlu0 %7945
  %7947 = vadd.xlane.f32.xlu0 %v7710
  %v7948 = vpop.xlane.xlu0 %7947
  %7949 = vadd.xlane.f32.xlu0 %v7711
  %v7950 = vpop.xlane.xlu0 %7949
  %7951 = vadd.xlane.f32.xlu0 %v7712
  %v7952 = vpop.xlane.xlu0 %7951
  %7953 = vadd.xlane.f32.xlu0 %v7713
  %v7954 = vpop.xlane.xlu0 %7953
  %7955 = vadd.xlane.f32.xlu0 %v7714
  %v7956 = vpop.xlane.xlu0 %7955
  %7957 = vadd.xlane.f32.xlu0 %v7715
  %v7958 = vpop.xlane.xlu0 %7957
  %7959 = vadd.xlane.f32.xlu0 %v7716
  %v7960 = vpop.xlane.xlu0 %7959
  %7961 = vadd.xlane.f32.xlu0 %v7717
  %v7962 = vpop.xlane.xlu0 %7961
  %7963 = vadd.xlane.f32.xlu0 %v7718
  %v7964 = vpop.xlane.xlu0 %7963
  %7965 = vadd.xlane.f32.xlu0 %v7719
  %v7966 = vpop.xlane.xlu0 %7965
  %7967 = vadd.xlane.f32.xlu0 %v7720
  %v7968 = vpop.xlane.xlu0 %7967
  %7969 = vadd.xlane.f32.xlu0 %v7721
  %v7970 = vpop.xlane.xlu0 %7969
  %7971 = vadd.xlane.f32.xlu0 %v7722
  %v7972 = vpop.xlane.xlu0 %7971
  %7973 = vadd.xlane.f32.xlu0 %v7723
  %v7974 = vpop.xlane.xlu0 %7973
  %7975 = vadd.xlane.f32.xlu0 %v7724
  %v7976 = vpop.xlane.xlu0 %7975
  %7977 = vadd.xlane.f32.xlu0 %v7725
  %v7978 = vpop.xlane.xlu0 %7977
  %7979 = vadd.xlane.f32.xlu0 %v7726
  %v7980 = vpop.xlane.xlu0 %7979
  %7981 = vadd.xlane.f32.xlu0 %v7727
  %v7982 = vpop.xlane.xlu0 %7981
  %7983 = vadd.xlane.f32.xlu0 %v7728
  %v7984 = vpop.xlane.xlu0 %7983
  %s7985 = sld [smem:[#allocation2]]
  %v7986 = vstv %s7985
  %v7987 = vadd.f32 %v7730, %v7986
  %v7988 = vadd.f32 %v7732, %v7986
  %v7989 = vadd.f32 %v7734, %v7986
  %v7990 = vadd.f32 %v7736, %v7986
  %v7991 = vadd.f32 %v7738, %v7986
  %v7992 = vadd.f32 %v7740, %v7986
  %v7993 = vadd.f32 %v7742, %v7986
  %v7994 = vadd.f32 %v7744, %v7986
  %v7995 = vadd.f32 %v7746, %v7986
  %v7996 = vadd.f32 %v7748, %v7986
  %v7997 = vadd.f32 %v7750, %v7986
  %v7998 = vadd.f32 %v7752, %v7986
  %v7999 = vadd.f32 %v7754, %v7986
  %v8000 = vadd.f32 %v7756, %v7986
  %v8001 = vadd.f32 %v7758, %v7986
  %v8002 = vadd.f32 %v7760, %v7986
  %v8003 = vadd.f32 %v7762, %v7986
  %v8004 = vadd.f32 %v7764, %v7986
  %v8005 = vadd.f32 %v7766, %v7986
  %v8006 = vadd.f32 %v7768, %v7986
  %v8007 = vadd.f32 %v7770, %v7986
  %v8008 = vadd.f32 %v7772, %v7986
  %v8009 = vadd.f32 %v7774, %v7986
  %v8010 = vadd.f32 %v7776, %v7986
  %v8011 = vadd.f32 %v7778, %v7986
  %v8012 = vadd.f32 %v7780, %v7986
  %v8013 = vadd.f32 %v7782, %v7986
  %v8014 = vadd.f32 %v7784, %v7986
  %v8015 = vadd.f32 %v7786, %v7986
  %v8016 = vadd.f32 %v7788, %v7986
  %v8017 = vadd.f32 %v7790, %v7986
  %v8018 = vadd.f32 %v7792, %v7986
  %v8019 = vadd.f32 %v7794, %v7986
  %v8020 = vadd.f32 %v7796, %v7986
  %v8021 = vadd.f32 %v7798, %v7986
  %v8022 = vadd.f32 %v7800, %v7986
  %v8023 = vadd.f32 %v7802, %v7986
  %v8024 = vadd.f32 %v7804, %v7986
  %v8025 = vadd.f32 %v7806, %v7986
  %v8026 = vadd.f32 %v7808, %v7986
  %v8027 = vadd.f32 %v7810, %v7986
  %v8028 = vadd.f32 %v7812, %v7986
  %v8029 = vadd.f32 %v7814, %v7986
  %v8030 = vadd.f32 %v7816, %v7986
  %v8031 = vadd.f32 %v7818, %v7986
  %v8032 = vadd.f32 %v7820, %v7986
  %v8033 = vadd.f32 %v7822, %v7986
  %v8034 = vadd.f32 %v7824, %v7986
  %v8035 = vadd.f32 %v7826, %v7986
  %v8036 = vadd.f32 %v7828, %v7986
  %v8037 = vadd.f32 %v7830, %v7986
  %v8038 = vadd.f32 %v7832, %v7986
  %v8039 = vadd.f32 %v7834, %v7986
  %v8040 = vadd.f32 %v7836, %v7986
  %v8041 = vadd.f32 %v7838, %v7986
  %v8042 = vadd.f32 %v7840, %v7986
  %v8043 = vadd.f32 %v7842, %v7986
  %v8044 = vadd.f32 %v7844, %v7986
  %v8045 = vadd.f32 %v7846, %v7986
  %v8046 = vadd.f32 %v7848, %v7986
  %v8047 = vadd.f32 %v7850, %v7986
  %v8048 = vadd.f32 %v7852, %v7986
  %v8049 = vadd.f32 %v7854, %v7986
  %v8050 = vadd.f32 %v7856, %v7986
  %v8051 = vadd.f32 %v7858, %v7986
  %v8052 = vadd.f32 %v7860, %v7986
  %v8053 = vadd.f32 %v7862, %v7986
  %v8054 = vadd.f32 %v7864, %v7986
  %v8055 = vadd.f32 %v7866, %v7986
  %v8056 = vadd.f32 %v7868, %v7986
  %v8057 = vadd.f32 %v7870, %v7986
  %v8058 = vadd.f32 %v7872, %v7986
  %v8059 = vadd.f32 %v7874, %v7986
  %v8060 = vadd.f32 %v7876, %v7986
  %v8061 = vadd.f32 %v7878, %v7986
  %v8062 = vadd.f32 %v7880, %v7986
  %v8063 = vadd.f32 %v7882, %v7986
  %v8064 = vadd.f32 %v7884, %v7986
  %v8065 = vadd.f32 %v7886, %v7986
  %v8066 = vadd.f32 %v7888, %v7986
  %v8067 = vadd.f32 %v7890, %v7986
  %v8068 = vadd.f32 %v7892, %v7986
  %v8069 = vadd.f32 %v7894, %v7986
  %v8070 = vadd.f32 %v7896, %v7986
  %v8071 = vadd.f32 %v7898, %v7986
  %v8072 = vadd.f32 %v7900, %v7986
  %v8073 = vadd.f32 %v7902, %v7986
  %v8074 = vadd.f32 %v7904, %v7986
  %v8075 = vadd.f32 %v7906, %v7986
  %v8076 = vadd.f32 %v7908, %v7986
  %v8077 = vadd.f32 %v7910, %v7986
  %v8078 = vadd.f32 %v7912, %v7986
  %v8079 = vadd.f32 %v7914, %v7986
  %v8080 = vadd.f32 %v7916, %v7986
  %v8081 = vadd.f32 %v7918, %v7986
  %v8082 = vadd.f32 %v7920, %v7986
  %v8083 = vadd.f32 %v7922, %v7986
  %v8084 = vadd.f32 %v7924, %v7986
  %v8085 = vadd.f32 %v7926, %v7986
  %v8086 = vadd.f32 %v7928, %v7986
  %v8087 = vadd.f32 %v7930, %v7986
  %v8088 = vadd.f32 %v7932, %v7986
  %v8089 = vadd.f32 %v7934, %v7986
  %v8090 = vadd.f32 %v7936, %v7986
  %v8091 = vadd.f32 %v7938, %v7986
  %v8092 = vadd.f32 %v7940, %v7986
  %v8093 = vadd.f32 %v7942, %v7986
  %v8094 = vadd.f32 %v7944, %v7986
  %v8095 = vadd.f32 %v7946, %v7986
  %v8096 = vadd.f32 %v7948, %v7986
  %v8097 = vadd.f32 %v7950, %v7986
  %v8098 = vadd.f32 %v7952, %v7986
  %v8099 = vadd.f32 %v7954, %v7986
  %v8100 = vadd.f32 %v7956, %v7986
  %v8101 = vadd.f32 %v7958, %v7986
  %v8102 = vadd.f32 %v7960, %v7986
  %v8103 = vadd.f32 %v7962, %v7986
  %v8104 = vadd.f32 %v7964, %v7986
  %v8105 = vadd.f32 %v7966, %v7986
  %v8106 = vadd.f32 %v7968, %v7986
  %v8107 = vadd.f32 %v7970, %v7986
  %v8108 = vadd.f32 %v7972, %v7986
  %v8109 = vadd.f32 %v7974, %v7986
  %v8110 = vadd.f32 %v7976, %v7986
  %v8111 = vadd.f32 %v7978, %v7986
  %v8112 = vadd.f32 %v7980, %v7986
  %v8113 = vadd.f32 %v7982, %v7986
  %v8114 = vadd.f32 %v7984, %v7986
  %v8115 = vtanh.pop %v7987
  %v8116 = vtanh.pop %v7988
  %v8117 = vtanh.pop %v7989
  %v8118 = vtanh.pop %v7990
  %v8119 = vtanh.pop %v7991
  %v8120 = vtanh.pop %v7992
  %v8121 = vtanh.pop %v7993
  %v8122 = vtanh.pop %v7994
  %v8123 = vtanh.pop %v7995
  %v8124 = vtanh.pop %v7996
  %v8125 = vtanh.pop %v7997
  %v8126 = vtanh.pop %v7998
  %v8127 = vtanh.pop %v7999
  %v8128 = vtanh.pop %v8000
  %v8129 = vtanh.pop %v8001
  %v8130 = vtanh.pop %v8002
  %v8131 = vtanh.pop %v8003
  %v8132 = vtanh.pop %v8004
  %v8133 = vtanh.pop %v8005
  %v8134 = vtanh.pop %v8006
  %v8135 = vtanh.pop %v8007
  %v8136 = vtanh.pop %v8008
  %v8137 = vtanh.pop %v8009
  %v8138 = vtanh.pop %v8010
  %v8139 = vtanh.pop %v8011
  %v8140 = vtanh.pop %v8012
  %v8141 = vtanh.pop %v8013
  %v8142 = vtanh.pop %v8014
  %v8143 = vtanh.pop %v8015
  %v8144 = vtanh.pop %v8016
  %v8145 = vtanh.pop %v8017
  %v8146 = vtanh.pop %v8018
  %v8147 = vtanh.pop %v8019
  %v8148 = vtanh.pop %v8020
  %v8149 = vtanh.pop %v8021
  %v8150 = vtanh.pop %v8022
  %v8151 = vtanh.pop %v8023
  %v8152 = vtanh.pop %v8024
  %v8153 = vtanh.pop %v8025
  %v8154 = vtanh.pop %v8026
  %v8155 = vtanh.pop %v8027
  %v8156 = vtanh.pop %v8028
  %v8157 = vtanh.pop %v8029
  %v8158 = vtanh.pop %v8030
  %v8159 = vtanh.pop %v8031
  %v8160 = vtanh.pop %v8032
  %v8161 = vtanh.pop %v8033
  %v8162 = vtanh.pop %v8034
  %v8163 = vtanh.pop %v8035
  %v8164 = vtanh.pop %v8036
  %v8165 = vtanh.pop %v8037
  %v8166 = vtanh.pop %v8038
  %v8167 = vtanh.pop %v8039
  %v8168 = vtanh.pop %v8040
  %v8169 = vtanh.pop %v8041
  %v8170 = vtanh.pop %v8042
  %v8171 = vtanh.pop %v8043
  %v8172 = vtanh.pop %v8044
  %v8173 = vtanh.pop %v8045
  %v8174 = vtanh.pop %v8046
  %v8175 = vtanh.pop %v8047
  %v8176 = vtanh.pop %v8048
  %v8177 = vtanh.pop %v8049
  %v8178 = vtanh.pop %v8050
  %v8179 = vtanh.pop %v8051
  %v8180 = vtanh.pop %v8052
  %v8181 = vtanh.pop %v8053
  %v8182 = vtanh.pop %v8054
  %v8183 = vtanh.pop %v8055
  %v8184 = vtanh.pop %v8056
  %v8185 = vtanh.pop %v8057
  %v8186 = vtanh.pop %v8058
  %v8187 = vtanh.pop %v8059
  %v8188 = vtanh.pop %v8060
  %v8189 = vtanh.pop %v8061
  %v8190 = vtanh.pop %v8062
  %v8191 = vtanh.pop %v8063
  %v8192 = vtanh.pop %v8064
  %v8193 = vtanh.pop %v8065
  %v8194 = vtanh.pop %v8066
  %v8195 = vtanh.pop %v8067
  %v8196 = vtanh.pop %v8068
  %v8197 = vtanh.pop %v8069
  %v8198 = vtanh.pop %v8070
  %v8199 = vtanh.pop %v8071
  %v8200 = vtanh.pop %v8072
  %v8201 = vtanh.pop %v8073
  %v8202 = vtanh.pop %v8074
  %v8203 = vtanh.pop %v8075
  %v8204 = vtanh.pop %v8076
  %v8205 = vtanh.pop %v8077
  %v8206 = vtanh.pop %v8078
  %v8207 = vtanh.pop %v8079
  %v8208 = vtanh.pop %v8080
  %v8209 = vtanh.pop %v8081
  %v8210 = vtanh.pop %v8082
  %v8211 = vtanh.pop %v8083
  %v8212 = vtanh.pop %v8084
  %v8213 = vtanh.pop %v8085
  %v8214 = vtanh.pop %v8086
  %v8215 = vtanh.pop %v8087
  %v8216 = vtanh.pop %v8088
  %v8217 = vtanh.pop %v8089
  %v8218 = vtanh.pop %v8090
  %v8219 = vtanh.pop %v8091
  %v8220 = vtanh.pop %v8092
  %v8221 = vtanh.pop %v8093
  %v8222 = vtanh.pop %v8094
  %v8223 = vtanh.pop %v8095
  %v8224 = vtanh.pop %v8096
  %v8225 = vtanh.pop %v8097
  %v8226 = vtanh.pop %v8098
  %v8227 = vtanh.pop %v8099
  %v8228 = vtanh.pop %v8100
  %v8229 = vtanh.pop %v8101
  %v8230 = vtanh.pop %v8102
  %v8231 = vtanh.pop %v8103
  %v8232 = vtanh.pop %v8104
  %v8233 = vtanh.pop %v8105
  %v8234 = vtanh.pop %v8106
  %v8235 = vtanh.pop %v8107
  %v8236 = vtanh.pop %v8108
  %v8237 = vtanh.pop %v8109
  %v8238 = vtanh.pop %v8110
  %v8239 = vtanh.pop %v8111
  %v8240 = vtanh.pop %v8112
  %v8241 = vtanh.pop %v8113
  %v8242 = vtanh.pop %v8114
  %v8371 = vlaneseq
  %v8372 = vand.u32 %v8371, 127
  %v8373 = vlaneseq
  %v8374 = vshrl.u32 %v8373, 7
  %v8375 = vsub.s32 %v8372, %v8374
  %v8376 = vrot.slane %v8115, %v8375
  %v8377 = vadd.s32 %v8372, 4294967288
  %v8378 = vlaneseq
  %v8379 = vshrl.u32 %v8378, 7
  %v8380 = vsub.s32 %v8377, %v8379
  %v8381 = vrot.slane %v8116, %v8380
  %vm8382 = vcmask 130112
  %v8383 = vsel %vm8382, %v8381, %v8376
  %v8384 = vadd.s32 %v8372, 4294967280
  %v8385 = vlaneseq
  %v8386 = vshrl.u32 %v8385, 7
  %v8387 = vsub.s32 %v8384, %v8386
  %v8388 = vrot.slane %v8117, %v8387
  %vm8389 = vcmask 195712
  %v8390 = vsel %vm8389, %v8388, %v8383
  %v8391 = vadd.s32 %v8372, 4294967272
  %v8392 = vlaneseq
  %v8393 = vshrl.u32 %v8392, 7
  %v8394 = vsub.s32 %v8391, %v8393
  %v8395 = vrot.slane %v8118, %v8394
  %vm8396 = vcmask 261312
  %v8397 = vsel %vm8396, %v8395, %v8390
  %v8398 = vadd.s32 %v8372, 4294967264
  %v8399 = vlaneseq
  %v8400 = vshrl.u32 %v8399, 7
  %v8401 = vsub.s32 %v8398, %v8400
  %v8402 = vrot.slane %v8119, %v8401
  %vm8403 = vcmask 326912
  %v8404 = vsel %vm8403, %v8402, %v8397
  %v8405 = vadd.s32 %v8372, 4294967256
  %v8406 = vlaneseq
  %v8407 = vshrl.u32 %v8406, 7
  %v8408 = vsub.s32 %v8405, %v8407
  %v8409 = vrot.slane %v8120, %v8408
  %vm8410 = vcmask 392512
  %v8411 = vsel %vm8410, %v8409, %v8404
  %v8412 = vadd.s32 %v8372, 4294967248
  %v8413 = vlaneseq
  %v8414 = vshrl.u32 %v8413, 7
  %v8415 = vsub.s32 %v8412, %v8414
  %v8416 = vrot.slane %v8121, %v8415
  %vm8417 = vcmask 458112
  %v8418 = vsel %vm8417, %v8416, %v8411
  %v8419 = vadd.s32 %v8372, 4294967240
  %v8420 = vlaneseq
  %v8421 = vshrl.u32 %v8420, 7
  %v8422 = vsub.s32 %v8419, %v8421
  %v8423 = vrot.slane %v8122, %v8422
  %vm8424 = vcmask 523712
  %v8425 = vsel %vm8424, %v8423, %v8418
  %v8426 = vadd.s32 %v8372, 4294967232
  %v8427 = vlaneseq
  %v8428 = vshrl.u32 %v8427, 7
  %v8429 = vsub.s32 %v8426, %v8428
  %v8430 = vrot.slane %v8123, %v8429
  %vm8431 = vcmask 589312
  %v8432 = vsel %vm8431, %v8430, %v8425
  %v8433 = vadd.s32 %v8372, 4294967224
  %v8434 = vlaneseq
  %v8435 = vshrl.u32 %v8434, 7
  %v8436 = vsub.s32 %v8433, %v8435
  %v8437 = vrot.slane %v8124, %v8436
  %vm8438 = vcmask 654912
  %v8439 = vsel %vm8438, %v8437, %v8432
  %v8440 = vadd.s32 %v8372, 4294967216
  %v8441 = vlaneseq
  %v8442 = vshrl.u32 %v8441, 7
  %v8443 = vsub.s32 %v8440, %v8442
  %v8444 = vrot.slane %v8125, %v8443
  %vm8445 = vcmask 720512
  %v8446 = vsel %vm8445, %v8444, %v8439
  %v8447 = vadd.s32 %v8372, 4294967208
  %v8448 = vlaneseq
  %v8449 = vshrl.u32 %v8448, 7
  %v8450 = vsub.s32 %v8447, %v8449
  %v8451 = vrot.slane %v8126, %v8450
  %vm8452 = vcmask 786112
  %v8453 = vsel %vm8452, %v8451, %v8446
  %v8454 = vadd.s32 %v8372, 4294967200
  %v8455 = vlaneseq
  %v8456 = vshrl.u32 %v8455, 7
  %v8457 = vsub.s32 %v8454, %v8456
  %v8458 = vrot.slane %v8127, %v8457
  %vm8459 = vcmask 851712
  %v8460 = vsel %vm8459, %v8458, %v8453
  %v8461 = vadd.s32 %v8372, 4294967192
  %v8462 = vlaneseq
  %v8463 = vshrl.u32 %v8462, 7
  %v8464 = vsub.s32 %v8461, %v8463
  %v8465 = vrot.slane %v8128, %v8464
  %vm8466 = vcmask 917312
  %v8467 = vsel %vm8466, %v8465, %v8460
  %v8468 = vadd.s32 %v8372, 4294967184
  %v8469 = vlaneseq
  %v8470 = vshrl.u32 %v8469, 7
  %v8471 = vsub.s32 %v8468, %v8470
  %v8472 = vrot.slane %v8129, %v8471
  %vm8473 = vcmask 982912
  %v8474 = vsel %vm8473, %v8472, %v8467
  %v8475 = vadd.s32 %v8372, 4294967176
  %v8476 = vlaneseq
  %v8477 = vshrl.u32 %v8476, 7
  %v8478 = vsub.s32 %v8475, %v8477
  %v8479 = vrot.slane %v8130, %v8478
  %vm8480 = vcmask 1048512
  %v8481 = vsel %vm8480, %v8479, %v8474
  %v8482 = vlaneseq
  %v8483 = vshrl.u32 %v8482, 7
  %v8484 = vsub.s32 %v8372, %v8483
  %v8485 = vrot.slane %v8131, %v8484
  %v8486 = vlaneseq
  %v8487 = vshrl.u32 %v8486, 7
  %v8488 = vsub.s32 %v8377, %v8487
  %v8489 = vrot.slane %v8132, %v8488
  %v8490 = vsel %vm8382, %v8489, %v8485
  %v8491 = vlaneseq
  %v8492 = vshrl.u32 %v8491, 7
  %v8493 = vsub.s32 %v8384, %v8492
  %v8494 = vrot.slane %v8133, %v8493
  %v8495 = vsel %vm8389, %v8494, %v8490
  %v8496 = vlaneseq
  %v8497 = vshrl.u32 %v8496, 7
  %v8498 = vsub.s32 %v8391, %v8497
  %v8499 = vrot.slane %v8134, %v8498
  %v8500 = vsel %vm8396, %v8499, %v8495
  %v8501 = vlaneseq
  %v8502 = vshrl.u32 %v8501, 7
  %v8503 = vsub.s32 %v8398, %v8502
  %v8504 = vrot.slane %v8135, %v8503
  %v8505 = vsel %vm8403, %v8504, %v8500
  %v8506 = vlaneseq
  %v8507 = vshrl.u32 %v8506, 7
  %v8508 = vsub.s32 %v8405, %v8507
  %v8509 = vrot.slane %v8136, %v8508
  %v8510 = vsel %vm8410, %v8509, %v8505
  %v8511 = vlaneseq
  %v8512 = vshrl.u32 %v8511, 7
  %v8513 = vsub.s32 %v8412, %v8512
  %v8514 = vrot.slane %v8137, %v8513
  %v8515 = vsel %vm8417, %v8514, %v8510
  %v8516 = vlaneseq
  %v8517 = vshrl.u32 %v8516, 7
  %v8518 = vsub.s32 %v8419, %v8517
  %v8519 = vrot.slane %v8138, %v8518
  %v8520 = vsel %vm8424, %v8519, %v8515
  %v8521 = vlaneseq
  %v8522 = vshrl.u32 %v8521, 7
  %v8523 = vsub.s32 %v8426, %v8522
  %v8524 = vrot.slane %v8139, %v8523
  %v8525 = vsel %vm8431, %v8524, %v8520
  %v8526 = vlaneseq
  %v8527 = vshrl.u32 %v8526, 7
  %v8528 = vsub.s32 %v8433, %v8527
  %v8529 = vrot.slane %v8140, %v8528
  %v8530 = vsel %vm8438, %v8529, %v8525
  %v8531 = vlaneseq
  %v8532 = vshrl.u32 %v8531, 7
  %v8533 = vsub.s32 %v8440, %v8532
  %v8534 = vrot.slane %v8141, %v8533
  %v8535 = vsel %vm8445, %v8534, %v8530
  %v8536 = vlaneseq
  %v8537 = vshrl.u32 %v8536, 7
  %v8538 = vsub.s32 %v8447, %v8537
  %v8539 = vrot.slane %v8142, %v8538
  %v8540 = vsel %vm8452, %v8539, %v8535
  %v8541 = vlaneseq
  %v8542 = vshrl.u32 %v8541, 7
  %v8543 = vsub.s32 %v8454, %v8542
  %v8544 = vrot.slane %v8143, %v8543
  %v8545 = vsel %vm8459, %v8544, %v8540
  %v8546 = vlaneseq
  %v8547 = vshrl.u32 %v8546, 7
  %v8548 = vsub.s32 %v8461, %v8547
  %v8549 = vrot.slane %v8144, %v8548
  %v8550 = vsel %vm8466, %v8549, %v8545
  %v8551 = vlaneseq
  %v8552 = vshrl.u32 %v8551, 7
  %v8553 = vsub.s32 %v8468, %v8552
  %v8554 = vrot.slane %v8145, %v8553
  %v8555 = vsel %vm8473, %v8554, %v8550
  %v8556 = vlaneseq
  %v8557 = vshrl.u32 %v8556, 7
  %v8558 = vsub.s32 %v8475, %v8557
  %v8559 = vrot.slane %v8146, %v8558
  %v8560 = vsel %vm8480, %v8559, %v8555
  %v8561 = vlaneseq
  %v8562 = vshrl.u32 %v8561, 7
  %v8563 = vsub.s32 %v8372, %v8562
  %v8564 = vrot.slane %v8147, %v8563
  %v8565 = vlaneseq
  %v8566 = vshrl.u32 %v8565, 7
  %v8567 = vsub.s32 %v8377, %v8566
  %v8568 = vrot.slane %v8148, %v8567
  %v8569 = vsel %vm8382, %v8568, %v8564
  %v8570 = vlaneseq
  %v8571 = vshrl.u32 %v8570, 7
  %v8572 = vsub.s32 %v8384, %v8571
  %v8573 = vrot.slane %v8149, %v8572
  %v8574 = vsel %vm8389, %v8573, %v8569
  %v8575 = vlaneseq
  %v8576 = vshrl.u32 %v8575, 7
  %v8577 = vsub.s32 %v8391, %v8576
  %v8578 = vrot.slane %v8150, %v8577
  %v8579 = vsel %vm8396, %v8578, %v8574
  %v8580 = vlaneseq
  %v8581 = vshrl.u32 %v8580, 7
  %v8582 = vsub.s32 %v8398, %v8581
  %v8583 = vrot.slane %v8151, %v8582
  %v8584 = vsel %vm8403, %v8583, %v8579
  %v8585 = vlaneseq
  %v8586 = vshrl.u32 %v8585, 7
  %v8587 = vsub.s32 %v8405, %v8586
  %v8588 = vrot.slane %v8152, %v8587
  %v8589 = vsel %vm8410, %v8588, %v8584
  %v8590 = vlaneseq
  %v8591 = vshrl.u32 %v8590, 7
  %v8592 = vsub.s32 %v8412, %v8591
  %v8593 = vrot.slane %v8153, %v8592
  %v8594 = vsel %vm8417, %v8593, %v8589
  %v8595 = vlaneseq
  %v8596 = vshrl.u32 %v8595, 7
  %v8597 = vsub.s32 %v8419, %v8596
  %v8598 = vrot.slane %v8154, %v8597
  %v8599 = vsel %vm8424, %v8598, %v8594
  %v8600 = vlaneseq
  %v8601 = vshrl.u32 %v8600, 7
  %v8602 = vsub.s32 %v8426, %v8601
  %v8603 = vrot.slane %v8155, %v8602
  %v8604 = vsel %vm8431, %v8603, %v8599
  %v8605 = vlaneseq
  %v8606 = vshrl.u32 %v8605, 7
  %v8607 = vsub.s32 %v8433, %v8606
  %v8608 = vrot.slane %v8156, %v8607
  %v8609 = vsel %vm8438, %v8608, %v8604
  %v8610 = vlaneseq
  %v8611 = vshrl.u32 %v8610, 7
  %v8612 = vsub.s32 %v8440, %v8611
  %v8613 = vrot.slane %v8157, %v8612
  %v8614 = vsel %vm8445, %v8613, %v8609
  %v8615 = vlaneseq
  %v8616 = vshrl.u32 %v8615, 7
  %v8617 = vsub.s32 %v8447, %v8616
  %v8618 = vrot.slane %v8158, %v8617
  %v8619 = vsel %vm8452, %v8618, %v8614
  %v8620 = vlaneseq
  %v8621 = vshrl.u32 %v8620, 7
  %v8622 = vsub.s32 %v8454, %v8621
  %v8623 = vrot.slane %v8159, %v8622
  %v8624 = vsel %vm8459, %v8623, %v8619
  %v8625 = vlaneseq
  %v8626 = vshrl.u32 %v8625, 7
  %v8627 = vsub.s32 %v8461, %v8626
  %v8628 = vrot.slane %v8160, %v8627
  %v8629 = vsel %vm8466, %v8628, %v8624
  %v8630 = vlaneseq
  %v8631 = vshrl.u32 %v8630, 7
  %v8632 = vsub.s32 %v8468, %v8631
  %v8633 = vrot.slane %v8161, %v8632
  %v8634 = vsel %vm8473, %v8633, %v8629
  %v8635 = vlaneseq
  %v8636 = vshrl.u32 %v8635, 7
  %v8637 = vsub.s32 %v8475, %v8636
  %v8638 = vrot.slane %v8162, %v8637
  %v8639 = vsel %vm8480, %v8638, %v8634
  %v8640 = vlaneseq
  %v8641 = vshrl.u32 %v8640, 7
  %v8642 = vsub.s32 %v8372, %v8641
  %v8643 = vrot.slane %v8163, %v8642
  %v8644 = vlaneseq
  %v8645 = vshrl.u32 %v8644, 7
  %v8646 = vsub.s32 %v8377, %v8645
  %v8647 = vrot.slane %v8164, %v8646
  %v8648 = vsel %vm8382, %v8647, %v8643
  %v8649 = vlaneseq
  %v8650 = vshrl.u32 %v8649, 7
  %v8651 = vsub.s32 %v8384, %v8650
  %v8652 = vrot.slane %v8165, %v8651
  %v8653 = vsel %vm8389, %v8652, %v8648
  %v8654 = vlaneseq
  %v8655 = vshrl.u32 %v8654, 7
  %v8656 = vsub.s32 %v8391, %v8655
  %v8657 = vrot.slane %v8166, %v8656
  %v8658 = vsel %vm8396, %v8657, %v8653
  %v8659 = vlaneseq
  %v8660 = vshrl.u32 %v8659, 7
  %v8661 = vsub.s32 %v8398, %v8660
  %v8662 = vrot.slane %v8167, %v8661
  %v8663 = vsel %vm8403, %v8662, %v8658
  %v8664 = vlaneseq
  %v8665 = vshrl.u32 %v8664, 7
  %v8666 = vsub.s32 %v8405, %v8665
  %v8667 = vrot.slane %v8168, %v8666
  %v8668 = vsel %vm8410, %v8667, %v8663
  %v8669 = vlaneseq
  %v8670 = vshrl.u32 %v8669, 7
  %v8671 = vsub.s32 %v8412, %v8670
  %v8672 = vrot.slane %v8169, %v8671
  %v8673 = vsel %vm8417, %v8672, %v8668
  %v8674 = vlaneseq
  %v8675 = vshrl.u32 %v8674, 7
  %v8676 = vsub.s32 %v8419, %v8675
  %v8677 = vrot.slane %v8170, %v8676
  %v8678 = vsel %vm8424, %v8677, %v8673
  %v8679 = vlaneseq
  %v8680 = vshrl.u32 %v8679, 7
  %v8681 = vsub.s32 %v8426, %v8680
  %v8682 = vrot.slane %v8171, %v8681
  %v8683 = vsel %vm8431, %v8682, %v8678
  %v8684 = vlaneseq
  %v8685 = vshrl.u32 %v8684, 7
  %v8686 = vsub.s32 %v8433, %v8685
  %v8687 = vrot.slane %v8172, %v8686
  %v8688 = vsel %vm8438, %v8687, %v8683
  %v8689 = vlaneseq
  %v8690 = vshrl.u32 %v8689, 7
  %v8691 = vsub.s32 %v8440, %v8690
  %v8692 = vrot.slane %v8173, %v8691
  %v8693 = vsel %vm8445, %v8692, %v8688
  %v8694 = vlaneseq
  %v8695 = vshrl.u32 %v8694, 7
  %v8696 = vsub.s32 %v8447, %v8695
  %v8697 = vrot.slane %v8174, %v8696
  %v8698 = vsel %vm8452, %v8697, %v8693
  %v8699 = vlaneseq
  %v8700 = vshrl.u32 %v8699, 7
  %v8701 = vsub.s32 %v8454, %v8700
  %v8702 = vrot.slane %v8175, %v8701
  %v8703 = vsel %vm8459, %v8702, %v8698
  %v8704 = vlaneseq
  %v8705 = vshrl.u32 %v8704, 7
  %v8706 = vsub.s32 %v8461, %v8705
  %v8707 = vrot.slane %v8176, %v8706
  %v8708 = vsel %vm8466, %v8707, %v8703
  %v8709 = vlaneseq
  %v8710 = vshrl.u32 %v8709, 7
  %v8711 = vsub.s32 %v8468, %v8710
  %v8712 = vrot.slane %v8177, %v8711
  %v8713 = vsel %vm8473, %v8712, %v8708
  %v8714 = vlaneseq
  %v8715 = vshrl.u32 %v8714, 7
  %v8716 = vsub.s32 %v8475, %v8715
  %v8717 = vrot.slane %v8178, %v8716
  %v8718 = vsel %vm8480, %v8717, %v8713
  %v8719 = vlaneseq
  %v8720 = vshrl.u32 %v8719, 7
  %v8721 = vsub.s32 %v8372, %v8720
  %v8722 = vrot.slane %v8179, %v8721
  %v8723 = vlaneseq
  %v8724 = vshrl.u32 %v8723, 7
  %v8725 = vsub.s32 %v8377, %v8724
  %v8726 = vrot.slane %v8180, %v8725
  %v8727 = vsel %vm8382, %v8726, %v8722
  %v8728 = vlaneseq
  %v8729 = vshrl.u32 %v8728, 7
  %v8730 = vsub.s32 %v8384, %v8729
  %v8731 = vrot.slane %v8181, %v8730
  %v8732 = vsel %vm8389, %v8731, %v8727
  %v8733 = vlaneseq
  %v8734 = vshrl.u32 %v8733, 7
  %v8735 = vsub.s32 %v8391, %v8734
  %v8736 = vrot.slane %v8182, %v8735
  %v8737 = vsel %vm8396, %v8736, %v8732
  %v8738 = vlaneseq
  %v8739 = vshrl.u32 %v8738, 7
  %v8740 = vsub.s32 %v8398, %v8739
  %v8741 = vrot.slane %v8183, %v8740
  %v8742 = vsel %vm8403, %v8741, %v8737
  %v8743 = vlaneseq
  %v8744 = vshrl.u32 %v8743, 7
  %v8745 = vsub.s32 %v8405, %v8744
  %v8746 = vrot.slane %v8184, %v8745
  %v8747 = vsel %vm8410, %v8746, %v8742
  %v8748 = vlaneseq
  %v8749 = vshrl.u32 %v8748, 7
  %v8750 = vsub.s32 %v8412, %v8749
  %v8751 = vrot.slane %v8185, %v8750
  %v8752 = vsel %vm8417, %v8751, %v8747
  %v8753 = vlaneseq
  %v8754 = vshrl.u32 %v8753, 7
  %v8755 = vsub.s32 %v8419, %v8754
  %v8756 = vrot.slane %v8186, %v8755
  %v8757 = vsel %vm8424, %v8756, %v8752
  %v8758 = vlaneseq
  %v8759 = vshrl.u32 %v8758, 7
  %v8760 = vsub.s32 %v8426, %v8759
  %v8761 = vrot.slane %v8187, %v8760
  %v8762 = vsel %vm8431, %v8761, %v8757
  %v8763 = vlaneseq
  %v8764 = vshrl.u32 %v8763, 7
  %v8765 = vsub.s32 %v8433, %v8764
  %v8766 = vrot.slane %v8188, %v8765
  %v8767 = vsel %vm8438, %v8766, %v8762
  %v8768 = vlaneseq
  %v8769 = vshrl.u32 %v8768, 7
  %v8770 = vsub.s32 %v8440, %v8769
  %v8771 = vrot.slane %v8189, %v8770
  %v8772 = vsel %vm8445, %v8771, %v8767
  %v8773 = vlaneseq
  %v8774 = vshrl.u32 %v8773, 7
  %v8775 = vsub.s32 %v8447, %v8774
  %v8776 = vrot.slane %v8190, %v8775
  %v8777 = vsel %vm8452, %v8776, %v8772
  %v8778 = vlaneseq
  %v8779 = vshrl.u32 %v8778, 7
  %v8780 = vsub.s32 %v8454, %v8779
  %v8781 = vrot.slane %v8191, %v8780
  %v8782 = vsel %vm8459, %v8781, %v8777
  %v8783 = vlaneseq
  %v8784 = vshrl.u32 %v8783, 7
  %v8785 = vsub.s32 %v8461, %v8784
  %v8786 = vrot.slane %v8192, %v8785
  %v8787 = vsel %vm8466, %v8786, %v8782
  %v8788 = vlaneseq
  %v8789 = vshrl.u32 %v8788, 7
  %v8790 = vsub.s32 %v8468, %v8789
  %v8791 = vrot.slane %v8193, %v8790
  %v8792 = vsel %vm8473, %v8791, %v8787
  %v8793 = vlaneseq
  %v8794 = vshrl.u32 %v8793, 7
  %v8795 = vsub.s32 %v8475, %v8794
  %v8796 = vrot.slane %v8194, %v8795
  %v8797 = vsel %vm8480, %v8796, %v8792
  %v8798 = vlaneseq
  %v8799 = vshrl.u32 %v8798, 7
  %v8800 = vsub.s32 %v8372, %v8799
  %v8801 = vrot.slane %v8195, %v8800
  %v8802 = vlaneseq
  %v8803 = vshrl.u32 %v8802, 7
  %v8804 = vsub.s32 %v8377, %v8803
  %v8805 = vrot.slane %v8196, %v8804
  %v8806 = vsel %vm8382, %v8805, %v8801
  %v8807 = vlaneseq
  %v8808 = vshrl.u32 %v8807, 7
  %v8809 = vsub.s32 %v8384, %v8808
  %v8810 = vrot.slane %v8197, %v8809
  %v8811 = vsel %vm8389, %v8810, %v8806
  %v8812 = vlaneseq
  %v8813 = vshrl.u32 %v8812, 7
  %v8814 = vsub.s32 %v8391, %v8813
  %v8815 = vrot.slane %v8198, %v8814
  %v8816 = vsel %vm8396, %v8815, %v8811
  %v8817 = vlaneseq
  %v8818 = vshrl.u32 %v8817, 7
  %v8819 = vsub.s32 %v8398, %v8818
  %v8820 = vrot.slane %v8199, %v8819
  %v8821 = vsel %vm8403, %v8820, %v8816
  %v8822 = vlaneseq
  %v8823 = vshrl.u32 %v8822, 7
  %v8824 = vsub.s32 %v8405, %v8823
  %v8825 = vrot.slane %v8200, %v8824
  %v8826 = vsel %vm8410, %v8825, %v8821
  %v8827 = vlaneseq
  %v8828 = vshrl.u32 %v8827, 7
  %v8829 = vsub.s32 %v8412, %v8828
  %v8830 = vrot.slane %v8201, %v8829
  %v8831 = vsel %vm8417, %v8830, %v8826
  %v8832 = vlaneseq
  %v8833 = vshrl.u32 %v8832, 7
  %v8834 = vsub.s32 %v8419, %v8833
  %v8835 = vrot.slane %v8202, %v8834
  %v8836 = vsel %vm8424, %v8835, %v8831
  %v8837 = vlaneseq
  %v8838 = vshrl.u32 %v8837, 7
  %v8839 = vsub.s32 %v8426, %v8838
  %v8840 = vrot.slane %v8203, %v8839
  %v8841 = vsel %vm8431, %v8840, %v8836
  %v8842 = vlaneseq
  %v8843 = vshrl.u32 %v8842, 7
  %v8844 = vsub.s32 %v8433, %v8843
  %v8845 = vrot.slane %v8204, %v8844
  %v8846 = vsel %vm8438, %v8845, %v8841
  %v8847 = vlaneseq
  %v8848 = vshrl.u32 %v8847, 7
  %v8849 = vsub.s32 %v8440, %v8848
  %v8850 = vrot.slane %v8205, %v8849
  %v8851 = vsel %vm8445, %v8850, %v8846
  %v8852 = vlaneseq
  %v8853 = vshrl.u32 %v8852, 7
  %v8854 = vsub.s32 %v8447, %v8853
  %v8855 = vrot.slane %v8206, %v8854
  %v8856 = vsel %vm8452, %v8855, %v8851
  %v8857 = vlaneseq
  %v8858 = vshrl.u32 %v8857, 7
  %v8859 = vsub.s32 %v8454, %v8858
  %v8860 = vrot.slane %v8207, %v8859
  %v8861 = vsel %vm8459, %v8860, %v8856
  %v8862 = vlaneseq
  %v8863 = vshrl.u32 %v8862, 7
  %v8864 = vsub.s32 %v8461, %v8863
  %v8865 = vrot.slane %v8208, %v8864
  %v8866 = vsel %vm8466, %v8865, %v8861
  %v8867 = vlaneseq
  %v8868 = vshrl.u32 %v8867, 7
  %v8869 = vsub.s32 %v8468, %v8868
  %v8870 = vrot.slane %v8209, %v8869
  %v8871 = vsel %vm8473, %v8870, %v8866
  %v8872 = vlaneseq
  %v8873 = vshrl.u32 %v8872, 7
  %v8874 = vsub.s32 %v8475, %v8873
  %v8875 = vrot.slane %v8210, %v8874
  %v8876 = vsel %vm8480, %v8875, %v8871
  %v8877 = vlaneseq
  %v8878 = vshrl.u32 %v8877, 7
  %v8879 = vsub.s32 %v8372, %v8878
  %v8880 = vrot.slane %v8211, %v8879
  %v8881 = vlaneseq
  %v8882 = vshrl.u32 %v8881, 7
  %v8883 = vsub.s32 %v8377, %v8882
  %v8884 = vrot.slane %v8212, %v8883
  %v8885 = vsel %vm8382, %v8884, %v8880
  %v8886 = vlaneseq
  %v8887 = vshrl.u32 %v8886, 7
  %v8888 = vsub.s32 %v8384, %v8887
  %v8889 = vrot.slane %v8213, %v8888
  %v8890 = vsel %vm8389, %v8889, %v8885
  %v8891 = vlaneseq
  %v8892 = vshrl.u32 %v8891, 7
  %v8893 = vsub.s32 %v8391, %v8892
  %v8894 = vrot.slane %v8214, %v8893
  %v8895 = vsel %vm8396, %v8894, %v8890
  %v8896 = vlaneseq
  %v8897 = vshrl.u32 %v8896, 7
  %v8898 = vsub.s32 %v8398, %v8897
  %v8899 = vrot.slane %v8215, %v8898
  %v8900 = vsel %vm8403, %v8899, %v8895
  %v8901 = vlaneseq
  %v8902 = vshrl.u32 %v8901, 7
  %v8903 = vsub.s32 %v8405, %v8902
  %v8904 = vrot.slane %v8216, %v8903
  %v8905 = vsel %vm8410, %v8904, %v8900
  %v8906 = vlaneseq
  %v8907 = vshrl.u32 %v8906, 7
  %v8908 = vsub.s32 %v8412, %v8907
  %v8909 = vrot.slane %v8217, %v8908
  %v8910 = vsel %vm8417, %v8909, %v8905
  %v8911 = vlaneseq
  %v8912 = vshrl.u32 %v8911, 7
  %v8913 = vsub.s32 %v8419, %v8912
  %v8914 = vrot.slane %v8218, %v8913
  %v8915 = vsel %vm8424, %v8914, %v8910
  %v8916 = vlaneseq
  %v8917 = vshrl.u32 %v8916, 7
  %v8918 = vsub.s32 %v8426, %v8917
  %v8919 = vrot.slane %v8219, %v8918
  %v8920 = vsel %vm8431, %v8919, %v8915
  %v8921 = vlaneseq
  %v8922 = vshrl.u32 %v8921, 7
  %v8923 = vsub.s32 %v8433, %v8922
  %v8924 = vrot.slane %v8220, %v8923
  %v8925 = vsel %vm8438, %v8924, %v8920
  %v8926 = vlaneseq
  %v8927 = vshrl.u32 %v8926, 7
  %v8928 = vsub.s32 %v8440, %v8927
  %v8929 = vrot.slane %v8221, %v8928
  %v8930 = vsel %vm8445, %v8929, %v8925
  %v8931 = vlaneseq
  %v8932 = vshrl.u32 %v8931, 7
  %v8933 = vsub.s32 %v8447, %v8932
  %v8934 = vrot.slane %v8222, %v8933
  %v8935 = vsel %vm8452, %v8934, %v8930
  %v8936 = vlaneseq
  %v8937 = vshrl.u32 %v8936, 7
  %v8938 = vsub.s32 %v8454, %v8937
  %v8939 = vrot.slane %v8223, %v8938
  %v8940 = vsel %vm8459, %v8939, %v8935
  %v8941 = vlaneseq
  %v8942 = vshrl.u32 %v8941, 7
  %v8943 = vsub.s32 %v8461, %v8942
  %v8944 = vrot.slane %v8224, %v8943
  %v8945 = vsel %vm8466, %v8944, %v8940
  %v8946 = vlaneseq
  %v8947 = vshrl.u32 %v8946, 7
  %v8948 = vsub.s32 %v8468, %v8947
  %v8949 = vrot.slane %v8225, %v8948
  %v8950 = vsel %vm8473, %v8949, %v8945
  %v8951 = vlaneseq
  %v8952 = vshrl.u32 %v8951, 7
  %v8953 = vsub.s32 %v8475, %v8952
  %v8954 = vrot.slane %v8226, %v8953
  %v8955 = vsel %vm8480, %v8954, %v8950
  %v8956 = vlaneseq
  %v8957 = vshrl.u32 %v8956, 7
  %v8958 = vsub.s32 %v8372, %v8957
  %v8959 = vrot.slane %v8227, %v8958
  %v8960 = vlaneseq
  %v8961 = vshrl.u32 %v8960, 7
  %v8962 = vsub.s32 %v8377, %v8961
  %v8963 = vrot.slane %v8228, %v8962
  %v8964 = vsel %vm8382, %v8963, %v8959
  %v8965 = vlaneseq
  %v8966 = vshrl.u32 %v8965, 7
  %v8967 = vsub.s32 %v8384, %v8966
  %v8968 = vrot.slane %v8229, %v8967
  %v8969 = vsel %vm8389, %v8968, %v8964
  %v8970 = vlaneseq
  %v8971 = vshrl.u32 %v8970, 7
  %v8972 = vsub.s32 %v8391, %v8971
  %v8973 = vrot.slane %v8230, %v8972
  %v8974 = vsel %vm8396, %v8973, %v8969
  %v8975 = vlaneseq
  %v8976 = vshrl.u32 %v8975, 7
  %v8977 = vsub.s32 %v8398, %v8976
  %v8978 = vrot.slane %v8231, %v8977
  %v8979 = vsel %vm8403, %v8978, %v8974
  %v8980 = vlaneseq
  %v8981 = vshrl.u32 %v8980, 7
  %v8982 = vsub.s32 %v8405, %v8981
  %v8983 = vrot.slane %v8232, %v8982
  %v8984 = vsel %vm8410, %v8983, %v8979
  %v8985 = vlaneseq
  %v8986 = vshrl.u32 %v8985, 7
  %v8987 = vsub.s32 %v8412, %v8986
  %v8988 = vrot.slane %v8233, %v8987
  %v8989 = vsel %vm8417, %v8988, %v8984
  %v8990 = vlaneseq
  %v8991 = vshrl.u32 %v8990, 7
  %v8992 = vsub.s32 %v8419, %v8991
  %v8993 = vrot.slane %v8234, %v8992
  %v8994 = vsel %vm8424, %v8993, %v8989
  %v8995 = vlaneseq
  %v8996 = vshrl.u32 %v8995, 7
  %v8997 = vsub.s32 %v8426, %v8996
  %v8998 = vrot.slane %v8235, %v8997
  %v8999 = vsel %vm8431, %v8998, %v8994
  %v9000 = vlaneseq
  %v9001 = vshrl.u32 %v9000, 7
  %v9002 = vsub.s32 %v8433, %v9001
  %v9003 = vrot.slane %v8236, %v9002
  %v9004 = vsel %vm8438, %v9003, %v8999
  %v9005 = vlaneseq
  %v9006 = vshrl.u32 %v9005, 7
  %v9007 = vsub.s32 %v8440, %v9006
  %v9008 = vrot.slane %v8237, %v9007
  %v9009 = vsel %vm8445, %v9008, %v9004
  %v9010 = vlaneseq
  %v9011 = vshrl.u32 %v9010, 7
  %v9012 = vsub.s32 %v8447, %v9011
  %v9013 = vrot.slane %v8238, %v9012
  %v9014 = vsel %vm8452, %v9013, %v9009
  %v9015 = vlaneseq
  %v9016 = vshrl.u32 %v9015, 7
  %v9017 = vsub.s32 %v8454, %v9016
  %v9018 = vrot.slane %v8239, %v9017
  %v9019 = vsel %vm8459, %v9018, %v9014
  %v9020 = vlaneseq
  %v9021 = vshrl.u32 %v9020, 7
  %v9022 = vsub.s32 %v8461, %v9021
  %v9023 = vrot.slane %v8240, %v9022
  %v9024 = vsel %vm8466, %v9023, %v9019
  %v9025 = vlaneseq
  %v9026 = vshrl.u32 %v9025, 7
  %v9027 = vsub.s32 %v8468, %v9026
  %v9028 = vrot.slane %v8241, %v9027
  %v9029 = vsel %vm8473, %v9028, %v9024
  %v9030 = vlaneseq
  %v9031 = vshrl.u32 %v9030, 7
  %v9032 = vsub.s32 %v8475, %v9031
  %v9033 = vrot.slane %v8242, %v9032
  %v9034 = vsel %vm8480, %v9033, %v9029
  %vm9035 = vcmask 1041409
  %v9036 = vsel %vm9035, %v8560, %v8481
  %vm9037 = vcmask 1042434
  %v9038 = vsel %vm9037, %v8639, %v9036
  %vm9039 = vcmask 1043459
  %v9040 = vsel %vm9039, %v8718, %v9038
  %vm9041 = vcmask 1044484
  %v9042 = vsel %vm9041, %v8797, %v9040
  %vm9043 = vcmask 1045509
  %v9044 = vsel %vm9043, %v8876, %v9042
  %vm9045 = vcmask 1046534
  %v9046 = vsel %vm9045, %v8955, %v9044
  %vm9047 = vcmask 1047559
  %v9048 = vsel %vm9047, %v9034, %v9046
  %9050 = vst [vmem:[%s7] sm:$0xff] %v9048
  // Predicated region
  $region30: #{_decoder_forward_impl.1} parent=0 // pred_check
    _
  $region31: #{_decoder_forward_impl.1} parent=0 // pred_check_branch
    %9052 = sbr.rel (0) target = $region33
  $region32: #{_decoder_forward_impl.1} parent=0 // pred_region
    _
  $region33: #{_decoder_forward_impl.1} parent=0 // pred_fallthru
    _
  // Predicated region
  $region34: #{_decoder_forward_impl.1} parent=0 // pred_check
    _
  $region35: #{_decoder_forward_impl.1} parent=0 // pred_check_branch
    %9054 = sbr.rel (0) target = $region37
  $region36: #{_decoder_forward_impl.1} parent=0 // pred_region
    _
  $region37: #{_decoder_forward_impl.1} parent=0 // pred_fallthru
    _

</llo_original>
